<compile_context>
chip_gen: v7x
topology: tpu7x:2x2x1
jax: 0.10.0
libtpu: 0.0.40
codegen_flags: <defaults>
</compile_context>

<pallas_src>
import functools

import jax
import jax.numpy as jnp
from jax import lax
from jax.experimental import pallas as pl
from jax.experimental.pallas import tpu as pltpu

FEAT_DIM = 2048      # resnet152 fc.in_features
HID_DIM = 512
CNN_OUT_DIM = 256
DROP_PROB = 0.3
BN_EPS = 1e-5
KPAD = 128           # 3*3*3 = 27 patch dim, zero-padded to one full lane tile


# ----------------------------------------------------------------------------
# Kernel 1: frozen feature extractor (conv-as-matmul + ReLU + global avg pool)
# Grid = (frames // NB, FEAT // TF).  Pooling is expressed as a small matmul so
# no in-kernel reshape of the (NB*HW, TF) activation slab is needed.
# ----------------------------------------------------------------------------
def _conv_pool_kernel(p_ref, w_ref, b_ref, o_ref, *, nb, hw):
    # p_ref: (nb*hw, KPAD) bf16   w_ref: (KPAD, TF) bf16
    # b_ref: (1, TF) f32          o_ref: (nb, TF) bf16
    acts = jnp.dot(p_ref[...], w_ref[...], preferred_element_type=jnp.float32)
    acts = jnp.maximum(acts + b_ref[...], 0.0)                      # (nb*hw, TF)

    # Per-frame global average pool via a (nb, nb*hw) pooling matrix.
    nrow = nb * hw
    r = lax.broadcasted_iota(jnp.int32, (nb, nrow), 0)
    c = lax.broadcasted_iota(jnp.int32, (nb, nrow), 1)
    pool = jnp.logical_and(c >= r * hw, c < (r + 1) * hw).astype(jnp.float32)
    pool = pool * (1.0 / hw)
    out = jnp.dot(pool, acts, preferred_element_type=jnp.float32)   # (nb, TF)
    o_ref[...] = out.astype(o_ref.dtype)


def conv_pool(patches_flat, w, b, *, nb, hw, tf):
    # patches_flat: (N*hw, KPAD) bf16 -> (N, FEAT) bf16
    nrows, kp = patches_flat.shape
    n = nrows // hw
    feat = w.shape[1]
    assert n % nb == 0 and feat % tf == 0
    kernel = functools.partial(_conv_pool_kernel, nb=nb, hw=hw)
    return pl.pallas_call(
        kernel,
        out_shape=jax.ShapeDtypeStruct((n, feat), jnp.bfloat16),
        grid_spec=pltpu.PrefetchScalarGridSpec(
            num_scalar_prefetch=0,
            grid=(n // nb, feat // tf),
            in_specs=[
                pl.BlockSpec((nb * hw, kp), lambda i, j: (i, 0)),
                pl.BlockSpec((kp, tf), lambda i, j: (0, j)),
                pl.BlockSpec((1, tf), lambda i, j: (0, j)),
            ],
            out_specs=pl.BlockSpec((nb, tf), lambda i, j: (i, j)),
        ),
        compiler_params=pltpu.CompilerParams(
            dimension_semantics=("parallel", "parallel")),
    )(patches_flat, w, b)


# ----------------------------------------------------------------------------
# Kernel 2: fused FC head over all time steps.
# x rows are t-major: row = t*B + b.  BN statistics are computed per t over the
# B rows of that t using small group-averaging / broadcast matmuls.
# ----------------------------------------------------------------------------
def _fc_head_kernel(x_ref, w1_ref, w2_ref, w3_ref, bn_ref, mask_ref, o_ref,
                    *, tt, bsz):
    rows = tt * bsz
    bn = bn_ref[...]                              # (8, HID) f32
    b1, g1, be1 = bn[0:1, :], bn[1:2, :], bn[2:3, :]
    b2, g2, be2 = bn[3:4, :], bn[4:5, :], bn[5:6, :]
    b3 = bn[6:7, :CNN_OUT_DIM]                    # (1, OUT)

    # Per-time-step group matrices (time step t owns rows [t*bsz, (t+1)*bsz)).
    t_i = lax.broadcasted_iota(jnp.int32, (tt, rows), 0)
    r_i = lax.broadcasted_iota(jnp.int32, (tt, rows), 1)
    avg = jnp.logical_and(r_i >= t_i * bsz, r_i < (t_i + 1) * bsz)
    avg = avg.astype(jnp.float32) * (1.0 / bsz)                   # (tt, rows)
    r2 = lax.broadcasted_iota(jnp.int32, (rows, tt), 0)
    t2 = lax.broadcasted_iota(jnp.int32, (rows, tt), 1)
    bcast = jnp.logical_and(r2 >= t2 * bsz, r2 < (t2 + 1) * bsz)
    bcast = bcast.astype(jnp.float32)                             # (rows, tt)

    def linear_bn_relu(h_bf16, w_r, bias, gamma, beta):
        h = jnp.dot(h_bf16, w_r[...], preferred_element_type=jnp.float32) + bias
        mu = jnp.dot(avg, h, preferred_element_type=jnp.float32)          # (tt, HID)
        ex2 = jnp.dot(avg, h * h, preferred_element_type=jnp.float32)
        var = jnp.maximum(ex2 - mu * mu, 0.0)         # biased var = train-mode BN
        mu_f = jnp.dot(bcast, mu, preferred_element_type=jnp.float32)     # (rows, HID)
        var_f = jnp.dot(bcast, var, preferred_element_type=jnp.float32)
        h = (h - mu_f) * lax.rsqrt(var_f + BN_EPS) * gamma + beta
        return jnp.maximum(h, 0.0)

    h1 = linear_bn_relu(x_ref[...], w1_ref, b1, g1, be1)           # f32 (rows, HID)
    h2 = linear_bn_relu(h1.astype(jnp.bfloat16), w2_ref, b2, g2, be2)
    h2 = h2 * mask_ref[...]                                        # dropout (inverted scale)
    o_ref[...] = jnp.dot(h2.astype(jnp.bfloat16), w3_ref[...],
                         preferred_element_type=jnp.float32) + b3


def fc_head(x_tbf, w1, w2, w3, bn_pack, mask, *, t, bsz, tt):
    rows_total = t * bsz
    assert t % tt == 0
    kernel = functools.partial(_fc_head_kernel, tt=tt, bsz=bsz)
    return pl.pallas_call(
        kernel,
        out_shape=jax.ShapeDtypeStruct((rows_total, CNN_OUT_DIM), jnp.float32),
        grid_spec=pltpu.PrefetchScalarGridSpec(
            num_scalar_prefetch=0,
            grid=(t // tt,),
            in_specs=[
                pl.BlockSpec((tt * bsz, FEAT_DIM), lambda i: (i, 0)),
                pl.BlockSpec((FEAT_DIM, HID_DIM), lambda i: (0, 0)),
                pl.BlockSpec((HID_DIM, HID_DIM), lambda i: (0, 0)),
                pl.BlockSpec((HID_DIM, CNN_OUT_DIM), lambda i: (0, 0)),
                pl.BlockSpec((8, HID_DIM), lambda i: (0, 0)),
                pl.BlockSpec((tt * bsz, HID_DIM), lambda i: (i, 0)),
            ],
            out_specs=pl.BlockSpec((tt * bsz, CNN_OUT_DIM), lambda i: (i, 0)),
        ),
        compiler_params=pltpu.CompilerParams(
            dimension_semantics=("parallel",)),
    )(x_tbf, w1, w2, w3, bn_pack, mask)


# ----------------------------------------------------------------------------
# Plain-JAX glue
# ----------------------------------------------------------------------------
def im2col_3x3(x):
    # x: (N, Cin, H, W), 3x3 kernel, stride 1, pad 1 -> (N*H*W, Cin*9)
    n, c, h, w = x.shape
    xp = jnp.pad(x, ((0, 0), (0, 0), (1, 1), (1, 1)))
    cols = []
    for dy in range(3):
        for dx in range(3):
            cols.append(xp[:, :, dy:dy + h, dx:dx + w])
    patches = jnp.stack(cols, axis=2)                   # (N, C, 9, H, W)
    patches = patches.transpose(0, 3, 4, 1, 2)          # (N, H, W, C, 9)
    return patches.reshape(n * h * w, c * 9)


def cnn_encoder_forward(x_3d, params):
    # x_3d: (B, T, 3, H, W) -> (B, T, CNN_OUT_DIM)
    bsz, t, cin, h, w = x_3d.shape
    hw = h * w
    n = t * bsz

    # Frames t-major so the conv output is already in (T, B, FEAT) row order.
    frames = jnp.transpose(x_3d, (1, 0, 2, 3, 4)).reshape(n, cin, h, w)
    patches = im2col_3x3(frames)                                         # (N*HW, 27)
    patches = jnp.pad(patches, ((0, 0), (0, KPAD - patches.shape[1])))
    patches = patches.astype(jnp.bfloat16)
    conv_w = jnp.pad(params["conv_w"],
                     ((0, KPAD - params["conv_w"].shape[0]), (0, 0))).astype(jnp.bfloat16)

    nb = max(d for d in (8, 4, 2, 1) if n % d == 0)
    tf = max(d for d in (512, 256, 128) if FEAT_DIM % d == 0)
    feats = conv_pool(patches, conv_w, params["conv_b"],
                      nb=nb, hw=hw, tf=tf)                               # (T*B, FEAT) bf16

    # Dropout(p=0.3), training semantics with inverted scaling.
    # TODO(synk): mask generated host-side with jax.random instead of in-kernel
    # pltpu.prng_* (no interpret-mode lowering for the stateful TPU PRNG).
    keep = jax.random.bernoulli(params["drop_key"], 1.0 - DROP_PROB, (n, HID_DIM))
    mask = keep.astype(jnp.float32) * (1.0 / (1.0 - DROP_PROB))

    (w1, b1, g1, be1, w2, b2, g2, be2, w3, b3) = params["fc"]
    b3p = jnp.pad(b3, ((0, 0), (0, HID_DIM - CNN_OUT_DIM)))
    bn_pack = jnp.concatenate(
        [b1, g1, be1, b2, g2, be2, b3p, jnp.zeros((1, HID_DIM), jnp.float32)], axis=0)

    tt = max(d for d in range(t, 0, -1) if t % d == 0 and d * bsz <= 512)
    out = fc_head(feats, w1.astype(jnp.bfloat16), w2.astype(jnp.bfloat16),
                  w3.astype(jnp.bfloat16), bn_pack, mask,
                  t=t, bsz=bsz, tt=tt)                                   # (T*B, OUT) f32
    return out.reshape(t, bsz, CNN_OUT_DIM).transpose(1, 0, 2)           # (B, T, OUT)


def init_params(key):
    ks = jax.random.split(key, 8)
    f32 = jnp.float32
    conv_w = jax.random.normal(ks[0], (3 * 9, FEAT_DIM), f32) * 0.05
    conv_b = jnp.zeros((1, FEAT_DIM), f32)
    w1 = jax.random.normal(ks[1], (FEAT_DIM, HID_DIM), f32) / jnp.sqrt(f32(FEAT_DIM))
    b1 = jax.random.normal(ks[2], (1, HID_DIM), f32) * 0.01
    g1 = jnp.ones((1, HID_DIM), f32)
    be1 = jnp.zeros((1, HID_DIM), f32)
    w2 = jax.random.normal(ks[3], (HID_DIM, HID_DIM), f32) / jnp.sqrt(f32(HID_DIM))
    b2 = jax.random.normal(ks[4], (1, HID_DIM), f32) * 0.01
    g2 = jnp.ones((1, HID_DIM), f32)
    be2 = jnp.zeros((1, HID_DIM), f32)
    w3 = jax.random.normal(ks[5], (HID_DIM, CNN_OUT_DIM), f32) / jnp.sqrt(f32(HID_DIM))
    b3 = jax.random.normal(ks[6], (1, CNN_OUT_DIM), f32) * 0.01
    return {
        "conv_w": conv_w,
        "conv_b": conv_b,
        "fc": (w1, b1, g1, be1, w2, b2, g2, be2, w3, b3),
        "drop_key": ks[7],
    }


if __name__ == "__main__":
    B, T, H, W = 2, 4, 16, 16
    key = jax.random.PRNGKey(0)
    pkey, xkey = jax.random.split(key)
    params = init_params(pkey)
    x_3d = jax.random.normal(xkey, (B, T, 3, H, W), jnp.float32)

    fwd = jax.jit(cnn_encoder_forward)
    out = fwd(x_3d, params)
    out = jax.block_until_ready(out)

    assert out.shape == (B, T, CNN_OUT_DIM), out.shape
    assert out.dtype == jnp.float32
    assert bool(jnp.all(jnp.isfinite(out)))
    print("KERNEL_OK")
</pallas_src>

<mosaic_0001>
module attributes {stable_mosaic.version = 11 : i64} {
  func.func @_conv_pool_kernel(%arg0: i32, %arg1: i32, %arg2: memref<2048x128xbf16, #tpu.memory_space<vmem>>, %arg3: memref<128x512xbf16, #tpu.memory_space<vmem>>, %arg4: memref<1x512xf32, #tpu.memory_space<vmem>>, %arg5: memref<8x512xbf16, #tpu.memory_space<vmem>>) attributes {dimension_semantics = [#tpu.dimension_semantics<parallel>, #tpu.dimension_semantics<parallel>], iteration_bounds = array<i64: 1, 4>, scalar_prefetch = 0 : i64, scratch_operands = 0 : i64, tpu.core_type = #tpu.core_type<tc>, window_params = [{transform_indices = @transform_0, window_bounds = array<i64: 2048, 128>}, {transform_indices = @transform_1, window_bounds = array<i64: 128, 512>}, {transform_indices = @transform_2, window_bounds = array<i64: 1, 512>}, {transform_indices = @transform_3, window_bounds = array<i64: 8, 512>}]} {
    %c0 = arith.constant 0 : index
    %c0_0 = arith.constant 0 : index
    %0 = vector.load %arg2[%c0, %c0_0] : memref<2048x128xbf16, #tpu.memory_space<vmem>>, vector<2048x128xbf16>
    %c0_1 = arith.constant 0 : index
    %c0_2 = arith.constant 0 : index
    %1 = vector.load %arg3[%c0_1, %c0_2] : memref<128x512xbf16, #tpu.memory_space<vmem>>, vector<128x512xbf16>
    %cst = arith.constant dense<0.000000e+00> : vector<2048x512xf32>
    %2 = tpu.matmul %0, %1, %cst {dimension_numbers = #tpu.dot_dimension_numbers<[1], [0], [0], [1], [0, 0, 1, 1], [], []>} : vector<2048x128xbf16>, vector<128x512xbf16>, vector<2048x512xf32> -> vector<2048x512xf32>
    %c0_3 = arith.constant 0 : index
    %c0_4 = arith.constant 0 : index
    %3 = vector.load %arg4[%c0_3, %c0_4] : memref<1x512xf32, #tpu.memory_space<vmem>>, vector<1x512xf32>
    %4 = vector.broadcast %3 : vector<1x512xf32> to vector<2048x512xf32>
    %5 = arith.addf %2, %4 : vector<2048x512xf32>
    %cst_5 = arith.constant 0.000000e+00 : f32
    %6 = vector.broadcast %cst_5 : f32 to vector<2048x512xf32>
    %7 = arith.maximumf %5, %6 : vector<2048x512xf32>
    %8 = tpu.iota {dimensions = array<i32: 0>} : vector<8x2048xi32>
    %9 = tpu.iota {dimensions = array<i32: 1>} : vector<8x2048xi32>
    %c256_i32 = arith.constant 256 : i32
    %10 = vector.broadcast %c256_i32 : i32 to vector<8x2048xi32>
    %11 = arith.muli %8, %10 : vector<8x2048xi32>
    %12 = arith.cmpi sge, %9, %11 : vector<8x2048xi32>
    %c1_i32 = arith.constant 1 : i32
    %13 = vector.broadcast %c1_i32 : i32 to vector<8x2048xi32>
    %14 = arith.addi %8, %13 : vector<8x2048xi32>
    %c256_i32_6 = arith.constant 256 : i32
    %15 = vector.broadcast %c256_i32_6 : i32 to vector<8x2048xi32>
    %16 = arith.muli %14, %15 : vector<8x2048xi32>
    %17 = arith.cmpi slt, %9, %16 : vector<8x2048xi32>
    %18 = arith.andi %12, %17 : vector<8x2048xi1>
    %19 = arith.extui %18 : vector<8x2048xi1> to vector<8x2048xi32>
    %20 = arith.sitofp %19 : vector<8x2048xi32> to vector<8x2048xf32>
    %cst_7 = arith.constant 3.906250e-03 : f32
    %21 = vector.broadcast %cst_7 : f32 to vector<8x2048xf32>
    %22 = arith.mulf %20, %21 : vector<8x2048xf32>
    %cst_8 = arith.constant dense<0.000000e+00> : vector<8x512xf32>
    %23 = tpu.matmul %22, %7, %cst_8 {dimension_numbers = #tpu.dot_dimension_numbers<[1], [0], [0], [1], [0, 0, 1, 1], [], []>} : vector<8x2048xf32>, vector<2048x512xf32>, vector<8x512xf32> -> vector<8x512xf32>
    %24 = arith.truncf %23 : vector<8x512xf32> to vector<8x512xbf16>
    %c0_9 = arith.constant 0 : index
    %c0_10 = arith.constant 0 : index
    %25 = vector.load %arg5[%c0_9, %c0_10] : memref<8x512xbf16, #tpu.memory_space<vmem>>, vector<8x512xbf16>
    tpu.vector_store %arg5[%c0_9, %c0_10], %24 {strides = array<i32>} : memref<8x512xbf16, #tpu.memory_space<vmem>>, vector<8x512xbf16>,
    return
  }
  func.func @transform_0(%arg0: i32, %arg1: i32) -> (i32, i32) {
    %c0_i32 = arith.constant 0 : i32
    %c0_i32_0 = arith.constant 0 : i32
    return %arg0, %c0_i32 : i32, i32
  }
  func.func @transform_1(%arg0: i32, %arg1: i32) -> (i32, i32) {
    %c0_i32 = arith.constant 0 : i32
    %c0_i32_0 = arith.constant 0 : i32
    return %c0_i32, %arg1 : i32, i32
  }
  func.func @transform_2(%arg0: i32, %arg1: i32) -> (i32, i32) {
    %c0_i32 = arith.constant 0 : i32
    %c0_i32_0 = arith.constant 0 : i32
    return %c0_i32, %arg1 : i32, i32
  }
  func.func @transform_3(%arg0: i32, %arg1: i32) -> (i32, i32) {
    %c0_i32 = arith.constant 0 : i32
    return %arg0, %arg1 : i32, i32
  }
}

module attributes {stable_mosaic.version = 11 : i64} {
  func.func @_fc_head_kernel(%arg0: i32, %arg1: memref<8x2048xbf16, #tpu.memory_space<vmem>>, %arg2: memref<2048x512xbf16, #tpu.memory_space<vmem>>, %arg3: memref<512x512xbf16, #tpu.memory_space<vmem>>, %arg4: memref<512x256xbf16, #tpu.memory_space<vmem>>, %arg5: memref<8x512xf32, #tpu.memory_space<vmem>>, %arg6: memref<8x512xf32, #tpu.memory_space<vmem>>, %arg7: memref<8x256xf32, #tpu.memory_space<vmem>>) attributes {dimension_semantics = [#tpu.dimension_semantics<parallel>], iteration_bounds = array<i64: 1>, scalar_prefetch = 0 : i64, scratch_operands = 0 : i64, tpu.core_type = #tpu.core_type<tc>, window_params = [{transform_indices = @transform_0, window_bounds = array<i64: 8, 2048>}, {pipeline_mode = #tpu.pipeline_mode<synchronous>, transform_indices = @transform_1, window_bounds = array<i64: 2048, 512>}, {pipeline_mode = #tpu.pipeline_mode<synchronous>, transform_indices = @transform_2, window_bounds = array<i64: 512, 512>}, {pipeline_mode = #tpu.pipeline_mode<synchronous>, transform_indices = @transform_3, window_bounds = array<i64: 512, 256>}, {pipeline_mode = #tpu.pipeline_mode<synchronous>, transform_indices = @transform_4, window_bounds = array<i64: 8, 512>}, {transform_indices = @transform_5, window_bounds = array<i64: 8, 512>}, {transform_indices = @transform_6, window_bounds = array<i64: 8, 256>}]} {
    %c0 = arith.constant 0 : index
    %c0_0 = arith.constant 0 : index
    %0 = vector.load %arg5[%c0, %c0_0] : memref<8x512xf32, #tpu.memory_space<vmem>>, vector<8x512xf32>
    %1 = vector.extract_strided_slice %0 {offsets = [0, 0], sizes = [1, 512], strides = [1, 1]} : vector<8x512xf32> to vector<1x512xf32>
    %2 = vector.extract_strided_slice %0 {offsets = [1, 0], sizes = [1, 512], strides = [1, 1]} : vector<8x512xf32> to vector<1x512xf32>
    %3 = vector.extract_strided_slice %0 {offsets = [2, 0], sizes = [1, 512], strides = [1, 1]} : vector<8x512xf32> to vector<1x512xf32>
    %4 = vector.extract_strided_slice %0 {offsets = [3, 0], sizes = [1, 512], strides = [1, 1]} : vector<8x512xf32> to vector<1x512xf32>
    %5 = vector.extract_strided_slice %0 {offsets = [4, 0], sizes = [1, 512], strides = [1, 1]} : vector<8x512xf32> to vector<1x512xf32>
    %6 = vector.extract_strided_slice %0 {offsets = [5, 0], sizes = [1, 512], strides = [1, 1]} : vector<8x512xf32> to vector<1x512xf32>
    %7 = vector.extract_strided_slice %0 {offsets = [6, 0], sizes = [1, 256], strides = [1, 1]} : vector<8x512xf32> to vector<1x256xf32>
    %8 = tpu.iota {dimensions = array<i32: 0>} : vector<4x8xi32>
    %9 = tpu.iota {dimensions = array<i32: 1>} : vector<4x8xi32>
    %c2_i32 = arith.constant 2 : i32
    %10 = vector.broadcast %c2_i32 : i32 to vector<4x8xi32>
    %11 = arith.muli %8, %10 : vector<4x8xi32>
    %12 = arith.cmpi sge, %9, %11 : vector<4x8xi32>
    %c1_i32 = arith.constant 1 : i32
    %13 = vector.broadcast %c1_i32 : i32 to vector<4x8xi32>
    %14 = arith.addi %8, %13 : vector<4x8xi32>
    %c2_i32_1 = arith.constant 2 : i32
    %15 = vector.broadcast %c2_i32_1 : i32 to vector<4x8xi32>
    %16 = arith.muli %14, %15 : vector<4x8xi32>
    %17 = arith.cmpi slt, %9, %16 : vector<4x8xi32>
    %18 = arith.andi %12, %17 : vector<4x8xi1>
    %19 = arith.extui %18 : vector<4x8xi1> to vector<4x8xi32>
    %20 = arith.sitofp %19 : vector<4x8xi32> to vector<4x8xf32>
    %cst = arith.constant 5.000000e-01 : f32
    %21 = vector.broadcast %cst : f32 to vector<4x8xf32>
    %22 = arith.mulf %20, %21 : vector<4x8xf32>
    %23 = tpu.iota {dimensions = array<i32: 0>} : vector<8x4xi32>
    %24 = tpu.iota {dimensions = array<i32: 1>} : vector<8x4xi32>
    %c2_i32_2 = arith.constant 2 : i32
    %25 = vector.broadcast %c2_i32_2 : i32 to vector<8x4xi32>
    %26 = arith.muli %24, %25 : vector<8x4xi32>
    %27 = arith.cmpi sge, %23, %26 : vector<8x4xi32>
    %c1_i32_3 = arith.constant 1 : i32
    %28 = vector.broadcast %c1_i32_3 : i32 to vector<8x4xi32>
    %29 = arith.addi %24, %28 : vector<8x4xi32>
    %c2_i32_4 = arith.constant 2 : i32
    %30 = vector.broadcast %c2_i32_4 : i32 to vector<8x4xi32>
    %31 = arith.muli %29, %30 : vector<8x4xi32>
    %32 = arith.cmpi slt, %23, %31 : vector<8x4xi32>
    %33 = arith.andi %27, %32 : vector<8x4xi1>
    %34 = arith.extui %33 : vector<8x4xi1> to vector<8x4xi32>
    %35 = arith.sitofp %34 : vector<8x4xi32> to vector<8x4xf32>
    %c0_5 = arith.constant 0 : index
    %c0_6 = arith.constant 0 : index
    %36 = vector.load %arg1[%c0_5, %c0_6] : memref<8x2048xbf16, #tpu.memory_space<vmem>>, vector<8x2048xbf16>
    %c0_7 = arith.constant 0 : index
    %c0_8 = arith.constant 0 : index
    %37 = vector.load %arg2[%c0_7, %c0_8] : memref<2048x512xbf16, #tpu.memory_space<vmem>>, vector<2048x512xbf16>
    %cst_9 = arith.constant dense<0.000000e+00> : vector<8x512xf32>
    %38 = tpu.matmul %36, %37, %cst_9 {dimension_numbers = #tpu.dot_dimension_numbers<[1], [0], [0], [1], [0, 0, 1, 1], [], []>} : vector<8x2048xbf16>, vector<2048x512xbf16>, vector<8x512xf32> -> vector<8x512xf32>
    %39 = vector.broadcast %1 : vector<1x512xf32> to vector<8x512xf32>
    %40 = arith.addf %38, %39 : vector<8x512xf32>
    %cst_10 = arith.constant dense<0.000000e+00> : vector<4x512xf32>
    %41 = tpu.matmul %22, %40, %cst_10 {dimension_numbers = #tpu.dot_dimension_numbers<[1], [0], [0], [1], [0, 0, 1, 1], [], []>} : vector<4x8xf32>, vector<8x512xf32>, vector<4x512xf32> -> vector<4x512xf32>
    %42 = arith.mulf %40, %40 : vector<8x512xf32>
    %cst_11 = arith.constant dense<0.000000e+00> : vector<4x512xf32>
    %43 = tpu.matmul %22, %42, %cst_11 {dimension_numbers = #tpu.dot_dimension_numbers<[1], [0], [0], [1], [0, 0, 1, 1], [], []>} : vector<4x8xf32>, vector<8x512xf32>, vector<4x512xf32> -> vector<4x512xf32>
    %44 = arith.mulf %41, %41 : vector<4x512xf32>
    %45 = arith.subf %43, %44 : vector<4x512xf32>
    %cst_12 = arith.constant 0.000000e+00 : f32
    %46 = vector.broadcast %cst_12 : f32 to vector<4x512xf32>
    %47 = arith.maximumf %45, %46 : vector<4x512xf32>
    %cst_13 = arith.constant dense<0.000000e+00> : vector<8x512xf32>
    %48 = tpu.matmul %35, %41, %cst_13 {dimension_numbers = #tpu.dot_dimension_numbers<[1], [0], [0], [1], [0, 0, 1, 1], [], []>} : vector<8x4xf32>, vector<4x512xf32>, vector<8x512xf32> -> vector<8x512xf32>
    %cst_14 = arith.constant dense<0.000000e+00> : vector<8x512xf32>
    %49 = tpu.matmul %35, %47, %cst_14 {dimension_numbers = #tpu.dot_dimension_numbers<[1], [0], [0], [1], [0, 0, 1, 1], [], []>} : vector<8x4xf32>, vector<4x512xf32>, vector<8x512xf32> -> vector<8x512xf32>
    %50 = arith.subf %40, %48 : vector<8x512xf32>
    %cst_15 = arith.constant 9.99999974E-6 : f32
    %51 = vector.broadcast %cst_15 : f32 to vector<8x512xf32>
    %52 = arith.addf %49, %51 : vector<8x512xf32>
    %53 = math.rsqrt %52 : vector<8x512xf32>
    %54 = arith.mulf %50, %53 : vector<8x512xf32>
    %55 = vector.broadcast %2 : vector<1x512xf32> to vector<8x512xf32>
    %56 = arith.mulf %54, %55 : vector<8x512xf32>
    %57 = vector.broadcast %3 : vector<1x512xf32> to vector<8x512xf32>
    %58 = arith.addf %56, %57 : vector<8x512xf32>
    %cst_16 = arith.constant 0.000000e+00 : f32
    %59 = vector.broadcast %cst_16 : f32 to vector<8x512xf32>
    %60 = arith.maximumf %58, %59 : vector<8x512xf32>
    %61 = arith.truncf %60 : vector<8x512xf32> to vector<8x512xbf16>
    %c0_17 = arith.constant 0 : index
    %c0_18 = arith.constant 0 : index
    %62 = vector.load %arg3[%c0_17, %c0_18] : memref<512x512xbf16, #tpu.memory_space<vmem>>, vector<512x512xbf16>
    %cst_19 = arith.constant dense<0.000000e+00> : vector<8x512xf32>
    %63 = tpu.matmul %61, %62, %cst_19 {dimension_numbers = #tpu.dot_dimension_numbers<[1], [0], [0], [1], [0, 0, 1, 1], [], []>} : vector<8x512xbf16>, vector<512x512xbf16>, vector<8x512xf32> -> vector<8x512xf32>
    %64 = vector.broadcast %4 : vector<1x512xf32> to vector<8x512xf32>
    %65 = arith.addf %63, %64 : vector<8x512xf32>
    %cst_20 = arith.constant dense<0.000000e+00> : vector<4x512xf32>
    %66 = tpu.matmul %22, %65, %cst_20 {dimension_numbers = #tpu.dot_dimension_numbers<[1], [0], [0], [1], [0, 0, 1, 1], [], []>} : vector<4x8xf32>, vector<8x512xf32>, vector<4x512xf32> -> vector<4x512xf32>
    %67 = arith.mulf %65, %65 : vector<8x512xf32>
    %cst_21 = arith.constant dense<0.000000e+00> : vector<4x512xf32>
    %68 = tpu.matmul %22, %67, %cst_21 {dimension_numbers = #tpu.dot_dimension_numbers<[1], [0], [0], [1], [0, 0, 1, 1], [], []>} : vector<4x8xf32>, vector<8x512xf32>, vector<4x512xf32> -> vector<4x512xf32>
    %69 = arith.mulf %66, %66 : vector<4x512xf32>
    %70 = arith.subf %68, %69 : vector<4x512xf32>
    %cst_22 = arith.constant 0.000000e+00 : f32
    %71 = vector.broadcast %cst_22 : f32 to vector<4x512xf32>
    %72 = arith.maximumf %70, %71 : vector<4x512xf32>
    %cst_23 = arith.constant dense<0.000000e+00> : vector<8x512xf32>
    %73 = tpu.matmul %35, %66, %cst_23 {dimension_numbers = #tpu.dot_dimension_numbers<[1], [0], [0], [1], [0, 0, 1, 1], [], []>} : vector<8x4xf32>, vector<4x512xf32>, vector<8x512xf32> -> vector<8x512xf32>
    %cst_24 = arith.constant dense<0.000000e+00> : vector<8x512xf32>
    %74 = tpu.matmul %35, %72, %cst_24 {dimension_numbers = #tpu.dot_dimension_numbers<[1], [0], [0], [1], [0, 0, 1, 1], [], []>} : vector<8x4xf32>, vector<4x512xf32>, vector<8x512xf32> -> vector<8x512xf32>
    %75 = arith.subf %65, %73 : vector<8x512xf32>
    %cst_25 = arith.constant 9.99999974E-6 : f32
    %76 = vector.broadcast %cst_25 : f32 to vector<8x512xf32>
    %77 = arith.addf %74, %76 : vector<8x512xf32>
    %78 = math.rsqrt %77 : vector<8x512xf32>
    %79 = arith.mulf %75, %78 : vector<8x512xf32>
    %80 = vector.broadcast %5 : vector<1x512xf32> to vector<8x512xf32>
    %81 = arith.mulf %79, %80 : vector<8x512xf32>
    %82 = vector.broadcast %6 : vector<1x512xf32> to vector<8x512xf32>
    %83 = arith.addf %81, %82 : vector<8x512xf32>
    %cst_26 = arith.constant 0.000000e+00 : f32
    %84 = vector.broadcast %cst_26 : f32 to vector<8x512xf32>
    %85 = arith.maximumf %83, %84 : vector<8x512xf32>
    %c0_27 = arith.constant 0 : index
    %c0_28 = arith.constant 0 : index
    %86 = vector.load %arg6[%c0_27, %c0_28] : memref<8x512xf32, #tpu.memory_space<vmem>>, vector<8x512xf32>
    %87 = arith.mulf %85, %86 : vector<8x512xf32>
    %88 = arith.truncf %87 : vector<8x512xf32> to vector<8x512xbf16>
    %c0_29 = arith.constant 0 : index
    %c0_30 = arith.constant 0 : index
    %89 = vector.load %arg4[%c0_29, %c0_30] : memref<512x256xbf16, #tpu.memory_space<vmem>>, vector<512x256xbf16>
    %cst_31 = arith.constant dense<0.000000e+00> : vector<8x256xf32>
    %90 = tpu.matmul %88, %89, %cst_31 {dimension_numbers = #tpu.dot_dimension_numbers<[1], [0], [0], [1], [0, 0, 1, 1], [], []>} : vector<8x512xbf16>, vector<512x256xbf16>, vector<8x256xf32> -> vector<8x256xf32>
    %91 = vector.broadcast %7 : vector<1x256xf32> to vector<8x256xf32>
    %92 = arith.addf %90, %91 : vector<8x256xf32>
    %c0_32 = arith.constant 0 : index
    %c0_33 = arith.constant 0 : index
    %93 = vector.load %arg7[%c0_32, %c0_33] : memref<8x256xf32, #tpu.memory_space<vmem>>, vector<8x256xf32>
    tpu.vector_store %arg7[%c0_32, %c0_33], %92 {strides = array<i32>} : memref<8x256xf32, #tpu.memory_space<vmem>>, vector<8x256xf32>,
    return
  }
  func.func @transform_0(%arg0: i32) -> (i32, i32) {
    %c0_i32 = arith.constant 0 : i32
    %c0_i32_0 = arith.constant 0 : i32
    return %arg0, %c0_i32 : i32, i32
  }
  func.func @transform_1(%arg0: i32) -> (i32, i32) {
    %c0_i32 = arith.constant 0 : i32
    %c0_i32_0 = arith.constant 0 : i32
    %c0_i32_1 = arith.constant 0 : i32
    return %c0_i32, %c0_i32_0 : i32, i32
  }
  func.func @transform_2(%arg0: i32) -> (i32, i32) {
    %c0_i32 = arith.constant 0 : i32
    %c0_i32_0 = arith.constant 0 : i32
    %c0_i32_1 = arith.constant 0 : i32
    return %c0_i32, %c0_i32_0 : i32, i32
  }
  func.func @transform_3(%arg0: i32) -> (i32, i32) {
    %c0_i32 = arith.constant 0 : i32
    %c0_i32_0 = arith.constant 0 : i32
    %c0_i32_1 = arith.constant 0 : i32
    return %c0_i32, %c0_i32_0 : i32, i32
  }
  func.func @transform_4(%arg0: i32) -> (i32, i32) {
    %c0_i32 = arith.constant 0 : i32
    %c0_i32_0 = arith.constant 0 : i32
    %c0_i32_1 = arith.constant 0 : i32
    return %c0_i32, %c0_i32_0 : i32, i32
  }
  func.func @transform_5(%arg0: i32) -> (i32, i32) {
    %c0_i32 = arith.constant 0 : i32
    %c0_i32_0 = arith.constant 0 : i32
    return %arg0, %c0_i32 : i32, i32
  }
  func.func @transform_6(%arg0: i32) -> (i32, i32) {
    %c0_i32 = arith.constant 0 : i32
    %c0_i32_0 = arith.constant 0 : i32
    return %arg0, %c0_i32 : i32, i32
  }
}

</mosaic_0001>

<llo_original>
// kernel: cnn_encoder_forward.2
$region0: #{cnn_encoder_forward.2}
  #allocation0 [shape = 'u32[]', space=smem, size = 0x4, offset = 0x4, fixed_abs, tag = 'smem constant byte address 0x4 - core index']
  #allocation1 [shape = 'u32[144,128]{1,0:T(1,128)}', space=vmem, size = 0x12000, scoped, tag = 'internal scratch']
  %s0 = inlined_call_operand.vmem [shape: bf16[2048,128], index: 0, kind: input, shape index: {}]
  %s1 = inlined_call_operand.vmem [shape: bf16[128,2048], index: 1, kind: input, shape index: {}]
  %s2 = inlined_call_operand.vmem [shape: f32[1,2048], index: 2, kind: input, shape index: {}]
  %s3 = inlined_call_operand.vmem [shape: bf16[8,2048], index: 3, kind: output, shape index: {}]
  %s4 = sld [smem:[#allocation0]]
  $region68: #{cnn_encoder_forward.2} parent=0
    _
  %s6 = ssub.s32 1, %s4
  %s7 = scalar_select 0, %s6, %s4
  $region1: #{cnn_encoder_forward.2} parent=0
    #allocation2 [shape = 'u8[262144]{0}', space=vmem, size = 0x40000, scoped, tag = 'input window, operand 1']
    loop: start=0, step=1, limit=6
    $region2: #{cnn_encoder_forward.2} parent=1 // loop_pre_header
      _
    $region3: #{cnn_encoder_forward.2} parent=1 // loop_header
      %s9 = sphi 0, %s13
      %p10 = scmp.ge.s32.totalorder %s9, 6
      %s16 = sphi 0, %s28
      %s17 = sphi 0, %s24
      %s18 = sphi 0, %s16
      %s19 = sphi 0, %s17
      %s20 = sphi 0, %s18
      %s21 = sphi 0, %s19
      %s31 = sphi 0, %s33
      %s34 = sphi 0, %s31
      %s35 = sphi 0, %s34
      %s51 = sphi 0, %s35
      %s57 = sphi 0, %s59
      %s60 = sphi 0, %s57
      %s61 = sphi 0, %s60
      %s77 = sphi 0, %s61
      %s83 = sphi 0, %s85
      %s86 = sphi 0, %s83
      %s87 = sphi 0, %s86
      %s103 = sphi 0, %s87
      %s111 = sphi 0, %s113
      %s114 = sphi 0, %s111
      %s115 = sphi 0, %s114
      %s131 = sphi 0, %s115
    $region4: #{cnn_encoder_forward.2} parent=1 // loop_header_branch
      %12 = sbr.rel (%p10) target = $region8
    $region5: #{cnn_encoder_forward.2} parent=1 // loop_body
      %s14 = ssub.s32 %s9, 1
      %s15 = ssub.s32 %s9, 2
      %s22 = sadd.s32 1, %s17
      %p23 = scmp.ge.s32.totalorder %s22, 4
      %s24 = scalar_select %p23, 0, %s22
      %s25 = sadd.s32 1, %s16
      %s26 = scalar_select %p23, %s25, %s16
      %p27 = scmp.ge.s32.totalorder %s26, 1
      %s28 = scalar_select %p27, 0, %s26
      %s29 = ssub.s32 %s16, %s28
      %p30 = scmp.eq.s32.totalorder %s29, 0
      %s32 = sadd.s32 %s31, 1
      %s33 = scalar_select %p30, %s31, %s32
      %p36 = pneg %p30
      %p37 = scmp.eq.s32.totalorder %s9, 3
      %p38 = por %p36, %p37
      %p39 = scmp.ne.s32.totalorder %s31, %s34
      %p40 = scmp.eq.s32.totalorder %s9, 0
      %p41 = por %p39, %p40
      %p42 = scmp.ne.s32.totalorder %s31, %s34
      %p43 = scmp.eq.s32.totalorder %s14, 3
      %p44 = por %p42, %p43
      %p45 = scmp.ne.s32.totalorder %s34, %s35
      %p46 = scmp.eq.s32.totalorder %s14, 0
      %p47 = por %p45, %p46
      %p48 = scmp.ne.s32.totalorder %s34, %s35
      %p49 = scmp.eq.s32.totalorder %s15, 3
      %p50 = por %p48, %p49
      %p52 = scmp.ne.s32.totalorder %s35, %s51
      %p53 = scmp.eq.s32.totalorder %s15, 0
      %p54 = por %p52, %p53
      %s55 = ssub.s32 %s17, %s24
      %p56 = scmp.eq.s32.totalorder %s55, 0
      %s58 = sadd.s32 %s57, 1
      %s59 = scalar_select %p56, %s57, %s58
      %p62 = pneg %p56
      %p63 = scmp.eq.s32.totalorder %s9, 3
      %p64 = por %p62, %p63
      %p65 = scmp.ne.s32.totalorder %s57, %s60
      %p66 = scmp.eq.s32.totalorder %s9, 0
      %p67 = por %p65, %p66
      %p68 = scmp.ne.s32.totalorder %s57, %s60
      %p69 = scmp.eq.s32.totalorder %s14, 3
      %p70 = por %p68, %p69
      %p71 = scmp.ne.s32.totalorder %s60, %s61
      %p72 = scmp.eq.s32.totalorder %s14, 0
      %p73 = por %p71, %p72
      %p74 = scmp.ne.s32.totalorder %s60, %s61
      %p75 = scmp.eq.s32.totalorder %s15, 3
      %p76 = por %p74, %p75
      %p78 = scmp.ne.s32.totalorder %s61, %s77
      %p79 = scmp.eq.s32.totalorder %s15, 0
      %p80 = por %p78, %p79
      %s81 = ssub.s32 %s17, %s24
      %p82 = scmp.eq.s32.totalorder %s81, 0
      %s84 = sadd.s32 %s83, 1
      %s85 = scalar_select %p82, %s83, %s84
      %p88 = pneg %p82
      %p89 = scmp.eq.s32.totalorder %s9, 3
      %p90 = por %p88, %p89
      %p91 = scmp.ne.s32.totalorder %s83, %s86
      %p92 = scmp.eq.s32.totalorder %s9, 0
      %p93 = por %p91, %p92
      %p94 = scmp.ne.s32.totalorder %s83, %s86
      %p95 = scmp.eq.s32.totalorder %s14, 3
      %p96 = por %p94, %p95
      %p97 = scmp.ne.s32.totalorder %s86, %s87
      %p98 = scmp.eq.s32.totalorder %s14, 0
      %p99 = por %p97, %p98
      %p100 = scmp.ne.s32.totalorder %s86, %s87
      %p101 = scmp.eq.s32.totalorder %s15, 3
      %p102 = por %p100, %p101
      %p104 = scmp.ne.s32.totalorder %s87, %s103
      %p105 = scmp.eq.s32.totalorder %s15, 0
      %p106 = por %p104, %p105
      %s107 = ssub.s32 %s16, %s28
      %s108 = ssub.s32 %s17, %s24
      %s109 = sor.u32 %s107, %s108
      %p110 = scmp.eq.s32.totalorder %s109, 0
      %s112 = sadd.s32 %s111, 1
      %s113 = scalar_select %p110, %s111, %s112
      %p116 = pneg %p110
      %p117 = scmp.eq.s32.totalorder %s9, 3
      %p118 = por %p116, %p117
      %p119 = scmp.ne.s32.totalorder %s111, %s114
      %p120 = scmp.eq.s32.totalorder %s9, 0
      %p121 = por %p119, %p120
      %p122 = scmp.ne.s32.totalorder %s111, %s114
      %p123 = scmp.eq.s32.totalorder %s14, 3
      %p124 = por %p122, %p123
      %p125 = scmp.ne.s32.totalorder %s114, %s115
      %p126 = scmp.eq.s32.totalorder %s14, 0
      %p127 = por %p125, %p126
      %p128 = scmp.ne.s32.totalorder %s114, %s115
      %p129 = scmp.eq.s32.totalorder %s15, 3
      %p130 = por %p128, %p129
      %p132 = scmp.ne.s32.totalorder %s115, %s131
      %p133 = scmp.eq.s32.totalorder %s15, 0
      %p134 = por %p132, %p133
      %p135 = scmp.le.s32.totalorder 1, %s9
      %p136 = scmp.lt.s32.totalorder %s9, 5
      %p137 = pnand %p135, %p136
      %p138 = pneg %p137
      // Predicated region
      $region9: #{cnn_encoder_forward.2} parent=5 // pred_check
        _
      $region10: #{cnn_encoder_forward.2} parent=5 // pred_check_branch
        %140 = sbr.rel (%p137) target = $region12
      $region11: #{cnn_encoder_forward.2} parent=5 // pred_region
        %s141 = ssub.s32 %s9, 1
        // Predicated region
        $region13: #{cnn_encoder_forward.2} parent=11 // pred_check
          %p142 = pneg %p47
        $region14: #{cnn_encoder_forward.2} parent=11 // pred_check_branch
          %144 = sbr.rel (%p142) target = $region16
        $region15: #{cnn_encoder_forward.2} parent=11 // pred_region
          %s145 = smul.u32 256, %s18
          %p146 = scmp.lt.s32.totalorder %s145, 255
          %s147 = scalar_select %p146, %s145, 255
          %s148 = smul.addr %s147, 4
          %s149 = scalar_lea.vmem %s0, %s148
          %s150 = smul.u32 256, %s18
        $region16: #{cnn_encoder_forward.2} parent=11 // pred_fallthru
          _
      $region12: #{cnn_encoder_forward.2} parent=5 // pred_fallthru
        _
      %p151 = scmp.lt.s32.totalorder %s9, 4
      // Predicated region
      $region17: #{cnn_encoder_forward.2} parent=5 // pred_check
        %p152 = pneg %p151
      $region18: #{cnn_encoder_forward.2} parent=5 // pred_check_branch
        %154 = sbr.rel (%p152) target = $region20
      $region19: #{cnn_encoder_forward.2} parent=5 // pred_region
        // Predicated region
        $region21: #{cnn_encoder_forward.2} parent=19 // pred_check
          %p155 = pneg %p67
        $region22: #{cnn_encoder_forward.2} parent=19 // pred_check_branch
          %157 = sbr.rel (%p155) target = $region24
        $region23: #{cnn_encoder_forward.2} parent=19 // pred_region
          %s158 = sand.u32 %s57, 1
          %s159 = sand.u32 %s57, 1
          %s160 = smul.addr %s159, 256
          %s161 = scalar_lea.vmem [#allocation2], %s160
          %s162 = smul.u32 4, %s17
          %s163 = smul.addr %s162, 4
          %s164 = scalar_lea.vmem %s1, %s163
          // Predicated region
          $region25: #{cnn_encoder_forward.2} parent=23 // pred_check
            _
          $region26: #{cnn_encoder_forward.2} parent=23 // pred_check_branch
            %166 = sbr.rel (0) target = $region28
          $region27: #{cnn_encoder_forward.2} parent=23 // pred_region
            // Predicated region
            $region29: #{cnn_encoder_forward.2} parent=27 // pred_check
              _
            $region30: #{cnn_encoder_forward.2} parent=27 // pred_check_branch
              %168 = sbr.rel (0) target = $region32
            $region31: #{cnn_encoder_forward.2} parent=27 // pred_region
              loop: start=0, step=1, limit=1
              $region33: #{cnn_encoder_forward.2} parent=31 // loop_pre_header
                _
              $region34: #{cnn_encoder_forward.2} parent=31 // loop_header
                %s170 = sphi 0, %s174
                %p171 = scmp.ge.s32.totalorder %s170, 1
                %s175 = sphi %s164, %s164
                %s176 = sphi %s161, %s161
              $region35: #{cnn_encoder_forward.2} parent=31 // loop_header_branch
                %173 = sbr.rel (%p171) target = $region39
              $region36: #{cnn_encoder_forward.2} parent=31 // loop_body
                %v177 = vld [vmem:[%s175] sm:$0xff]
                %178 = vst [vmem:[%s176] sm:$0xff] %v177
                %v179 = vld [vmem:[%s175 + $0x8] sm:$0xff]
                %180 = vst [vmem:[%s176 + $0x8] sm:$0xff] %v179
                %v181 = vld [vmem:[%s175 + $0x40] sm:$0xff]
                %182 = vst [vmem:[%s176 + $0x10] sm:$0xff] %v181
                %v183 = vld [vmem:[%s175 + $0x48] sm:$0xff]
                %184 = vst [vmem:[%s176 + $0x18] sm:$0xff] %v183
                %v185 = vld [vmem:[%s175 + $0x80] sm:$0xff]
                %186 = vst [vmem:[%s176 + $0x20] sm:$0xff] %v185
                %v187 = vld [vmem:[%s175 + $0x88] sm:$0xff]
                %188 = vst [vmem:[%s176 + $0x28] sm:$0xff] %v187
                %v189 = vld [vmem:[%s175 + $0xc0] sm:$0xff]
                %190 = vst [vmem:[%s176 + $0x30] sm:$0xff] %v189
                %v191 = vld [vmem:[%s175 + $0xc8] sm:$0xff]
                %192 = vst [vmem:[%s176 + $0x38] sm:$0xff] %v191
                %v193 = vld [vmem:[%s175 + $0x100] sm:$0xff]
                %194 = vst [vmem:[%s176 + $0x40] sm:$0xff] %v193
                %v195 = vld [vmem:[%s175 + $0x108] sm:$0xff]
                %196 = vst [vmem:[%s176 + $0x48] sm:$0xff] %v195
                %v197 = vld [vmem:[%s175 + $0x140] sm:$0xff]
                %198 = vst [vmem:[%s176 + $0x50] sm:$0xff] %v197
                %v199 = vld [vmem:[%s175 + $0x148] sm:$0xff]
                %200 = vst [vmem:[%s176 + $0x58] sm:$0xff] %v199
                %v201 = vld [vmem:[%s175 + $0x180] sm:$0xff]
                %202 = vst [vmem:[%s176 + $0x60] sm:$0xff] %v201
                %v203 = vld [vmem:[%s175 + $0x188] sm:$0xff]
                %204 = vst [vmem:[%s176 + $0x68] sm:$0xff] %v203
                %v205 = vld [vmem:[%s175 + $0x1c0] sm:$0xff]
                %206 = vst [vmem:[%s176 + $0x70] sm:$0xff] %v205
                %v207 = vld [vmem:[%s175 + $0x1c8] sm:$0xff]
                %208 = vst [vmem:[%s176 + $0x78] sm:$0xff] %v207
                %v209 = vld [vmem:[%s175 + $0x200] sm:$0xff]
                %210 = vst [vmem:[%s176 + $0x80] sm:$0xff] %v209
                %v211 = vld [vmem:[%s175 + $0x208] sm:$0xff]
                %212 = vst [vmem:[%s176 + $0x88] sm:$0xff] %v211
                %v213 = vld [vmem:[%s175 + $0x240] sm:$0xff]
                %214 = vst [vmem:[%s176 + $0x90] sm:$0xff] %v213
                %v215 = vld [vmem:[%s175 + $0x248] sm:$0xff]
                %216 = vst [vmem:[%s176 + $0x98] sm:$0xff] %v215
                %v217 = vld [vmem:[%s175 + $0x280] sm:$0xff]
                %218 = vst [vmem:[%s176 + $0xa0] sm:$0xff] %v217
                %v219 = vld [vmem:[%s175 + $0x288] sm:$0xff]
                %220 = vst [vmem:[%s176 + $0xa8] sm:$0xff] %v219
                %v221 = vld [vmem:[%s175 + $0x2c0] sm:$0xff]
                %222 = vst [vmem:[%s176 + $0xb0] sm:$0xff] %v221
                %v223 = vld [vmem:[%s175 + $0x2c8] sm:$0xff]
                %224 = vst [vmem:[%s176 + $0xb8] sm:$0xff] %v223
                %v225 = vld [vmem:[%s175 + $0x300] sm:$0xff]
                %226 = vst [vmem:[%s176 + $0xc0] sm:$0xff] %v225
                %v227 = vld [vmem:[%s175 + $0x308] sm:$0xff]
                %228 = vst [vmem:[%s176 + $0xc8] sm:$0xff] %v227
                %v229 = vld [vmem:[%s175 + $0x340] sm:$0xff]
                %230 = vst [vmem:[%s176 + $0xd0] sm:$0xff] %v229
                %v231 = vld [vmem:[%s175 + $0x348] sm:$0xff]
                %232 = vst [vmem:[%s176 + $0xd8] sm:$0xff] %v231
                %v233 = vld [vmem:[%s175 + $0x380] sm:$0xff]
                %234 = vst [vmem:[%s176 + $0xe0] sm:$0xff] %v233
                %v235 = vld [vmem:[%s175 + $0x388] sm:$0xff]
                %236 = vst [vmem:[%s176 + $0xe8] sm:$0xff] %v235
                %v237 = vld [vmem:[%s175 + $0x3c0] sm:$0xff]
                %238 = vst [vmem:[%s176 + $0xf0] sm:$0xff] %v237
                %v239 = vld [vmem:[%s175 + $0x3c8] sm:$0xff]
                %240 = vst [vmem:[%s176 + $0xf8] sm:$0xff] %v239
              $region37: #{cnn_encoder_forward.2} parent=31 // loop_footer
                %s174 = sadd.s32 1, %s170
              $region38: #{cnn_encoder_forward.2} parent=31 // loop_footer_branch
                %169 = sbr.rel target = $region34
              $region39: #{cnn_encoder_forward.2} parent=31 // loop_exit
                _
            $region32: #{cnn_encoder_forward.2} parent=27 // pred_fallthru
              _
            // Predicated region
            $region40: #{cnn_encoder_forward.2} parent=27 // pred_check
              _
            $region41: #{cnn_encoder_forward.2} parent=27 // pred_check_branch
              %242 = sbr.rel target = $region43
            $region42: #{cnn_encoder_forward.2} parent=27 // pred_region
              _
            $region43: #{cnn_encoder_forward.2} parent=27 // pred_fallthru
              _
          $region28: #{cnn_encoder_forward.2} parent=23 // pred_fallthru
            _
          %243 = vnop
        $region24: #{cnn_encoder_forward.2} parent=19 // pred_fallthru
          _
        // Predicated region
        $region44: #{cnn_encoder_forward.2} parent=19 // pred_check
          %p244 = pneg %p93
        $region45: #{cnn_encoder_forward.2} parent=19 // pred_check_branch
          %246 = sbr.rel (%p244) target = $region47
        $region46: #{cnn_encoder_forward.2} parent=19 // pred_region
          %s247 = smul.u32 4, %s17
          %p248 = scmp.lt.s32.totalorder %s247, 15
          %s249 = scalar_select %p248, %s247, 15
          %s250 = scalar_lea.vmem %s2, %s249
          %s251 = smul.u32 4, %s17
        $region47: #{cnn_encoder_forward.2} parent=19 // pred_fallthru
          _
      $region20: #{cnn_encoder_forward.2} parent=5 // pred_fallthru
        _
      %p252 = scmp.le.s32.totalorder 1, %s9
      %p253 = scmp.lt.s32.totalorder %s9, 5
      %p254 = pnand %p252, %p253
      %p255 = pneg %p254
      // Predicated region
      $region48: #{cnn_encoder_forward.2} parent=5 // pred_check
        _
      $region49: #{cnn_encoder_forward.2} parent=5 // pred_check_branch
        %257 = sbr.rel (%p254) target = $region51
      $region50: #{cnn_encoder_forward.2} parent=5 // pred_region
        %s258 = ssub.s32 %s9, 1
        %s259 = sand.u32 %s60, 1
        %s260 = sand.u32 %s60, 1
        %s261 = smul.addr %s260, 256
        %s262 = scalar_lea.vmem [#allocation2], %s261
        // Predicated region
        $region52: #{cnn_encoder_forward.2} parent=50 // pred_check
          %p263 = pneg %p73
        $region53: #{cnn_encoder_forward.2} parent=50 // pred_check_branch
          %265 = sbr.rel (%p263) target = $region55
        $region54: #{cnn_encoder_forward.2} parent=50 // pred_region
          _
        $region55: #{cnn_encoder_forward.2} parent=50 // pred_fallthru
          _
        %s266 = smul.u32 256, %s18
        %p267 = scmp.lt.s32.totalorder %s266, 255
        %s268 = scalar_select %p267, %s266, 255
        %s269 = smul.addr %s268, 4
        %s270 = scalar_lea.vmem %s0, %s269
        %p271 = pneg %p47
        %p272 = pneg %p44
        %s273 = sand.u32 %s60, 1
        %s274 = sand.u32 %s60, 1
        %s275 = smul.addr %s274, 256
        %s276 = scalar_lea.vmem [#allocation2], %s275
        %p277 = pneg %p73
        %p278 = pneg %p70
        %s279 = smul.u32 4, %s19
        %p280 = scmp.lt.s32.totalorder %s279, 15
        %s281 = scalar_select %p280, %s279, 15
        %s282 = scalar_lea.vmem %s2, %s281
        %p283 = pneg %p99
        %p284 = pneg %p96
        %p285 = pneg %p127
        %p286 = pneg %p124
        %s287 = smul.u32 4, %s19
        %p288 = scmp.lt.s32.totalorder %s18, 0
        %s289 = scalar_select %p288, %s18, 0
        %p290 = scmp.lt.s32.totalorder %s287, 15
        %s291 = scalar_select %p290, %s287, 15
        %s292 = smul.addr %s289, 16
        %s293 = sadd.s32 %s291, %s292
        %s294 = smul.addr %s293, 4
        %s295 = scalar_lea.vmem %s3, %s294
        %s296 = smul.u32 256, %s18
        %p297 = scmp.lt.s32.totalorder %s296, 255
        %s298 = scalar_select %p297, %s296, 255
        %s299 = smul.addr %s298, 4
        %s300 = scalar_lea.vmem %s0, %s299
        %s301 = smul.u32 256, %s18
        %s302 = smul.u32 4, %s19
        %s303 = smul.u32 4, %s19
        %p304 = scmp.lt.s32.totalorder %s303, 15
        %s305 = scalar_select %p304, %s303, 15
        %s306 = scalar_lea.vmem %s2, %s305
        %s307 = smul.u32 4, %s19
        %s308 = smul.u32 4, %s19
        %p309 = scmp.lt.s32.totalorder %s18, 0
        %s310 = scalar_select %p309, %s18, 0
        %p311 = scmp.lt.s32.totalorder %s308, 15
        %s312 = scalar_select %p311, %s308, 15
        %s313 = smul.addr %s310, 16
        %s314 = sadd.s32 %s312, %s313
        %s315 = smul.addr %s314, 4
        %s316 = scalar_lea.vmem %s3, %s315
        %s317 = smul.u32 4, %s19
        %v319 = vld [vmem:[%s300] sm:$0xf]
        %v320 = vld [vmem:[%s300 + $0x4] sm:$0xf]
        %v321 = vld [vmem:[%s300 + $0x8] sm:$0xf]
        %v322 = vld [vmem:[%s300 + $0xc] sm:$0xf]
        %v323 = vld [vmem:[%s300 + $0x10] sm:$0xf]
        %v324 = vld [vmem:[%s300 + $0x14] sm:$0xf]
        %v325 = vld [vmem:[%s300 + $0x18] sm:$0xf]
        %v326 = vld [vmem:[%s300 + $0x1c] sm:$0xf]
        %v327 = vld [vmem:[%s300 + $0x20] sm:$0xf]
        %v328 = vld [vmem:[%s300 + $0x24] sm:$0xf]
        %v329 = vld [vmem:[%s300 + $0x28] sm:$0xf]
        %v330 = vld [vmem:[%s300 + $0x2c] sm:$0xf]
        %v331 = vld [vmem:[%s300 + $0x30] sm:$0xf]
        %v332 = vld [vmem:[%s300 + $0x34] sm:$0xf]
        %v333 = vld [vmem:[%s300 + $0x38] sm:$0xf]
        %v334 = vld [vmem:[%s300 + $0x3c] sm:$0xf]
        %v335 = vld [vmem:[%s300 + $0x40] sm:$0xf]
        %v336 = vld [vmem:[%s300 + $0x44] sm:$0xf]
        %v337 = vld [vmem:[%s300 + $0x48] sm:$0xf]
        %v338 = vld [vmem:[%s300 + $0x4c] sm:$0xf]
        %v339 = vld [vmem:[%s300 + $0x50] sm:$0xf]
        %v340 = vld [vmem:[%s300 + $0x54] sm:$0xf]
        %v341 = vld [vmem:[%s300 + $0x58] sm:$0xf]
        %v342 = vld [vmem:[%s300 + $0x5c] sm:$0xf]
        %v343 = vld [vmem:[%s300 + $0x60] sm:$0xf]
        %v344 = vld [vmem:[%s300 + $0x64] sm:$0xf]
        %v345 = vld [vmem:[%s300 + $0x68] sm:$0xf]
        %v346 = vld [vmem:[%s300 + $0x6c] sm:$0xf]
        %v347 = vld [vmem:[%s300 + $0x70] sm:$0xf]
        %v348 = vld [vmem:[%s300 + $0x74] sm:$0xf]
        %v349 = vld [vmem:[%s300 + $0x78] sm:$0xf]
        %v350 = vld [vmem:[%s300 + $0x7c] sm:$0xf]
        %v351 = vld [vmem:[%s300 + $0x80] sm:$0xf]
        %v352 = vld [vmem:[%s300 + $0x84] sm:$0xf]
        %v353 = vld [vmem:[%s300 + $0x88] sm:$0xf]
        %v354 = vld [vmem:[%s300 + $0x8c] sm:$0xf]
        %v355 = vld [vmem:[%s300 + $0x90] sm:$0xf]
        %v356 = vld [vmem:[%s300 + $0x94] sm:$0xf]
        %v357 = vld [vmem:[%s300 + $0x98] sm:$0xf]
        %v358 = vld [vmem:[%s300 + $0x9c] sm:$0xf]
        %v359 = vld [vmem:[%s300 + $0xa0] sm:$0xf]
        %v360 = vld [vmem:[%s300 + $0xa4] sm:$0xf]
        %v361 = vld [vmem:[%s300 + $0xa8] sm:$0xf]
        %v362 = vld [vmem:[%s300 + $0xac] sm:$0xf]
        %v363 = vld [vmem:[%s300 + $0xb0] sm:$0xf]
        %v364 = vld [vmem:[%s300 + $0xb4] sm:$0xf]
        %v365 = vld [vmem:[%s300 + $0xb8] sm:$0xf]
        %v366 = vld [vmem:[%s300 + $0xbc] sm:$0xf]
        %v367 = vld [vmem:[%s300 + $0xc0] sm:$0xf]
        %v368 = vld [vmem:[%s300 + $0xc4] sm:$0xf]
        %v369 = vld [vmem:[%s300 + $0xc8] sm:$0xf]
        %v370 = vld [vmem:[%s300 + $0xcc] sm:$0xf]
        %v371 = vld [vmem:[%s300 + $0xd0] sm:$0xf]
        %v372 = vld [vmem:[%s300 + $0xd4] sm:$0xf]
        %v373 = vld [vmem:[%s300 + $0xd8] sm:$0xf]
        %v374 = vld [vmem:[%s300 + $0xdc] sm:$0xf]
        %v375 = vld [vmem:[%s300 + $0xe0] sm:$0xf]
        %v376 = vld [vmem:[%s300 + $0xe4] sm:$0xf]
        %v377 = vld [vmem:[%s300 + $0xe8] sm:$0xf]
        %v378 = vld [vmem:[%s300 + $0xec] sm:$0xf]
        %v379 = vld [vmem:[%s300 + $0xf0] sm:$0xf]
        %v380 = vld [vmem:[%s300 + $0xf4] sm:$0xf]
        %v381 = vld [vmem:[%s300 + $0xf8] sm:$0xf]
        %v382 = vld [vmem:[%s300 + $0xfc] sm:$0xf]
        %v383 = vld [vmem:[%s300 + $0x100] sm:$0xf]
        %v384 = vld [vmem:[%s300 + $0x104] sm:$0xf]
        %v385 = vld [vmem:[%s300 + $0x108] sm:$0xf]
        %v386 = vld [vmem:[%s300 + $0x10c] sm:$0xf]
        %v387 = vld [vmem:[%s300 + $0x110] sm:$0xf]
        %v388 = vld [vmem:[%s300 + $0x114] sm:$0xf]
        %v389 = vld [vmem:[%s300 + $0x118] sm:$0xf]
        %v390 = vld [vmem:[%s300 + $0x11c] sm:$0xf]
        %v391 = vld [vmem:[%s300 + $0x120] sm:$0xf]
        %v392 = vld [vmem:[%s300 + $0x124] sm:$0xf]
        %v393 = vld [vmem:[%s300 + $0x128] sm:$0xf]
        %v394 = vld [vmem:[%s300 + $0x12c] sm:$0xf]
        %v395 = vld [vmem:[%s300 + $0x130] sm:$0xf]
        %v396 = vld [vmem:[%s300 + $0x134] sm:$0xf]
        %v397 = vld [vmem:[%s300 + $0x138] sm:$0xf]
        %v398 = vld [vmem:[%s300 + $0x13c] sm:$0xf]
        %v399 = vld [vmem:[%s300 + $0x140] sm:$0xf]
        %v400 = vld [vmem:[%s300 + $0x144] sm:$0xf]
        %v401 = vld [vmem:[%s300 + $0x148] sm:$0xf]
        %v402 = vld [vmem:[%s300 + $0x14c] sm:$0xf]
        %v403 = vld [vmem:[%s300 + $0x150] sm:$0xf]
        %v404 = vld [vmem:[%s300 + $0x154] sm:$0xf]
        %v405 = vld [vmem:[%s300 + $0x158] sm:$0xf]
        %v406 = vld [vmem:[%s300 + $0x15c] sm:$0xf]
        %v407 = vld [vmem:[%s300 + $0x160] sm:$0xf]
        %v408 = vld [vmem:[%s300 + $0x164] sm:$0xf]
        %v409 = vld [vmem:[%s300 + $0x168] sm:$0xf]
        %v410 = vld [vmem:[%s300 + $0x16c] sm:$0xf]
        %v411 = vld [vmem:[%s300 + $0x170] sm:$0xf]
        %v412 = vld [vmem:[%s300 + $0x174] sm:$0xf]
        %v413 = vld [vmem:[%s300 + $0x178] sm:$0xf]
        %v414 = vld [vmem:[%s300 + $0x17c] sm:$0xf]
        %v415 = vld [vmem:[%s300 + $0x180] sm:$0xf]
        %v416 = vld [vmem:[%s300 + $0x184] sm:$0xf]
        %v417 = vld [vmem:[%s300 + $0x188] sm:$0xf]
        %v418 = vld [vmem:[%s300 + $0x18c] sm:$0xf]
        %v419 = vld [vmem:[%s300 + $0x190] sm:$0xf]
        %v420 = vld [vmem:[%s300 + $0x194] sm:$0xf]
        %v421 = vld [vmem:[%s300 + $0x198] sm:$0xf]
        %v422 = vld [vmem:[%s300 + $0x19c] sm:$0xf]
        %v423 = vld [vmem:[%s300 + $0x1a0] sm:$0xf]
        %v424 = vld [vmem:[%s300 + $0x1a4] sm:$0xf]
        %v425 = vld [vmem:[%s300 + $0x1a8] sm:$0xf]
        %v426 = vld [vmem:[%s300 + $0x1ac] sm:$0xf]
        %v427 = vld [vmem:[%s300 + $0x1b0] sm:$0xf]
        %v428 = vld [vmem:[%s300 + $0x1b4] sm:$0xf]
        %v429 = vld [vmem:[%s300 + $0x1b8] sm:$0xf]
        %v430 = vld [vmem:[%s300 + $0x1bc] sm:$0xf]
        %v431 = vld [vmem:[%s300 + $0x1c0] sm:$0xf]
        %v432 = vld [vmem:[%s300 + $0x1c4] sm:$0xf]
        %v433 = vld [vmem:[%s300 + $0x1c8] sm:$0xf]
        %v434 = vld [vmem:[%s300 + $0x1cc] sm:$0xf]
        %v435 = vld [vmem:[%s300 + $0x1d0] sm:$0xf]
        %v436 = vld [vmem:[%s300 + $0x1d4] sm:$0xf]
        %v437 = vld [vmem:[%s300 + $0x1d8] sm:$0xf]
        %v438 = vld [vmem:[%s300 + $0x1dc] sm:$0xf]
        %v439 = vld [vmem:[%s300 + $0x1e0] sm:$0xf]
        %v440 = vld [vmem:[%s300 + $0x1e4] sm:$0xf]
        %v441 = vld [vmem:[%s300 + $0x1e8] sm:$0xf]
        %v442 = vld [vmem:[%s300 + $0x1ec] sm:$0xf]
        %v443 = vld [vmem:[%s300 + $0x1f0] sm:$0xf]
        %v444 = vld [vmem:[%s300 + $0x1f4] sm:$0xf]
        %v445 = vld [vmem:[%s300 + $0x1f8] sm:$0xf]
        %v446 = vld [vmem:[%s300 + $0x1fc] sm:$0xf]
        %v447 = vld [vmem:[%s300 + $0x200] sm:$0xf]
        %v448 = vld [vmem:[%s300 + $0x204] sm:$0xf]
        %v449 = vld [vmem:[%s300 + $0x208] sm:$0xf]
        %v450 = vld [vmem:[%s300 + $0x20c] sm:$0xf]
        %v451 = vld [vmem:[%s300 + $0x210] sm:$0xf]
        %v452 = vld [vmem:[%s300 + $0x214] sm:$0xf]
        %v453 = vld [vmem:[%s300 + $0x218] sm:$0xf]
        %v454 = vld [vmem:[%s300 + $0x21c] sm:$0xf]
        %v455 = vld [vmem:[%s300 + $0x220] sm:$0xf]
        %v456 = vld [vmem:[%s300 + $0x224] sm:$0xf]
        %v457 = vld [vmem:[%s300 + $0x228] sm:$0xf]
        %v458 = vld [vmem:[%s300 + $0x22c] sm:$0xf]
        %v459 = vld [vmem:[%s300 + $0x230] sm:$0xf]
        %v460 = vld [vmem:[%s300 + $0x234] sm:$0xf]
        %v461 = vld [vmem:[%s300 + $0x238] sm:$0xf]
        %v462 = vld [vmem:[%s300 + $0x23c] sm:$0xf]
        %v463 = vld [vmem:[%s300 + $0x240] sm:$0xf]
        %v464 = vld [vmem:[%s300 + $0x244] sm:$0xf]
        %v465 = vld [vmem:[%s300 + $0x248] sm:$0xf]
        %v466 = vld [vmem:[%s300 + $0x24c] sm:$0xf]
        %v467 = vld [vmem:[%s300 + $0x250] sm:$0xf]
        %v468 = vld [vmem:[%s300 + $0x254] sm:$0xf]
        %v469 = vld [vmem:[%s300 + $0x258] sm:$0xf]
        %v470 = vld [vmem:[%s300 + $0x25c] sm:$0xf]
        %v471 = vld [vmem:[%s300 + $0x260] sm:$0xf]
        %v472 = vld [vmem:[%s300 + $0x264] sm:$0xf]
        %v473 = vld [vmem:[%s300 + $0x268] sm:$0xf]
        %v474 = vld [vmem:[%s300 + $0x26c] sm:$0xf]
        %v475 = vld [vmem:[%s300 + $0x270] sm:$0xf]
        %v476 = vld [vmem:[%s300 + $0x274] sm:$0xf]
        %v477 = vld [vmem:[%s300 + $0x278] sm:$0xf]
        %v478 = vld [vmem:[%s300 + $0x27c] sm:$0xf]
        %v479 = vld [vmem:[%s300 + $0x280] sm:$0xf]
        %v480 = vld [vmem:[%s300 + $0x284] sm:$0xf]
        %v481 = vld [vmem:[%s300 + $0x288] sm:$0xf]
        %v482 = vld [vmem:[%s300 + $0x28c] sm:$0xf]
        %v483 = vld [vmem:[%s300 + $0x290] sm:$0xf]
        %v484 = vld [vmem:[%s300 + $0x294] sm:$0xf]
        %v485 = vld [vmem:[%s300 + $0x298] sm:$0xf]
        %v486 = vld [vmem:[%s300 + $0x29c] sm:$0xf]
        %v487 = vld [vmem:[%s300 + $0x2a0] sm:$0xf]
        %v488 = vld [vmem:[%s300 + $0x2a4] sm:$0xf]
        %v489 = vld [vmem:[%s300 + $0x2a8] sm:$0xf]
        %v490 = vld [vmem:[%s300 + $0x2ac] sm:$0xf]
        %v491 = vld [vmem:[%s300 + $0x2b0] sm:$0xf]
        %v492 = vld [vmem:[%s300 + $0x2b4] sm:$0xf]
        %v493 = vld [vmem:[%s300 + $0x2b8] sm:$0xf]
        %v494 = vld [vmem:[%s300 + $0x2bc] sm:$0xf]
        %v495 = vld [vmem:[%s300 + $0x2c0] sm:$0xf]
        %v496 = vld [vmem:[%s300 + $0x2c4] sm:$0xf]
        %v497 = vld [vmem:[%s300 + $0x2c8] sm:$0xf]
        %v498 = vld [vmem:[%s300 + $0x2cc] sm:$0xf]
        %v499 = vld [vmem:[%s300 + $0x2d0] sm:$0xf]
        %v500 = vld [vmem:[%s300 + $0x2d4] sm:$0xf]
        %v501 = vld [vmem:[%s300 + $0x2d8] sm:$0xf]
        %v502 = vld [vmem:[%s300 + $0x2dc] sm:$0xf]
        %v503 = vld [vmem:[%s300 + $0x2e0] sm:$0xf]
        %v504 = vld [vmem:[%s300 + $0x2e4] sm:$0xf]
        %v505 = vld [vmem:[%s300 + $0x2e8] sm:$0xf]
        %v506 = vld [vmem:[%s300 + $0x2ec] sm:$0xf]
        %v507 = vld [vmem:[%s300 + $0x2f0] sm:$0xf]
        %v508 = vld [vmem:[%s300 + $0x2f4] sm:$0xf]
        %v509 = vld [vmem:[%s300 + $0x2f8] sm:$0xf]
        %v510 = vld [vmem:[%s300 + $0x2fc] sm:$0xf]
        %v511 = vld [vmem:[%s300 + $0x300] sm:$0xf]
        %v512 = vld [vmem:[%s300 + $0x304] sm:$0xf]
        %v513 = vld [vmem:[%s300 + $0x308] sm:$0xf]
        %v514 = vld [vmem:[%s300 + $0x30c] sm:$0xf]
        %v515 = vld [vmem:[%s300 + $0x310] sm:$0xf]
        %v516 = vld [vmem:[%s300 + $0x314] sm:$0xf]
        %v517 = vld [vmem:[%s300 + $0x318] sm:$0xf]
        %v518 = vld [vmem:[%s300 + $0x31c] sm:$0xf]
        %v519 = vld [vmem:[%s300 + $0x320] sm:$0xf]
        %v520 = vld [vmem:[%s300 + $0x324] sm:$0xf]
        %v521 = vld [vmem:[%s300 + $0x328] sm:$0xf]
        %v522 = vld [vmem:[%s300 + $0x32c] sm:$0xf]
        %v523 = vld [vmem:[%s300 + $0x330] sm:$0xf]
        %v524 = vld [vmem:[%s300 + $0x334] sm:$0xf]
        %v525 = vld [vmem:[%s300 + $0x338] sm:$0xf]
        %v526 = vld [vmem:[%s300 + $0x33c] sm:$0xf]
        %v527 = vld [vmem:[%s300 + $0x340] sm:$0xf]
        %v528 = vld [vmem:[%s300 + $0x344] sm:$0xf]
        %v529 = vld [vmem:[%s300 + $0x348] sm:$0xf]
        %v530 = vld [vmem:[%s300 + $0x34c] sm:$0xf]
        %v531 = vld [vmem:[%s300 + $0x350] sm:$0xf]
        %v532 = vld [vmem:[%s300 + $0x354] sm:$0xf]
        %v533 = vld [vmem:[%s300 + $0x358] sm:$0xf]
        %v534 = vld [vmem:[%s300 + $0x35c] sm:$0xf]
        %v535 = vld [vmem:[%s300 + $0x360] sm:$0xf]
        %v536 = vld [vmem:[%s300 + $0x364] sm:$0xf]
        %v537 = vld [vmem:[%s300 + $0x368] sm:$0xf]
        %v538 = vld [vmem:[%s300 + $0x36c] sm:$0xf]
        %v539 = vld [vmem:[%s300 + $0x370] sm:$0xf]
        %v540 = vld [vmem:[%s300 + $0x374] sm:$0xf]
        %v541 = vld [vmem:[%s300 + $0x378] sm:$0xf]
        %v542 = vld [vmem:[%s300 + $0x37c] sm:$0xf]
        %v543 = vld [vmem:[%s300 + $0x380] sm:$0xf]
        %v544 = vld [vmem:[%s300 + $0x384] sm:$0xf]
        %v545 = vld [vmem:[%s300 + $0x388] sm:$0xf]
        %v546 = vld [vmem:[%s300 + $0x38c] sm:$0xf]
        %v547 = vld [vmem:[%s300 + $0x390] sm:$0xf]
        %v548 = vld [vmem:[%s300 + $0x394] sm:$0xf]
        %v549 = vld [vmem:[%s300 + $0x398] sm:$0xf]
        %v550 = vld [vmem:[%s300 + $0x39c] sm:$0xf]
        %v551 = vld [vmem:[%s300 + $0x3a0] sm:$0xf]
        %v552 = vld [vmem:[%s300 + $0x3a4] sm:$0xf]
        %v553 = vld [vmem:[%s300 + $0x3a8] sm:$0xf]
        %v554 = vld [vmem:[%s300 + $0x3ac] sm:$0xf]
        %v555 = vld [vmem:[%s300 + $0x3b0] sm:$0xf]
        %v556 = vld [vmem:[%s300 + $0x3b4] sm:$0xf]
        %v557 = vld [vmem:[%s300 + $0x3b8] sm:$0xf]
        %v558 = vld [vmem:[%s300 + $0x3bc] sm:$0xf]
        %v559 = vld [vmem:[%s300 + $0x3c0] sm:$0xf]
        %v560 = vld [vmem:[%s300 + $0x3c4] sm:$0xf]
        %v561 = vld [vmem:[%s300 + $0x3c8] sm:$0xf]
        %v562 = vld [vmem:[%s300 + $0x3cc] sm:$0xf]
        %v563 = vld [vmem:[%s300 + $0x3d0] sm:$0xf]
        %v564 = vld [vmem:[%s300 + $0x3d4] sm:$0xf]
        %v565 = vld [vmem:[%s300 + $0x3d8] sm:$0xf]
        %v566 = vld [vmem:[%s300 + $0x3dc] sm:$0xf]
        %v567 = vld [vmem:[%s300 + $0x3e0] sm:$0xf]
        %v568 = vld [vmem:[%s300 + $0x3e4] sm:$0xf]
        %v569 = vld [vmem:[%s300 + $0x3e8] sm:$0xf]
        %v570 = vld [vmem:[%s300 + $0x3ec] sm:$0xf]
        %v571 = vld [vmem:[%s300 + $0x3f0] sm:$0xf]
        %v572 = vld [vmem:[%s300 + $0x3f4] sm:$0xf]
        %v573 = vld [vmem:[%s300 + $0x3f8] sm:$0xf]
        %v574 = vld [vmem:[%s300 + $0x3fc] sm:$0xf]
        %v575 = vld [vmem:[%s262] sm:$0xff]
        %v576 = vld [vmem:[%s262 + $0x8] sm:$0xff]
        %v577 = vld [vmem:[%s262 + $0x10] sm:$0xff]
        %v578 = vld [vmem:[%s262 + $0x18] sm:$0xff]
        %v579 = vld [vmem:[%s262 + $0x20] sm:$0xff]
        %v580 = vld [vmem:[%s262 + $0x28] sm:$0xff]
        %v581 = vld [vmem:[%s262 + $0x30] sm:$0xff]
        %v582 = vld [vmem:[%s262 + $0x38] sm:$0xff]
        %v583 = vld [vmem:[%s262 + $0x40] sm:$0xff]
        %v584 = vld [vmem:[%s262 + $0x48] sm:$0xff]
        %v585 = vld [vmem:[%s262 + $0x50] sm:$0xff]
        %v586 = vld [vmem:[%s262 + $0x58] sm:$0xff]
        %v587 = vld [vmem:[%s262 + $0x60] sm:$0xff]
        %v588 = vld [vmem:[%s262 + $0x68] sm:$0xff]
        %v589 = vld [vmem:[%s262 + $0x70] sm:$0xff]
        %v590 = vld [vmem:[%s262 + $0x78] sm:$0xff]
        %v591 = vld [vmem:[%s262 + $0x80] sm:$0xff]
        %v592 = vld [vmem:[%s262 + $0x88] sm:$0xff]
        %v593 = vld [vmem:[%s262 + $0x90] sm:$0xff]
        %v594 = vld [vmem:[%s262 + $0x98] sm:$0xff]
        %v595 = vld [vmem:[%s262 + $0xa0] sm:$0xff]
        %v596 = vld [vmem:[%s262 + $0xa8] sm:$0xff]
        %v597 = vld [vmem:[%s262 + $0xb0] sm:$0xff]
        %v598 = vld [vmem:[%s262 + $0xb8] sm:$0xff]
        %v599 = vld [vmem:[%s262 + $0xc0] sm:$0xff]
        %v600 = vld [vmem:[%s262 + $0xc8] sm:$0xff]
        %v601 = vld [vmem:[%s262 + $0xd0] sm:$0xff]
        %v602 = vld [vmem:[%s262 + $0xd8] sm:$0xff]
        %v603 = vld [vmem:[%s262 + $0xe0] sm:$0xff]
        %v604 = vld [vmem:[%s262 + $0xe8] sm:$0xff]
        %v605 = vld [vmem:[%s262 + $0xf0] sm:$0xff]
        %v606 = vld [vmem:[%s262 + $0xf8] sm:$0xff]
        %v607 = vld [vmem:[%s306] sm:$0xf]
        %v609 = vlaneseq
        %v610 = vshrl.u32 %v609, 7
        %v611 = vsub.s32 0, %v610
        %v612 = vrot.slane %v607, %v611
        %v613 = vlaneseq
        %v614 = vshrl.u32 %v613, 7
        %v615 = vsub.s32 1, %v614
        %v616 = vrot.slane %v607, %v615
        %v617 = vlaneseq
        %v618 = vshrl.u32 %v617, 7
        %v619 = vsub.s32 2, %v618
        %v620 = vrot.slane %v607, %v619
        %v621 = vlaneseq
        %v622 = vshrl.u32 %v621, 7
        %v623 = vsub.s32 3, %v622
        %v624 = vrot.slane %v607, %v623
        %v885 = vunpack.c.l.b16 %v319
        %v886 = vunpack.c.l.b16 %v320
        %v887 = vunpack.c.l.b16 %v321
        %v888 = vunpack.c.l.b16 %v322
        %v889 = vunpack.c.l.b16 %v323
        %v890 = vunpack.c.l.b16 %v324
        %v891 = vunpack.c.l.b16 %v325
        %v892 = vunpack.c.l.b16 %v326
        %v893 = vunpack.c.l.b16 %v327
        %v894 = vunpack.c.l.b16 %v328
        %v895 = vunpack.c.l.b16 %v329
        %v896 = vunpack.c.l.b16 %v330
        %v897 = vunpack.c.l.b16 %v331
        %v898 = vunpack.c.l.b16 %v332
        %v899 = vunpack.c.l.b16 %v333
        %v900 = vunpack.c.l.b16 %v334
        %v901 = vunpack.c.l.b16 %v335
        %v902 = vunpack.c.l.b16 %v336
        %v903 = vunpack.c.l.b16 %v337
        %v904 = vunpack.c.l.b16 %v338
        %v905 = vunpack.c.l.b16 %v339
        %v906 = vunpack.c.l.b16 %v340
        %v907 = vunpack.c.l.b16 %v341
        %v908 = vunpack.c.l.b16 %v342
        %v909 = vunpack.c.l.b16 %v343
        %v910 = vunpack.c.l.b16 %v344
        %v911 = vunpack.c.l.b16 %v345
        %v912 = vunpack.c.l.b16 %v346
        %v913 = vunpack.c.l.b16 %v347
        %v914 = vunpack.c.l.b16 %v348
        %v915 = vunpack.c.l.b16 %v349
        %v916 = vunpack.c.l.b16 %v350
        %v917 = vunpack.c.l.b16 %v351
        %v918 = vunpack.c.l.b16 %v352
        %v919 = vunpack.c.l.b16 %v353
        %v920 = vunpack.c.l.b16 %v354
        %v921 = vunpack.c.l.b16 %v355
        %v922 = vunpack.c.l.b16 %v356
        %v923 = vunpack.c.l.b16 %v357
        %v924 = vunpack.c.l.b16 %v358
        %v925 = vunpack.c.l.b16 %v359
        %v926 = vunpack.c.l.b16 %v360
        %v927 = vunpack.c.l.b16 %v361
        %v928 = vunpack.c.l.b16 %v362
        %v929 = vunpack.c.l.b16 %v363
        %v930 = vunpack.c.l.b16 %v364
        %v931 = vunpack.c.l.b16 %v365
        %v932 = vunpack.c.l.b16 %v366
        %v933 = vunpack.c.l.b16 %v367
        %v934 = vunpack.c.l.b16 %v368
        %v935 = vunpack.c.l.b16 %v369
        %v936 = vunpack.c.l.b16 %v370
        %v937 = vunpack.c.l.b16 %v371
        %v938 = vunpack.c.l.b16 %v372
        %v939 = vunpack.c.l.b16 %v373
        %v940 = vunpack.c.l.b16 %v374
        %v941 = vunpack.c.l.b16 %v375
        %v942 = vunpack.c.l.b16 %v376
        %v943 = vunpack.c.l.b16 %v377
        %v944 = vunpack.c.l.b16 %v378
        %v945 = vunpack.c.l.b16 %v379
        %v946 = vunpack.c.l.b16 %v380
        %v947 = vunpack.c.l.b16 %v381
        %v948 = vunpack.c.l.b16 %v382
        %v949 = vunpack.c.l.b16 %v383
        %v950 = vunpack.c.l.b16 %v384
        %v951 = vunpack.c.l.b16 %v385
        %v952 = vunpack.c.l.b16 %v386
        %v953 = vunpack.c.l.b16 %v387
        %v954 = vunpack.c.l.b16 %v388
        %v955 = vunpack.c.l.b16 %v389
        %v956 = vunpack.c.l.b16 %v390
        %v957 = vunpack.c.l.b16 %v391
        %v958 = vunpack.c.l.b16 %v392
        %v959 = vunpack.c.l.b16 %v393
        %v960 = vunpack.c.l.b16 %v394
        %v961 = vunpack.c.l.b16 %v395
        %v962 = vunpack.c.l.b16 %v396
        %v963 = vunpack.c.l.b16 %v397
        %v964 = vunpack.c.l.b16 %v398
        %v965 = vunpack.c.l.b16 %v399
        %v966 = vunpack.c.l.b16 %v400
        %v967 = vunpack.c.l.b16 %v401
        %v968 = vunpack.c.l.b16 %v402
        %v969 = vunpack.c.l.b16 %v403
        %v970 = vunpack.c.l.b16 %v404
        %v971 = vunpack.c.l.b16 %v405
        %v972 = vunpack.c.l.b16 %v406
        %v973 = vunpack.c.l.b16 %v407
        %v974 = vunpack.c.l.b16 %v408
        %v975 = vunpack.c.l.b16 %v409
        %v976 = vunpack.c.l.b16 %v410
        %v977 = vunpack.c.l.b16 %v411
        %v978 = vunpack.c.l.b16 %v412
        %v979 = vunpack.c.l.b16 %v413
        %v980 = vunpack.c.l.b16 %v414
        %v981 = vunpack.c.l.b16 %v415
        %v982 = vunpack.c.l.b16 %v416
        %v983 = vunpack.c.l.b16 %v417
        %v984 = vunpack.c.l.b16 %v418
        %v985 = vunpack.c.l.b16 %v419
        %v986 = vunpack.c.l.b16 %v420
        %v987 = vunpack.c.l.b16 %v421
        %v988 = vunpack.c.l.b16 %v422
        %v989 = vunpack.c.l.b16 %v423
        %v990 = vunpack.c.l.b16 %v424
        %v991 = vunpack.c.l.b16 %v425
        %v992 = vunpack.c.l.b16 %v426
        %v993 = vunpack.c.l.b16 %v427
        %v994 = vunpack.c.l.b16 %v428
        %v995 = vunpack.c.l.b16 %v429
        %v996 = vunpack.c.l.b16 %v430
        %v997 = vunpack.c.l.b16 %v431
        %v998 = vunpack.c.l.b16 %v432
        %v999 = vunpack.c.l.b16 %v433
        %v1000 = vunpack.c.l.b16 %v434
        %v1001 = vunpack.c.l.b16 %v435
        %v1002 = vunpack.c.l.b16 %v436
        %v1003 = vunpack.c.l.b16 %v437
        %v1004 = vunpack.c.l.b16 %v438
        %v1005 = vunpack.c.l.b16 %v439
        %v1006 = vunpack.c.l.b16 %v440
        %v1007 = vunpack.c.l.b16 %v441
        %v1008 = vunpack.c.l.b16 %v442
        %v1009 = vunpack.c.l.b16 %v443
        %v1010 = vunpack.c.l.b16 %v444
        %v1011 = vunpack.c.l.b16 %v445
        %v1012 = vunpack.c.l.b16 %v446
        %v1013 = vunpack.c.l.b16 %v447
        %v1014 = vunpack.c.l.b16 %v448
        %v1015 = vunpack.c.l.b16 %v449
        %v1016 = vunpack.c.l.b16 %v450
        %v1017 = vunpack.c.l.b16 %v451
        %v1018 = vunpack.c.l.b16 %v452
        %v1019 = vunpack.c.l.b16 %v453
        %v1020 = vunpack.c.l.b16 %v454
        %v1021 = vunpack.c.l.b16 %v455
        %v1022 = vunpack.c.l.b16 %v456
        %v1023 = vunpack.c.l.b16 %v457
        %v1024 = vunpack.c.l.b16 %v458
        %v1025 = vunpack.c.l.b16 %v459
        %v1026 = vunpack.c.l.b16 %v460
        %v1027 = vunpack.c.l.b16 %v461
        %v1028 = vunpack.c.l.b16 %v462
        %v1029 = vunpack.c.l.b16 %v463
        %v1030 = vunpack.c.l.b16 %v464
        %v1031 = vunpack.c.l.b16 %v465
        %v1032 = vunpack.c.l.b16 %v466
        %v1033 = vunpack.c.l.b16 %v467
        %v1034 = vunpack.c.l.b16 %v468
        %v1035 = vunpack.c.l.b16 %v469
        %v1036 = vunpack.c.l.b16 %v470
        %v1037 = vunpack.c.l.b16 %v471
        %v1038 = vunpack.c.l.b16 %v472
        %v1039 = vunpack.c.l.b16 %v473
        %v1040 = vunpack.c.l.b16 %v474
        %v1041 = vunpack.c.l.b16 %v475
        %v1042 = vunpack.c.l.b16 %v476
        %v1043 = vunpack.c.l.b16 %v477
        %v1044 = vunpack.c.l.b16 %v478
        %v1045 = vunpack.c.l.b16 %v479
        %v1046 = vunpack.c.l.b16 %v480
        %v1047 = vunpack.c.l.b16 %v481
        %v1048 = vunpack.c.l.b16 %v482
        %v1049 = vunpack.c.l.b16 %v483
        %v1050 = vunpack.c.l.b16 %v484
        %v1051 = vunpack.c.l.b16 %v485
        %v1052 = vunpack.c.l.b16 %v486
        %v1053 = vunpack.c.l.b16 %v487
        %v1054 = vunpack.c.l.b16 %v488
        %v1055 = vunpack.c.l.b16 %v489
        %v1056 = vunpack.c.l.b16 %v490
        %v1057 = vunpack.c.l.b16 %v491
        %v1058 = vunpack.c.l.b16 %v492
        %v1059 = vunpack.c.l.b16 %v493
        %v1060 = vunpack.c.l.b16 %v494
        %v1061 = vunpack.c.l.b16 %v495
        %v1062 = vunpack.c.l.b16 %v496
        %v1063 = vunpack.c.l.b16 %v497
        %v1064 = vunpack.c.l.b16 %v498
        %v1065 = vunpack.c.l.b16 %v499
        %v1066 = vunpack.c.l.b16 %v500
        %v1067 = vunpack.c.l.b16 %v501
        %v1068 = vunpack.c.l.b16 %v502
        %v1069 = vunpack.c.l.b16 %v503
        %v1070 = vunpack.c.l.b16 %v504
        %v1071 = vunpack.c.l.b16 %v505
        %v1072 = vunpack.c.l.b16 %v506
        %v1073 = vunpack.c.l.b16 %v507
        %v1074 = vunpack.c.l.b16 %v508
        %v1075 = vunpack.c.l.b16 %v509
        %v1076 = vunpack.c.l.b16 %v510
        %v1077 = vunpack.c.l.b16 %v511
        %v1078 = vunpack.c.l.b16 %v512
        %v1079 = vunpack.c.l.b16 %v513
        %v1080 = vunpack.c.l.b16 %v514
        %v1081 = vunpack.c.l.b16 %v515
        %v1082 = vunpack.c.l.b16 %v516
        %v1083 = vunpack.c.l.b16 %v517
        %v1084 = vunpack.c.l.b16 %v518
        %v1085 = vunpack.c.l.b16 %v519
        %v1086 = vunpack.c.l.b16 %v520
        %v1087 = vunpack.c.l.b16 %v521
        %v1088 = vunpack.c.l.b16 %v522
        %v1089 = vunpack.c.l.b16 %v523
        %v1090 = vunpack.c.l.b16 %v524
        %v1091 = vunpack.c.l.b16 %v525
        %v1092 = vunpack.c.l.b16 %v526
        %v1093 = vunpack.c.l.b16 %v527
        %v1094 = vunpack.c.l.b16 %v528
        %v1095 = vunpack.c.l.b16 %v529
        %v1096 = vunpack.c.l.b16 %v530
        %v1097 = vunpack.c.l.b16 %v531
        %v1098 = vunpack.c.l.b16 %v532
        %v1099 = vunpack.c.l.b16 %v533
        %v1100 = vunpack.c.l.b16 %v534
        %v1101 = vunpack.c.l.b16 %v535
        %v1102 = vunpack.c.l.b16 %v536
        %v1103 = vunpack.c.l.b16 %v537
        %v1104 = vunpack.c.l.b16 %v538
        %v1105 = vunpack.c.l.b16 %v539
        %v1106 = vunpack.c.l.b16 %v540
        %v1107 = vunpack.c.l.b16 %v541
        %v1108 = vunpack.c.l.b16 %v542
        %v1109 = vunpack.c.l.b16 %v543
        %v1110 = vunpack.c.l.b16 %v544
        %v1111 = vunpack.c.l.b16 %v545
        %v1112 = vunpack.c.l.b16 %v546
        %v1113 = vunpack.c.l.b16 %v547
        %v1114 = vunpack.c.l.b16 %v548
        %v1115 = vunpack.c.l.b16 %v549
        %v1116 = vunpack.c.l.b16 %v550
        %v1117 = vunpack.c.l.b16 %v551
        %v1118 = vunpack.c.l.b16 %v552
        %v1119 = vunpack.c.l.b16 %v553
        %v1120 = vunpack.c.l.b16 %v554
        %v1121 = vunpack.c.l.b16 %v555
        %v1122 = vunpack.c.l.b16 %v556
        %v1123 = vunpack.c.l.b16 %v557
        %v1124 = vunpack.c.l.b16 %v558
        %v1125 = vunpack.c.l.b16 %v559
        %v1126 = vunpack.c.l.b16 %v560
        %v1127 = vunpack.c.l.b16 %v561
        %v1128 = vunpack.c.l.b16 %v562
        %v1129 = vunpack.c.l.b16 %v563
        %v1130 = vunpack.c.l.b16 %v564
        %v1131 = vunpack.c.l.b16 %v565
        %v1132 = vunpack.c.l.b16 %v566
        %v1133 = vunpack.c.l.b16 %v567
        %v1134 = vunpack.c.l.b16 %v568
        %v1135 = vunpack.c.l.b16 %v569
        %v1136 = vunpack.c.l.b16 %v570
        %v1137 = vunpack.c.l.b16 %v571
        %v1138 = vunpack.c.l.b16 %v572
        %v1139 = vunpack.c.l.b16 %v573
        %v1140 = vunpack.c.l.b16 %v574
        %v1141 = vpack.c.b16 %v886, %v885
        %v1142 = vpack.c.b16 %v888, %v887
        %v1143 = vpack.c.b16 %v890, %v889
        %v1144 = vpack.c.b16 %v892, %v891
        %v1145 = vpack.c.b16 %v894, %v893
        %v1146 = vpack.c.b16 %v896, %v895
        %v1147 = vpack.c.b16 %v898, %v897
        %v1148 = vpack.c.b16 %v900, %v899
        %v1149 = vpack.c.b16 %v902, %v901
        %v1150 = vpack.c.b16 %v904, %v903
        %v1151 = vpack.c.b16 %v906, %v905
        %v1152 = vpack.c.b16 %v908, %v907
        %v1153 = vpack.c.b16 %v910, %v909
        %v1154 = vpack.c.b16 %v912, %v911
        %v1155 = vpack.c.b16 %v914, %v913
        %v1156 = vpack.c.b16 %v916, %v915
        %v1157 = vpack.c.b16 %v918, %v917
        %v1158 = vpack.c.b16 %v920, %v919
        %v1159 = vpack.c.b16 %v922, %v921
        %v1160 = vpack.c.b16 %v924, %v923
        %v1161 = vpack.c.b16 %v926, %v925
        %v1162 = vpack.c.b16 %v928, %v927
        %v1163 = vpack.c.b16 %v930, %v929
        %v1164 = vpack.c.b16 %v932, %v931
        %v1165 = vpack.c.b16 %v934, %v933
        %v1166 = vpack.c.b16 %v936, %v935
        %v1167 = vpack.c.b16 %v938, %v937
        %v1168 = vpack.c.b16 %v940, %v939
        %v1169 = vpack.c.b16 %v942, %v941
        %v1170 = vpack.c.b16 %v944, %v943
        %v1171 = vpack.c.b16 %v946, %v945
        %v1172 = vpack.c.b16 %v948, %v947
        %v1173 = vpack.c.b16 %v950, %v949
        %v1174 = vpack.c.b16 %v952, %v951
        %v1175 = vpack.c.b16 %v954, %v953
        %v1176 = vpack.c.b16 %v956, %v955
        %v1177 = vpack.c.b16 %v958, %v957
        %v1178 = vpack.c.b16 %v960, %v959
        %v1179 = vpack.c.b16 %v962, %v961
        %v1180 = vpack.c.b16 %v964, %v963
        %v1181 = vpack.c.b16 %v966, %v965
        %v1182 = vpack.c.b16 %v968, %v967
        %v1183 = vpack.c.b16 %v970, %v969
        %v1184 = vpack.c.b16 %v972, %v971
        %v1185 = vpack.c.b16 %v974, %v973
        %v1186 = vpack.c.b16 %v976, %v975
        %v1187 = vpack.c.b16 %v978, %v977
        %v1188 = vpack.c.b16 %v980, %v979
        %v1189 = vpack.c.b16 %v982, %v981
        %v1190 = vpack.c.b16 %v984, %v983
        %v1191 = vpack.c.b16 %v986, %v985
        %v1192 = vpack.c.b16 %v988, %v987
        %v1193 = vpack.c.b16 %v990, %v989
        %v1194 = vpack.c.b16 %v992, %v991
        %v1195 = vpack.c.b16 %v994, %v993
        %v1196 = vpack.c.b16 %v996, %v995
        %v1197 = vpack.c.b16 %v998, %v997
        %v1198 = vpack.c.b16 %v1000, %v999
        %v1199 = vpack.c.b16 %v1002, %v1001
        %v1200 = vpack.c.b16 %v1004, %v1003
        %v1201 = vpack.c.b16 %v1006, %v1005
        %v1202 = vpack.c.b16 %v1008, %v1007
        %v1203 = vpack.c.b16 %v1010, %v1009
        %v1204 = vpack.c.b16 %v1012, %v1011
        %v1205 = vpack.c.b16 %v1014, %v1013
        %v1206 = vpack.c.b16 %v1016, %v1015
        %v1207 = vpack.c.b16 %v1018, %v1017
        %v1208 = vpack.c.b16 %v1020, %v1019
        %v1209 = vpack.c.b16 %v1022, %v1021
        %v1210 = vpack.c.b16 %v1024, %v1023
        %v1211 = vpack.c.b16 %v1026, %v1025
        %v1212 = vpack.c.b16 %v1028, %v1027
        %v1213 = vpack.c.b16 %v1030, %v1029
        %v1214 = vpack.c.b16 %v1032, %v1031
        %v1215 = vpack.c.b16 %v1034, %v1033
        %v1216 = vpack.c.b16 %v1036, %v1035
        %v1217 = vpack.c.b16 %v1038, %v1037
        %v1218 = vpack.c.b16 %v1040, %v1039
        %v1219 = vpack.c.b16 %v1042, %v1041
        %v1220 = vpack.c.b16 %v1044, %v1043
        %v1221 = vpack.c.b16 %v1046, %v1045
        %v1222 = vpack.c.b16 %v1048, %v1047
        %v1223 = vpack.c.b16 %v1050, %v1049
        %v1224 = vpack.c.b16 %v1052, %v1051
        %v1225 = vpack.c.b16 %v1054, %v1053
        %v1226 = vpack.c.b16 %v1056, %v1055
        %v1227 = vpack.c.b16 %v1058, %v1057
        %v1228 = vpack.c.b16 %v1060, %v1059
        %v1229 = vpack.c.b16 %v1062, %v1061
        %v1230 = vpack.c.b16 %v1064, %v1063
        %v1231 = vpack.c.b16 %v1066, %v1065
        %v1232 = vpack.c.b16 %v1068, %v1067
        %v1233 = vpack.c.b16 %v1070, %v1069
        %v1234 = vpack.c.b16 %v1072, %v1071
        %v1235 = vpack.c.b16 %v1074, %v1073
        %v1236 = vpack.c.b16 %v1076, %v1075
        %v1237 = vpack.c.b16 %v1078, %v1077
        %v1238 = vpack.c.b16 %v1080, %v1079
        %v1239 = vpack.c.b16 %v1082, %v1081
        %v1240 = vpack.c.b16 %v1084, %v1083
        %v1241 = vpack.c.b16 %v1086, %v1085
        %v1242 = vpack.c.b16 %v1088, %v1087
        %v1243 = vpack.c.b16 %v1090, %v1089
        %v1244 = vpack.c.b16 %v1092, %v1091
        %v1245 = vpack.c.b16 %v1094, %v1093
        %v1246 = vpack.c.b16 %v1096, %v1095
        %v1247 = vpack.c.b16 %v1098, %v1097
        %v1248 = vpack.c.b16 %v1100, %v1099
        %v1249 = vpack.c.b16 %v1102, %v1101
        %v1250 = vpack.c.b16 %v1104, %v1103
        %v1251 = vpack.c.b16 %v1106, %v1105
        %v1252 = vpack.c.b16 %v1108, %v1107
        %v1253 = vpack.c.b16 %v1110, %v1109
        %v1254 = vpack.c.b16 %v1112, %v1111
        %v1255 = vpack.c.b16 %v1114, %v1113
        %v1256 = vpack.c.b16 %v1116, %v1115
        %v1257 = vpack.c.b16 %v1118, %v1117
        %v1258 = vpack.c.b16 %v1120, %v1119
        %v1259 = vpack.c.b16 %v1122, %v1121
        %v1260 = vpack.c.b16 %v1124, %v1123
        %v1261 = vpack.c.b16 %v1126, %v1125
        %v1262 = vpack.c.b16 %v1128, %v1127
        %v1263 = vpack.c.b16 %v1130, %v1129
        %v1264 = vpack.c.b16 %v1132, %v1131
        %v1265 = vpack.c.b16 %v1134, %v1133
        %v1266 = vpack.c.b16 %v1136, %v1135
        %v1267 = vpack.c.b16 %v1138, %v1137
        %v1268 = vpack.c.b16 %v1140, %v1139
        %v1429 = vunpack.c.l.b16 %v575
        %v1430 = vunpack.c.h.b16 %v575
        %v1431 = vunpack.c.l.b16 %v576
        %v1432 = vunpack.c.h.b16 %v576
        %v1433 = vunpack.c.l.b16 %v577
        %v1434 = vunpack.c.h.b16 %v577
        %v1435 = vunpack.c.l.b16 %v578
        %v1436 = vunpack.c.h.b16 %v578
        %v1437 = vunpack.c.l.b16 %v579
        %v1438 = vunpack.c.h.b16 %v579
        %v1439 = vunpack.c.l.b16 %v580
        %v1440 = vunpack.c.h.b16 %v580
        %v1441 = vunpack.c.l.b16 %v581
        %v1442 = vunpack.c.h.b16 %v581
        %v1443 = vunpack.c.l.b16 %v582
        %v1444 = vunpack.c.h.b16 %v582
        %v1445 = vunpack.c.l.b16 %v583
        %v1446 = vunpack.c.h.b16 %v583
        %v1447 = vunpack.c.l.b16 %v584
        %v1448 = vunpack.c.h.b16 %v584
        %v1449 = vunpack.c.l.b16 %v585
        %v1450 = vunpack.c.h.b16 %v585
        %v1451 = vunpack.c.l.b16 %v586
        %v1452 = vunpack.c.h.b16 %v586
        %v1453 = vunpack.c.l.b16 %v587
        %v1454 = vunpack.c.h.b16 %v587
        %v1455 = vunpack.c.l.b16 %v588
        %v1456 = vunpack.c.h.b16 %v588
        %v1457 = vunpack.c.l.b16 %v589
        %v1458 = vunpack.c.h.b16 %v589
        %v1459 = vunpack.c.l.b16 %v590
        %v1460 = vunpack.c.h.b16 %v590
        %v1461 = vunpack.c.l.b16 %v591
        %v1462 = vunpack.c.h.b16 %v591
        %v1463 = vunpack.c.l.b16 %v592
        %v1464 = vunpack.c.h.b16 %v592
        %v1465 = vunpack.c.l.b16 %v593
        %v1466 = vunpack.c.h.b16 %v593
        %v1467 = vunpack.c.l.b16 %v594
        %v1468 = vunpack.c.h.b16 %v594
        %v1469 = vunpack.c.l.b16 %v595
        %v1470 = vunpack.c.h.b16 %v595
        %v1471 = vunpack.c.l.b16 %v596
        %v1472 = vunpack.c.h.b16 %v596
        %v1473 = vunpack.c.l.b16 %v597
        %v1474 = vunpack.c.h.b16 %v597
        %v1475 = vunpack.c.l.b16 %v598
        %v1476 = vunpack.c.h.b16 %v598
        %v1477 = vunpack.c.l.b16 %v599
        %v1478 = vunpack.c.h.b16 %v599
        %v1479 = vunpack.c.l.b16 %v600
        %v1480 = vunpack.c.h.b16 %v600
        %v1481 = vunpack.c.l.b16 %v601
        %v1482 = vunpack.c.h.b16 %v601
        %v1483 = vunpack.c.l.b16 %v602
        %v1484 = vunpack.c.h.b16 %v602
        %v1485 = vunpack.c.l.b16 %v603
        %v1486 = vunpack.c.h.b16 %v603
        %v1487 = vunpack.c.l.b16 %v604
        %v1488 = vunpack.c.h.b16 %v604
        %v1489 = vunpack.c.l.b16 %v605
        %v1490 = vunpack.c.h.b16 %v605
        %v1491 = vunpack.c.l.b16 %v606
        %v1492 = vunpack.c.h.b16 %v606
        %v1493 = vpack.c.b16 %v1433, %v1429
        %v1494 = vpack.c.b16 %v1434, %v1430
        %v1495 = vpack.c.b16 %v1435, %v1431
        %v1496 = vpack.c.b16 %v1436, %v1432
        %v1497 = vpack.c.b16 %v1441, %v1437
        %v1498 = vpack.c.b16 %v1442, %v1438
        %v1499 = vpack.c.b16 %v1443, %v1439
        %v1500 = vpack.c.b16 %v1444, %v1440
        %v1501 = vpack.c.b16 %v1449, %v1445
        %v1502 = vpack.c.b16 %v1450, %v1446
        %v1503 = vpack.c.b16 %v1451, %v1447
        %v1504 = vpack.c.b16 %v1452, %v1448
        %v1505 = vpack.c.b16 %v1457, %v1453
        %v1506 = vpack.c.b16 %v1458, %v1454
        %v1507 = vpack.c.b16 %v1459, %v1455
        %v1508 = vpack.c.b16 %v1460, %v1456
        %v1509 = vpack.c.b16 %v1465, %v1461
        %v1510 = vpack.c.b16 %v1466, %v1462
        %v1511 = vpack.c.b16 %v1467, %v1463
        %v1512 = vpack.c.b16 %v1468, %v1464
        %v1513 = vpack.c.b16 %v1473, %v1469
        %v1514 = vpack.c.b16 %v1474, %v1470
        %v1515 = vpack.c.b16 %v1475, %v1471
        %v1516 = vpack.c.b16 %v1476, %v1472
        %v1517 = vpack.c.b16 %v1481, %v1477
        %v1518 = vpack.c.b16 %v1482, %v1478
        %v1519 = vpack.c.b16 %v1483, %v1479
        %v1520 = vpack.c.b16 %v1484, %v1480
        %v1521 = vpack.c.b16 %v1489, %v1485
        %v1522 = vpack.c.b16 %v1490, %v1486
        %v1523 = vpack.c.b16 %v1491, %v1487
        %v1524 = vpack.c.b16 %v1492, %v1488
        %1557 = vmatprep.subr.bf16.mxu0 %v1494
        %1558 = vmatpush1.bf16.msra.mxu0 %v1493
        %1559 = vmatprep.subr.bf16.mxu0 %v1498
        %1560 = vmatpush1.bf16.msra.mxu0 %v1497
        %1561 = vmatprep.subr.bf16.mxu0 %v1502
        %1562 = vmatpush1.bf16.msra.mxu0 %v1501
        %1563 = vmatprep.subr.bf16.mxu0 %v1506
        %1564 = vmatpush1.bf16.msra.mxu0 %v1505
        %1565 = vmatprep.subr.bf16.mxu0 %v1510
        %1566 = vmatpush1.bf16.msra.mxu0 %v1509
        %1567 = vmatprep.subr.bf16.mxu0 %v1514
        %1568 = vmatpush1.bf16.msra.mxu0 %v1513
        %1569 = vmatprep.subr.bf16.mxu0 %v1518
        %1570 = vmatpush1.bf16.msra.mxu0 %v1517
        %1571 = vmatprep.subr.bf16.mxu0 %v1522
        %1572 = vmatpush1.bf16.msra.mxu0 %v1521
        %1573 = vmatprep.subr.bf16.mxu0 0
        %1574 = vmatpush1.bf16.msra.mxu0 0
        %1575 = vmatprep.subr.bf16.mxu0 0
        %1576 = vmatpush1.bf16.msra.mxu0 0
        %1577 = vmatprep.subr.bf16.mxu0 0
        %1578 = vmatpush1.bf16.msra.mxu0 0
        %1579 = vmatprep.subr.bf16.mxu0 0
        %1580 = vmatpush1.bf16.msra.mxu0 0
        %1581 = vmatprep.subr.bf16.mxu0 0
        %1582 = vmatpush1.bf16.msra.mxu0 0
        %1583 = vmatprep.subr.bf16.mxu0 0
        %1584 = vmatpush1.bf16.msra.mxu0 0
        %1585 = vmatprep.subr.bf16.mxu0 0
        %1586 = vmatpush1.bf16.msra.mxu0 0
        %1587 = vmatprep.subr.bf16.mxu0 0
        %1588 = vmatpush1.bf16.msra.mxu0 0
        %1589 = vmatprep.mubr.bf16.mxu0 0
        %1590 = vmatmul.mubr.bf16.gmra.mrb[0].mxu0 %v1141
        %v1591 = vpop.f32.mrb[0].mxu0
        %v1592 = vadd.f32 %v612, %v1591
        %v1593 = vpop.f32.mrb[0].mxu0
        %v1594 = vadd.f32 %v616, %v1593
        %v1595 = vpop.f32.mrb[0].mxu0
        %v1596 = vadd.f32 %v612, %v1595
        %v1597 = vpop.f32.mrb[0].mxu0
        %v1598 = vadd.f32 %v616, %v1597
        %1599 = vmatprep.mubr.bf16.mxu0 0
        %1600 = vmatmul.mubr.bf16.gmra.mrb[0].mxu0 %v1142
        %v1601 = vpop.f32.mrb[0].mxu0
        %v1602 = vadd.f32 %v612, %v1601
        %v1603 = vpop.f32.mrb[0].mxu0
        %v1604 = vadd.f32 %v616, %v1603
        %v1605 = vpop.f32.mrb[0].mxu0
        %v1606 = vadd.f32 %v612, %v1605
        %v1607 = vpop.f32.mrb[0].mxu0
        %v1608 = vadd.f32 %v616, %v1607
        %1609 = vmatprep.mubr.bf16.mxu0 0
        %1610 = vmatmul.mubr.bf16.gmra.mrb[0].mxu0 %v1143
        %v1611 = vpop.f32.mrb[0].mxu0
        %v1612 = vadd.f32 %v612, %v1611
        %v1613 = vpop.f32.mrb[0].mxu0
        %v1614 = vadd.f32 %v616, %v1613
        %v1615 = vpop.f32.mrb[0].mxu0
        %v1616 = vadd.f32 %v612, %v1615
        %v1617 = vpop.f32.mrb[0].mxu0
        %v1618 = vadd.f32 %v616, %v1617
        %1619 = vmatprep.mubr.bf16.mxu0 0
        %1620 = vmatmul.mubr.bf16.gmra.mrb[0].mxu0 %v1144
        %v1621 = vpop.f32.mrb[0].mxu0
        %v1622 = vadd.f32 %v612, %v1621
        %v1623 = vpop.f32.mrb[0].mxu0
        %v1624 = vadd.f32 %v616, %v1623
        %v1625 = vpop.f32.mrb[0].mxu0
        %v1626 = vadd.f32 %v612, %v1625
        %v1627 = vpop.f32.mrb[0].mxu0
        %v1628 = vadd.f32 %v616, %v1627
        %1629 = vmatprep.mubr.bf16.mxu0 0
        %1630 = vmatmul.mubr.bf16.gmra.mrb[0].mxu0 %v1145
        %v1631 = vpop.f32.mrb[0].mxu0
        %v1632 = vadd.f32 %v612, %v1631
        %v1633 = vpop.f32.mrb[0].mxu0
        %v1634 = vadd.f32 %v616, %v1633
        %v1635 = vpop.f32.mrb[0].mxu0
        %v1636 = vadd.f32 %v612, %v1635
        %v1637 = vpop.f32.mrb[0].mxu0
        %v1638 = vadd.f32 %v616, %v1637
        %1639 = vmatprep.mubr.bf16.mxu0 0
        %1640 = vmatmul.mubr.bf16.gmra.mrb[0].mxu0 %v1146
        %v1641 = vpop.f32.mrb[0].mxu0
        %v1642 = vadd.f32 %v612, %v1641
        %v1643 = vpop.f32.mrb[0].mxu0
        %v1644 = vadd.f32 %v616, %v1643
        %v1645 = vpop.f32.mrb[0].mxu0
        %v1646 = vadd.f32 %v612, %v1645
        %v1647 = vpop.f32.mrb[0].mxu0
        %v1648 = vadd.f32 %v616, %v1647
        %1649 = vmatprep.mubr.bf16.mxu0 0
        %1650 = vmatmul.mubr.bf16.gmra.mrb[0].mxu0 %v1147
        %v1651 = vpop.f32.mrb[0].mxu0
        %v1652 = vadd.f32 %v612, %v1651
        %v1653 = vpop.f32.mrb[0].mxu0
        %v1654 = vadd.f32 %v616, %v1653
        %v1655 = vpop.f32.mrb[0].mxu0
        %v1656 = vadd.f32 %v612, %v1655
        %v1657 = vpop.f32.mrb[0].mxu0
        %v1658 = vadd.f32 %v616, %v1657
        %1659 = vmatprep.mubr.bf16.mxu0 0
        %1660 = vmatmul.mubr.bf16.gmra.mrb[0].mxu0 %v1148
        %v1661 = vpop.f32.mrb[0].mxu0
        %v1662 = vadd.f32 %v612, %v1661
        %v1663 = vpop.f32.mrb[0].mxu0
        %v1664 = vadd.f32 %v616, %v1663
        %v1665 = vpop.f32.mrb[0].mxu0
        %v1666 = vadd.f32 %v612, %v1665
        %v1667 = vpop.f32.mrb[0].mxu0
        %v1668 = vadd.f32 %v616, %v1667
        %1669 = vmatprep.mubr.bf16.mxu0 0
        %1670 = vmatmul.mubr.bf16.gmra.mrb[0].mxu0 %v1149
        %v1671 = vpop.f32.mrb[0].mxu0
        %v1672 = vadd.f32 %v612, %v1671
        %v1673 = vpop.f32.mrb[0].mxu0
        %v1674 = vadd.f32 %v616, %v1673
        %v1675 = vpop.f32.mrb[0].mxu0
        %v1676 = vadd.f32 %v612, %v1675
        %v1677 = vpop.f32.mrb[0].mxu0
        %v1678 = vadd.f32 %v616, %v1677
        %1679 = vmatprep.mubr.bf16.mxu0 0
        %1680 = vmatmul.mubr.bf16.gmra.mrb[0].mxu0 %v1150
        %v1681 = vpop.f32.mrb[0].mxu0
        %v1682 = vadd.f32 %v612, %v1681
        %v1683 = vpop.f32.mrb[0].mxu0
        %v1684 = vadd.f32 %v616, %v1683
        %v1685 = vpop.f32.mrb[0].mxu0
        %v1686 = vadd.f32 %v612, %v1685
        %v1687 = vpop.f32.mrb[0].mxu0
        %v1688 = vadd.f32 %v616, %v1687
        %1689 = vmatprep.mubr.bf16.mxu0 0
        %1690 = vmatmul.mubr.bf16.gmra.mrb[0].mxu0 %v1151
        %v1691 = vpop.f32.mrb[0].mxu0
        %v1692 = vadd.f32 %v612, %v1691
        %v1693 = vpop.f32.mrb[0].mxu0
        %v1694 = vadd.f32 %v616, %v1693
        %v1695 = vpop.f32.mrb[0].mxu0
        %v1696 = vadd.f32 %v612, %v1695
        %v1697 = vpop.f32.mrb[0].mxu0
        %v1698 = vadd.f32 %v616, %v1697
        %1699 = vmatprep.mubr.bf16.mxu0 0
        %1700 = vmatmul.mubr.bf16.gmra.mrb[0].mxu0 %v1152
        %v1701 = vpop.f32.mrb[0].mxu0
        %v1702 = vadd.f32 %v612, %v1701
        %v1703 = vpop.f32.mrb[0].mxu0
        %v1704 = vadd.f32 %v616, %v1703
        %v1705 = vpop.f32.mrb[0].mxu0
        %v1706 = vadd.f32 %v612, %v1705
        %v1707 = vpop.f32.mrb[0].mxu0
        %v1708 = vadd.f32 %v616, %v1707
        %1709 = vmatprep.mubr.bf16.mxu0 0
        %1710 = vmatmul.mubr.bf16.gmra.mrb[0].mxu0 %v1153
        %v1711 = vpop.f32.mrb[0].mxu0
        %v1712 = vadd.f32 %v612, %v1711
        %v1713 = vpop.f32.mrb[0].mxu0
        %v1714 = vadd.f32 %v616, %v1713
        %v1715 = vpop.f32.mrb[0].mxu0
        %v1716 = vadd.f32 %v612, %v1715
        %v1717 = vpop.f32.mrb[0].mxu0
        %v1718 = vadd.f32 %v616, %v1717
        %1719 = vmatprep.mubr.bf16.mxu0 0
        %1720 = vmatmul.mubr.bf16.gmra.mrb[0].mxu0 %v1154
        %v1721 = vpop.f32.mrb[0].mxu0
        %v1722 = vadd.f32 %v612, %v1721
        %v1723 = vpop.f32.mrb[0].mxu0
        %v1724 = vadd.f32 %v616, %v1723
        %v1725 = vpop.f32.mrb[0].mxu0
        %v1726 = vadd.f32 %v612, %v1725
        %v1727 = vpop.f32.mrb[0].mxu0
        %v1728 = vadd.f32 %v616, %v1727
        %1729 = vmatprep.mubr.bf16.mxu0 0
        %1730 = vmatmul.mubr.bf16.gmra.mrb[0].mxu0 %v1155
        %v1731 = vpop.f32.mrb[0].mxu0
        %v1732 = vadd.f32 %v612, %v1731
        %v1733 = vpop.f32.mrb[0].mxu0
        %v1734 = vadd.f32 %v616, %v1733
        %v1735 = vpop.f32.mrb[0].mxu0
        %v1736 = vadd.f32 %v612, %v1735
        %v1737 = vpop.f32.mrb[0].mxu0
        %v1738 = vadd.f32 %v616, %v1737
        %1739 = vmatprep.mubr.bf16.mxu0 0
        %1740 = vmatmul.mubr.bf16.gmra.mrb[0].mxu0 %v1156
        %v1741 = vpop.f32.mrb[0].mxu0
        %v1742 = vadd.f32 %v612, %v1741
        %v1743 = vpop.f32.mrb[0].mxu0
        %v1744 = vadd.f32 %v616, %v1743
        %v1745 = vpop.f32.mrb[0].mxu0
        %v1746 = vadd.f32 %v612, %v1745
        %v1747 = vpop.f32.mrb[0].mxu0
        %v1748 = vadd.f32 %v616, %v1747
        %1749 = vmatprep.mubr.bf16.mxu0 0
        %1750 = vmatmul.mubr.bf16.gmra.mrb[0].mxu0 %v1157
        %v1751 = vpop.f32.mrb[0].mxu0
        %v1752 = vadd.f32 %v612, %v1751
        %v1753 = vpop.f32.mrb[0].mxu0
        %v1754 = vadd.f32 %v616, %v1753
        %v1755 = vpop.f32.mrb[0].mxu0
        %v1756 = vadd.f32 %v612, %v1755
        %v1757 = vpop.f32.mrb[0].mxu0
        %v1758 = vadd.f32 %v616, %v1757
        %1759 = vmatprep.mubr.bf16.mxu0 0
        %1760 = vmatmul.mubr.bf16.gmra.mrb[0].mxu0 %v1158
        %v1761 = vpop.f32.mrb[0].mxu0
        %v1762 = vadd.f32 %v612, %v1761
        %v1763 = vpop.f32.mrb[0].mxu0
        %v1764 = vadd.f32 %v616, %v1763
        %v1765 = vpop.f32.mrb[0].mxu0
        %v1766 = vadd.f32 %v612, %v1765
        %v1767 = vpop.f32.mrb[0].mxu0
        %v1768 = vadd.f32 %v616, %v1767
        %1769 = vmatprep.mubr.bf16.mxu0 0
        %1770 = vmatmul.mubr.bf16.gmra.mrb[0].mxu0 %v1159
        %v1771 = vpop.f32.mrb[0].mxu0
        %v1772 = vadd.f32 %v612, %v1771
        %v1773 = vpop.f32.mrb[0].mxu0
        %v1774 = vadd.f32 %v616, %v1773
        %v1775 = vpop.f32.mrb[0].mxu0
        %v1776 = vadd.f32 %v612, %v1775
        %v1777 = vpop.f32.mrb[0].mxu0
        %v1778 = vadd.f32 %v616, %v1777
        %1779 = vmatprep.mubr.bf16.mxu0 0
        %1780 = vmatmul.mubr.bf16.gmra.mrb[0].mxu0 %v1160
        %v1781 = vpop.f32.mrb[0].mxu0
        %v1782 = vadd.f32 %v612, %v1781
        %v1783 = vpop.f32.mrb[0].mxu0
        %v1784 = vadd.f32 %v616, %v1783
        %v1785 = vpop.f32.mrb[0].mxu0
        %v1786 = vadd.f32 %v612, %v1785
        %v1787 = vpop.f32.mrb[0].mxu0
        %v1788 = vadd.f32 %v616, %v1787
        %1789 = vmatprep.mubr.bf16.mxu0 0
        %1790 = vmatmul.mubr.bf16.gmra.mrb[0].mxu0 %v1161
        %v1791 = vpop.f32.mrb[0].mxu0
        %v1792 = vadd.f32 %v612, %v1791
        %v1793 = vpop.f32.mrb[0].mxu0
        %v1794 = vadd.f32 %v616, %v1793
        %v1795 = vpop.f32.mrb[0].mxu0
        %v1796 = vadd.f32 %v612, %v1795
        %v1797 = vpop.f32.mrb[0].mxu0
        %v1798 = vadd.f32 %v616, %v1797
        %1799 = vmatprep.mubr.bf16.mxu0 0
        %1800 = vmatmul.mubr.bf16.gmra.mrb[0].mxu0 %v1162
        %v1801 = vpop.f32.mrb[0].mxu0
        %v1802 = vadd.f32 %v612, %v1801
        %v1803 = vpop.f32.mrb[0].mxu0
        %v1804 = vadd.f32 %v616, %v1803
        %v1805 = vpop.f32.mrb[0].mxu0
        %v1806 = vadd.f32 %v612, %v1805
        %v1807 = vpop.f32.mrb[0].mxu0
        %v1808 = vadd.f32 %v616, %v1807
        %1809 = vmatprep.mubr.bf16.mxu0 0
        %1810 = vmatmul.mubr.bf16.gmra.mrb[0].mxu0 %v1163
        %v1811 = vpop.f32.mrb[0].mxu0
        %v1812 = vadd.f32 %v612, %v1811
        %v1813 = vpop.f32.mrb[0].mxu0
        %v1814 = vadd.f32 %v616, %v1813
        %v1815 = vpop.f32.mrb[0].mxu0
        %v1816 = vadd.f32 %v612, %v1815
        %v1817 = vpop.f32.mrb[0].mxu0
        %v1818 = vadd.f32 %v616, %v1817
        %1819 = vmatprep.mubr.bf16.mxu0 0
        %1820 = vmatmul.mubr.bf16.gmra.mrb[0].mxu0 %v1164
        %v1821 = vpop.f32.mrb[0].mxu0
        %v1822 = vadd.f32 %v612, %v1821
        %v1823 = vpop.f32.mrb[0].mxu0
        %v1824 = vadd.f32 %v616, %v1823
        %v1825 = vpop.f32.mrb[0].mxu0
        %v1826 = vadd.f32 %v612, %v1825
        %v1827 = vpop.f32.mrb[0].mxu0
        %v1828 = vadd.f32 %v616, %v1827
        %1829 = vmatprep.mubr.bf16.mxu0 0
        %1830 = vmatmul.mubr.bf16.gmra.mrb[0].mxu0 %v1165
        %v1831 = vpop.f32.mrb[0].mxu0
        %v1832 = vadd.f32 %v612, %v1831
        %v1833 = vpop.f32.mrb[0].mxu0
        %v1834 = vadd.f32 %v616, %v1833
        %v1835 = vpop.f32.mrb[0].mxu0
        %v1836 = vadd.f32 %v612, %v1835
        %v1837 = vpop.f32.mrb[0].mxu0
        %v1838 = vadd.f32 %v616, %v1837
        %1839 = vmatprep.mubr.bf16.mxu0 0
        %1840 = vmatmul.mubr.bf16.gmra.mrb[0].mxu0 %v1166
        %v1841 = vpop.f32.mrb[0].mxu0
        %v1842 = vadd.f32 %v612, %v1841
        %v1843 = vpop.f32.mrb[0].mxu0
        %v1844 = vadd.f32 %v616, %v1843
        %v1845 = vpop.f32.mrb[0].mxu0
        %v1846 = vadd.f32 %v612, %v1845
        %v1847 = vpop.f32.mrb[0].mxu0
        %v1848 = vadd.f32 %v616, %v1847
        %1849 = vmatprep.mubr.bf16.mxu0 0
        %1850 = vmatmul.mubr.bf16.gmra.mrb[0].mxu0 %v1167
        %v1851 = vpop.f32.mrb[0].mxu0
        %v1852 = vadd.f32 %v612, %v1851
        %v1853 = vpop.f32.mrb[0].mxu0
        %v1854 = vadd.f32 %v616, %v1853
        %v1855 = vpop.f32.mrb[0].mxu0
        %v1856 = vadd.f32 %v612, %v1855
        %v1857 = vpop.f32.mrb[0].mxu0
        %v1858 = vadd.f32 %v616, %v1857
        %1859 = vmatprep.mubr.bf16.mxu0 0
        %1860 = vmatmul.mubr.bf16.gmra.mrb[0].mxu0 %v1168
        %v1861 = vpop.f32.mrb[0].mxu0
        %v1862 = vadd.f32 %v612, %v1861
        %v1863 = vpop.f32.mrb[0].mxu0
        %v1864 = vadd.f32 %v616, %v1863
        %v1865 = vpop.f32.mrb[0].mxu0
        %v1866 = vadd.f32 %v612, %v1865
        %v1867 = vpop.f32.mrb[0].mxu0
        %v1868 = vadd.f32 %v616, %v1867
        %1869 = vmatprep.mubr.bf16.mxu0 0
        %1870 = vmatmul.mubr.bf16.gmra.mrb[0].mxu0 %v1169
        %v1871 = vpop.f32.mrb[0].mxu0
        %v1872 = vadd.f32 %v612, %v1871
        %v1873 = vpop.f32.mrb[0].mxu0
        %v1874 = vadd.f32 %v616, %v1873
        %v1875 = vpop.f32.mrb[0].mxu0
        %v1876 = vadd.f32 %v612, %v1875
        %v1877 = vpop.f32.mrb[0].mxu0
        %v1878 = vadd.f32 %v616, %v1877
        %1879 = vmatprep.mubr.bf16.mxu0 0
        %1880 = vmatmul.mubr.bf16.gmra.mrb[0].mxu0 %v1170
        %v1881 = vpop.f32.mrb[0].mxu0
        %v1882 = vadd.f32 %v612, %v1881
        %v1883 = vpop.f32.mrb[0].mxu0
        %v1884 = vadd.f32 %v616, %v1883
        %v1885 = vpop.f32.mrb[0].mxu0
        %v1886 = vadd.f32 %v612, %v1885
        %v1887 = vpop.f32.mrb[0].mxu0
        %v1888 = vadd.f32 %v616, %v1887
        %1889 = vmatprep.mubr.bf16.mxu0 0
        %1890 = vmatmul.mubr.bf16.gmra.mrb[0].mxu0 %v1171
        %v1891 = vpop.f32.mrb[0].mxu0
        %v1892 = vadd.f32 %v612, %v1891
        %v1893 = vpop.f32.mrb[0].mxu0
        %v1894 = vadd.f32 %v616, %v1893
        %v1895 = vpop.f32.mrb[0].mxu0
        %v1896 = vadd.f32 %v612, %v1895
        %v1897 = vpop.f32.mrb[0].mxu0
        %v1898 = vadd.f32 %v616, %v1897
        %1899 = vmatprep.mubr.bf16.mxu0 0
        %1900 = vmatmul.mubr.bf16.gmra.mrb[0].mxu0 %v1172
        %v1901 = vpop.f32.mrb[0].mxu0
        %v1902 = vadd.f32 %v612, %v1901
        %v1903 = vpop.f32.mrb[0].mxu0
        %v1904 = vadd.f32 %v616, %v1903
        %v1905 = vpop.f32.mrb[0].mxu0
        %v1906 = vadd.f32 %v612, %v1905
        %v1907 = vpop.f32.mrb[0].mxu0
        %v1908 = vadd.f32 %v616, %v1907
        %1909 = vmatprep.mubr.bf16.mxu0 0
        %1910 = vmatmul.mubr.bf16.gmra.mrb[0].mxu0 %v1173
        %v1911 = vpop.f32.mrb[0].mxu0
        %v1912 = vadd.f32 %v612, %v1911
        %v1913 = vpop.f32.mrb[0].mxu0
        %v1914 = vadd.f32 %v616, %v1913
        %v1915 = vpop.f32.mrb[0].mxu0
        %v1916 = vadd.f32 %v612, %v1915
        %v1917 = vpop.f32.mrb[0].mxu0
        %v1918 = vadd.f32 %v616, %v1917
        %1919 = vmatprep.mubr.bf16.mxu0 0
        %1920 = vmatmul.mubr.bf16.gmra.mrb[0].mxu0 %v1174
        %v1921 = vpop.f32.mrb[0].mxu0
        %v1922 = vadd.f32 %v612, %v1921
        %v1923 = vpop.f32.mrb[0].mxu0
        %v1924 = vadd.f32 %v616, %v1923
        %v1925 = vpop.f32.mrb[0].mxu0
        %v1926 = vadd.f32 %v612, %v1925
        %v1927 = vpop.f32.mrb[0].mxu0
        %v1928 = vadd.f32 %v616, %v1927
        %1929 = vmatprep.mubr.bf16.mxu0 0
        %1930 = vmatmul.mubr.bf16.gmra.mrb[0].mxu0 %v1175
        %v1931 = vpop.f32.mrb[0].mxu0
        %v1932 = vadd.f32 %v612, %v1931
        %v1933 = vpop.f32.mrb[0].mxu0
        %v1934 = vadd.f32 %v616, %v1933
        %v1935 = vpop.f32.mrb[0].mxu0
        %v1936 = vadd.f32 %v612, %v1935
        %v1937 = vpop.f32.mrb[0].mxu0
        %v1938 = vadd.f32 %v616, %v1937
        %1939 = vmatprep.mubr.bf16.mxu0 0
        %1940 = vmatmul.mubr.bf16.gmra.mrb[0].mxu0 %v1176
        %v1941 = vpop.f32.mrb[0].mxu0
        %v1942 = vadd.f32 %v612, %v1941
        %v1943 = vpop.f32.mrb[0].mxu0
        %v1944 = vadd.f32 %v616, %v1943
        %v1945 = vpop.f32.mrb[0].mxu0
        %v1946 = vadd.f32 %v612, %v1945
        %v1947 = vpop.f32.mrb[0].mxu0
        %v1948 = vadd.f32 %v616, %v1947
        %1949 = vmatprep.mubr.bf16.mxu0 0
        %1950 = vmatmul.mubr.bf16.gmra.mrb[0].mxu0 %v1177
        %v1951 = vpop.f32.mrb[0].mxu0
        %v1952 = vadd.f32 %v612, %v1951
        %v1953 = vpop.f32.mrb[0].mxu0
        %v1954 = vadd.f32 %v616, %v1953
        %v1955 = vpop.f32.mrb[0].mxu0
        %v1956 = vadd.f32 %v612, %v1955
        %v1957 = vpop.f32.mrb[0].mxu0
        %v1958 = vadd.f32 %v616, %v1957
        %1959 = vmatprep.mubr.bf16.mxu0 0
        %1960 = vmatmul.mubr.bf16.gmra.mrb[0].mxu0 %v1178
        %v1961 = vpop.f32.mrb[0].mxu0
        %v1962 = vadd.f32 %v612, %v1961
        %v1963 = vpop.f32.mrb[0].mxu0
        %v1964 = vadd.f32 %v616, %v1963
        %v1965 = vpop.f32.mrb[0].mxu0
        %v1966 = vadd.f32 %v612, %v1965
        %v1967 = vpop.f32.mrb[0].mxu0
        %v1968 = vadd.f32 %v616, %v1967
        %1969 = vmatprep.mubr.bf16.mxu0 0
        %1970 = vmatmul.mubr.bf16.gmra.mrb[0].mxu0 %v1179
        %v1971 = vpop.f32.mrb[0].mxu0
        %v1972 = vadd.f32 %v612, %v1971
        %v1973 = vpop.f32.mrb[0].mxu0
        %v1974 = vadd.f32 %v616, %v1973
        %v1975 = vpop.f32.mrb[0].mxu0
        %v1976 = vadd.f32 %v612, %v1975
        %v1977 = vpop.f32.mrb[0].mxu0
        %v1978 = vadd.f32 %v616, %v1977
        %1979 = vmatprep.mubr.bf16.mxu0 0
        %1980 = vmatmul.mubr.bf16.gmra.mrb[0].mxu0 %v1180
        %v1981 = vpop.f32.mrb[0].mxu0
        %v1982 = vadd.f32 %v612, %v1981
        %v1983 = vpop.f32.mrb[0].mxu0
        %v1984 = vadd.f32 %v616, %v1983
        %v1985 = vpop.f32.mrb[0].mxu0
        %v1986 = vadd.f32 %v612, %v1985
        %v1987 = vpop.f32.mrb[0].mxu0
        %v1988 = vadd.f32 %v616, %v1987
        %1989 = vmatprep.mubr.bf16.mxu0 0
        %1990 = vmatmul.mubr.bf16.gmra.mrb[0].mxu0 %v1181
        %v1991 = vpop.f32.mrb[0].mxu0
        %v1992 = vadd.f32 %v612, %v1991
        %v1993 = vpop.f32.mrb[0].mxu0
        %v1994 = vadd.f32 %v616, %v1993
        %v1995 = vpop.f32.mrb[0].mxu0
        %v1996 = vadd.f32 %v612, %v1995
        %v1997 = vpop.f32.mrb[0].mxu0
        %v1998 = vadd.f32 %v616, %v1997
        %1999 = vmatprep.mubr.bf16.mxu0 0
        %2000 = vmatmul.mubr.bf16.gmra.mrb[0].mxu0 %v1182
        %v2001 = vpop.f32.mrb[0].mxu0
        %v2002 = vadd.f32 %v612, %v2001
        %v2003 = vpop.f32.mrb[0].mxu0
        %v2004 = vadd.f32 %v616, %v2003
        %v2005 = vpop.f32.mrb[0].mxu0
        %v2006 = vadd.f32 %v612, %v2005
        %v2007 = vpop.f32.mrb[0].mxu0
        %v2008 = vadd.f32 %v616, %v2007
        %2009 = vmatprep.mubr.bf16.mxu0 0
        %2010 = vmatmul.mubr.bf16.gmra.mrb[0].mxu0 %v1183
        %v2011 = vpop.f32.mrb[0].mxu0
        %v2012 = vadd.f32 %v612, %v2011
        %v2013 = vpop.f32.mrb[0].mxu0
        %v2014 = vadd.f32 %v616, %v2013
        %v2015 = vpop.f32.mrb[0].mxu0
        %v2016 = vadd.f32 %v612, %v2015
        %v2017 = vpop.f32.mrb[0].mxu0
        %v2018 = vadd.f32 %v616, %v2017
        %2019 = vmatprep.mubr.bf16.mxu0 0
        %2020 = vmatmul.mubr.bf16.gmra.mrb[0].mxu0 %v1184
        %v2021 = vpop.f32.mrb[0].mxu0
        %v2022 = vadd.f32 %v612, %v2021
        %v2023 = vpop.f32.mrb[0].mxu0
        %v2024 = vadd.f32 %v616, %v2023
        %v2025 = vpop.f32.mrb[0].mxu0
        %v2026 = vadd.f32 %v612, %v2025
        %v2027 = vpop.f32.mrb[0].mxu0
        %v2028 = vadd.f32 %v616, %v2027
        %2029 = vmatprep.mubr.bf16.mxu0 0
        %2030 = vmatmul.mubr.bf16.gmra.mrb[0].mxu0 %v1185
        %v2031 = vpop.f32.mrb[0].mxu0
        %v2032 = vadd.f32 %v612, %v2031
        %v2033 = vpop.f32.mrb[0].mxu0
        %v2034 = vadd.f32 %v616, %v2033
        %v2035 = vpop.f32.mrb[0].mxu0
        %v2036 = vadd.f32 %v612, %v2035
        %v2037 = vpop.f32.mrb[0].mxu0
        %v2038 = vadd.f32 %v616, %v2037
        %2039 = vmatprep.mubr.bf16.mxu0 0
        %2040 = vmatmul.mubr.bf16.gmra.mrb[0].mxu0 %v1186
        %v2041 = vpop.f32.mrb[0].mxu0
        %v2042 = vadd.f32 %v612, %v2041
        %v2043 = vpop.f32.mrb[0].mxu0
        %v2044 = vadd.f32 %v616, %v2043
        %v2045 = vpop.f32.mrb[0].mxu0
        %v2046 = vadd.f32 %v612, %v2045
        %v2047 = vpop.f32.mrb[0].mxu0
        %v2048 = vadd.f32 %v616, %v2047
        %2049 = vmatprep.mubr.bf16.mxu0 0
        %2050 = vmatmul.mubr.bf16.gmra.mrb[0].mxu0 %v1187
        %v2051 = vpop.f32.mrb[0].mxu0
        %v2052 = vadd.f32 %v612, %v2051
        %v2053 = vpop.f32.mrb[0].mxu0
        %v2054 = vadd.f32 %v616, %v2053
        %v2055 = vpop.f32.mrb[0].mxu0
        %v2056 = vadd.f32 %v612, %v2055
        %v2057 = vpop.f32.mrb[0].mxu0
        %v2058 = vadd.f32 %v616, %v2057
        %2059 = vmatprep.mubr.bf16.mxu0 0
        %2060 = vmatmul.mubr.bf16.gmra.mrb[0].mxu0 %v1188
        %v2061 = vpop.f32.mrb[0].mxu0
        %v2062 = vadd.f32 %v612, %v2061
        %v2063 = vpop.f32.mrb[0].mxu0
        %v2064 = vadd.f32 %v616, %v2063
        %v2065 = vpop.f32.mrb[0].mxu0
        %v2066 = vadd.f32 %v612, %v2065
        %v2067 = vpop.f32.mrb[0].mxu0
        %v2068 = vadd.f32 %v616, %v2067
        %2069 = vmatprep.mubr.bf16.mxu0 0
        %2070 = vmatmul.mubr.bf16.gmra.mrb[0].mxu0 %v1189
        %v2071 = vpop.f32.mrb[0].mxu0
        %v2072 = vadd.f32 %v612, %v2071
        %v2073 = vpop.f32.mrb[0].mxu0
        %v2074 = vadd.f32 %v616, %v2073
        %v2075 = vpop.f32.mrb[0].mxu0
        %v2076 = vadd.f32 %v612, %v2075
        %v2077 = vpop.f32.mrb[0].mxu0
        %v2078 = vadd.f32 %v616, %v2077
        %2079 = vmatprep.mubr.bf16.mxu0 0
        %2080 = vmatmul.mubr.bf16.gmra.mrb[0].mxu0 %v1190
        %v2081 = vpop.f32.mrb[0].mxu0
        %v2082 = vadd.f32 %v612, %v2081
        %v2083 = vpop.f32.mrb[0].mxu0
        %v2084 = vadd.f32 %v616, %v2083
        %v2085 = vpop.f32.mrb[0].mxu0
        %v2086 = vadd.f32 %v612, %v2085
        %v2087 = vpop.f32.mrb[0].mxu0
        %v2088 = vadd.f32 %v616, %v2087
        %2089 = vmatprep.mubr.bf16.mxu0 0
        %2090 = vmatmul.mubr.bf16.gmra.mrb[0].mxu0 %v1191
        %v2091 = vpop.f32.mrb[0].mxu0
        %v2092 = vadd.f32 %v612, %v2091
        %v2093 = vpop.f32.mrb[0].mxu0
        %v2094 = vadd.f32 %v616, %v2093
        %v2095 = vpop.f32.mrb[0].mxu0
        %v2096 = vadd.f32 %v612, %v2095
        %v2097 = vpop.f32.mrb[0].mxu0
        %v2098 = vadd.f32 %v616, %v2097
        %2099 = vmatprep.mubr.bf16.mxu0 0
        %2100 = vmatmul.mubr.bf16.gmra.mrb[0].mxu0 %v1192
        %v2101 = vpop.f32.mrb[0].mxu0
        %v2102 = vadd.f32 %v612, %v2101
        %v2103 = vpop.f32.mrb[0].mxu0
        %v2104 = vadd.f32 %v616, %v2103
        %v2105 = vpop.f32.mrb[0].mxu0
        %v2106 = vadd.f32 %v612, %v2105
        %v2107 = vpop.f32.mrb[0].mxu0
        %v2108 = vadd.f32 %v616, %v2107
        %2109 = vmatprep.mubr.bf16.mxu0 0
        %2110 = vmatmul.mubr.bf16.gmra.mrb[0].mxu0 %v1193
        %v2111 = vpop.f32.mrb[0].mxu0
        %v2112 = vadd.f32 %v612, %v2111
        %v2113 = vpop.f32.mrb[0].mxu0
        %v2114 = vadd.f32 %v616, %v2113
        %v2115 = vpop.f32.mrb[0].mxu0
        %v2116 = vadd.f32 %v612, %v2115
        %v2117 = vpop.f32.mrb[0].mxu0
        %v2118 = vadd.f32 %v616, %v2117
        %2119 = vmatprep.mubr.bf16.mxu0 0
        %2120 = vmatmul.mubr.bf16.gmra.mrb[0].mxu0 %v1194
        %v2121 = vpop.f32.mrb[0].mxu0
        %v2122 = vadd.f32 %v612, %v2121
        %v2123 = vpop.f32.mrb[0].mxu0
        %v2124 = vadd.f32 %v616, %v2123
        %v2125 = vpop.f32.mrb[0].mxu0
        %v2126 = vadd.f32 %v612, %v2125
        %v2127 = vpop.f32.mrb[0].mxu0
        %v2128 = vadd.f32 %v616, %v2127
        %2129 = vmatprep.mubr.bf16.mxu0 0
        %2130 = vmatmul.mubr.bf16.gmra.mrb[0].mxu0 %v1195
        %v2131 = vpop.f32.mrb[0].mxu0
        %v2132 = vadd.f32 %v612, %v2131
        %v2133 = vpop.f32.mrb[0].mxu0
        %v2134 = vadd.f32 %v616, %v2133
        %v2135 = vpop.f32.mrb[0].mxu0
        %v2136 = vadd.f32 %v612, %v2135
        %v2137 = vpop.f32.mrb[0].mxu0
        %v2138 = vadd.f32 %v616, %v2137
        %2139 = vmatprep.mubr.bf16.mxu0 0
        %2140 = vmatmul.mubr.bf16.gmra.mrb[0].mxu0 %v1196
        %v2141 = vpop.f32.mrb[0].mxu0
        %v2142 = vadd.f32 %v612, %v2141
        %v2143 = vpop.f32.mrb[0].mxu0
        %v2144 = vadd.f32 %v616, %v2143
        %v2145 = vpop.f32.mrb[0].mxu0
        %v2146 = vadd.f32 %v612, %v2145
        %v2147 = vpop.f32.mrb[0].mxu0
        %v2148 = vadd.f32 %v616, %v2147
        %2149 = vmatprep.mubr.bf16.mxu0 0
        %2150 = vmatmul.mubr.bf16.gmra.mrb[0].mxu0 %v1197
        %v2151 = vpop.f32.mrb[0].mxu0
        %v2152 = vadd.f32 %v612, %v2151
        %v2153 = vpop.f32.mrb[0].mxu0
        %v2154 = vadd.f32 %v616, %v2153
        %v2155 = vpop.f32.mrb[0].mxu0
        %v2156 = vadd.f32 %v612, %v2155
        %v2157 = vpop.f32.mrb[0].mxu0
        %v2158 = vadd.f32 %v616, %v2157
        %2159 = vmatprep.mubr.bf16.mxu0 0
        %2160 = vmatmul.mubr.bf16.gmra.mrb[0].mxu0 %v1198
        %v2161 = vpop.f32.mrb[0].mxu0
        %v2162 = vadd.f32 %v612, %v2161
        %v2163 = vpop.f32.mrb[0].mxu0
        %v2164 = vadd.f32 %v616, %v2163
        %v2165 = vpop.f32.mrb[0].mxu0
        %v2166 = vadd.f32 %v612, %v2165
        %v2167 = vpop.f32.mrb[0].mxu0
        %v2168 = vadd.f32 %v616, %v2167
        %2169 = vmatprep.mubr.bf16.mxu0 0
        %2170 = vmatmul.mubr.bf16.gmra.mrb[0].mxu0 %v1199
        %v2171 = vpop.f32.mrb[0].mxu0
        %v2172 = vadd.f32 %v612, %v2171
        %v2173 = vpop.f32.mrb[0].mxu0
        %v2174 = vadd.f32 %v616, %v2173
        %v2175 = vpop.f32.mrb[0].mxu0
        %v2176 = vadd.f32 %v612, %v2175
        %v2177 = vpop.f32.mrb[0].mxu0
        %v2178 = vadd.f32 %v616, %v2177
        %2179 = vmatprep.mubr.bf16.mxu0 0
        %2180 = vmatmul.mubr.bf16.gmra.mrb[0].mxu0 %v1200
        %v2181 = vpop.f32.mrb[0].mxu0
        %v2182 = vadd.f32 %v612, %v2181
        %v2183 = vpop.f32.mrb[0].mxu0
        %v2184 = vadd.f32 %v616, %v2183
        %v2185 = vpop.f32.mrb[0].mxu0
        %v2186 = vadd.f32 %v612, %v2185
        %v2187 = vpop.f32.mrb[0].mxu0
        %v2188 = vadd.f32 %v616, %v2187
        %2189 = vmatprep.mubr.bf16.mxu0 0
        %2190 = vmatmul.mubr.bf16.gmra.mrb[0].mxu0 %v1201
        %v2191 = vpop.f32.mrb[0].mxu0
        %v2192 = vadd.f32 %v612, %v2191
        %v2193 = vpop.f32.mrb[0].mxu0
        %v2194 = vadd.f32 %v616, %v2193
        %v2195 = vpop.f32.mrb[0].mxu0
        %v2196 = vadd.f32 %v612, %v2195
        %v2197 = vpop.f32.mrb[0].mxu0
        %v2198 = vadd.f32 %v616, %v2197
        %2199 = vmatprep.mubr.bf16.mxu0 0
        %2200 = vmatmul.mubr.bf16.gmra.mrb[0].mxu0 %v1202
        %v2201 = vpop.f32.mrb[0].mxu0
        %v2202 = vadd.f32 %v612, %v2201
        %v2203 = vpop.f32.mrb[0].mxu0
        %v2204 = vadd.f32 %v616, %v2203
        %v2205 = vpop.f32.mrb[0].mxu0
        %v2206 = vadd.f32 %v612, %v2205
        %v2207 = vpop.f32.mrb[0].mxu0
        %v2208 = vadd.f32 %v616, %v2207
        %2209 = vmatprep.mubr.bf16.mxu0 0
        %2210 = vmatmul.mubr.bf16.gmra.mrb[0].mxu0 %v1203
        %v2211 = vpop.f32.mrb[0].mxu0
        %v2212 = vadd.f32 %v612, %v2211
        %v2213 = vpop.f32.mrb[0].mxu0
        %v2214 = vadd.f32 %v616, %v2213
        %v2215 = vpop.f32.mrb[0].mxu0
        %v2216 = vadd.f32 %v612, %v2215
        %v2217 = vpop.f32.mrb[0].mxu0
        %v2218 = vadd.f32 %v616, %v2217
        %2219 = vmatprep.mubr.bf16.mxu0 0
        %2220 = vmatmul.mubr.bf16.gmra.mrb[0].mxu0 %v1204
        %v2221 = vpop.f32.mrb[0].mxu0
        %v2222 = vadd.f32 %v612, %v2221
        %v2223 = vpop.f32.mrb[0].mxu0
        %v2224 = vadd.f32 %v616, %v2223
        %v2225 = vpop.f32.mrb[0].mxu0
        %v2226 = vadd.f32 %v612, %v2225
        %v2227 = vpop.f32.mrb[0].mxu0
        %v2228 = vadd.f32 %v616, %v2227
        %2229 = vmatprep.mubr.bf16.mxu0 0
        %2230 = vmatmul.mubr.bf16.gmra.mrb[0].mxu0 %v1205
        %v2231 = vpop.f32.mrb[0].mxu0
        %v2232 = vadd.f32 %v612, %v2231
        %v2233 = vpop.f32.mrb[0].mxu0
        %v2234 = vadd.f32 %v616, %v2233
        %v2235 = vpop.f32.mrb[0].mxu0
        %v2236 = vadd.f32 %v612, %v2235
        %v2237 = vpop.f32.mrb[0].mxu0
        %v2238 = vadd.f32 %v616, %v2237
        %2239 = vmatprep.mubr.bf16.mxu0 0
        %2240 = vmatmul.mubr.bf16.gmra.mrb[0].mxu0 %v1206
        %v2241 = vpop.f32.mrb[0].mxu0
        %v2242 = vadd.f32 %v612, %v2241
        %v2243 = vpop.f32.mrb[0].mxu0
        %v2244 = vadd.f32 %v616, %v2243
        %v2245 = vpop.f32.mrb[0].mxu0
        %v2246 = vadd.f32 %v612, %v2245
        %v2247 = vpop.f32.mrb[0].mxu0
        %v2248 = vadd.f32 %v616, %v2247
        %2249 = vmatprep.mubr.bf16.mxu0 0
        %2250 = vmatmul.mubr.bf16.gmra.mrb[0].mxu0 %v1207
        %v2251 = vpop.f32.mrb[0].mxu0
        %v2252 = vadd.f32 %v612, %v2251
        %v2253 = vpop.f32.mrb[0].mxu0
        %v2254 = vadd.f32 %v616, %v2253
        %v2255 = vpop.f32.mrb[0].mxu0
        %v2256 = vadd.f32 %v612, %v2255
        %v2257 = vpop.f32.mrb[0].mxu0
        %v2258 = vadd.f32 %v616, %v2257
        %2259 = vmatprep.mubr.bf16.mxu0 0
        %2260 = vmatmul.mubr.bf16.gmra.mrb[0].mxu0 %v1208
        %v2261 = vpop.f32.mrb[0].mxu0
        %v2262 = vadd.f32 %v612, %v2261
        %v2263 = vpop.f32.mrb[0].mxu0
        %v2264 = vadd.f32 %v616, %v2263
        %v2265 = vpop.f32.mrb[0].mxu0
        %v2266 = vadd.f32 %v612, %v2265
        %v2267 = vpop.f32.mrb[0].mxu0
        %v2268 = vadd.f32 %v616, %v2267
        %2269 = vmatprep.mubr.bf16.mxu0 0
        %2270 = vmatmul.mubr.bf16.gmra.mrb[0].mxu0 %v1209
        %v2271 = vpop.f32.mrb[0].mxu0
        %v2272 = vadd.f32 %v612, %v2271
        %v2273 = vpop.f32.mrb[0].mxu0
        %v2274 = vadd.f32 %v616, %v2273
        %v2275 = vpop.f32.mrb[0].mxu0
        %v2276 = vadd.f32 %v612, %v2275
        %v2277 = vpop.f32.mrb[0].mxu0
        %v2278 = vadd.f32 %v616, %v2277
        %2279 = vmatprep.mubr.bf16.mxu0 0
        %2280 = vmatmul.mubr.bf16.gmra.mrb[0].mxu0 %v1210
        %v2281 = vpop.f32.mrb[0].mxu0
        %v2282 = vadd.f32 %v612, %v2281
        %v2283 = vpop.f32.mrb[0].mxu0
        %v2284 = vadd.f32 %v616, %v2283
        %v2285 = vpop.f32.mrb[0].mxu0
        %v2286 = vadd.f32 %v612, %v2285
        %v2287 = vpop.f32.mrb[0].mxu0
        %v2288 = vadd.f32 %v616, %v2287
        %2289 = vmatprep.mubr.bf16.mxu0 0
        %2290 = vmatmul.mubr.bf16.gmra.mrb[0].mxu0 %v1211
        %v2291 = vpop.f32.mrb[0].mxu0
        %v2292 = vadd.f32 %v612, %v2291
        %v2293 = vpop.f32.mrb[0].mxu0
        %v2294 = vadd.f32 %v616, %v2293
        %v2295 = vpop.f32.mrb[0].mxu0
        %v2296 = vadd.f32 %v612, %v2295
        %v2297 = vpop.f32.mrb[0].mxu0
        %v2298 = vadd.f32 %v616, %v2297
        %2299 = vmatprep.mubr.bf16.mxu0 0
        %2300 = vmatmul.mubr.bf16.gmra.mrb[0].mxu0 %v1212
        %v2301 = vpop.f32.mrb[0].mxu0
        %v2302 = vadd.f32 %v612, %v2301
        %v2303 = vpop.f32.mrb[0].mxu0
        %v2304 = vadd.f32 %v616, %v2303
        %v2305 = vpop.f32.mrb[0].mxu0
        %v2306 = vadd.f32 %v612, %v2305
        %v2307 = vpop.f32.mrb[0].mxu0
        %v2308 = vadd.f32 %v616, %v2307
        %2309 = vmatprep.mubr.bf16.mxu0 0
        %2310 = vmatmul.mubr.bf16.gmra.mrb[0].mxu0 %v1213
        %v2311 = vpop.f32.mrb[0].mxu0
        %v2312 = vadd.f32 %v612, %v2311
        %v2313 = vpop.f32.mrb[0].mxu0
        %v2314 = vadd.f32 %v616, %v2313
        %v2315 = vpop.f32.mrb[0].mxu0
        %v2316 = vadd.f32 %v612, %v2315
        %v2317 = vpop.f32.mrb[0].mxu0
        %v2318 = vadd.f32 %v616, %v2317
        %2319 = vmatprep.mubr.bf16.mxu0 0
        %2320 = vmatmul.mubr.bf16.gmra.mrb[0].mxu0 %v1214
        %v2321 = vpop.f32.mrb[0].mxu0
        %v2322 = vadd.f32 %v612, %v2321
        %v2323 = vpop.f32.mrb[0].mxu0
        %v2324 = vadd.f32 %v616, %v2323
        %v2325 = vpop.f32.mrb[0].mxu0
        %v2326 = vadd.f32 %v612, %v2325
        %v2327 = vpop.f32.mrb[0].mxu0
        %v2328 = vadd.f32 %v616, %v2327
        %2329 = vmatprep.mubr.bf16.mxu0 0
        %2330 = vmatmul.mubr.bf16.gmra.mrb[0].mxu0 %v1215
        %v2331 = vpop.f32.mrb[0].mxu0
        %v2332 = vadd.f32 %v612, %v2331
        %v2333 = vpop.f32.mrb[0].mxu0
        %v2334 = vadd.f32 %v616, %v2333
        %v2335 = vpop.f32.mrb[0].mxu0
        %v2336 = vadd.f32 %v612, %v2335
        %v2337 = vpop.f32.mrb[0].mxu0
        %v2338 = vadd.f32 %v616, %v2337
        %2339 = vmatprep.mubr.bf16.mxu0 0
        %2340 = vmatmul.mubr.bf16.gmra.mrb[0].mxu0 %v1216
        %v2341 = vpop.f32.mrb[0].mxu0
        %v2342 = vadd.f32 %v612, %v2341
        %v2343 = vpop.f32.mrb[0].mxu0
        %v2344 = vadd.f32 %v616, %v2343
        %v2345 = vpop.f32.mrb[0].mxu0
        %v2346 = vadd.f32 %v612, %v2345
        %v2347 = vpop.f32.mrb[0].mxu0
        %v2348 = vadd.f32 %v616, %v2347
        %2349 = vmatprep.mubr.bf16.mxu0 0
        %2350 = vmatmul.mubr.bf16.gmra.mrb[0].mxu0 %v1217
        %v2351 = vpop.f32.mrb[0].mxu0
        %v2352 = vadd.f32 %v612, %v2351
        %v2353 = vpop.f32.mrb[0].mxu0
        %v2354 = vadd.f32 %v616, %v2353
        %v2355 = vpop.f32.mrb[0].mxu0
        %v2356 = vadd.f32 %v612, %v2355
        %v2357 = vpop.f32.mrb[0].mxu0
        %v2358 = vadd.f32 %v616, %v2357
        %2359 = vmatprep.mubr.bf16.mxu0 0
        %2360 = vmatmul.mubr.bf16.gmra.mrb[0].mxu0 %v1218
        %v2361 = vpop.f32.mrb[0].mxu0
        %v2362 = vadd.f32 %v612, %v2361
        %v2363 = vpop.f32.mrb[0].mxu0
        %v2364 = vadd.f32 %v616, %v2363
        %v2365 = vpop.f32.mrb[0].mxu0
        %v2366 = vadd.f32 %v612, %v2365
        %v2367 = vpop.f32.mrb[0].mxu0
        %v2368 = vadd.f32 %v616, %v2367
        %2369 = vmatprep.mubr.bf16.mxu0 0
        %2370 = vmatmul.mubr.bf16.gmra.mrb[0].mxu0 %v1219
        %v2371 = vpop.f32.mrb[0].mxu0
        %v2372 = vadd.f32 %v612, %v2371
        %v2373 = vpop.f32.mrb[0].mxu0
        %v2374 = vadd.f32 %v616, %v2373
        %v2375 = vpop.f32.mrb[0].mxu0
        %v2376 = vadd.f32 %v612, %v2375
        %v2377 = vpop.f32.mrb[0].mxu0
        %v2378 = vadd.f32 %v616, %v2377
        %2379 = vmatprep.mubr.bf16.mxu0 0
        %2380 = vmatmul.mubr.bf16.gmra.mrb[0].mxu0 %v1220
        %v2381 = vpop.f32.mrb[0].mxu0
        %v2382 = vadd.f32 %v612, %v2381
        %v2383 = vpop.f32.mrb[0].mxu0
        %v2384 = vadd.f32 %v616, %v2383
        %v2385 = vpop.f32.mrb[0].mxu0
        %v2386 = vadd.f32 %v612, %v2385
        %v2387 = vpop.f32.mrb[0].mxu0
        %v2388 = vadd.f32 %v616, %v2387
        %2389 = vmatprep.mubr.bf16.mxu0 0
        %2390 = vmatmul.mubr.bf16.gmra.mrb[0].mxu0 %v1221
        %v2391 = vpop.f32.mrb[0].mxu0
        %v2392 = vadd.f32 %v612, %v2391
        %v2393 = vpop.f32.mrb[0].mxu0
        %v2394 = vadd.f32 %v616, %v2393
        %v2395 = vpop.f32.mrb[0].mxu0
        %v2396 = vadd.f32 %v612, %v2395
        %v2397 = vpop.f32.mrb[0].mxu0
        %v2398 = vadd.f32 %v616, %v2397
        %2399 = vmatprep.mubr.bf16.mxu0 0
        %2400 = vmatmul.mubr.bf16.gmra.mrb[0].mxu0 %v1222
        %v2401 = vpop.f32.mrb[0].mxu0
        %v2402 = vadd.f32 %v612, %v2401
        %v2403 = vpop.f32.mrb[0].mxu0
        %v2404 = vadd.f32 %v616, %v2403
        %v2405 = vpop.f32.mrb[0].mxu0
        %v2406 = vadd.f32 %v612, %v2405
        %v2407 = vpop.f32.mrb[0].mxu0
        %v2408 = vadd.f32 %v616, %v2407
        %2409 = vmatprep.mubr.bf16.mxu0 0
        %2410 = vmatmul.mubr.bf16.gmra.mrb[0].mxu0 %v1223
        %v2411 = vpop.f32.mrb[0].mxu0
        %v2412 = vadd.f32 %v612, %v2411
        %v2413 = vpop.f32.mrb[0].mxu0
        %v2414 = vadd.f32 %v616, %v2413
        %v2415 = vpop.f32.mrb[0].mxu0
        %v2416 = vadd.f32 %v612, %v2415
        %v2417 = vpop.f32.mrb[0].mxu0
        %v2418 = vadd.f32 %v616, %v2417
        %2419 = vmatprep.mubr.bf16.mxu0 0
        %2420 = vmatmul.mubr.bf16.gmra.mrb[0].mxu0 %v1224
        %v2421 = vpop.f32.mrb[0].mxu0
        %v2422 = vadd.f32 %v612, %v2421
        %v2423 = vpop.f32.mrb[0].mxu0
        %v2424 = vadd.f32 %v616, %v2423
        %v2425 = vpop.f32.mrb[0].mxu0
        %v2426 = vadd.f32 %v612, %v2425
        %v2427 = vpop.f32.mrb[0].mxu0
        %v2428 = vadd.f32 %v616, %v2427
        %2429 = vmatprep.mubr.bf16.mxu0 0
        %2430 = vmatmul.mubr.bf16.gmra.mrb[0].mxu0 %v1225
        %v2431 = vpop.f32.mrb[0].mxu0
        %v2432 = vadd.f32 %v612, %v2431
        %v2433 = vpop.f32.mrb[0].mxu0
        %v2434 = vadd.f32 %v616, %v2433
        %v2435 = vpop.f32.mrb[0].mxu0
        %v2436 = vadd.f32 %v612, %v2435
        %v2437 = vpop.f32.mrb[0].mxu0
        %v2438 = vadd.f32 %v616, %v2437
        %2439 = vmatprep.mubr.bf16.mxu0 0
        %2440 = vmatmul.mubr.bf16.gmra.mrb[0].mxu0 %v1226
        %v2441 = vpop.f32.mrb[0].mxu0
        %v2442 = vadd.f32 %v612, %v2441
        %v2443 = vpop.f32.mrb[0].mxu0
        %v2444 = vadd.f32 %v616, %v2443
        %v2445 = vpop.f32.mrb[0].mxu0
        %v2446 = vadd.f32 %v612, %v2445
        %v2447 = vpop.f32.mrb[0].mxu0
        %v2448 = vadd.f32 %v616, %v2447
        %2449 = vmatprep.mubr.bf16.mxu0 0
        %2450 = vmatmul.mubr.bf16.gmra.mrb[0].mxu0 %v1227
        %v2451 = vpop.f32.mrb[0].mxu0
        %v2452 = vadd.f32 %v612, %v2451
        %v2453 = vpop.f32.mrb[0].mxu0
        %v2454 = vadd.f32 %v616, %v2453
        %v2455 = vpop.f32.mrb[0].mxu0
        %v2456 = vadd.f32 %v612, %v2455
        %v2457 = vpop.f32.mrb[0].mxu0
        %v2458 = vadd.f32 %v616, %v2457
        %2459 = vmatprep.mubr.bf16.mxu0 0
        %2460 = vmatmul.mubr.bf16.gmra.mrb[0].mxu0 %v1228
        %v2461 = vpop.f32.mrb[0].mxu0
        %v2462 = vadd.f32 %v612, %v2461
        %v2463 = vpop.f32.mrb[0].mxu0
        %v2464 = vadd.f32 %v616, %v2463
        %v2465 = vpop.f32.mrb[0].mxu0
        %v2466 = vadd.f32 %v612, %v2465
        %v2467 = vpop.f32.mrb[0].mxu0
        %v2468 = vadd.f32 %v616, %v2467
        %2469 = vmatprep.mubr.bf16.mxu0 0
        %2470 = vmatmul.mubr.bf16.gmra.mrb[0].mxu0 %v1229
        %v2471 = vpop.f32.mrb[0].mxu0
        %v2472 = vadd.f32 %v612, %v2471
        %v2473 = vpop.f32.mrb[0].mxu0
        %v2474 = vadd.f32 %v616, %v2473
        %v2475 = vpop.f32.mrb[0].mxu0
        %v2476 = vadd.f32 %v612, %v2475
        %v2477 = vpop.f32.mrb[0].mxu0
        %v2478 = vadd.f32 %v616, %v2477
        %2479 = vmatprep.mubr.bf16.mxu0 0
        %2480 = vmatmul.mubr.bf16.gmra.mrb[0].mxu0 %v1230
        %v2481 = vpop.f32.mrb[0].mxu0
        %v2482 = vadd.f32 %v612, %v2481
        %v2483 = vpop.f32.mrb[0].mxu0
        %v2484 = vadd.f32 %v616, %v2483
        %v2485 = vpop.f32.mrb[0].mxu0
        %v2486 = vadd.f32 %v612, %v2485
        %v2487 = vpop.f32.mrb[0].mxu0
        %v2488 = vadd.f32 %v616, %v2487
        %2489 = vmatprep.mubr.bf16.mxu0 0
        %2490 = vmatmul.mubr.bf16.gmra.mrb[0].mxu0 %v1231
        %v2491 = vpop.f32.mrb[0].mxu0
        %v2492 = vadd.f32 %v612, %v2491
        %v2493 = vpop.f32.mrb[0].mxu0
        %v2494 = vadd.f32 %v616, %v2493
        %v2495 = vpop.f32.mrb[0].mxu0
        %v2496 = vadd.f32 %v612, %v2495
        %v2497 = vpop.f32.mrb[0].mxu0
        %v2498 = vadd.f32 %v616, %v2497
        %2499 = vmatprep.mubr.bf16.mxu0 0
        %2500 = vmatmul.mubr.bf16.gmra.mrb[0].mxu0 %v1232
        %v2501 = vpop.f32.mrb[0].mxu0
        %v2502 = vadd.f32 %v612, %v2501
        %v2503 = vpop.f32.mrb[0].mxu0
        %v2504 = vadd.f32 %v616, %v2503
        %v2505 = vpop.f32.mrb[0].mxu0
        %v2506 = vadd.f32 %v612, %v2505
        %v2507 = vpop.f32.mrb[0].mxu0
        %v2508 = vadd.f32 %v616, %v2507
        %2509 = vmatprep.mubr.bf16.mxu0 0
        %2510 = vmatmul.mubr.bf16.gmra.mrb[0].mxu0 %v1233
        %v2511 = vpop.f32.mrb[0].mxu0
        %v2512 = vadd.f32 %v612, %v2511
        %v2513 = vpop.f32.mrb[0].mxu0
        %v2514 = vadd.f32 %v616, %v2513
        %v2515 = vpop.f32.mrb[0].mxu0
        %v2516 = vadd.f32 %v612, %v2515
        %v2517 = vpop.f32.mrb[0].mxu0
        %v2518 = vadd.f32 %v616, %v2517
        %2519 = vmatprep.mubr.bf16.mxu0 0
        %2520 = vmatmul.mubr.bf16.gmra.mrb[0].mxu0 %v1234
        %v2521 = vpop.f32.mrb[0].mxu0
        %v2522 = vadd.f32 %v612, %v2521
        %v2523 = vpop.f32.mrb[0].mxu0
        %v2524 = vadd.f32 %v616, %v2523
        %v2525 = vpop.f32.mrb[0].mxu0
        %v2526 = vadd.f32 %v612, %v2525
        %v2527 = vpop.f32.mrb[0].mxu0
        %v2528 = vadd.f32 %v616, %v2527
        %2529 = vmatprep.mubr.bf16.mxu0 0
        %2530 = vmatmul.mubr.bf16.gmra.mrb[0].mxu0 %v1235
        %v2531 = vpop.f32.mrb[0].mxu0
        %v2532 = vadd.f32 %v612, %v2531
        %v2533 = vpop.f32.mrb[0].mxu0
        %v2534 = vadd.f32 %v616, %v2533
        %v2535 = vpop.f32.mrb[0].mxu0
        %v2536 = vadd.f32 %v612, %v2535
        %v2537 = vpop.f32.mrb[0].mxu0
        %v2538 = vadd.f32 %v616, %v2537
        %2539 = vmatprep.mubr.bf16.mxu0 0
        %2540 = vmatmul.mubr.bf16.gmra.mrb[0].mxu0 %v1236
        %v2541 = vpop.f32.mrb[0].mxu0
        %v2542 = vadd.f32 %v612, %v2541
        %v2543 = vpop.f32.mrb[0].mxu0
        %v2544 = vadd.f32 %v616, %v2543
        %v2545 = vpop.f32.mrb[0].mxu0
        %v2546 = vadd.f32 %v612, %v2545
        %v2547 = vpop.f32.mrb[0].mxu0
        %v2548 = vadd.f32 %v616, %v2547
        %2549 = vmatprep.mubr.bf16.mxu0 0
        %2550 = vmatmul.mubr.bf16.gmra.mrb[0].mxu0 %v1237
        %v2551 = vpop.f32.mrb[0].mxu0
        %v2552 = vadd.f32 %v612, %v2551
        %v2553 = vpop.f32.mrb[0].mxu0
        %v2554 = vadd.f32 %v616, %v2553
        %v2555 = vpop.f32.mrb[0].mxu0
        %v2556 = vadd.f32 %v612, %v2555
        %v2557 = vpop.f32.mrb[0].mxu0
        %v2558 = vadd.f32 %v616, %v2557
        %2559 = vmatprep.mubr.bf16.mxu0 0
        %2560 = vmatmul.mubr.bf16.gmra.mrb[0].mxu0 %v1238
        %v2561 = vpop.f32.mrb[0].mxu0
        %v2562 = vadd.f32 %v612, %v2561
        %v2563 = vpop.f32.mrb[0].mxu0
        %v2564 = vadd.f32 %v616, %v2563
        %v2565 = vpop.f32.mrb[0].mxu0
        %v2566 = vadd.f32 %v612, %v2565
        %v2567 = vpop.f32.mrb[0].mxu0
        %v2568 = vadd.f32 %v616, %v2567
        %2569 = vmatprep.mubr.bf16.mxu0 0
        %2570 = vmatmul.mubr.bf16.gmra.mrb[0].mxu0 %v1239
        %v2571 = vpop.f32.mrb[0].mxu0
        %v2572 = vadd.f32 %v612, %v2571
        %v2573 = vpop.f32.mrb[0].mxu0
        %v2574 = vadd.f32 %v616, %v2573
        %v2575 = vpop.f32.mrb[0].mxu0
        %v2576 = vadd.f32 %v612, %v2575
        %v2577 = vpop.f32.mrb[0].mxu0
        %v2578 = vadd.f32 %v616, %v2577
        %2579 = vmatprep.mubr.bf16.mxu0 0
        %2580 = vmatmul.mubr.bf16.gmra.mrb[0].mxu0 %v1240
        %v2581 = vpop.f32.mrb[0].mxu0
        %v2582 = vadd.f32 %v612, %v2581
        %v2583 = vpop.f32.mrb[0].mxu0
        %v2584 = vadd.f32 %v616, %v2583
        %v2585 = vpop.f32.mrb[0].mxu0
        %v2586 = vadd.f32 %v612, %v2585
        %v2587 = vpop.f32.mrb[0].mxu0
        %v2588 = vadd.f32 %v616, %v2587
        %2589 = vmatprep.mubr.bf16.mxu0 0
        %2590 = vmatmul.mubr.bf16.gmra.mrb[0].mxu0 %v1241
        %v2591 = vpop.f32.mrb[0].mxu0
        %v2592 = vadd.f32 %v612, %v2591
        %v2593 = vpop.f32.mrb[0].mxu0
        %v2594 = vadd.f32 %v616, %v2593
        %v2595 = vpop.f32.mrb[0].mxu0
        %v2596 = vadd.f32 %v612, %v2595
        %v2597 = vpop.f32.mrb[0].mxu0
        %v2598 = vadd.f32 %v616, %v2597
        %2599 = vmatprep.mubr.bf16.mxu0 0
        %2600 = vmatmul.mubr.bf16.gmra.mrb[0].mxu0 %v1242
        %v2601 = vpop.f32.mrb[0].mxu0
        %v2602 = vadd.f32 %v612, %v2601
        %v2603 = vpop.f32.mrb[0].mxu0
        %v2604 = vadd.f32 %v616, %v2603
        %v2605 = vpop.f32.mrb[0].mxu0
        %v2606 = vadd.f32 %v612, %v2605
        %v2607 = vpop.f32.mrb[0].mxu0
        %v2608 = vadd.f32 %v616, %v2607
        %2609 = vmatprep.mubr.bf16.mxu0 0
        %2610 = vmatmul.mubr.bf16.gmra.mrb[0].mxu0 %v1243
        %v2611 = vpop.f32.mrb[0].mxu0
        %v2612 = vadd.f32 %v612, %v2611
        %v2613 = vpop.f32.mrb[0].mxu0
        %v2614 = vadd.f32 %v616, %v2613
        %v2615 = vpop.f32.mrb[0].mxu0
        %v2616 = vadd.f32 %v612, %v2615
        %v2617 = vpop.f32.mrb[0].mxu0
        %v2618 = vadd.f32 %v616, %v2617
        %2619 = vmatprep.mubr.bf16.mxu0 0
        %2620 = vmatmul.mubr.bf16.gmra.mrb[0].mxu0 %v1244
        %v2621 = vpop.f32.mrb[0].mxu0
        %v2622 = vadd.f32 %v612, %v2621
        %v2623 = vpop.f32.mrb[0].mxu0
        %v2624 = vadd.f32 %v616, %v2623
        %v2625 = vpop.f32.mrb[0].mxu0
        %v2626 = vadd.f32 %v612, %v2625
        %v2627 = vpop.f32.mrb[0].mxu0
        %v2628 = vadd.f32 %v616, %v2627
        %2629 = vmatprep.mubr.bf16.mxu0 0
        %2630 = vmatmul.mubr.bf16.gmra.mrb[0].mxu0 %v1245
        %v2631 = vpop.f32.mrb[0].mxu0
        %v2632 = vadd.f32 %v612, %v2631
        %v2633 = vpop.f32.mrb[0].mxu0
        %v2634 = vadd.f32 %v616, %v2633
        %v2635 = vpop.f32.mrb[0].mxu0
        %v2636 = vadd.f32 %v612, %v2635
        %v2637 = vpop.f32.mrb[0].mxu0
        %v2638 = vadd.f32 %v616, %v2637
        %2639 = vmatprep.mubr.bf16.mxu0 0
        %2640 = vmatmul.mubr.bf16.gmra.mrb[0].mxu0 %v1246
        %v2641 = vpop.f32.mrb[0].mxu0
        %v2642 = vadd.f32 %v612, %v2641
        %v2643 = vpop.f32.mrb[0].mxu0
        %v2644 = vadd.f32 %v616, %v2643
        %v2645 = vpop.f32.mrb[0].mxu0
        %v2646 = vadd.f32 %v612, %v2645
        %v2647 = vpop.f32.mrb[0].mxu0
        %v2648 = vadd.f32 %v616, %v2647
        %2649 = vmatprep.mubr.bf16.mxu0 0
        %2650 = vmatmul.mubr.bf16.gmra.mrb[0].mxu0 %v1247
        %v2651 = vpop.f32.mrb[0].mxu0
        %v2652 = vadd.f32 %v612, %v2651
        %v2653 = vpop.f32.mrb[0].mxu0
        %v2654 = vadd.f32 %v616, %v2653
        %v2655 = vpop.f32.mrb[0].mxu0
        %v2656 = vadd.f32 %v612, %v2655
        %v2657 = vpop.f32.mrb[0].mxu0
        %v2658 = vadd.f32 %v616, %v2657
        %2659 = vmatprep.mubr.bf16.mxu0 0
        %2660 = vmatmul.mubr.bf16.gmra.mrb[0].mxu0 %v1248
        %v2661 = vpop.f32.mrb[0].mxu0
        %v2662 = vadd.f32 %v612, %v2661
        %v2663 = vpop.f32.mrb[0].mxu0
        %v2664 = vadd.f32 %v616, %v2663
        %v2665 = vpop.f32.mrb[0].mxu0
        %v2666 = vadd.f32 %v612, %v2665
        %v2667 = vpop.f32.mrb[0].mxu0
        %v2668 = vadd.f32 %v616, %v2667
        %2669 = vmatprep.mubr.bf16.mxu0 0
        %2670 = vmatmul.mubr.bf16.gmra.mrb[0].mxu0 %v1249
        %v2671 = vpop.f32.mrb[0].mxu0
        %v2672 = vadd.f32 %v612, %v2671
        %v2673 = vpop.f32.mrb[0].mxu0
        %v2674 = vadd.f32 %v616, %v2673
        %v2675 = vpop.f32.mrb[0].mxu0
        %v2676 = vadd.f32 %v612, %v2675
        %v2677 = vpop.f32.mrb[0].mxu0
        %v2678 = vadd.f32 %v616, %v2677
        %2679 = vmatprep.mubr.bf16.mxu0 0
        %2680 = vmatmul.mubr.bf16.gmra.mrb[0].mxu0 %v1250
        %v2681 = vpop.f32.mrb[0].mxu0
        %v2682 = vadd.f32 %v612, %v2681
        %v2683 = vpop.f32.mrb[0].mxu0
        %v2684 = vadd.f32 %v616, %v2683
        %v2685 = vpop.f32.mrb[0].mxu0
        %v2686 = vadd.f32 %v612, %v2685
        %v2687 = vpop.f32.mrb[0].mxu0
        %v2688 = vadd.f32 %v616, %v2687
        %2689 = vmatprep.mubr.bf16.mxu0 0
        %2690 = vmatmul.mubr.bf16.gmra.mrb[0].mxu0 %v1251
        %v2691 = vpop.f32.mrb[0].mxu0
        %v2692 = vadd.f32 %v612, %v2691
        %v2693 = vpop.f32.mrb[0].mxu0
        %v2694 = vadd.f32 %v616, %v2693
        %v2695 = vpop.f32.mrb[0].mxu0
        %v2696 = vadd.f32 %v612, %v2695
        %v2697 = vpop.f32.mrb[0].mxu0
        %v2698 = vadd.f32 %v616, %v2697
        %2699 = vmatprep.mubr.bf16.mxu0 0
        %2700 = vmatmul.mubr.bf16.gmra.mrb[0].mxu0 %v1252
        %v2701 = vpop.f32.mrb[0].mxu0
        %v2702 = vadd.f32 %v612, %v2701
        %v2703 = vpop.f32.mrb[0].mxu0
        %v2704 = vadd.f32 %v616, %v2703
        %v2705 = vpop.f32.mrb[0].mxu0
        %v2706 = vadd.f32 %v612, %v2705
        %v2707 = vpop.f32.mrb[0].mxu0
        %v2708 = vadd.f32 %v616, %v2707
        %2709 = vmatprep.mubr.bf16.mxu0 0
        %2710 = vmatmul.mubr.bf16.gmra.mrb[0].mxu0 %v1253
        %v2711 = vpop.f32.mrb[0].mxu0
        %v2712 = vadd.f32 %v612, %v2711
        %v2713 = vpop.f32.mrb[0].mxu0
        %v2714 = vadd.f32 %v616, %v2713
        %v2715 = vpop.f32.mrb[0].mxu0
        %v2716 = vadd.f32 %v612, %v2715
        %v2717 = vpop.f32.mrb[0].mxu0
        %v2718 = vadd.f32 %v616, %v2717
        %2719 = vmatprep.mubr.bf16.mxu0 0
        %2720 = vmatmul.mubr.bf16.gmra.mrb[0].mxu0 %v1254
        %v2721 = vpop.f32.mrb[0].mxu0
        %v2722 = vadd.f32 %v612, %v2721
        %v2723 = vpop.f32.mrb[0].mxu0
        %v2724 = vadd.f32 %v616, %v2723
        %v2725 = vpop.f32.mrb[0].mxu0
        %v2726 = vadd.f32 %v612, %v2725
        %v2727 = vpop.f32.mrb[0].mxu0
        %v2728 = vadd.f32 %v616, %v2727
        %2729 = vmatprep.mubr.bf16.mxu0 0
        %2730 = vmatmul.mubr.bf16.gmra.mrb[0].mxu0 %v1255
        %v2731 = vpop.f32.mrb[0].mxu0
        %v2732 = vadd.f32 %v612, %v2731
        %v2733 = vpop.f32.mrb[0].mxu0
        %v2734 = vadd.f32 %v616, %v2733
        %v2735 = vpop.f32.mrb[0].mxu0
        %v2736 = vadd.f32 %v612, %v2735
        %v2737 = vpop.f32.mrb[0].mxu0
        %v2738 = vadd.f32 %v616, %v2737
        %2739 = vmatprep.mubr.bf16.mxu0 0
        %2740 = vmatmul.mubr.bf16.gmra.mrb[0].mxu0 %v1256
        %v2741 = vpop.f32.mrb[0].mxu0
        %v2742 = vadd.f32 %v612, %v2741
        %v2743 = vpop.f32.mrb[0].mxu0
        %v2744 = vadd.f32 %v616, %v2743
        %v2745 = vpop.f32.mrb[0].mxu0
        %v2746 = vadd.f32 %v612, %v2745
        %v2747 = vpop.f32.mrb[0].mxu0
        %v2748 = vadd.f32 %v616, %v2747
        %2749 = vmatprep.mubr.bf16.mxu0 0
        %2750 = vmatmul.mubr.bf16.gmra.mrb[0].mxu0 %v1257
        %v2751 = vpop.f32.mrb[0].mxu0
        %v2752 = vadd.f32 %v612, %v2751
        %v2753 = vpop.f32.mrb[0].mxu0
        %v2754 = vadd.f32 %v616, %v2753
        %v2755 = vpop.f32.mrb[0].mxu0
        %v2756 = vadd.f32 %v612, %v2755
        %v2757 = vpop.f32.mrb[0].mxu0
        %v2758 = vadd.f32 %v616, %v2757
        %2759 = vmatprep.mubr.bf16.mxu0 0
        %2760 = vmatmul.mubr.bf16.gmra.mrb[0].mxu0 %v1258
        %v2761 = vpop.f32.mrb[0].mxu0
        %v2762 = vadd.f32 %v612, %v2761
        %v2763 = vpop.f32.mrb[0].mxu0
        %v2764 = vadd.f32 %v616, %v2763
        %v2765 = vpop.f32.mrb[0].mxu0
        %v2766 = vadd.f32 %v612, %v2765
        %v2767 = vpop.f32.mrb[0].mxu0
        %v2768 = vadd.f32 %v616, %v2767
        %2769 = vmatprep.mubr.bf16.mxu0 0
        %2770 = vmatmul.mubr.bf16.gmra.mrb[0].mxu0 %v1259
        %v2771 = vpop.f32.mrb[0].mxu0
        %v2772 = vadd.f32 %v612, %v2771
        %v2773 = vpop.f32.mrb[0].mxu0
        %v2774 = vadd.f32 %v616, %v2773
        %v2775 = vpop.f32.mrb[0].mxu0
        %v2776 = vadd.f32 %v612, %v2775
        %v2777 = vpop.f32.mrb[0].mxu0
        %v2778 = vadd.f32 %v616, %v2777
        %2779 = vmatprep.mubr.bf16.mxu0 0
        %2780 = vmatmul.mubr.bf16.gmra.mrb[0].mxu0 %v1260
        %v2781 = vpop.f32.mrb[0].mxu0
        %v2782 = vadd.f32 %v612, %v2781
        %v2783 = vpop.f32.mrb[0].mxu0
        %v2784 = vadd.f32 %v616, %v2783
        %v2785 = vpop.f32.mrb[0].mxu0
        %v2786 = vadd.f32 %v612, %v2785
        %v2787 = vpop.f32.mrb[0].mxu0
        %v2788 = vadd.f32 %v616, %v2787
        %2789 = vmatprep.mubr.bf16.mxu0 0
        %2790 = vmatmul.mubr.bf16.gmra.mrb[0].mxu0 %v1261
        %v2791 = vpop.f32.mrb[0].mxu0
        %v2792 = vadd.f32 %v612, %v2791
        %v2793 = vpop.f32.mrb[0].mxu0
        %v2794 = vadd.f32 %v616, %v2793
        %v2795 = vpop.f32.mrb[0].mxu0
        %v2796 = vadd.f32 %v612, %v2795
        %v2797 = vpop.f32.mrb[0].mxu0
        %v2798 = vadd.f32 %v616, %v2797
        %2799 = vmatprep.mubr.bf16.mxu0 0
        %2800 = vmatmul.mubr.bf16.gmra.mrb[0].mxu0 %v1262
        %v2801 = vpop.f32.mrb[0].mxu0
        %v2802 = vadd.f32 %v612, %v2801
        %v2803 = vpop.f32.mrb[0].mxu0
        %v2804 = vadd.f32 %v616, %v2803
        %v2805 = vpop.f32.mrb[0].mxu0
        %v2806 = vadd.f32 %v612, %v2805
        %v2807 = vpop.f32.mrb[0].mxu0
        %v2808 = vadd.f32 %v616, %v2807
        %2809 = vmatprep.mubr.bf16.mxu0 0
        %2810 = vmatmul.mubr.bf16.gmra.mrb[0].mxu0 %v1263
        %v2811 = vpop.f32.mrb[0].mxu0
        %v2812 = vadd.f32 %v612, %v2811
        %v2813 = vpop.f32.mrb[0].mxu0
        %v2814 = vadd.f32 %v616, %v2813
        %v2815 = vpop.f32.mrb[0].mxu0
        %v2816 = vadd.f32 %v612, %v2815
        %v2817 = vpop.f32.mrb[0].mxu0
        %v2818 = vadd.f32 %v616, %v2817
        %2819 = vmatprep.mubr.bf16.mxu0 0
        %2820 = vmatmul.mubr.bf16.gmra.mrb[0].mxu0 %v1264
        %v2821 = vpop.f32.mrb[0].mxu0
        %v2822 = vadd.f32 %v612, %v2821
        %v2823 = vpop.f32.mrb[0].mxu0
        %v2824 = vadd.f32 %v616, %v2823
        %v2825 = vpop.f32.mrb[0].mxu0
        %v2826 = vadd.f32 %v612, %v2825
        %v2827 = vpop.f32.mrb[0].mxu0
        %v2828 = vadd.f32 %v616, %v2827
        %2829 = vmatprep.mubr.bf16.mxu0 0
        %2830 = vmatmul.mubr.bf16.gmra.mrb[0].mxu0 %v1265
        %v2831 = vpop.f32.mrb[0].mxu0
        %v2832 = vadd.f32 %v612, %v2831
        %v2833 = vpop.f32.mrb[0].mxu0
        %v2834 = vadd.f32 %v616, %v2833
        %v2835 = vpop.f32.mrb[0].mxu0
        %v2836 = vadd.f32 %v612, %v2835
        %v2837 = vpop.f32.mrb[0].mxu0
        %v2838 = vadd.f32 %v616, %v2837
        %2839 = vmatprep.mubr.bf16.mxu0 0
        %2840 = vmatmul.mubr.bf16.gmra.mrb[0].mxu0 %v1266
        %v2841 = vpop.f32.mrb[0].mxu0
        %v2842 = vadd.f32 %v612, %v2841
        %v2843 = vpop.f32.mrb[0].mxu0
        %v2844 = vadd.f32 %v616, %v2843
        %v2845 = vpop.f32.mrb[0].mxu0
        %v2846 = vadd.f32 %v612, %v2845
        %v2847 = vpop.f32.mrb[0].mxu0
        %v2848 = vadd.f32 %v616, %v2847
        %2849 = vmatprep.mubr.bf16.mxu0 0
        %2850 = vmatmul.mubr.bf16.gmra.mrb[0].mxu0 %v1267
        %v2851 = vpop.f32.mrb[0].mxu0
        %v2852 = vadd.f32 %v612, %v2851
        %v2853 = vpop.f32.mrb[0].mxu0
        %v2854 = vadd.f32 %v616, %v2853
        %v2855 = vpop.f32.mrb[0].mxu0
        %v2856 = vadd.f32 %v612, %v2855
        %v2857 = vpop.f32.mrb[0].mxu0
        %v2858 = vadd.f32 %v616, %v2857
        %2859 = vmatprep.mubr.bf16.mxu0 0
        %2860 = vmatmul.mubr.bf16.gmra.mrb[0].mxu0 %v1268
        %v2861 = vpop.f32.mrb[0].mxu0
        %v2862 = vadd.f32 %v612, %v2861
        %v2863 = vpop.f32.mrb[0].mxu0
        %v2864 = vadd.f32 %v616, %v2863
        %v2865 = vpop.f32.mrb[0].mxu0
        %v2866 = vadd.f32 %v612, %v2865
        %v2867 = vpop.f32.mrb[0].mxu0
        %v2868 = vadd.f32 %v616, %v2867
        %2869 = vdwg.mxu0
        %2870 = vmatprep.subr.bf16.mxu0 %v1496
        %2871 = vmatpush1.bf16.msra.mxu0 %v1495
        %2872 = vmatprep.subr.bf16.mxu0 %v1500
        %2873 = vmatpush1.bf16.msra.mxu0 %v1499
        %2874 = vmatprep.subr.bf16.mxu0 %v1504
        %2875 = vmatpush1.bf16.msra.mxu0 %v1503
        %2876 = vmatprep.subr.bf16.mxu0 %v1508
        %2877 = vmatpush1.bf16.msra.mxu0 %v1507
        %2878 = vmatprep.subr.bf16.mxu0 %v1512
        %2879 = vmatpush1.bf16.msra.mxu0 %v1511
        %2880 = vmatprep.subr.bf16.mxu0 %v1516
        %2881 = vmatpush1.bf16.msra.mxu0 %v1515
        %2882 = vmatprep.subr.bf16.mxu0 %v1520
        %2883 = vmatpush1.bf16.msra.mxu0 %v1519
        %2884 = vmatprep.subr.bf16.mxu0 %v1524
        %2885 = vmatpush1.bf16.msra.mxu0 %v1523
        %2886 = vmatprep.subr.bf16.mxu0 0
        %2887 = vmatpush1.bf16.msra.mxu0 0
        %2888 = vmatprep.subr.bf16.mxu0 0
        %2889 = vmatpush1.bf16.msra.mxu0 0
        %2890 = vmatprep.subr.bf16.mxu0 0
        %2891 = vmatpush1.bf16.msra.mxu0 0
        %2892 = vmatprep.subr.bf16.mxu0 0
        %2893 = vmatpush1.bf16.msra.mxu0 0
        %2894 = vmatprep.subr.bf16.mxu0 0
        %2895 = vmatpush1.bf16.msra.mxu0 0
        %2896 = vmatprep.subr.bf16.mxu0 0
        %2897 = vmatpush1.bf16.msra.mxu0 0
        %2898 = vmatprep.subr.bf16.mxu0 0
        %2899 = vmatpush1.bf16.msra.mxu0 0
        %2900 = vmatprep.subr.bf16.mxu0 0
        %2901 = vmatpush1.bf16.msra.mxu0 0
        %2902 = vmatprep.mubr.bf16.mxu0 0
        %2903 = vmatmul.mubr.bf16.gmra.mrb[0].mxu0 %v1141
        %v2904 = vpop.f32.mrb[0].mxu0
        %v2905 = vadd.f32 %v620, %v2904
        %v2906 = vpop.f32.mrb[0].mxu0
        %v2907 = vadd.f32 %v624, %v2906
        %v2908 = vpop.f32.mrb[0].mxu0
        %v2909 = vadd.f32 %v620, %v2908
        %v2910 = vpop.f32.mrb[0].mxu0
        %v2911 = vadd.f32 %v624, %v2910
        %2912 = vmatprep.mubr.bf16.mxu0 0
        %2913 = vmatmul.mubr.bf16.gmra.mrb[0].mxu0 %v1142
        %v2914 = vpop.f32.mrb[0].mxu0
        %v2915 = vadd.f32 %v620, %v2914
        %v2916 = vpop.f32.mrb[0].mxu0
        %v2917 = vadd.f32 %v624, %v2916
        %v2918 = vpop.f32.mrb[0].mxu0
        %v2919 = vadd.f32 %v620, %v2918
        %v2920 = vpop.f32.mrb[0].mxu0
        %v2921 = vadd.f32 %v624, %v2920
        %2922 = vmatprep.mubr.bf16.mxu0 0
        %2923 = vmatmul.mubr.bf16.gmra.mrb[0].mxu0 %v1143
        %v2924 = vpop.f32.mrb[0].mxu0
        %v2925 = vadd.f32 %v620, %v2924
        %v2926 = vpop.f32.mrb[0].mxu0
        %v2927 = vadd.f32 %v624, %v2926
        %v2928 = vpop.f32.mrb[0].mxu0
        %v2929 = vadd.f32 %v620, %v2928
        %v2930 = vpop.f32.mrb[0].mxu0
        %v2931 = vadd.f32 %v624, %v2930
        %2932 = vmatprep.mubr.bf16.mxu0 0
        %2933 = vmatmul.mubr.bf16.gmra.mrb[0].mxu0 %v1144
        %v2934 = vpop.f32.mrb[0].mxu0
        %v2935 = vadd.f32 %v620, %v2934
        %v2936 = vpop.f32.mrb[0].mxu0
        %v2937 = vadd.f32 %v624, %v2936
        %v2938 = vpop.f32.mrb[0].mxu0
        %v2939 = vadd.f32 %v620, %v2938
        %v2940 = vpop.f32.mrb[0].mxu0
        %v2941 = vadd.f32 %v624, %v2940
        %2942 = vmatprep.mubr.bf16.mxu0 0
        %2943 = vmatmul.mubr.bf16.gmra.mrb[0].mxu0 %v1145
        %v2944 = vpop.f32.mrb[0].mxu0
        %v2945 = vadd.f32 %v620, %v2944
        %v2946 = vpop.f32.mrb[0].mxu0
        %v2947 = vadd.f32 %v624, %v2946
        %v2948 = vpop.f32.mrb[0].mxu0
        %v2949 = vadd.f32 %v620, %v2948
        %v2950 = vpop.f32.mrb[0].mxu0
        %v2951 = vadd.f32 %v624, %v2950
        %2952 = vmatprep.mubr.bf16.mxu0 0
        %2953 = vmatmul.mubr.bf16.gmra.mrb[0].mxu0 %v1146
        %v2954 = vpop.f32.mrb[0].mxu0
        %v2955 = vadd.f32 %v620, %v2954
        %v2956 = vpop.f32.mrb[0].mxu0
        %v2957 = vadd.f32 %v624, %v2956
        %v2958 = vpop.f32.mrb[0].mxu0
        %v2959 = vadd.f32 %v620, %v2958
        %v2960 = vpop.f32.mrb[0].mxu0
        %v2961 = vadd.f32 %v624, %v2960
        %2962 = vmatprep.mubr.bf16.mxu0 0
        %2963 = vmatmul.mubr.bf16.gmra.mrb[0].mxu0 %v1147
        %v2964 = vpop.f32.mrb[0].mxu0
        %v2965 = vadd.f32 %v620, %v2964
        %v2966 = vpop.f32.mrb[0].mxu0
        %v2967 = vadd.f32 %v624, %v2966
        %v2968 = vpop.f32.mrb[0].mxu0
        %v2969 = vadd.f32 %v620, %v2968
        %v2970 = vpop.f32.mrb[0].mxu0
        %v2971 = vadd.f32 %v624, %v2970
        %2972 = vmatprep.mubr.bf16.mxu0 0
        %2973 = vmatmul.mubr.bf16.gmra.mrb[0].mxu0 %v1148
        %v2974 = vpop.f32.mrb[0].mxu0
        %v2975 = vadd.f32 %v620, %v2974
        %v2976 = vpop.f32.mrb[0].mxu0
        %v2977 = vadd.f32 %v624, %v2976
        %v2978 = vpop.f32.mrb[0].mxu0
        %v2979 = vadd.f32 %v620, %v2978
        %v2980 = vpop.f32.mrb[0].mxu0
        %v2981 = vadd.f32 %v624, %v2980
        %2982 = vmatprep.mubr.bf16.mxu0 0
        %2983 = vmatmul.mubr.bf16.gmra.mrb[0].mxu0 %v1149
        %v2984 = vpop.f32.mrb[0].mxu0
        %v2985 = vadd.f32 %v620, %v2984
        %v2986 = vpop.f32.mrb[0].mxu0
        %v2987 = vadd.f32 %v624, %v2986
        %v2988 = vpop.f32.mrb[0].mxu0
        %v2989 = vadd.f32 %v620, %v2988
        %v2990 = vpop.f32.mrb[0].mxu0
        %v2991 = vadd.f32 %v624, %v2990
        %2992 = vmatprep.mubr.bf16.mxu0 0
        %2993 = vmatmul.mubr.bf16.gmra.mrb[0].mxu0 %v1150
        %v2994 = vpop.f32.mrb[0].mxu0
        %v2995 = vadd.f32 %v620, %v2994
        %v2996 = vpop.f32.mrb[0].mxu0
        %v2997 = vadd.f32 %v624, %v2996
        %v2998 = vpop.f32.mrb[0].mxu0
        %v2999 = vadd.f32 %v620, %v2998
        %v3000 = vpop.f32.mrb[0].mxu0
        %v3001 = vadd.f32 %v624, %v3000
        %3002 = vmatprep.mubr.bf16.mxu0 0
        %3003 = vmatmul.mubr.bf16.gmra.mrb[0].mxu0 %v1151
        %v3004 = vpop.f32.mrb[0].mxu0
        %v3005 = vadd.f32 %v620, %v3004
        %v3006 = vpop.f32.mrb[0].mxu0
        %v3007 = vadd.f32 %v624, %v3006
        %v3008 = vpop.f32.mrb[0].mxu0
        %v3009 = vadd.f32 %v620, %v3008
        %v3010 = vpop.f32.mrb[0].mxu0
        %v3011 = vadd.f32 %v624, %v3010
        %3012 = vmatprep.mubr.bf16.mxu0 0
        %3013 = vmatmul.mubr.bf16.gmra.mrb[0].mxu0 %v1152
        %v3014 = vpop.f32.mrb[0].mxu0
        %v3015 = vadd.f32 %v620, %v3014
        %v3016 = vpop.f32.mrb[0].mxu0
        %v3017 = vadd.f32 %v624, %v3016
        %v3018 = vpop.f32.mrb[0].mxu0
        %v3019 = vadd.f32 %v620, %v3018
        %v3020 = vpop.f32.mrb[0].mxu0
        %v3021 = vadd.f32 %v624, %v3020
        %3022 = vmatprep.mubr.bf16.mxu0 0
        %3023 = vmatmul.mubr.bf16.gmra.mrb[0].mxu0 %v1153
        %v3024 = vpop.f32.mrb[0].mxu0
        %v3025 = vadd.f32 %v620, %v3024
        %v3026 = vpop.f32.mrb[0].mxu0
        %v3027 = vadd.f32 %v624, %v3026
        %v3028 = vpop.f32.mrb[0].mxu0
        %v3029 = vadd.f32 %v620, %v3028
        %v3030 = vpop.f32.mrb[0].mxu0
        %v3031 = vadd.f32 %v624, %v3030
        %3032 = vmatprep.mubr.bf16.mxu0 0
        %3033 = vmatmul.mubr.bf16.gmra.mrb[0].mxu0 %v1154
        %v3034 = vpop.f32.mrb[0].mxu0
        %v3035 = vadd.f32 %v620, %v3034
        %v3036 = vpop.f32.mrb[0].mxu0
        %v3037 = vadd.f32 %v624, %v3036
        %v3038 = vpop.f32.mrb[0].mxu0
        %v3039 = vadd.f32 %v620, %v3038
        %v3040 = vpop.f32.mrb[0].mxu0
        %v3041 = vadd.f32 %v624, %v3040
        %3042 = vmatprep.mubr.bf16.mxu0 0
        %3043 = vmatmul.mubr.bf16.gmra.mrb[0].mxu0 %v1155
        %v3044 = vpop.f32.mrb[0].mxu0
        %v3045 = vadd.f32 %v620, %v3044
        %v3046 = vpop.f32.mrb[0].mxu0
        %v3047 = vadd.f32 %v624, %v3046
        %v3048 = vpop.f32.mrb[0].mxu0
        %v3049 = vadd.f32 %v620, %v3048
        %v3050 = vpop.f32.mrb[0].mxu0
        %v3051 = vadd.f32 %v624, %v3050
        %3052 = vmatprep.mubr.bf16.mxu0 0
        %3053 = vmatmul.mubr.bf16.gmra.mrb[0].mxu0 %v1156
        %v3054 = vpop.f32.mrb[0].mxu0
        %v3055 = vadd.f32 %v620, %v3054
        %v3056 = vpop.f32.mrb[0].mxu0
        %v3057 = vadd.f32 %v624, %v3056
        %v3058 = vpop.f32.mrb[0].mxu0
        %v3059 = vadd.f32 %v620, %v3058
        %v3060 = vpop.f32.mrb[0].mxu0
        %v3061 = vadd.f32 %v624, %v3060
        %3062 = vmatprep.mubr.bf16.mxu0 0
        %3063 = vmatmul.mubr.bf16.gmra.mrb[0].mxu0 %v1157
        %v3064 = vpop.f32.mrb[0].mxu0
        %v3065 = vadd.f32 %v620, %v3064
        %v3066 = vpop.f32.mrb[0].mxu0
        %v3067 = vadd.f32 %v624, %v3066
        %v3068 = vpop.f32.mrb[0].mxu0
        %v3069 = vadd.f32 %v620, %v3068
        %v3070 = vpop.f32.mrb[0].mxu0
        %v3071 = vadd.f32 %v624, %v3070
        %3072 = vmatprep.mubr.bf16.mxu0 0
        %3073 = vmatmul.mubr.bf16.gmra.mrb[0].mxu0 %v1158
        %v3074 = vpop.f32.mrb[0].mxu0
        %v3075 = vadd.f32 %v620, %v3074
        %v3076 = vpop.f32.mrb[0].mxu0
        %v3077 = vadd.f32 %v624, %v3076
        %v3078 = vpop.f32.mrb[0].mxu0
        %v3079 = vadd.f32 %v620, %v3078
        %v3080 = vpop.f32.mrb[0].mxu0
        %v3081 = vadd.f32 %v624, %v3080
        %3082 = vmatprep.mubr.bf16.mxu0 0
        %3083 = vmatmul.mubr.bf16.gmra.mrb[0].mxu0 %v1159
        %v3084 = vpop.f32.mrb[0].mxu0
        %v3085 = vadd.f32 %v620, %v3084
        %v3086 = vpop.f32.mrb[0].mxu0
        %v3087 = vadd.f32 %v624, %v3086
        %v3088 = vpop.f32.mrb[0].mxu0
        %v3089 = vadd.f32 %v620, %v3088
        %v3090 = vpop.f32.mrb[0].mxu0
        %v3091 = vadd.f32 %v624, %v3090
        %3092 = vmatprep.mubr.bf16.mxu0 0
        %3093 = vmatmul.mubr.bf16.gmra.mrb[0].mxu0 %v1160
        %v3094 = vpop.f32.mrb[0].mxu0
        %v3095 = vadd.f32 %v620, %v3094
        %v3096 = vpop.f32.mrb[0].mxu0
        %v3097 = vadd.f32 %v624, %v3096
        %v3098 = vpop.f32.mrb[0].mxu0
        %v3099 = vadd.f32 %v620, %v3098
        %v3100 = vpop.f32.mrb[0].mxu0
        %v3101 = vadd.f32 %v624, %v3100
        %3102 = vmatprep.mubr.bf16.mxu0 0
        %3103 = vmatmul.mubr.bf16.gmra.mrb[0].mxu0 %v1161
        %v3104 = vpop.f32.mrb[0].mxu0
        %v3105 = vadd.f32 %v620, %v3104
        %v3106 = vpop.f32.mrb[0].mxu0
        %v3107 = vadd.f32 %v624, %v3106
        %v3108 = vpop.f32.mrb[0].mxu0
        %v3109 = vadd.f32 %v620, %v3108
        %v3110 = vpop.f32.mrb[0].mxu0
        %v3111 = vadd.f32 %v624, %v3110
        %3112 = vmatprep.mubr.bf16.mxu0 0
        %3113 = vmatmul.mubr.bf16.gmra.mrb[0].mxu0 %v1162
        %v3114 = vpop.f32.mrb[0].mxu0
        %v3115 = vadd.f32 %v620, %v3114
        %v3116 = vpop.f32.mrb[0].mxu0
        %v3117 = vadd.f32 %v624, %v3116
        %v3118 = vpop.f32.mrb[0].mxu0
        %v3119 = vadd.f32 %v620, %v3118
        %v3120 = vpop.f32.mrb[0].mxu0
        %v3121 = vadd.f32 %v624, %v3120
        %3122 = vmatprep.mubr.bf16.mxu0 0
        %3123 = vmatmul.mubr.bf16.gmra.mrb[0].mxu0 %v1163
        %v3124 = vpop.f32.mrb[0].mxu0
        %v3125 = vadd.f32 %v620, %v3124
        %v3126 = vpop.f32.mrb[0].mxu0
        %v3127 = vadd.f32 %v624, %v3126
        %v3128 = vpop.f32.mrb[0].mxu0
        %v3129 = vadd.f32 %v620, %v3128
        %v3130 = vpop.f32.mrb[0].mxu0
        %v3131 = vadd.f32 %v624, %v3130
        %3132 = vmatprep.mubr.bf16.mxu0 0
        %3133 = vmatmul.mubr.bf16.gmra.mrb[0].mxu0 %v1164
        %v3134 = vpop.f32.mrb[0].mxu0
        %v3135 = vadd.f32 %v620, %v3134
        %v3136 = vpop.f32.mrb[0].mxu0
        %v3137 = vadd.f32 %v624, %v3136
        %v3138 = vpop.f32.mrb[0].mxu0
        %v3139 = vadd.f32 %v620, %v3138
        %v3140 = vpop.f32.mrb[0].mxu0
        %v3141 = vadd.f32 %v624, %v3140
        %3142 = vmatprep.mubr.bf16.mxu0 0
        %3143 = vmatmul.mubr.bf16.gmra.mrb[0].mxu0 %v1165
        %v3144 = vpop.f32.mrb[0].mxu0
        %v3145 = vadd.f32 %v620, %v3144
        %v3146 = vpop.f32.mrb[0].mxu0
        %v3147 = vadd.f32 %v624, %v3146
        %v3148 = vpop.f32.mrb[0].mxu0
        %v3149 = vadd.f32 %v620, %v3148
        %v3150 = vpop.f32.mrb[0].mxu0
        %v3151 = vadd.f32 %v624, %v3150
        %3152 = vmatprep.mubr.bf16.mxu0 0
        %3153 = vmatmul.mubr.bf16.gmra.mrb[0].mxu0 %v1166
        %v3154 = vpop.f32.mrb[0].mxu0
        %v3155 = vadd.f32 %v620, %v3154
        %v3156 = vpop.f32.mrb[0].mxu0
        %v3157 = vadd.f32 %v624, %v3156
        %v3158 = vpop.f32.mrb[0].mxu0
        %v3159 = vadd.f32 %v620, %v3158
        %v3160 = vpop.f32.mrb[0].mxu0
        %v3161 = vadd.f32 %v624, %v3160
        %3162 = vmatprep.mubr.bf16.mxu0 0
        %3163 = vmatmul.mubr.bf16.gmra.mrb[0].mxu0 %v1167
        %v3164 = vpop.f32.mrb[0].mxu0
        %v3165 = vadd.f32 %v620, %v3164
        %v3166 = vpop.f32.mrb[0].mxu0
        %v3167 = vadd.f32 %v624, %v3166
        %v3168 = vpop.f32.mrb[0].mxu0
        %v3169 = vadd.f32 %v620, %v3168
        %v3170 = vpop.f32.mrb[0].mxu0
        %v3171 = vadd.f32 %v624, %v3170
        %3172 = vmatprep.mubr.bf16.mxu0 0
        %3173 = vmatmul.mubr.bf16.gmra.mrb[0].mxu0 %v1168
        %v3174 = vpop.f32.mrb[0].mxu0
        %v3175 = vadd.f32 %v620, %v3174
        %v3176 = vpop.f32.mrb[0].mxu0
        %v3177 = vadd.f32 %v624, %v3176
        %v3178 = vpop.f32.mrb[0].mxu0
        %v3179 = vadd.f32 %v620, %v3178
        %v3180 = vpop.f32.mrb[0].mxu0
        %v3181 = vadd.f32 %v624, %v3180
        %3182 = vmatprep.mubr.bf16.mxu0 0
        %3183 = vmatmul.mubr.bf16.gmra.mrb[0].mxu0 %v1169
        %v3184 = vpop.f32.mrb[0].mxu0
        %v3185 = vadd.f32 %v620, %v3184
        %v3186 = vpop.f32.mrb[0].mxu0
        %v3187 = vadd.f32 %v624, %v3186
        %v3188 = vpop.f32.mrb[0].mxu0
        %v3189 = vadd.f32 %v620, %v3188
        %v3190 = vpop.f32.mrb[0].mxu0
        %v3191 = vadd.f32 %v624, %v3190
        %3192 = vmatprep.mubr.bf16.mxu0 0
        %3193 = vmatmul.mubr.bf16.gmra.mrb[0].mxu0 %v1170
        %v3194 = vpop.f32.mrb[0].mxu0
        %v3195 = vadd.f32 %v620, %v3194
        %v3196 = vpop.f32.mrb[0].mxu0
        %v3197 = vadd.f32 %v624, %v3196
        %v3198 = vpop.f32.mrb[0].mxu0
        %v3199 = vadd.f32 %v620, %v3198
        %v3200 = vpop.f32.mrb[0].mxu0
        %v3201 = vadd.f32 %v624, %v3200
        %3202 = vmatprep.mubr.bf16.mxu0 0
        %3203 = vmatmul.mubr.bf16.gmra.mrb[0].mxu0 %v1171
        %v3204 = vpop.f32.mrb[0].mxu0
        %v3205 = vadd.f32 %v620, %v3204
        %v3206 = vpop.f32.mrb[0].mxu0
        %v3207 = vadd.f32 %v624, %v3206
        %v3208 = vpop.f32.mrb[0].mxu0
        %v3209 = vadd.f32 %v620, %v3208
        %v3210 = vpop.f32.mrb[0].mxu0
        %v3211 = vadd.f32 %v624, %v3210
        %3212 = vmatprep.mubr.bf16.mxu0 0
        %3213 = vmatmul.mubr.bf16.gmra.mrb[0].mxu0 %v1172
        %v3214 = vpop.f32.mrb[0].mxu0
        %v3215 = vadd.f32 %v620, %v3214
        %v3216 = vpop.f32.mrb[0].mxu0
        %v3217 = vadd.f32 %v624, %v3216
        %v3218 = vpop.f32.mrb[0].mxu0
        %v3219 = vadd.f32 %v620, %v3218
        %v3220 = vpop.f32.mrb[0].mxu0
        %v3221 = vadd.f32 %v624, %v3220
        %3222 = vmatprep.mubr.bf16.mxu0 0
        %3223 = vmatmul.mubr.bf16.gmra.mrb[0].mxu0 %v1173
        %v3224 = vpop.f32.mrb[0].mxu0
        %v3225 = vadd.f32 %v620, %v3224
        %v3226 = vpop.f32.mrb[0].mxu0
        %v3227 = vadd.f32 %v624, %v3226
        %v3228 = vpop.f32.mrb[0].mxu0
        %v3229 = vadd.f32 %v620, %v3228
        %v3230 = vpop.f32.mrb[0].mxu0
        %v3231 = vadd.f32 %v624, %v3230
        %3232 = vmatprep.mubr.bf16.mxu0 0
        %3233 = vmatmul.mubr.bf16.gmra.mrb[0].mxu0 %v1174
        %v3234 = vpop.f32.mrb[0].mxu0
        %v3235 = vadd.f32 %v620, %v3234
        %v3236 = vpop.f32.mrb[0].mxu0
        %v3237 = vadd.f32 %v624, %v3236
        %v3238 = vpop.f32.mrb[0].mxu0
        %v3239 = vadd.f32 %v620, %v3238
        %v3240 = vpop.f32.mrb[0].mxu0
        %v3241 = vadd.f32 %v624, %v3240
        %3242 = vmatprep.mubr.bf16.mxu0 0
        %3243 = vmatmul.mubr.bf16.gmra.mrb[0].mxu0 %v1175
        %v3244 = vpop.f32.mrb[0].mxu0
        %v3245 = vadd.f32 %v620, %v3244
        %v3246 = vpop.f32.mrb[0].mxu0
        %v3247 = vadd.f32 %v624, %v3246
        %v3248 = vpop.f32.mrb[0].mxu0
        %v3249 = vadd.f32 %v620, %v3248
        %v3250 = vpop.f32.mrb[0].mxu0
        %v3251 = vadd.f32 %v624, %v3250
        %3252 = vmatprep.mubr.bf16.mxu0 0
        %3253 = vmatmul.mubr.bf16.gmra.mrb[0].mxu0 %v1176
        %v3254 = vpop.f32.mrb[0].mxu0
        %v3255 = vadd.f32 %v620, %v3254
        %v3256 = vpop.f32.mrb[0].mxu0
        %v3257 = vadd.f32 %v624, %v3256
        %v3258 = vpop.f32.mrb[0].mxu0
        %v3259 = vadd.f32 %v620, %v3258
        %v3260 = vpop.f32.mrb[0].mxu0
        %v3261 = vadd.f32 %v624, %v3260
        %3262 = vmatprep.mubr.bf16.mxu0 0
        %3263 = vmatmul.mubr.bf16.gmra.mrb[0].mxu0 %v1177
        %v3264 = vpop.f32.mrb[0].mxu0
        %v3265 = vadd.f32 %v620, %v3264
        %v3266 = vpop.f32.mrb[0].mxu0
        %v3267 = vadd.f32 %v624, %v3266
        %v3268 = vpop.f32.mrb[0].mxu0
        %v3269 = vadd.f32 %v620, %v3268
        %v3270 = vpop.f32.mrb[0].mxu0
        %v3271 = vadd.f32 %v624, %v3270
        %3272 = vmatprep.mubr.bf16.mxu0 0
        %3273 = vmatmul.mubr.bf16.gmra.mrb[0].mxu0 %v1178
        %v3274 = vpop.f32.mrb[0].mxu0
        %v3275 = vadd.f32 %v620, %v3274
        %v3276 = vpop.f32.mrb[0].mxu0
        %v3277 = vadd.f32 %v624, %v3276
        %v3278 = vpop.f32.mrb[0].mxu0
        %v3279 = vadd.f32 %v620, %v3278
        %v3280 = vpop.f32.mrb[0].mxu0
        %v3281 = vadd.f32 %v624, %v3280
        %3282 = vmatprep.mubr.bf16.mxu0 0
        %3283 = vmatmul.mubr.bf16.gmra.mrb[0].mxu0 %v1179
        %v3284 = vpop.f32.mrb[0].mxu0
        %v3285 = vadd.f32 %v620, %v3284
        %v3286 = vpop.f32.mrb[0].mxu0
        %v3287 = vadd.f32 %v624, %v3286
        %v3288 = vpop.f32.mrb[0].mxu0
        %v3289 = vadd.f32 %v620, %v3288
        %v3290 = vpop.f32.mrb[0].mxu0
        %v3291 = vadd.f32 %v624, %v3290
        %3292 = vmatprep.mubr.bf16.mxu0 0
        %3293 = vmatmul.mubr.bf16.gmra.mrb[0].mxu0 %v1180
        %v3294 = vpop.f32.mrb[0].mxu0
        %v3295 = vadd.f32 %v620, %v3294
        %v3296 = vpop.f32.mrb[0].mxu0
        %v3297 = vadd.f32 %v624, %v3296
        %v3298 = vpop.f32.mrb[0].mxu0
        %v3299 = vadd.f32 %v620, %v3298
        %v3300 = vpop.f32.mrb[0].mxu0
        %v3301 = vadd.f32 %v624, %v3300
        %3302 = vmatprep.mubr.bf16.mxu0 0
        %3303 = vmatmul.mubr.bf16.gmra.mrb[0].mxu0 %v1181
        %v3304 = vpop.f32.mrb[0].mxu0
        %v3305 = vadd.f32 %v620, %v3304
        %v3306 = vpop.f32.mrb[0].mxu0
        %v3307 = vadd.f32 %v624, %v3306
        %v3308 = vpop.f32.mrb[0].mxu0
        %v3309 = vadd.f32 %v620, %v3308
        %v3310 = vpop.f32.mrb[0].mxu0
        %v3311 = vadd.f32 %v624, %v3310
        %3312 = vmatprep.mubr.bf16.mxu0 0
        %3313 = vmatmul.mubr.bf16.gmra.mrb[0].mxu0 %v1182
        %v3314 = vpop.f32.mrb[0].mxu0
        %v3315 = vadd.f32 %v620, %v3314
        %v3316 = vpop.f32.mrb[0].mxu0
        %v3317 = vadd.f32 %v624, %v3316
        %v3318 = vpop.f32.mrb[0].mxu0
        %v3319 = vadd.f32 %v620, %v3318
        %v3320 = vpop.f32.mrb[0].mxu0
        %v3321 = vadd.f32 %v624, %v3320
        %3322 = vmatprep.mubr.bf16.mxu0 0
        %3323 = vmatmul.mubr.bf16.gmra.mrb[0].mxu0 %v1183
        %v3324 = vpop.f32.mrb[0].mxu0
        %v3325 = vadd.f32 %v620, %v3324
        %v3326 = vpop.f32.mrb[0].mxu0
        %v3327 = vadd.f32 %v624, %v3326
        %v3328 = vpop.f32.mrb[0].mxu0
        %v3329 = vadd.f32 %v620, %v3328
        %v3330 = vpop.f32.mrb[0].mxu0
        %v3331 = vadd.f32 %v624, %v3330
        %3332 = vmatprep.mubr.bf16.mxu0 0
        %3333 = vmatmul.mubr.bf16.gmra.mrb[0].mxu0 %v1184
        %v3334 = vpop.f32.mrb[0].mxu0
        %v3335 = vadd.f32 %v620, %v3334
        %v3336 = vpop.f32.mrb[0].mxu0
        %v3337 = vadd.f32 %v624, %v3336
        %v3338 = vpop.f32.mrb[0].mxu0
        %v3339 = vadd.f32 %v620, %v3338
        %v3340 = vpop.f32.mrb[0].mxu0
        %v3341 = vadd.f32 %v624, %v3340
        %3342 = vmatprep.mubr.bf16.mxu0 0
        %3343 = vmatmul.mubr.bf16.gmra.mrb[0].mxu0 %v1185
        %v3344 = vpop.f32.mrb[0].mxu0
        %v3345 = vadd.f32 %v620, %v3344
        %v3346 = vpop.f32.mrb[0].mxu0
        %v3347 = vadd.f32 %v624, %v3346
        %v3348 = vpop.f32.mrb[0].mxu0
        %v3349 = vadd.f32 %v620, %v3348
        %v3350 = vpop.f32.mrb[0].mxu0
        %v3351 = vadd.f32 %v624, %v3350
        %3352 = vmatprep.mubr.bf16.mxu0 0
        %3353 = vmatmul.mubr.bf16.gmra.mrb[0].mxu0 %v1186
        %v3354 = vpop.f32.mrb[0].mxu0
        %v3355 = vadd.f32 %v620, %v3354
        %v3356 = vpop.f32.mrb[0].mxu0
        %v3357 = vadd.f32 %v624, %v3356
        %v3358 = vpop.f32.mrb[0].mxu0
        %v3359 = vadd.f32 %v620, %v3358
        %v3360 = vpop.f32.mrb[0].mxu0
        %v3361 = vadd.f32 %v624, %v3360
        %3362 = vmatprep.mubr.bf16.mxu0 0
        %3363 = vmatmul.mubr.bf16.gmra.mrb[0].mxu0 %v1187
        %v3364 = vpop.f32.mrb[0].mxu0
        %v3365 = vadd.f32 %v620, %v3364
        %v3366 = vpop.f32.mrb[0].mxu0
        %v3367 = vadd.f32 %v624, %v3366
        %v3368 = vpop.f32.mrb[0].mxu0
        %v3369 = vadd.f32 %v620, %v3368
        %v3370 = vpop.f32.mrb[0].mxu0
        %v3371 = vadd.f32 %v624, %v3370
        %3372 = vmatprep.mubr.bf16.mxu0 0
        %3373 = vmatmul.mubr.bf16.gmra.mrb[0].mxu0 %v1188
        %v3374 = vpop.f32.mrb[0].mxu0
        %v3375 = vadd.f32 %v620, %v3374
        %v3376 = vpop.f32.mrb[0].mxu0
        %v3377 = vadd.f32 %v624, %v3376
        %v3378 = vpop.f32.mrb[0].mxu0
        %v3379 = vadd.f32 %v620, %v3378
        %v3380 = vpop.f32.mrb[0].mxu0
        %v3381 = vadd.f32 %v624, %v3380
        %3382 = vmatprep.mubr.bf16.mxu0 0
        %3383 = vmatmul.mubr.bf16.gmra.mrb[0].mxu0 %v1189
        %v3384 = vpop.f32.mrb[0].mxu0
        %v3385 = vadd.f32 %v620, %v3384
        %v3386 = vpop.f32.mrb[0].mxu0
        %v3387 = vadd.f32 %v624, %v3386
        %v3388 = vpop.f32.mrb[0].mxu0
        %v3389 = vadd.f32 %v620, %v3388
        %v3390 = vpop.f32.mrb[0].mxu0
        %v3391 = vadd.f32 %v624, %v3390
        %3392 = vmatprep.mubr.bf16.mxu0 0
        %3393 = vmatmul.mubr.bf16.gmra.mrb[0].mxu0 %v1190
        %v3394 = vpop.f32.mrb[0].mxu0
        %v3395 = vadd.f32 %v620, %v3394
        %v3396 = vpop.f32.mrb[0].mxu0
        %v3397 = vadd.f32 %v624, %v3396
        %v3398 = vpop.f32.mrb[0].mxu0
        %v3399 = vadd.f32 %v620, %v3398
        %v3400 = vpop.f32.mrb[0].mxu0
        %v3401 = vadd.f32 %v624, %v3400
        %3402 = vmatprep.mubr.bf16.mxu0 0
        %3403 = vmatmul.mubr.bf16.gmra.mrb[0].mxu0 %v1191
        %v3404 = vpop.f32.mrb[0].mxu0
        %v3405 = vadd.f32 %v620, %v3404
        %v3406 = vpop.f32.mrb[0].mxu0
        %v3407 = vadd.f32 %v624, %v3406
        %v3408 = vpop.f32.mrb[0].mxu0
        %v3409 = vadd.f32 %v620, %v3408
        %v3410 = vpop.f32.mrb[0].mxu0
        %v3411 = vadd.f32 %v624, %v3410
        %3412 = vmatprep.mubr.bf16.mxu0 0
        %3413 = vmatmul.mubr.bf16.gmra.mrb[0].mxu0 %v1192
        %v3414 = vpop.f32.mrb[0].mxu0
        %v3415 = vadd.f32 %v620, %v3414
        %v3416 = vpop.f32.mrb[0].mxu0
        %v3417 = vadd.f32 %v624, %v3416
        %v3418 = vpop.f32.mrb[0].mxu0
        %v3419 = vadd.f32 %v620, %v3418
        %v3420 = vpop.f32.mrb[0].mxu0
        %v3421 = vadd.f32 %v624, %v3420
        %3422 = vmatprep.mubr.bf16.mxu0 0
        %3423 = vmatmul.mubr.bf16.gmra.mrb[0].mxu0 %v1193
        %v3424 = vpop.f32.mrb[0].mxu0
        %v3425 = vadd.f32 %v620, %v3424
        %v3426 = vpop.f32.mrb[0].mxu0
        %v3427 = vadd.f32 %v624, %v3426
        %v3428 = vpop.f32.mrb[0].mxu0
        %v3429 = vadd.f32 %v620, %v3428
        %v3430 = vpop.f32.mrb[0].mxu0
        %v3431 = vadd.f32 %v624, %v3430
        %3432 = vmatprep.mubr.bf16.mxu0 0
        %3433 = vmatmul.mubr.bf16.gmra.mrb[0].mxu0 %v1194
        %v3434 = vpop.f32.mrb[0].mxu0
        %v3435 = vadd.f32 %v620, %v3434
        %v3436 = vpop.f32.mrb[0].mxu0
        %v3437 = vadd.f32 %v624, %v3436
        %v3438 = vpop.f32.mrb[0].mxu0
        %v3439 = vadd.f32 %v620, %v3438
        %v3440 = vpop.f32.mrb[0].mxu0
        %v3441 = vadd.f32 %v624, %v3440
        %3442 = vmatprep.mubr.bf16.mxu0 0
        %3443 = vmatmul.mubr.bf16.gmra.mrb[0].mxu0 %v1195
        %v3444 = vpop.f32.mrb[0].mxu0
        %v3445 = vadd.f32 %v620, %v3444
        %v3446 = vpop.f32.mrb[0].mxu0
        %v3447 = vadd.f32 %v624, %v3446
        %v3448 = vpop.f32.mrb[0].mxu0
        %v3449 = vadd.f32 %v620, %v3448
        %v3450 = vpop.f32.mrb[0].mxu0
        %v3451 = vadd.f32 %v624, %v3450
        %3452 = vmatprep.mubr.bf16.mxu0 0
        %3453 = vmatmul.mubr.bf16.gmra.mrb[0].mxu0 %v1196
        %v3454 = vpop.f32.mrb[0].mxu0
        %v3455 = vadd.f32 %v620, %v3454
        %v3456 = vpop.f32.mrb[0].mxu0
        %v3457 = vadd.f32 %v624, %v3456
        %v3458 = vpop.f32.mrb[0].mxu0
        %v3459 = vadd.f32 %v620, %v3458
        %v3460 = vpop.f32.mrb[0].mxu0
        %v3461 = vadd.f32 %v624, %v3460
        %3462 = vmatprep.mubr.bf16.mxu0 0
        %3463 = vmatmul.mubr.bf16.gmra.mrb[0].mxu0 %v1197
        %v3464 = vpop.f32.mrb[0].mxu0
        %v3465 = vadd.f32 %v620, %v3464
        %v3466 = vpop.f32.mrb[0].mxu0
        %v3467 = vadd.f32 %v624, %v3466
        %v3468 = vpop.f32.mrb[0].mxu0
        %v3469 = vadd.f32 %v620, %v3468
        %v3470 = vpop.f32.mrb[0].mxu0
        %v3471 = vadd.f32 %v624, %v3470
        %3472 = vmatprep.mubr.bf16.mxu0 0
        %3473 = vmatmul.mubr.bf16.gmra.mrb[0].mxu0 %v1198
        %v3474 = vpop.f32.mrb[0].mxu0
        %v3475 = vadd.f32 %v620, %v3474
        %v3476 = vpop.f32.mrb[0].mxu0
        %v3477 = vadd.f32 %v624, %v3476
        %v3478 = vpop.f32.mrb[0].mxu0
        %v3479 = vadd.f32 %v620, %v3478
        %v3480 = vpop.f32.mrb[0].mxu0
        %v3481 = vadd.f32 %v624, %v3480
        %3482 = vmatprep.mubr.bf16.mxu0 0
        %3483 = vmatmul.mubr.bf16.gmra.mrb[0].mxu0 %v1199
        %v3484 = vpop.f32.mrb[0].mxu0
        %v3485 = vadd.f32 %v620, %v3484
        %v3486 = vpop.f32.mrb[0].mxu0
        %v3487 = vadd.f32 %v624, %v3486
        %v3488 = vpop.f32.mrb[0].mxu0
        %v3489 = vadd.f32 %v620, %v3488
        %v3490 = vpop.f32.mrb[0].mxu0
        %v3491 = vadd.f32 %v624, %v3490
        %3492 = vmatprep.mubr.bf16.mxu0 0
        %3493 = vmatmul.mubr.bf16.gmra.mrb[0].mxu0 %v1200
        %v3494 = vpop.f32.mrb[0].mxu0
        %v3495 = vadd.f32 %v620, %v3494
        %v3496 = vpop.f32.mrb[0].mxu0
        %v3497 = vadd.f32 %v624, %v3496
        %v3498 = vpop.f32.mrb[0].mxu0
        %v3499 = vadd.f32 %v620, %v3498
        %v3500 = vpop.f32.mrb[0].mxu0
        %v3501 = vadd.f32 %v624, %v3500
        %3502 = vmatprep.mubr.bf16.mxu0 0
        %3503 = vmatmul.mubr.bf16.gmra.mrb[0].mxu0 %v1201
        %v3504 = vpop.f32.mrb[0].mxu0
        %v3505 = vadd.f32 %v620, %v3504
        %v3506 = vpop.f32.mrb[0].mxu0
        %v3507 = vadd.f32 %v624, %v3506
        %v3508 = vpop.f32.mrb[0].mxu0
        %v3509 = vadd.f32 %v620, %v3508
        %v3510 = vpop.f32.mrb[0].mxu0
        %v3511 = vadd.f32 %v624, %v3510
        %3512 = vmatprep.mubr.bf16.mxu0 0
        %3513 = vmatmul.mubr.bf16.gmra.mrb[0].mxu0 %v1202
        %v3514 = vpop.f32.mrb[0].mxu0
        %v3515 = vadd.f32 %v620, %v3514
        %v3516 = vpop.f32.mrb[0].mxu0
        %v3517 = vadd.f32 %v624, %v3516
        %v3518 = vpop.f32.mrb[0].mxu0
        %v3519 = vadd.f32 %v620, %v3518
        %v3520 = vpop.f32.mrb[0].mxu0
        %v3521 = vadd.f32 %v624, %v3520
        %3522 = vmatprep.mubr.bf16.mxu0 0
        %3523 = vmatmul.mubr.bf16.gmra.mrb[0].mxu0 %v1203
        %v3524 = vpop.f32.mrb[0].mxu0
        %v3525 = vadd.f32 %v620, %v3524
        %v3526 = vpop.f32.mrb[0].mxu0
        %v3527 = vadd.f32 %v624, %v3526
        %v3528 = vpop.f32.mrb[0].mxu0
        %v3529 = vadd.f32 %v620, %v3528
        %v3530 = vpop.f32.mrb[0].mxu0
        %v3531 = vadd.f32 %v624, %v3530
        %3532 = vmatprep.mubr.bf16.mxu0 0
        %3533 = vmatmul.mubr.bf16.gmra.mrb[0].mxu0 %v1204
        %v3534 = vpop.f32.mrb[0].mxu0
        %v3535 = vadd.f32 %v620, %v3534
        %v3536 = vpop.f32.mrb[0].mxu0
        %v3537 = vadd.f32 %v624, %v3536
        %v3538 = vpop.f32.mrb[0].mxu0
        %v3539 = vadd.f32 %v620, %v3538
        %v3540 = vpop.f32.mrb[0].mxu0
        %v3541 = vadd.f32 %v624, %v3540
        %3542 = vmatprep.mubr.bf16.mxu0 0
        %3543 = vmatmul.mubr.bf16.gmra.mrb[0].mxu0 %v1205
        %v3544 = vpop.f32.mrb[0].mxu0
        %v3545 = vadd.f32 %v620, %v3544
        %v3546 = vpop.f32.mrb[0].mxu0
        %v3547 = vadd.f32 %v624, %v3546
        %v3548 = vpop.f32.mrb[0].mxu0
        %v3549 = vadd.f32 %v620, %v3548
        %v3550 = vpop.f32.mrb[0].mxu0
        %v3551 = vadd.f32 %v624, %v3550
        %3552 = vmatprep.mubr.bf16.mxu0 0
        %3553 = vmatmul.mubr.bf16.gmra.mrb[0].mxu0 %v1206
        %v3554 = vpop.f32.mrb[0].mxu0
        %v3555 = vadd.f32 %v620, %v3554
        %v3556 = vpop.f32.mrb[0].mxu0
        %v3557 = vadd.f32 %v624, %v3556
        %v3558 = vpop.f32.mrb[0].mxu0
        %v3559 = vadd.f32 %v620, %v3558
        %v3560 = vpop.f32.mrb[0].mxu0
        %v3561 = vadd.f32 %v624, %v3560
        %3562 = vmatprep.mubr.bf16.mxu0 0
        %3563 = vmatmul.mubr.bf16.gmra.mrb[0].mxu0 %v1207
        %v3564 = vpop.f32.mrb[0].mxu0
        %v3565 = vadd.f32 %v620, %v3564
        %v3566 = vpop.f32.mrb[0].mxu0
        %v3567 = vadd.f32 %v624, %v3566
        %v3568 = vpop.f32.mrb[0].mxu0
        %v3569 = vadd.f32 %v620, %v3568
        %v3570 = vpop.f32.mrb[0].mxu0
        %v3571 = vadd.f32 %v624, %v3570
        %3572 = vmatprep.mubr.bf16.mxu0 0
        %3573 = vmatmul.mubr.bf16.gmra.mrb[0].mxu0 %v1208
        %v3574 = vpop.f32.mrb[0].mxu0
        %v3575 = vadd.f32 %v620, %v3574
        %v3576 = vpop.f32.mrb[0].mxu0
        %v3577 = vadd.f32 %v624, %v3576
        %v3578 = vpop.f32.mrb[0].mxu0
        %v3579 = vadd.f32 %v620, %v3578
        %v3580 = vpop.f32.mrb[0].mxu0
        %v3581 = vadd.f32 %v624, %v3580
        %3582 = vmatprep.mubr.bf16.mxu0 0
        %3583 = vmatmul.mubr.bf16.gmra.mrb[0].mxu0 %v1209
        %v3584 = vpop.f32.mrb[0].mxu0
        %v3585 = vadd.f32 %v620, %v3584
        %v3586 = vpop.f32.mrb[0].mxu0
        %v3587 = vadd.f32 %v624, %v3586
        %v3588 = vpop.f32.mrb[0].mxu0
        %v3589 = vadd.f32 %v620, %v3588
        %v3590 = vpop.f32.mrb[0].mxu0
        %v3591 = vadd.f32 %v624, %v3590
        %3592 = vmatprep.mubr.bf16.mxu0 0
        %3593 = vmatmul.mubr.bf16.gmra.mrb[0].mxu0 %v1210
        %v3594 = vpop.f32.mrb[0].mxu0
        %v3595 = vadd.f32 %v620, %v3594
        %v3596 = vpop.f32.mrb[0].mxu0
        %v3597 = vadd.f32 %v624, %v3596
        %v3598 = vpop.f32.mrb[0].mxu0
        %v3599 = vadd.f32 %v620, %v3598
        %v3600 = vpop.f32.mrb[0].mxu0
        %v3601 = vadd.f32 %v624, %v3600
        %3602 = vmatprep.mubr.bf16.mxu0 0
        %3603 = vmatmul.mubr.bf16.gmra.mrb[0].mxu0 %v1211
        %v3604 = vpop.f32.mrb[0].mxu0
        %v3605 = vadd.f32 %v620, %v3604
        %v3606 = vpop.f32.mrb[0].mxu0
        %v3607 = vadd.f32 %v624, %v3606
        %v3608 = vpop.f32.mrb[0].mxu0
        %v3609 = vadd.f32 %v620, %v3608
        %v3610 = vpop.f32.mrb[0].mxu0
        %v3611 = vadd.f32 %v624, %v3610
        %3612 = vmatprep.mubr.bf16.mxu0 0
        %3613 = vmatmul.mubr.bf16.gmra.mrb[0].mxu0 %v1212
        %v3614 = vpop.f32.mrb[0].mxu0
        %v3615 = vadd.f32 %v620, %v3614
        %v3616 = vpop.f32.mrb[0].mxu0
        %v3617 = vadd.f32 %v624, %v3616
        %v3618 = vpop.f32.mrb[0].mxu0
        %v3619 = vadd.f32 %v620, %v3618
        %v3620 = vpop.f32.mrb[0].mxu0
        %v3621 = vadd.f32 %v624, %v3620
        %3622 = vmatprep.mubr.bf16.mxu0 0
        %3623 = vmatmul.mubr.bf16.gmra.mrb[0].mxu0 %v1213
        %v3624 = vpop.f32.mrb[0].mxu0
        %v3625 = vadd.f32 %v620, %v3624
        %v3626 = vpop.f32.mrb[0].mxu0
        %v3627 = vadd.f32 %v624, %v3626
        %v3628 = vpop.f32.mrb[0].mxu0
        %v3629 = vadd.f32 %v620, %v3628
        %v3630 = vpop.f32.mrb[0].mxu0
        %v3631 = vadd.f32 %v624, %v3630
        %3632 = vmatprep.mubr.bf16.mxu0 0
        %3633 = vmatmul.mubr.bf16.gmra.mrb[0].mxu0 %v1214
        %v3634 = vpop.f32.mrb[0].mxu0
        %v3635 = vadd.f32 %v620, %v3634
        %v3636 = vpop.f32.mrb[0].mxu0
        %v3637 = vadd.f32 %v624, %v3636
        %v3638 = vpop.f32.mrb[0].mxu0
        %v3639 = vadd.f32 %v620, %v3638
        %v3640 = vpop.f32.mrb[0].mxu0
        %v3641 = vadd.f32 %v624, %v3640
        %3642 = vmatprep.mubr.bf16.mxu0 0
        %3643 = vmatmul.mubr.bf16.gmra.mrb[0].mxu0 %v1215
        %v3644 = vpop.f32.mrb[0].mxu0
        %v3645 = vadd.f32 %v620, %v3644
        %v3646 = vpop.f32.mrb[0].mxu0
        %v3647 = vadd.f32 %v624, %v3646
        %v3648 = vpop.f32.mrb[0].mxu0
        %v3649 = vadd.f32 %v620, %v3648
        %v3650 = vpop.f32.mrb[0].mxu0
        %v3651 = vadd.f32 %v624, %v3650
        %3652 = vmatprep.mubr.bf16.mxu0 0
        %3653 = vmatmul.mubr.bf16.gmra.mrb[0].mxu0 %v1216
        %v3654 = vpop.f32.mrb[0].mxu0
        %v3655 = vadd.f32 %v620, %v3654
        %v3656 = vpop.f32.mrb[0].mxu0
        %v3657 = vadd.f32 %v624, %v3656
        %v3658 = vpop.f32.mrb[0].mxu0
        %v3659 = vadd.f32 %v620, %v3658
        %v3660 = vpop.f32.mrb[0].mxu0
        %v3661 = vadd.f32 %v624, %v3660
        %3662 = vmatprep.mubr.bf16.mxu0 0
        %3663 = vmatmul.mubr.bf16.gmra.mrb[0].mxu0 %v1217
        %v3664 = vpop.f32.mrb[0].mxu0
        %v3665 = vadd.f32 %v620, %v3664
        %v3666 = vpop.f32.mrb[0].mxu0
        %v3667 = vadd.f32 %v624, %v3666
        %v3668 = vpop.f32.mrb[0].mxu0
        %v3669 = vadd.f32 %v620, %v3668
        %v3670 = vpop.f32.mrb[0].mxu0
        %v3671 = vadd.f32 %v624, %v3670
        %3672 = vmatprep.mubr.bf16.mxu0 0
        %3673 = vmatmul.mubr.bf16.gmra.mrb[0].mxu0 %v1218
        %v3674 = vpop.f32.mrb[0].mxu0
        %v3675 = vadd.f32 %v620, %v3674
        %v3676 = vpop.f32.mrb[0].mxu0
        %v3677 = vadd.f32 %v624, %v3676
        %v3678 = vpop.f32.mrb[0].mxu0
        %v3679 = vadd.f32 %v620, %v3678
        %v3680 = vpop.f32.mrb[0].mxu0
        %v3681 = vadd.f32 %v624, %v3680
        %3682 = vmatprep.mubr.bf16.mxu0 0
        %3683 = vmatmul.mubr.bf16.gmra.mrb[0].mxu0 %v1219
        %v3684 = vpop.f32.mrb[0].mxu0
        %v3685 = vadd.f32 %v620, %v3684
        %v3686 = vpop.f32.mrb[0].mxu0
        %v3687 = vadd.f32 %v624, %v3686
        %v3688 = vpop.f32.mrb[0].mxu0
        %v3689 = vadd.f32 %v620, %v3688
        %v3690 = vpop.f32.mrb[0].mxu0
        %v3691 = vadd.f32 %v624, %v3690
        %3692 = vmatprep.mubr.bf16.mxu0 0
        %3693 = vmatmul.mubr.bf16.gmra.mrb[0].mxu0 %v1220
        %v3694 = vpop.f32.mrb[0].mxu0
        %v3695 = vadd.f32 %v620, %v3694
        %v3696 = vpop.f32.mrb[0].mxu0
        %v3697 = vadd.f32 %v624, %v3696
        %v3698 = vpop.f32.mrb[0].mxu0
        %v3699 = vadd.f32 %v620, %v3698
        %v3700 = vpop.f32.mrb[0].mxu0
        %v3701 = vadd.f32 %v624, %v3700
        %3702 = vmatprep.mubr.bf16.mxu0 0
        %3703 = vmatmul.mubr.bf16.gmra.mrb[0].mxu0 %v1221
        %v3704 = vpop.f32.mrb[0].mxu0
        %v3705 = vadd.f32 %v620, %v3704
        %v3706 = vpop.f32.mrb[0].mxu0
        %v3707 = vadd.f32 %v624, %v3706
        %v3708 = vpop.f32.mrb[0].mxu0
        %v3709 = vadd.f32 %v620, %v3708
        %v3710 = vpop.f32.mrb[0].mxu0
        %v3711 = vadd.f32 %v624, %v3710
        %3712 = vmatprep.mubr.bf16.mxu0 0
        %3713 = vmatmul.mubr.bf16.gmra.mrb[0].mxu0 %v1222
        %v3714 = vpop.f32.mrb[0].mxu0
        %v3715 = vadd.f32 %v620, %v3714
        %v3716 = vpop.f32.mrb[0].mxu0
        %v3717 = vadd.f32 %v624, %v3716
        %v3718 = vpop.f32.mrb[0].mxu0
        %v3719 = vadd.f32 %v620, %v3718
        %v3720 = vpop.f32.mrb[0].mxu0
        %v3721 = vadd.f32 %v624, %v3720
        %3722 = vmatprep.mubr.bf16.mxu0 0
        %3723 = vmatmul.mubr.bf16.gmra.mrb[0].mxu0 %v1223
        %v3724 = vpop.f32.mrb[0].mxu0
        %v3725 = vadd.f32 %v620, %v3724
        %v3726 = vpop.f32.mrb[0].mxu0
        %v3727 = vadd.f32 %v624, %v3726
        %v3728 = vpop.f32.mrb[0].mxu0
        %v3729 = vadd.f32 %v620, %v3728
        %v3730 = vpop.f32.mrb[0].mxu0
        %v3731 = vadd.f32 %v624, %v3730
        %3732 = vmatprep.mubr.bf16.mxu0 0
        %3733 = vmatmul.mubr.bf16.gmra.mrb[0].mxu0 %v1224
        %v3734 = vpop.f32.mrb[0].mxu0
        %v3735 = vadd.f32 %v620, %v3734
        %v3736 = vpop.f32.mrb[0].mxu0
        %v3737 = vadd.f32 %v624, %v3736
        %v3738 = vpop.f32.mrb[0].mxu0
        %v3739 = vadd.f32 %v620, %v3738
        %v3740 = vpop.f32.mrb[0].mxu0
        %v3741 = vadd.f32 %v624, %v3740
        %3742 = vmatprep.mubr.bf16.mxu0 0
        %3743 = vmatmul.mubr.bf16.gmra.mrb[0].mxu0 %v1225
        %v3744 = vpop.f32.mrb[0].mxu0
        %v3745 = vadd.f32 %v620, %v3744
        %v3746 = vpop.f32.mrb[0].mxu0
        %v3747 = vadd.f32 %v624, %v3746
        %v3748 = vpop.f32.mrb[0].mxu0
        %v3749 = vadd.f32 %v620, %v3748
        %v3750 = vpop.f32.mrb[0].mxu0
        %v3751 = vadd.f32 %v624, %v3750
        %3752 = vmatprep.mubr.bf16.mxu0 0
        %3753 = vmatmul.mubr.bf16.gmra.mrb[0].mxu0 %v1226
        %v3754 = vpop.f32.mrb[0].mxu0
        %v3755 = vadd.f32 %v620, %v3754
        %v3756 = vpop.f32.mrb[0].mxu0
        %v3757 = vadd.f32 %v624, %v3756
        %v3758 = vpop.f32.mrb[0].mxu0
        %v3759 = vadd.f32 %v620, %v3758
        %v3760 = vpop.f32.mrb[0].mxu0
        %v3761 = vadd.f32 %v624, %v3760
        %3762 = vmatprep.mubr.bf16.mxu0 0
        %3763 = vmatmul.mubr.bf16.gmra.mrb[0].mxu0 %v1227
        %v3764 = vpop.f32.mrb[0].mxu0
        %v3765 = vadd.f32 %v620, %v3764
        %v3766 = vpop.f32.mrb[0].mxu0
        %v3767 = vadd.f32 %v624, %v3766
        %v3768 = vpop.f32.mrb[0].mxu0
        %v3769 = vadd.f32 %v620, %v3768
        %v3770 = vpop.f32.mrb[0].mxu0
        %v3771 = vadd.f32 %v624, %v3770
        %3772 = vmatprep.mubr.bf16.mxu0 0
        %3773 = vmatmul.mubr.bf16.gmra.mrb[0].mxu0 %v1228
        %v3774 = vpop.f32.mrb[0].mxu0
        %v3775 = vadd.f32 %v620, %v3774
        %v3776 = vpop.f32.mrb[0].mxu0
        %v3777 = vadd.f32 %v624, %v3776
        %v3778 = vpop.f32.mrb[0].mxu0
        %v3779 = vadd.f32 %v620, %v3778
        %v3780 = vpop.f32.mrb[0].mxu0
        %v3781 = vadd.f32 %v624, %v3780
        %3782 = vmatprep.mubr.bf16.mxu0 0
        %3783 = vmatmul.mubr.bf16.gmra.mrb[0].mxu0 %v1229
        %v3784 = vpop.f32.mrb[0].mxu0
        %v3785 = vadd.f32 %v620, %v3784
        %v3786 = vpop.f32.mrb[0].mxu0
        %v3787 = vadd.f32 %v624, %v3786
        %v3788 = vpop.f32.mrb[0].mxu0
        %v3789 = vadd.f32 %v620, %v3788
        %v3790 = vpop.f32.mrb[0].mxu0
        %v3791 = vadd.f32 %v624, %v3790
        %3792 = vmatprep.mubr.bf16.mxu0 0
        %3793 = vmatmul.mubr.bf16.gmra.mrb[0].mxu0 %v1230
        %v3794 = vpop.f32.mrb[0].mxu0
        %v3795 = vadd.f32 %v620, %v3794
        %v3796 = vpop.f32.mrb[0].mxu0
        %v3797 = vadd.f32 %v624, %v3796
        %v3798 = vpop.f32.mrb[0].mxu0
        %v3799 = vadd.f32 %v620, %v3798
        %v3800 = vpop.f32.mrb[0].mxu0
        %v3801 = vadd.f32 %v624, %v3800
        %3802 = vmatprep.mubr.bf16.mxu0 0
        %3803 = vmatmul.mubr.bf16.gmra.mrb[0].mxu0 %v1231
        %v3804 = vpop.f32.mrb[0].mxu0
        %v3805 = vadd.f32 %v620, %v3804
        %v3806 = vpop.f32.mrb[0].mxu0
        %v3807 = vadd.f32 %v624, %v3806
        %v3808 = vpop.f32.mrb[0].mxu0
        %v3809 = vadd.f32 %v620, %v3808
        %v3810 = vpop.f32.mrb[0].mxu0
        %v3811 = vadd.f32 %v624, %v3810
        %3812 = vmatprep.mubr.bf16.mxu0 0
        %3813 = vmatmul.mubr.bf16.gmra.mrb[0].mxu0 %v1232
        %v3814 = vpop.f32.mrb[0].mxu0
        %v3815 = vadd.f32 %v620, %v3814
        %v3816 = vpop.f32.mrb[0].mxu0
        %v3817 = vadd.f32 %v624, %v3816
        %v3818 = vpop.f32.mrb[0].mxu0
        %v3819 = vadd.f32 %v620, %v3818
        %v3820 = vpop.f32.mrb[0].mxu0
        %v3821 = vadd.f32 %v624, %v3820
        %3822 = vmatprep.mubr.bf16.mxu0 0
        %3823 = vmatmul.mubr.bf16.gmra.mrb[0].mxu0 %v1233
        %v3824 = vpop.f32.mrb[0].mxu0
        %v3825 = vadd.f32 %v620, %v3824
        %v3826 = vpop.f32.mrb[0].mxu0
        %v3827 = vadd.f32 %v624, %v3826
        %v3828 = vpop.f32.mrb[0].mxu0
        %v3829 = vadd.f32 %v620, %v3828
        %v3830 = vpop.f32.mrb[0].mxu0
        %v3831 = vadd.f32 %v624, %v3830
        %3832 = vmatprep.mubr.bf16.mxu0 0
        %3833 = vmatmul.mubr.bf16.gmra.mrb[0].mxu0 %v1234
        %v3834 = vpop.f32.mrb[0].mxu0
        %v3835 = vadd.f32 %v620, %v3834
        %v3836 = vpop.f32.mrb[0].mxu0
        %v3837 = vadd.f32 %v624, %v3836
        %v3838 = vpop.f32.mrb[0].mxu0
        %v3839 = vadd.f32 %v620, %v3838
        %v3840 = vpop.f32.mrb[0].mxu0
        %v3841 = vadd.f32 %v624, %v3840
        %3842 = vmatprep.mubr.bf16.mxu0 0
        %3843 = vmatmul.mubr.bf16.gmra.mrb[0].mxu0 %v1235
        %v3844 = vpop.f32.mrb[0].mxu0
        %v3845 = vadd.f32 %v620, %v3844
        %v3846 = vpop.f32.mrb[0].mxu0
        %v3847 = vadd.f32 %v624, %v3846
        %v3848 = vpop.f32.mrb[0].mxu0
        %v3849 = vadd.f32 %v620, %v3848
        %v3850 = vpop.f32.mrb[0].mxu0
        %v3851 = vadd.f32 %v624, %v3850
        %3852 = vmatprep.mubr.bf16.mxu0 0
        %3853 = vmatmul.mubr.bf16.gmra.mrb[0].mxu0 %v1236
        %v3854 = vpop.f32.mrb[0].mxu0
        %v3855 = vadd.f32 %v620, %v3854
        %v3856 = vpop.f32.mrb[0].mxu0
        %v3857 = vadd.f32 %v624, %v3856
        %v3858 = vpop.f32.mrb[0].mxu0
        %v3859 = vadd.f32 %v620, %v3858
        %v3860 = vpop.f32.mrb[0].mxu0
        %v3861 = vadd.f32 %v624, %v3860
        %3862 = vmatprep.mubr.bf16.mxu0 0
        %3863 = vmatmul.mubr.bf16.gmra.mrb[0].mxu0 %v1237
        %v3864 = vpop.f32.mrb[0].mxu0
        %v3865 = vadd.f32 %v620, %v3864
        %v3866 = vpop.f32.mrb[0].mxu0
        %v3867 = vadd.f32 %v624, %v3866
        %v3868 = vpop.f32.mrb[0].mxu0
        %v3869 = vadd.f32 %v620, %v3868
        %v3870 = vpop.f32.mrb[0].mxu0
        %v3871 = vadd.f32 %v624, %v3870
        %3872 = vmatprep.mubr.bf16.mxu0 0
        %3873 = vmatmul.mubr.bf16.gmra.mrb[0].mxu0 %v1238
        %v3874 = vpop.f32.mrb[0].mxu0
        %v3875 = vadd.f32 %v620, %v3874
        %v3876 = vpop.f32.mrb[0].mxu0
        %v3877 = vadd.f32 %v624, %v3876
        %v3878 = vpop.f32.mrb[0].mxu0
        %v3879 = vadd.f32 %v620, %v3878
        %v3880 = vpop.f32.mrb[0].mxu0
        %v3881 = vadd.f32 %v624, %v3880
        %3882 = vmatprep.mubr.bf16.mxu0 0
        %3883 = vmatmul.mubr.bf16.gmra.mrb[0].mxu0 %v1239
        %v3884 = vpop.f32.mrb[0].mxu0
        %v3885 = vadd.f32 %v620, %v3884
        %v3886 = vpop.f32.mrb[0].mxu0
        %v3887 = vadd.f32 %v624, %v3886
        %v3888 = vpop.f32.mrb[0].mxu0
        %v3889 = vadd.f32 %v620, %v3888
        %v3890 = vpop.f32.mrb[0].mxu0
        %v3891 = vadd.f32 %v624, %v3890
        %3892 = vmatprep.mubr.bf16.mxu0 0
        %3893 = vmatmul.mubr.bf16.gmra.mrb[0].mxu0 %v1240
        %v3894 = vpop.f32.mrb[0].mxu0
        %v3895 = vadd.f32 %v620, %v3894
        %v3896 = vpop.f32.mrb[0].mxu0
        %v3897 = vadd.f32 %v624, %v3896
        %v3898 = vpop.f32.mrb[0].mxu0
        %v3899 = vadd.f32 %v620, %v3898
        %v3900 = vpop.f32.mrb[0].mxu0
        %v3901 = vadd.f32 %v624, %v3900
        %3902 = vmatprep.mubr.bf16.mxu0 0
        %3903 = vmatmul.mubr.bf16.gmra.mrb[0].mxu0 %v1241
        %v3904 = vpop.f32.mrb[0].mxu0
        %v3905 = vadd.f32 %v620, %v3904
        %v3906 = vpop.f32.mrb[0].mxu0
        %v3907 = vadd.f32 %v624, %v3906
        %v3908 = vpop.f32.mrb[0].mxu0
        %v3909 = vadd.f32 %v620, %v3908
        %v3910 = vpop.f32.mrb[0].mxu0
        %v3911 = vadd.f32 %v624, %v3910
        %3912 = vmatprep.mubr.bf16.mxu0 0
        %3913 = vmatmul.mubr.bf16.gmra.mrb[0].mxu0 %v1242
        %v3914 = vpop.f32.mrb[0].mxu0
        %v3915 = vadd.f32 %v620, %v3914
        %v3916 = vpop.f32.mrb[0].mxu0
        %v3917 = vadd.f32 %v624, %v3916
        %v3918 = vpop.f32.mrb[0].mxu0
        %v3919 = vadd.f32 %v620, %v3918
        %v3920 = vpop.f32.mrb[0].mxu0
        %v3921 = vadd.f32 %v624, %v3920
        %3922 = vmatprep.mubr.bf16.mxu0 0
        %3923 = vmatmul.mubr.bf16.gmra.mrb[0].mxu0 %v1243
        %v3924 = vpop.f32.mrb[0].mxu0
        %v3925 = vadd.f32 %v620, %v3924
        %v3926 = vpop.f32.mrb[0].mxu0
        %v3927 = vadd.f32 %v624, %v3926
        %v3928 = vpop.f32.mrb[0].mxu0
        %v3929 = vadd.f32 %v620, %v3928
        %v3930 = vpop.f32.mrb[0].mxu0
        %v3931 = vadd.f32 %v624, %v3930
        %3932 = vmatprep.mubr.bf16.mxu0 0
        %3933 = vmatmul.mubr.bf16.gmra.mrb[0].mxu0 %v1244
        %v3934 = vpop.f32.mrb[0].mxu0
        %v3935 = vadd.f32 %v620, %v3934
        %v3936 = vpop.f32.mrb[0].mxu0
        %v3937 = vadd.f32 %v624, %v3936
        %v3938 = vpop.f32.mrb[0].mxu0
        %v3939 = vadd.f32 %v620, %v3938
        %v3940 = vpop.f32.mrb[0].mxu0
        %v3941 = vadd.f32 %v624, %v3940
        %3942 = vmatprep.mubr.bf16.mxu0 0
        %3943 = vmatmul.mubr.bf16.gmra.mrb[0].mxu0 %v1245
        %v3944 = vpop.f32.mrb[0].mxu0
        %v3945 = vadd.f32 %v620, %v3944
        %v3946 = vpop.f32.mrb[0].mxu0
        %v3947 = vadd.f32 %v624, %v3946
        %v3948 = vpop.f32.mrb[0].mxu0
        %v3949 = vadd.f32 %v620, %v3948
        %v3950 = vpop.f32.mrb[0].mxu0
        %v3951 = vadd.f32 %v624, %v3950
        %3952 = vmatprep.mubr.bf16.mxu0 0
        %3953 = vmatmul.mubr.bf16.gmra.mrb[0].mxu0 %v1246
        %v3954 = vpop.f32.mrb[0].mxu0
        %v3955 = vadd.f32 %v620, %v3954
        %v3956 = vpop.f32.mrb[0].mxu0
        %v3957 = vadd.f32 %v624, %v3956
        %v3958 = vpop.f32.mrb[0].mxu0
        %v3959 = vadd.f32 %v620, %v3958
        %v3960 = vpop.f32.mrb[0].mxu0
        %v3961 = vadd.f32 %v624, %v3960
        %3962 = vmatprep.mubr.bf16.mxu0 0
        %3963 = vmatmul.mubr.bf16.gmra.mrb[0].mxu0 %v1247
        %v3964 = vpop.f32.mrb[0].mxu0
        %v3965 = vadd.f32 %v620, %v3964
        %v3966 = vpop.f32.mrb[0].mxu0
        %v3967 = vadd.f32 %v624, %v3966
        %v3968 = vpop.f32.mrb[0].mxu0
        %v3969 = vadd.f32 %v620, %v3968
        %v3970 = vpop.f32.mrb[0].mxu0
        %v3971 = vadd.f32 %v624, %v3970
        %3972 = vmatprep.mubr.bf16.mxu0 0
        %3973 = vmatmul.mubr.bf16.gmra.mrb[0].mxu0 %v1248
        %v3974 = vpop.f32.mrb[0].mxu0
        %v3975 = vadd.f32 %v620, %v3974
        %v3976 = vpop.f32.mrb[0].mxu0
        %v3977 = vadd.f32 %v624, %v3976
        %v3978 = vpop.f32.mrb[0].mxu0
        %v3979 = vadd.f32 %v620, %v3978
        %v3980 = vpop.f32.mrb[0].mxu0
        %v3981 = vadd.f32 %v624, %v3980
        %3982 = vmatprep.mubr.bf16.mxu0 0
        %3983 = vmatmul.mubr.bf16.gmra.mrb[0].mxu0 %v1249
        %v3984 = vpop.f32.mrb[0].mxu0
        %v3985 = vadd.f32 %v620, %v3984
        %v3986 = vpop.f32.mrb[0].mxu0
        %v3987 = vadd.f32 %v624, %v3986
        %v3988 = vpop.f32.mrb[0].mxu0
        %v3989 = vadd.f32 %v620, %v3988
        %v3990 = vpop.f32.mrb[0].mxu0
        %v3991 = vadd.f32 %v624, %v3990
        %3992 = vmatprep.mubr.bf16.mxu0 0
        %3993 = vmatmul.mubr.bf16.gmra.mrb[0].mxu0 %v1250
        %v3994 = vpop.f32.mrb[0].mxu0
        %v3995 = vadd.f32 %v620, %v3994
        %v3996 = vpop.f32.mrb[0].mxu0
        %v3997 = vadd.f32 %v624, %v3996
        %v3998 = vpop.f32.mrb[0].mxu0
        %v3999 = vadd.f32 %v620, %v3998
        %v4000 = vpop.f32.mrb[0].mxu0
        %v4001 = vadd.f32 %v624, %v4000
        %4002 = vmatprep.mubr.bf16.mxu0 0
        %4003 = vmatmul.mubr.bf16.gmra.mrb[0].mxu0 %v1251
        %v4004 = vpop.f32.mrb[0].mxu0
        %v4005 = vadd.f32 %v620, %v4004
        %v4006 = vpop.f32.mrb[0].mxu0
        %v4007 = vadd.f32 %v624, %v4006
        %v4008 = vpop.f32.mrb[0].mxu0
        %v4009 = vadd.f32 %v620, %v4008
        %v4010 = vpop.f32.mrb[0].mxu0
        %v4011 = vadd.f32 %v624, %v4010
        %4012 = vmatprep.mubr.bf16.mxu0 0
        %4013 = vmatmul.mubr.bf16.gmra.mrb[0].mxu0 %v1252
        %v4014 = vpop.f32.mrb[0].mxu0
        %v4015 = vadd.f32 %v620, %v4014
        %v4016 = vpop.f32.mrb[0].mxu0
        %v4017 = vadd.f32 %v624, %v4016
        %v4018 = vpop.f32.mrb[0].mxu0
        %v4019 = vadd.f32 %v620, %v4018
        %v4020 = vpop.f32.mrb[0].mxu0
        %v4021 = vadd.f32 %v624, %v4020
        %4022 = vmatprep.mubr.bf16.mxu0 0
        %4023 = vmatmul.mubr.bf16.gmra.mrb[0].mxu0 %v1253
        %v4024 = vpop.f32.mrb[0].mxu0
        %v4025 = vadd.f32 %v620, %v4024
        %v4026 = vpop.f32.mrb[0].mxu0
        %v4027 = vadd.f32 %v624, %v4026
        %v4028 = vpop.f32.mrb[0].mxu0
        %v4029 = vadd.f32 %v620, %v4028
        %v4030 = vpop.f32.mrb[0].mxu0
        %v4031 = vadd.f32 %v624, %v4030
        %4032 = vmatprep.mubr.bf16.mxu0 0
        %4033 = vmatmul.mubr.bf16.gmra.mrb[0].mxu0 %v1254
        %v4034 = vpop.f32.mrb[0].mxu0
        %v4035 = vadd.f32 %v620, %v4034
        %v4036 = vpop.f32.mrb[0].mxu0
        %v4037 = vadd.f32 %v624, %v4036
        %v4038 = vpop.f32.mrb[0].mxu0
        %v4039 = vadd.f32 %v620, %v4038
        %v4040 = vpop.f32.mrb[0].mxu0
        %v4041 = vadd.f32 %v624, %v4040
        %4042 = vmatprep.mubr.bf16.mxu0 0
        %4043 = vmatmul.mubr.bf16.gmra.mrb[0].mxu0 %v1255
        %v4044 = vpop.f32.mrb[0].mxu0
        %v4045 = vadd.f32 %v620, %v4044
        %v4046 = vpop.f32.mrb[0].mxu0
        %v4047 = vadd.f32 %v624, %v4046
        %v4048 = vpop.f32.mrb[0].mxu0
        %v4049 = vadd.f32 %v620, %v4048
        %v4050 = vpop.f32.mrb[0].mxu0
        %v4051 = vadd.f32 %v624, %v4050
        %4052 = vmatprep.mubr.bf16.mxu0 0
        %4053 = vmatmul.mubr.bf16.gmra.mrb[0].mxu0 %v1256
        %v4054 = vpop.f32.mrb[0].mxu0
        %v4055 = vadd.f32 %v620, %v4054
        %v4056 = vpop.f32.mrb[0].mxu0
        %v4057 = vadd.f32 %v624, %v4056
        %v4058 = vpop.f32.mrb[0].mxu0
        %v4059 = vadd.f32 %v620, %v4058
        %v4060 = vpop.f32.mrb[0].mxu0
        %v4061 = vadd.f32 %v624, %v4060
        %4062 = vmatprep.mubr.bf16.mxu0 0
        %4063 = vmatmul.mubr.bf16.gmra.mrb[0].mxu0 %v1257
        %v4064 = vpop.f32.mrb[0].mxu0
        %v4065 = vadd.f32 %v620, %v4064
        %v4066 = vpop.f32.mrb[0].mxu0
        %v4067 = vadd.f32 %v624, %v4066
        %v4068 = vpop.f32.mrb[0].mxu0
        %v4069 = vadd.f32 %v620, %v4068
        %v4070 = vpop.f32.mrb[0].mxu0
        %v4071 = vadd.f32 %v624, %v4070
        %4072 = vmatprep.mubr.bf16.mxu0 0
        %4073 = vmatmul.mubr.bf16.gmra.mrb[0].mxu0 %v1258
        %v4074 = vpop.f32.mrb[0].mxu0
        %v4075 = vadd.f32 %v620, %v4074
        %v4076 = vpop.f32.mrb[0].mxu0
        %v4077 = vadd.f32 %v624, %v4076
        %v4078 = vpop.f32.mrb[0].mxu0
        %v4079 = vadd.f32 %v620, %v4078
        %v4080 = vpop.f32.mrb[0].mxu0
        %v4081 = vadd.f32 %v624, %v4080
        %4082 = vmatprep.mubr.bf16.mxu0 0
        %4083 = vmatmul.mubr.bf16.gmra.mrb[0].mxu0 %v1259
        %v4084 = vpop.f32.mrb[0].mxu0
        %v4085 = vadd.f32 %v620, %v4084
        %v4086 = vpop.f32.mrb[0].mxu0
        %v4087 = vadd.f32 %v624, %v4086
        %v4088 = vpop.f32.mrb[0].mxu0
        %v4089 = vadd.f32 %v620, %v4088
        %v4090 = vpop.f32.mrb[0].mxu0
        %v4091 = vadd.f32 %v624, %v4090
        %4092 = vmatprep.mubr.bf16.mxu0 0
        %4093 = vmatmul.mubr.bf16.gmra.mrb[0].mxu0 %v1260
        %v4094 = vpop.f32.mrb[0].mxu0
        %v4095 = vadd.f32 %v620, %v4094
        %v4096 = vpop.f32.mrb[0].mxu0
        %v4097 = vadd.f32 %v624, %v4096
        %v4098 = vpop.f32.mrb[0].mxu0
        %v4099 = vadd.f32 %v620, %v4098
        %v4100 = vpop.f32.mrb[0].mxu0
        %v4101 = vadd.f32 %v624, %v4100
        %4102 = vmatprep.mubr.bf16.mxu0 0
        %4103 = vmatmul.mubr.bf16.gmra.mrb[0].mxu0 %v1261
        %v4104 = vpop.f32.mrb[0].mxu0
        %v4105 = vadd.f32 %v620, %v4104
        %v4106 = vpop.f32.mrb[0].mxu0
        %v4107 = vadd.f32 %v624, %v4106
        %v4108 = vpop.f32.mrb[0].mxu0
        %v4109 = vadd.f32 %v620, %v4108
        %v4110 = vpop.f32.mrb[0].mxu0
        %v4111 = vadd.f32 %v624, %v4110
        %4112 = vmatprep.mubr.bf16.mxu0 0
        %4113 = vmatmul.mubr.bf16.gmra.mrb[0].mxu0 %v1262
        %v4114 = vpop.f32.mrb[0].mxu0
        %v4115 = vadd.f32 %v620, %v4114
        %v4116 = vpop.f32.mrb[0].mxu0
        %v4117 = vadd.f32 %v624, %v4116
        %v4118 = vpop.f32.mrb[0].mxu0
        %v4119 = vadd.f32 %v620, %v4118
        %v4120 = vpop.f32.mrb[0].mxu0
        %v4121 = vadd.f32 %v624, %v4120
        %4122 = vmatprep.mubr.bf16.mxu0 0
        %4123 = vmatmul.mubr.bf16.gmra.mrb[0].mxu0 %v1263
        %v4124 = vpop.f32.mrb[0].mxu0
        %v4125 = vadd.f32 %v620, %v4124
        %v4126 = vpop.f32.mrb[0].mxu0
        %v4127 = vadd.f32 %v624, %v4126
        %v4128 = vpop.f32.mrb[0].mxu0
        %v4129 = vadd.f32 %v620, %v4128
        %v4130 = vpop.f32.mrb[0].mxu0
        %v4131 = vadd.f32 %v624, %v4130
        %4132 = vmatprep.mubr.bf16.mxu0 0
        %4133 = vmatmul.mubr.bf16.gmra.mrb[0].mxu0 %v1264
        %v4134 = vpop.f32.mrb[0].mxu0
        %v4135 = vadd.f32 %v620, %v4134
        %v4136 = vpop.f32.mrb[0].mxu0
        %v4137 = vadd.f32 %v624, %v4136
        %v4138 = vpop.f32.mrb[0].mxu0
        %v4139 = vadd.f32 %v620, %v4138
        %v4140 = vpop.f32.mrb[0].mxu0
        %v4141 = vadd.f32 %v624, %v4140
        %4142 = vmatprep.mubr.bf16.mxu0 0
        %4143 = vmatmul.mubr.bf16.gmra.mrb[0].mxu0 %v1265
        %v4144 = vpop.f32.mrb[0].mxu0
        %v4145 = vadd.f32 %v620, %v4144
        %v4146 = vpop.f32.mrb[0].mxu0
        %v4147 = vadd.f32 %v624, %v4146
        %v4148 = vpop.f32.mrb[0].mxu0
        %v4149 = vadd.f32 %v620, %v4148
        %v4150 = vpop.f32.mrb[0].mxu0
        %v4151 = vadd.f32 %v624, %v4150
        %4152 = vmatprep.mubr.bf16.mxu0 0
        %4153 = vmatmul.mubr.bf16.gmra.mrb[0].mxu0 %v1266
        %v4154 = vpop.f32.mrb[0].mxu0
        %v4155 = vadd.f32 %v620, %v4154
        %v4156 = vpop.f32.mrb[0].mxu0
        %v4157 = vadd.f32 %v624, %v4156
        %v4158 = vpop.f32.mrb[0].mxu0
        %v4159 = vadd.f32 %v620, %v4158
        %v4160 = vpop.f32.mrb[0].mxu0
        %v4161 = vadd.f32 %v624, %v4160
        %4162 = vmatprep.mubr.bf16.mxu0 0
        %4163 = vmatmul.mubr.bf16.gmra.mrb[0].mxu0 %v1267
        %v4164 = vpop.f32.mrb[0].mxu0
        %v4165 = vadd.f32 %v620, %v4164
        %v4166 = vpop.f32.mrb[0].mxu0
        %v4167 = vadd.f32 %v624, %v4166
        %v4168 = vpop.f32.mrb[0].mxu0
        %v4169 = vadd.f32 %v620, %v4168
        %v4170 = vpop.f32.mrb[0].mxu0
        %v4171 = vadd.f32 %v624, %v4170
        %4172 = vmatprep.mubr.bf16.mxu0 0
        %4173 = vmatmul.mubr.bf16.gmra.mrb[0].mxu0 %v1268
        %v4174 = vpop.f32.mrb[0].mxu0
        %v4175 = vadd.f32 %v620, %v4174
        %v4176 = vpop.f32.mrb[0].mxu0
        %v4177 = vadd.f32 %v624, %v4176
        %v4178 = vpop.f32.mrb[0].mxu0
        %v4179 = vadd.f32 %v620, %v4178
        %v4180 = vpop.f32.mrb[0].mxu0
        %v4181 = vadd.f32 %v624, %v4180
        %4182 = vdwg.mxu0
        %v4183 = vmax.f32 %v1592, 0.0
        %v4184 = vmax.f32 %v1594, 0.0
        %v4185 = vmax.f32 %v2905, 0.0
        %v4186 = vmax.f32 %v2907, 0.0
        %v4187 = vmax.f32 %v1596, 0.0
        %v4188 = vmax.f32 %v1598, 0.0
        %v4189 = vmax.f32 %v2909, 0.0
        %v4190 = vmax.f32 %v2911, 0.0
        %v4191 = vmax.f32 %v1602, 0.0
        %v4192 = vmax.f32 %v1604, 0.0
        %v4193 = vmax.f32 %v2915, 0.0
        %v4194 = vmax.f32 %v2917, 0.0
        %v4195 = vmax.f32 %v1606, 0.0
        %v4196 = vmax.f32 %v1608, 0.0
        %v4197 = vmax.f32 %v2919, 0.0
        %v4198 = vmax.f32 %v2921, 0.0
        %v4199 = vmax.f32 %v1612, 0.0
        %v4200 = vmax.f32 %v1614, 0.0
        %v4201 = vmax.f32 %v2925, 0.0
        %v4202 = vmax.f32 %v2927, 0.0
        %v4203 = vmax.f32 %v1616, 0.0
        %v4204 = vmax.f32 %v1618, 0.0
        %v4205 = vmax.f32 %v2929, 0.0
        %v4206 = vmax.f32 %v2931, 0.0
        %v4207 = vmax.f32 %v1622, 0.0
        %v4208 = vmax.f32 %v1624, 0.0
        %v4209 = vmax.f32 %v2935, 0.0
        %v4210 = vmax.f32 %v2937, 0.0
        %v4211 = vmax.f32 %v1626, 0.0
        %v4212 = vmax.f32 %v1628, 0.0
        %v4213 = vmax.f32 %v2939, 0.0
        %v4214 = vmax.f32 %v2941, 0.0
        %v4215 = vmax.f32 %v1632, 0.0
        %v4216 = vmax.f32 %v1634, 0.0
        %v4217 = vmax.f32 %v2945, 0.0
        %v4218 = vmax.f32 %v2947, 0.0
        %v4219 = vmax.f32 %v1636, 0.0
        %v4220 = vmax.f32 %v1638, 0.0
        %v4221 = vmax.f32 %v2949, 0.0
        %v4222 = vmax.f32 %v2951, 0.0
        %v4223 = vmax.f32 %v1642, 0.0
        %v4224 = vmax.f32 %v1644, 0.0
        %v4225 = vmax.f32 %v2955, 0.0
        %v4226 = vmax.f32 %v2957, 0.0
        %v4227 = vmax.f32 %v1646, 0.0
        %v4228 = vmax.f32 %v1648, 0.0
        %v4229 = vmax.f32 %v2959, 0.0
        %v4230 = vmax.f32 %v2961, 0.0
        %v4231 = vmax.f32 %v1652, 0.0
        %v4232 = vmax.f32 %v1654, 0.0
        %v4233 = vmax.f32 %v2965, 0.0
        %v4234 = vmax.f32 %v2967, 0.0
        %v4235 = vmax.f32 %v1656, 0.0
        %v4236 = vmax.f32 %v1658, 0.0
        %v4237 = vmax.f32 %v2969, 0.0
        %v4238 = vmax.f32 %v2971, 0.0
        %v4239 = vmax.f32 %v1662, 0.0
        %v4240 = vmax.f32 %v1664, 0.0
        %v4241 = vmax.f32 %v2975, 0.0
        %v4242 = vmax.f32 %v2977, 0.0
        %v4243 = vmax.f32 %v1666, 0.0
        %v4244 = vmax.f32 %v1668, 0.0
        %v4245 = vmax.f32 %v2979, 0.0
        %v4246 = vmax.f32 %v2981, 0.0
        %v4247 = vmax.f32 %v1672, 0.0
        %v4248 = vmax.f32 %v1674, 0.0
        %v4249 = vmax.f32 %v2985, 0.0
        %v4250 = vmax.f32 %v2987, 0.0
        %v4251 = vmax.f32 %v1676, 0.0
        %v4252 = vmax.f32 %v1678, 0.0
        %v4253 = vmax.f32 %v2989, 0.0
        %v4254 = vmax.f32 %v2991, 0.0
        %v4255 = vmax.f32 %v1682, 0.0
        %v4256 = vmax.f32 %v1684, 0.0
        %v4257 = vmax.f32 %v2995, 0.0
        %v4258 = vmax.f32 %v2997, 0.0
        %v4259 = vmax.f32 %v1686, 0.0
        %v4260 = vmax.f32 %v1688, 0.0
        %v4261 = vmax.f32 %v2999, 0.0
        %v4262 = vmax.f32 %v3001, 0.0
        %v4263 = vmax.f32 %v1692, 0.0
        %v4264 = vmax.f32 %v1694, 0.0
        %v4265 = vmax.f32 %v3005, 0.0
        %v4266 = vmax.f32 %v3007, 0.0
        %v4267 = vmax.f32 %v1696, 0.0
        %v4268 = vmax.f32 %v1698, 0.0
        %v4269 = vmax.f32 %v3009, 0.0
        %v4270 = vmax.f32 %v3011, 0.0
        %v4271 = vmax.f32 %v1702, 0.0
        %v4272 = vmax.f32 %v1704, 0.0
        %v4273 = vmax.f32 %v3015, 0.0
        %v4274 = vmax.f32 %v3017, 0.0
        %v4275 = vmax.f32 %v1706, 0.0
        %v4276 = vmax.f32 %v1708, 0.0
        %v4277 = vmax.f32 %v3019, 0.0
        %v4278 = vmax.f32 %v3021, 0.0
        %v4279 = vmax.f32 %v1712, 0.0
        %v4280 = vmax.f32 %v1714, 0.0
        %v4281 = vmax.f32 %v3025, 0.0
        %v4282 = vmax.f32 %v3027, 0.0
        %v4283 = vmax.f32 %v1716, 0.0
        %v4284 = vmax.f32 %v1718, 0.0
        %v4285 = vmax.f32 %v3029, 0.0
        %v4286 = vmax.f32 %v3031, 0.0
        %v4287 = vmax.f32 %v1722, 0.0
        %v4288 = vmax.f32 %v1724, 0.0
        %v4289 = vmax.f32 %v3035, 0.0
        %v4290 = vmax.f32 %v3037, 0.0
        %v4291 = vmax.f32 %v1726, 0.0
        %v4292 = vmax.f32 %v1728, 0.0
        %v4293 = vmax.f32 %v3039, 0.0
        %v4294 = vmax.f32 %v3041, 0.0
        %v4295 = vmax.f32 %v1732, 0.0
        %v4296 = vmax.f32 %v1734, 0.0
        %v4297 = vmax.f32 %v3045, 0.0
        %v4298 = vmax.f32 %v3047, 0.0
        %v4299 = vmax.f32 %v1736, 0.0
        %v4300 = vmax.f32 %v1738, 0.0
        %v4301 = vmax.f32 %v3049, 0.0
        %v4302 = vmax.f32 %v3051, 0.0
        %v4303 = vmax.f32 %v1742, 0.0
        %v4304 = vmax.f32 %v1744, 0.0
        %v4305 = vmax.f32 %v3055, 0.0
        %v4306 = vmax.f32 %v3057, 0.0
        %v4307 = vmax.f32 %v1746, 0.0
        %v4308 = vmax.f32 %v1748, 0.0
        %v4309 = vmax.f32 %v3059, 0.0
        %v4310 = vmax.f32 %v3061, 0.0
        %v4311 = vmax.f32 %v1752, 0.0
        %v4312 = vmax.f32 %v1754, 0.0
        %v4313 = vmax.f32 %v3065, 0.0
        %v4314 = vmax.f32 %v3067, 0.0
        %v4315 = vmax.f32 %v1756, 0.0
        %v4316 = vmax.f32 %v1758, 0.0
        %v4317 = vmax.f32 %v3069, 0.0
        %v4318 = vmax.f32 %v3071, 0.0
        %v4319 = vmax.f32 %v1762, 0.0
        %v4320 = vmax.f32 %v1764, 0.0
        %v4321 = vmax.f32 %v3075, 0.0
        %v4322 = vmax.f32 %v3077, 0.0
        %v4323 = vmax.f32 %v1766, 0.0
        %v4324 = vmax.f32 %v1768, 0.0
        %v4325 = vmax.f32 %v3079, 0.0
        %v4326 = vmax.f32 %v3081, 0.0
        %v4327 = vmax.f32 %v1772, 0.0
        %v4328 = vmax.f32 %v1774, 0.0
        %v4329 = vmax.f32 %v3085, 0.0
        %v4330 = vmax.f32 %v3087, 0.0
        %v4331 = vmax.f32 %v1776, 0.0
        %v4332 = vmax.f32 %v1778, 0.0
        %v4333 = vmax.f32 %v3089, 0.0
        %v4334 = vmax.f32 %v3091, 0.0
        %v4335 = vmax.f32 %v1782, 0.0
        %v4336 = vmax.f32 %v1784, 0.0
        %v4337 = vmax.f32 %v3095, 0.0
        %v4338 = vmax.f32 %v3097, 0.0
        %v4339 = vmax.f32 %v1786, 0.0
        %v4340 = vmax.f32 %v1788, 0.0
        %v4341 = vmax.f32 %v3099, 0.0
        %v4342 = vmax.f32 %v3101, 0.0
        %v4343 = vmax.f32 %v1792, 0.0
        %v4344 = vmax.f32 %v1794, 0.0
        %v4345 = vmax.f32 %v3105, 0.0
        %v4346 = vmax.f32 %v3107, 0.0
        %v4347 = vmax.f32 %v1796, 0.0
        %v4348 = vmax.f32 %v1798, 0.0
        %v4349 = vmax.f32 %v3109, 0.0
        %v4350 = vmax.f32 %v3111, 0.0
        %v4351 = vmax.f32 %v1802, 0.0
        %v4352 = vmax.f32 %v1804, 0.0
        %v4353 = vmax.f32 %v3115, 0.0
        %v4354 = vmax.f32 %v3117, 0.0
        %v4355 = vmax.f32 %v1806, 0.0
        %v4356 = vmax.f32 %v1808, 0.0
        %v4357 = vmax.f32 %v3119, 0.0
        %v4358 = vmax.f32 %v3121, 0.0
        %v4359 = vmax.f32 %v1812, 0.0
        %v4360 = vmax.f32 %v1814, 0.0
        %v4361 = vmax.f32 %v3125, 0.0
        %v4362 = vmax.f32 %v3127, 0.0
        %v4363 = vmax.f32 %v1816, 0.0
        %v4364 = vmax.f32 %v1818, 0.0
        %v4365 = vmax.f32 %v3129, 0.0
        %v4366 = vmax.f32 %v3131, 0.0
        %v4367 = vmax.f32 %v1822, 0.0
        %v4368 = vmax.f32 %v1824, 0.0
        %v4369 = vmax.f32 %v3135, 0.0
        %v4370 = vmax.f32 %v3137, 0.0
        %v4371 = vmax.f32 %v1826, 0.0
        %v4372 = vmax.f32 %v1828, 0.0
        %v4373 = vmax.f32 %v3139, 0.0
        %v4374 = vmax.f32 %v3141, 0.0
        %v4375 = vmax.f32 %v1832, 0.0
        %v4376 = vmax.f32 %v1834, 0.0
        %v4377 = vmax.f32 %v3145, 0.0
        %v4378 = vmax.f32 %v3147, 0.0
        %v4379 = vmax.f32 %v1836, 0.0
        %v4380 = vmax.f32 %v1838, 0.0
        %v4381 = vmax.f32 %v3149, 0.0
        %v4382 = vmax.f32 %v3151, 0.0
        %v4383 = vmax.f32 %v1842, 0.0
        %v4384 = vmax.f32 %v1844, 0.0
        %v4385 = vmax.f32 %v3155, 0.0
        %v4386 = vmax.f32 %v3157, 0.0
        %v4387 = vmax.f32 %v1846, 0.0
        %v4388 = vmax.f32 %v1848, 0.0
        %v4389 = vmax.f32 %v3159, 0.0
        %v4390 = vmax.f32 %v3161, 0.0
        %v4391 = vmax.f32 %v1852, 0.0
        %v4392 = vmax.f32 %v1854, 0.0
        %v4393 = vmax.f32 %v3165, 0.0
        %v4394 = vmax.f32 %v3167, 0.0
        %v4395 = vmax.f32 %v1856, 0.0
        %v4396 = vmax.f32 %v1858, 0.0
        %v4397 = vmax.f32 %v3169, 0.0
        %v4398 = vmax.f32 %v3171, 0.0
        %v4399 = vmax.f32 %v1862, 0.0
        %v4400 = vmax.f32 %v1864, 0.0
        %v4401 = vmax.f32 %v3175, 0.0
        %v4402 = vmax.f32 %v3177, 0.0
        %v4403 = vmax.f32 %v1866, 0.0
        %v4404 = vmax.f32 %v1868, 0.0
        %v4405 = vmax.f32 %v3179, 0.0
        %v4406 = vmax.f32 %v3181, 0.0
        %v4407 = vmax.f32 %v1872, 0.0
        %v4408 = vmax.f32 %v1874, 0.0
        %v4409 = vmax.f32 %v3185, 0.0
        %v4410 = vmax.f32 %v3187, 0.0
        %v4411 = vmax.f32 %v1876, 0.0
        %v4412 = vmax.f32 %v1878, 0.0
        %v4413 = vmax.f32 %v3189, 0.0
        %v4414 = vmax.f32 %v3191, 0.0
        %v4415 = vmax.f32 %v1882, 0.0
        %v4416 = vmax.f32 %v1884, 0.0
        %v4417 = vmax.f32 %v3195, 0.0
        %v4418 = vmax.f32 %v3197, 0.0
        %v4419 = vmax.f32 %v1886, 0.0
        %v4420 = vmax.f32 %v1888, 0.0
        %v4421 = vmax.f32 %v3199, 0.0
        %v4422 = vmax.f32 %v3201, 0.0
        %v4423 = vmax.f32 %v1892, 0.0
        %v4424 = vmax.f32 %v1894, 0.0
        %v4425 = vmax.f32 %v3205, 0.0
        %v4426 = vmax.f32 %v3207, 0.0
        %v4427 = vmax.f32 %v1896, 0.0
        %v4428 = vmax.f32 %v1898, 0.0
        %v4429 = vmax.f32 %v3209, 0.0
        %v4430 = vmax.f32 %v3211, 0.0
        %v4431 = vmax.f32 %v1902, 0.0
        %v4432 = vmax.f32 %v1904, 0.0
        %v4433 = vmax.f32 %v3215, 0.0
        %v4434 = vmax.f32 %v3217, 0.0
        %v4435 = vmax.f32 %v1906, 0.0
        %v4436 = vmax.f32 %v1908, 0.0
        %v4437 = vmax.f32 %v3219, 0.0
        %v4438 = vmax.f32 %v3221, 0.0
        %v4439 = vmax.f32 %v1912, 0.0
        %v4440 = vmax.f32 %v1914, 0.0
        %v4441 = vmax.f32 %v3225, 0.0
        %v4442 = vmax.f32 %v3227, 0.0
        %v4443 = vmax.f32 %v1916, 0.0
        %v4444 = vmax.f32 %v1918, 0.0
        %v4445 = vmax.f32 %v3229, 0.0
        %v4446 = vmax.f32 %v3231, 0.0
        %v4447 = vmax.f32 %v1922, 0.0
        %v4448 = vmax.f32 %v1924, 0.0
        %v4449 = vmax.f32 %v3235, 0.0
        %v4450 = vmax.f32 %v3237, 0.0
        %v4451 = vmax.f32 %v1926, 0.0
        %v4452 = vmax.f32 %v1928, 0.0
        %v4453 = vmax.f32 %v3239, 0.0
        %v4454 = vmax.f32 %v3241, 0.0
        %v4455 = vmax.f32 %v1932, 0.0
        %v4456 = vmax.f32 %v1934, 0.0
        %v4457 = vmax.f32 %v3245, 0.0
        %v4458 = vmax.f32 %v3247, 0.0
        %v4459 = vmax.f32 %v1936, 0.0
        %v4460 = vmax.f32 %v1938, 0.0
        %v4461 = vmax.f32 %v3249, 0.0
        %v4462 = vmax.f32 %v3251, 0.0
        %v4463 = vmax.f32 %v1942, 0.0
        %v4464 = vmax.f32 %v1944, 0.0
        %v4465 = vmax.f32 %v3255, 0.0
        %v4466 = vmax.f32 %v3257, 0.0
        %v4467 = vmax.f32 %v1946, 0.0
        %v4468 = vmax.f32 %v1948, 0.0
        %v4469 = vmax.f32 %v3259, 0.0
        %v4470 = vmax.f32 %v3261, 0.0
        %v4471 = vmax.f32 %v1952, 0.0
        %v4472 = vmax.f32 %v1954, 0.0
        %v4473 = vmax.f32 %v3265, 0.0
        %v4474 = vmax.f32 %v3267, 0.0
        %v4475 = vmax.f32 %v1956, 0.0
        %v4476 = vmax.f32 %v1958, 0.0
        %v4477 = vmax.f32 %v3269, 0.0
        %v4478 = vmax.f32 %v3271, 0.0
        %v4479 = vmax.f32 %v1962, 0.0
        %v4480 = vmax.f32 %v1964, 0.0
        %v4481 = vmax.f32 %v3275, 0.0
        %v4482 = vmax.f32 %v3277, 0.0
        %v4483 = vmax.f32 %v1966, 0.0
        %v4484 = vmax.f32 %v1968, 0.0
        %v4485 = vmax.f32 %v3279, 0.0
        %v4486 = vmax.f32 %v3281, 0.0
        %v4487 = vmax.f32 %v1972, 0.0
        %v4488 = vmax.f32 %v1974, 0.0
        %v4489 = vmax.f32 %v3285, 0.0
        %v4490 = vmax.f32 %v3287, 0.0
        %v4491 = vmax.f32 %v1976, 0.0
        %v4492 = vmax.f32 %v1978, 0.0
        %v4493 = vmax.f32 %v3289, 0.0
        %v4494 = vmax.f32 %v3291, 0.0
        %v4495 = vmax.f32 %v1982, 0.0
        %v4496 = vmax.f32 %v1984, 0.0
        %v4497 = vmax.f32 %v3295, 0.0
        %v4498 = vmax.f32 %v3297, 0.0
        %v4499 = vmax.f32 %v1986, 0.0
        %v4500 = vmax.f32 %v1988, 0.0
        %v4501 = vmax.f32 %v3299, 0.0
        %v4502 = vmax.f32 %v3301, 0.0
        %v4503 = vmax.f32 %v1992, 0.0
        %v4504 = vmax.f32 %v1994, 0.0
        %v4505 = vmax.f32 %v3305, 0.0
        %v4506 = vmax.f32 %v3307, 0.0
        %v4507 = vmax.f32 %v1996, 0.0
        %v4508 = vmax.f32 %v1998, 0.0
        %v4509 = vmax.f32 %v3309, 0.0
        %v4510 = vmax.f32 %v3311, 0.0
        %v4511 = vmax.f32 %v2002, 0.0
        %v4512 = vmax.f32 %v2004, 0.0
        %v4513 = vmax.f32 %v3315, 0.0
        %v4514 = vmax.f32 %v3317, 0.0
        %v4515 = vmax.f32 %v2006, 0.0
        %v4516 = vmax.f32 %v2008, 0.0
        %v4517 = vmax.f32 %v3319, 0.0
        %v4518 = vmax.f32 %v3321, 0.0
        %v4519 = vmax.f32 %v2012, 0.0
        %v4520 = vmax.f32 %v2014, 0.0
        %v4521 = vmax.f32 %v3325, 0.0
        %v4522 = vmax.f32 %v3327, 0.0
        %v4523 = vmax.f32 %v2016, 0.0
        %v4524 = vmax.f32 %v2018, 0.0
        %v4525 = vmax.f32 %v3329, 0.0
        %v4526 = vmax.f32 %v3331, 0.0
        %v4527 = vmax.f32 %v2022, 0.0
        %v4528 = vmax.f32 %v2024, 0.0
        %v4529 = vmax.f32 %v3335, 0.0
        %v4530 = vmax.f32 %v3337, 0.0
        %v4531 = vmax.f32 %v2026, 0.0
        %v4532 = vmax.f32 %v2028, 0.0
        %v4533 = vmax.f32 %v3339, 0.0
        %v4534 = vmax.f32 %v3341, 0.0
        %v4535 = vmax.f32 %v2032, 0.0
        %v4536 = vmax.f32 %v2034, 0.0
        %v4537 = vmax.f32 %v3345, 0.0
        %v4538 = vmax.f32 %v3347, 0.0
        %v4539 = vmax.f32 %v2036, 0.0
        %v4540 = vmax.f32 %v2038, 0.0
        %v4541 = vmax.f32 %v3349, 0.0
        %v4542 = vmax.f32 %v3351, 0.0
        %v4543 = vmax.f32 %v2042, 0.0
        %v4544 = vmax.f32 %v2044, 0.0
        %v4545 = vmax.f32 %v3355, 0.0
        %v4546 = vmax.f32 %v3357, 0.0
        %v4547 = vmax.f32 %v2046, 0.0
        %v4548 = vmax.f32 %v2048, 0.0
        %v4549 = vmax.f32 %v3359, 0.0
        %v4550 = vmax.f32 %v3361, 0.0
        %v4551 = vmax.f32 %v2052, 0.0
        %v4552 = vmax.f32 %v2054, 0.0
        %v4553 = vmax.f32 %v3365, 0.0
        %v4554 = vmax.f32 %v3367, 0.0
        %v4555 = vmax.f32 %v2056, 0.0
        %v4556 = vmax.f32 %v2058, 0.0
        %v4557 = vmax.f32 %v3369, 0.0
        %v4558 = vmax.f32 %v3371, 0.0
        %v4559 = vmax.f32 %v2062, 0.0
        %v4560 = vmax.f32 %v2064, 0.0
        %v4561 = vmax.f32 %v3375, 0.0
        %v4562 = vmax.f32 %v3377, 0.0
        %v4563 = vmax.f32 %v2066, 0.0
        %v4564 = vmax.f32 %v2068, 0.0
        %v4565 = vmax.f32 %v3379, 0.0
        %v4566 = vmax.f32 %v3381, 0.0
        %v4567 = vmax.f32 %v2072, 0.0
        %v4568 = vmax.f32 %v2074, 0.0
        %v4569 = vmax.f32 %v3385, 0.0
        %v4570 = vmax.f32 %v3387, 0.0
        %v4571 = vmax.f32 %v2076, 0.0
        %v4572 = vmax.f32 %v2078, 0.0
        %v4573 = vmax.f32 %v3389, 0.0
        %v4574 = vmax.f32 %v3391, 0.0
        %v4575 = vmax.f32 %v2082, 0.0
        %v4576 = vmax.f32 %v2084, 0.0
        %v4577 = vmax.f32 %v3395, 0.0
        %v4578 = vmax.f32 %v3397, 0.0
        %v4579 = vmax.f32 %v2086, 0.0
        %v4580 = vmax.f32 %v2088, 0.0
        %v4581 = vmax.f32 %v3399, 0.0
        %v4582 = vmax.f32 %v3401, 0.0
        %v4583 = vmax.f32 %v2092, 0.0
        %v4584 = vmax.f32 %v2094, 0.0
        %v4585 = vmax.f32 %v3405, 0.0
        %v4586 = vmax.f32 %v3407, 0.0
        %v4587 = vmax.f32 %v2096, 0.0
        %v4588 = vmax.f32 %v2098, 0.0
        %v4589 = vmax.f32 %v3409, 0.0
        %v4590 = vmax.f32 %v3411, 0.0
        %v4591 = vmax.f32 %v2102, 0.0
        %v4592 = vmax.f32 %v2104, 0.0
        %v4593 = vmax.f32 %v3415, 0.0
        %v4594 = vmax.f32 %v3417, 0.0
        %v4595 = vmax.f32 %v2106, 0.0
        %v4596 = vmax.f32 %v2108, 0.0
        %v4597 = vmax.f32 %v3419, 0.0
        %v4598 = vmax.f32 %v3421, 0.0
        %v4599 = vmax.f32 %v2112, 0.0
        %v4600 = vmax.f32 %v2114, 0.0
        %v4601 = vmax.f32 %v3425, 0.0
        %v4602 = vmax.f32 %v3427, 0.0
        %v4603 = vmax.f32 %v2116, 0.0
        %v4604 = vmax.f32 %v2118, 0.0
        %v4605 = vmax.f32 %v3429, 0.0
        %v4606 = vmax.f32 %v3431, 0.0
        %v4607 = vmax.f32 %v2122, 0.0
        %v4608 = vmax.f32 %v2124, 0.0
        %v4609 = vmax.f32 %v3435, 0.0
        %v4610 = vmax.f32 %v3437, 0.0
        %v4611 = vmax.f32 %v2126, 0.0
        %v4612 = vmax.f32 %v2128, 0.0
        %v4613 = vmax.f32 %v3439, 0.0
        %v4614 = vmax.f32 %v3441, 0.0
        %v4615 = vmax.f32 %v2132, 0.0
        %v4616 = vmax.f32 %v2134, 0.0
        %v4617 = vmax.f32 %v3445, 0.0
        %v4618 = vmax.f32 %v3447, 0.0
        %v4619 = vmax.f32 %v2136, 0.0
        %v4620 = vmax.f32 %v2138, 0.0
        %v4621 = vmax.f32 %v3449, 0.0
        %v4622 = vmax.f32 %v3451, 0.0
        %v4623 = vmax.f32 %v2142, 0.0
        %v4624 = vmax.f32 %v2144, 0.0
        %v4625 = vmax.f32 %v3455, 0.0
        %v4626 = vmax.f32 %v3457, 0.0
        %v4627 = vmax.f32 %v2146, 0.0
        %v4628 = vmax.f32 %v2148, 0.0
        %v4629 = vmax.f32 %v3459, 0.0
        %v4630 = vmax.f32 %v3461, 0.0
        %v4631 = vmax.f32 %v2152, 0.0
        %v4632 = vmax.f32 %v2154, 0.0
        %v4633 = vmax.f32 %v3465, 0.0
        %v4634 = vmax.f32 %v3467, 0.0
        %v4635 = vmax.f32 %v2156, 0.0
        %v4636 = vmax.f32 %v2158, 0.0
        %v4637 = vmax.f32 %v3469, 0.0
        %v4638 = vmax.f32 %v3471, 0.0
        %v4639 = vmax.f32 %v2162, 0.0
        %v4640 = vmax.f32 %v2164, 0.0
        %v4641 = vmax.f32 %v3475, 0.0
        %v4642 = vmax.f32 %v3477, 0.0
        %v4643 = vmax.f32 %v2166, 0.0
        %v4644 = vmax.f32 %v2168, 0.0
        %v4645 = vmax.f32 %v3479, 0.0
        %v4646 = vmax.f32 %v3481, 0.0
        %v4647 = vmax.f32 %v2172, 0.0
        %v4648 = vmax.f32 %v2174, 0.0
        %v4649 = vmax.f32 %v3485, 0.0
        %v4650 = vmax.f32 %v3487, 0.0
        %v4651 = vmax.f32 %v2176, 0.0
        %v4652 = vmax.f32 %v2178, 0.0
        %v4653 = vmax.f32 %v3489, 0.0
        %v4654 = vmax.f32 %v3491, 0.0
        %v4655 = vmax.f32 %v2182, 0.0
        %v4656 = vmax.f32 %v2184, 0.0
        %v4657 = vmax.f32 %v3495, 0.0
        %v4658 = vmax.f32 %v3497, 0.0
        %v4659 = vmax.f32 %v2186, 0.0
        %v4660 = vmax.f32 %v2188, 0.0
        %v4661 = vmax.f32 %v3499, 0.0
        %v4662 = vmax.f32 %v3501, 0.0
        %v4663 = vmax.f32 %v2192, 0.0
        %v4664 = vmax.f32 %v2194, 0.0
        %v4665 = vmax.f32 %v3505, 0.0
        %v4666 = vmax.f32 %v3507, 0.0
        %v4667 = vmax.f32 %v2196, 0.0
        %v4668 = vmax.f32 %v2198, 0.0
        %v4669 = vmax.f32 %v3509, 0.0
        %v4670 = vmax.f32 %v3511, 0.0
        %v4671 = vmax.f32 %v2202, 0.0
        %v4672 = vmax.f32 %v2204, 0.0
        %v4673 = vmax.f32 %v3515, 0.0
        %v4674 = vmax.f32 %v3517, 0.0
        %v4675 = vmax.f32 %v2206, 0.0
        %v4676 = vmax.f32 %v2208, 0.0
        %v4677 = vmax.f32 %v3519, 0.0
        %v4678 = vmax.f32 %v3521, 0.0
        %v4679 = vmax.f32 %v2212, 0.0
        %v4680 = vmax.f32 %v2214, 0.0
        %v4681 = vmax.f32 %v3525, 0.0
        %v4682 = vmax.f32 %v3527, 0.0
        %v4683 = vmax.f32 %v2216, 0.0
        %v4684 = vmax.f32 %v2218, 0.0
        %v4685 = vmax.f32 %v3529, 0.0
        %v4686 = vmax.f32 %v3531, 0.0
        %v4687 = vmax.f32 %v2222, 0.0
        %v4688 = vmax.f32 %v2224, 0.0
        %v4689 = vmax.f32 %v3535, 0.0
        %v4690 = vmax.f32 %v3537, 0.0
        %v4691 = vmax.f32 %v2226, 0.0
        %v4692 = vmax.f32 %v2228, 0.0
        %v4693 = vmax.f32 %v3539, 0.0
        %v4694 = vmax.f32 %v3541, 0.0
        %v4695 = vmax.f32 %v2232, 0.0
        %v4696 = vmax.f32 %v2234, 0.0
        %v4697 = vmax.f32 %v3545, 0.0
        %v4698 = vmax.f32 %v3547, 0.0
        %v4699 = vmax.f32 %v2236, 0.0
        %v4700 = vmax.f32 %v2238, 0.0
        %v4701 = vmax.f32 %v3549, 0.0
        %v4702 = vmax.f32 %v3551, 0.0
        %v4703 = vmax.f32 %v2242, 0.0
        %v4704 = vmax.f32 %v2244, 0.0
        %v4705 = vmax.f32 %v3555, 0.0
        %v4706 = vmax.f32 %v3557, 0.0
        %v4707 = vmax.f32 %v2246, 0.0
        %v4708 = vmax.f32 %v2248, 0.0
        %v4709 = vmax.f32 %v3559, 0.0
        %v4710 = vmax.f32 %v3561, 0.0
        %v4711 = vmax.f32 %v2252, 0.0
        %v4712 = vmax.f32 %v2254, 0.0
        %v4713 = vmax.f32 %v3565, 0.0
        %v4714 = vmax.f32 %v3567, 0.0
        %v4715 = vmax.f32 %v2256, 0.0
        %v4716 = vmax.f32 %v2258, 0.0
        %v4717 = vmax.f32 %v3569, 0.0
        %v4718 = vmax.f32 %v3571, 0.0
        %v4719 = vmax.f32 %v2262, 0.0
        %v4720 = vmax.f32 %v2264, 0.0
        %v4721 = vmax.f32 %v3575, 0.0
        %v4722 = vmax.f32 %v3577, 0.0
        %v4723 = vmax.f32 %v2266, 0.0
        %v4724 = vmax.f32 %v2268, 0.0
        %v4725 = vmax.f32 %v3579, 0.0
        %v4726 = vmax.f32 %v3581, 0.0
        %v4727 = vmax.f32 %v2272, 0.0
        %v4728 = vmax.f32 %v2274, 0.0
        %v4729 = vmax.f32 %v3585, 0.0
        %v4730 = vmax.f32 %v3587, 0.0
        %v4731 = vmax.f32 %v2276, 0.0
        %v4732 = vmax.f32 %v2278, 0.0
        %v4733 = vmax.f32 %v3589, 0.0
        %v4734 = vmax.f32 %v3591, 0.0
        %v4735 = vmax.f32 %v2282, 0.0
        %v4736 = vmax.f32 %v2284, 0.0
        %v4737 = vmax.f32 %v3595, 0.0
        %v4738 = vmax.f32 %v3597, 0.0
        %v4739 = vmax.f32 %v2286, 0.0
        %v4740 = vmax.f32 %v2288, 0.0
        %v4741 = vmax.f32 %v3599, 0.0
        %v4742 = vmax.f32 %v3601, 0.0
        %v4743 = vmax.f32 %v2292, 0.0
        %v4744 = vmax.f32 %v2294, 0.0
        %v4745 = vmax.f32 %v3605, 0.0
        %v4746 = vmax.f32 %v3607, 0.0
        %v4747 = vmax.f32 %v2296, 0.0
        %v4748 = vmax.f32 %v2298, 0.0
        %v4749 = vmax.f32 %v3609, 0.0
        %v4750 = vmax.f32 %v3611, 0.0
        %v4751 = vmax.f32 %v2302, 0.0
        %v4752 = vmax.f32 %v2304, 0.0
        %v4753 = vmax.f32 %v3615, 0.0
        %v4754 = vmax.f32 %v3617, 0.0
        %v4755 = vmax.f32 %v2306, 0.0
        %v4756 = vmax.f32 %v2308, 0.0
        %v4757 = vmax.f32 %v3619, 0.0
        %v4758 = vmax.f32 %v3621, 0.0
        %v4759 = vmax.f32 %v2312, 0.0
        %v4760 = vmax.f32 %v2314, 0.0
        %v4761 = vmax.f32 %v3625, 0.0
        %v4762 = vmax.f32 %v3627, 0.0
        %v4763 = vmax.f32 %v2316, 0.0
        %v4764 = vmax.f32 %v2318, 0.0
        %v4765 = vmax.f32 %v3629, 0.0
        %v4766 = vmax.f32 %v3631, 0.0
        %v4767 = vmax.f32 %v2322, 0.0
        %v4768 = vmax.f32 %v2324, 0.0
        %v4769 = vmax.f32 %v3635, 0.0
        %v4770 = vmax.f32 %v3637, 0.0
        %v4771 = vmax.f32 %v2326, 0.0
        %v4772 = vmax.f32 %v2328, 0.0
        %v4773 = vmax.f32 %v3639, 0.0
        %v4774 = vmax.f32 %v3641, 0.0
        %v4775 = vmax.f32 %v2332, 0.0
        %v4776 = vmax.f32 %v2334, 0.0
        %v4777 = vmax.f32 %v3645, 0.0
        %v4778 = vmax.f32 %v3647, 0.0
        %v4779 = vmax.f32 %v2336, 0.0
        %v4780 = vmax.f32 %v2338, 0.0
        %v4781 = vmax.f32 %v3649, 0.0
        %v4782 = vmax.f32 %v3651, 0.0
        %v4783 = vmax.f32 %v2342, 0.0
        %v4784 = vmax.f32 %v2344, 0.0
        %v4785 = vmax.f32 %v3655, 0.0
        %v4786 = vmax.f32 %v3657, 0.0
        %v4787 = vmax.f32 %v2346, 0.0
        %v4788 = vmax.f32 %v2348, 0.0
        %v4789 = vmax.f32 %v3659, 0.0
        %v4790 = vmax.f32 %v3661, 0.0
        %v4791 = vmax.f32 %v2352, 0.0
        %v4792 = vmax.f32 %v2354, 0.0
        %v4793 = vmax.f32 %v3665, 0.0
        %v4794 = vmax.f32 %v3667, 0.0
        %v4795 = vmax.f32 %v2356, 0.0
        %v4796 = vmax.f32 %v2358, 0.0
        %v4797 = vmax.f32 %v3669, 0.0
        %v4798 = vmax.f32 %v3671, 0.0
        %v4799 = vmax.f32 %v2362, 0.0
        %v4800 = vmax.f32 %v2364, 0.0
        %v4801 = vmax.f32 %v3675, 0.0
        %v4802 = vmax.f32 %v3677, 0.0
        %v4803 = vmax.f32 %v2366, 0.0
        %v4804 = vmax.f32 %v2368, 0.0
        %v4805 = vmax.f32 %v3679, 0.0
        %v4806 = vmax.f32 %v3681, 0.0
        %v4807 = vmax.f32 %v2372, 0.0
        %v4808 = vmax.f32 %v2374, 0.0
        %v4809 = vmax.f32 %v3685, 0.0
        %v4810 = vmax.f32 %v3687, 0.0
        %v4811 = vmax.f32 %v2376, 0.0
        %v4812 = vmax.f32 %v2378, 0.0
        %v4813 = vmax.f32 %v3689, 0.0
        %v4814 = vmax.f32 %v3691, 0.0
        %v4815 = vmax.f32 %v2382, 0.0
        %v4816 = vmax.f32 %v2384, 0.0
        %v4817 = vmax.f32 %v3695, 0.0
        %v4818 = vmax.f32 %v3697, 0.0
        %v4819 = vmax.f32 %v2386, 0.0
        %v4820 = vmax.f32 %v2388, 0.0
        %v4821 = vmax.f32 %v3699, 0.0
        %v4822 = vmax.f32 %v3701, 0.0
        %v4823 = vmax.f32 %v2392, 0.0
        %v4824 = vmax.f32 %v2394, 0.0
        %v4825 = vmax.f32 %v3705, 0.0
        %v4826 = vmax.f32 %v3707, 0.0
        %v4827 = vmax.f32 %v2396, 0.0
        %v4828 = vmax.f32 %v2398, 0.0
        %v4829 = vmax.f32 %v3709, 0.0
        %v4830 = vmax.f32 %v3711, 0.0
        %v4831 = vmax.f32 %v2402, 0.0
        %v4832 = vmax.f32 %v2404, 0.0
        %v4833 = vmax.f32 %v3715, 0.0
        %v4834 = vmax.f32 %v3717, 0.0
        %v4835 = vmax.f32 %v2406, 0.0
        %v4836 = vmax.f32 %v2408, 0.0
        %v4837 = vmax.f32 %v3719, 0.0
        %v4838 = vmax.f32 %v3721, 0.0
        %v4839 = vmax.f32 %v2412, 0.0
        %v4840 = vmax.f32 %v2414, 0.0
        %v4841 = vmax.f32 %v3725, 0.0
        %v4842 = vmax.f32 %v3727, 0.0
        %v4843 = vmax.f32 %v2416, 0.0
        %v4844 = vmax.f32 %v2418, 0.0
        %v4845 = vmax.f32 %v3729, 0.0
        %v4846 = vmax.f32 %v3731, 0.0
        %v4847 = vmax.f32 %v2422, 0.0
        %v4848 = vmax.f32 %v2424, 0.0
        %v4849 = vmax.f32 %v3735, 0.0
        %v4850 = vmax.f32 %v3737, 0.0
        %v4851 = vmax.f32 %v2426, 0.0
        %v4852 = vmax.f32 %v2428, 0.0
        %v4853 = vmax.f32 %v3739, 0.0
        %v4854 = vmax.f32 %v3741, 0.0
        %v4855 = vmax.f32 %v2432, 0.0
        %v4856 = vmax.f32 %v2434, 0.0
        %v4857 = vmax.f32 %v3745, 0.0
        %v4858 = vmax.f32 %v3747, 0.0
        %v4859 = vmax.f32 %v2436, 0.0
        %v4860 = vmax.f32 %v2438, 0.0
        %v4861 = vmax.f32 %v3749, 0.0
        %v4862 = vmax.f32 %v3751, 0.0
        %v4863 = vmax.f32 %v2442, 0.0
        %v4864 = vmax.f32 %v2444, 0.0
        %v4865 = vmax.f32 %v3755, 0.0
        %v4866 = vmax.f32 %v3757, 0.0
        %v4867 = vmax.f32 %v2446, 0.0
        %v4868 = vmax.f32 %v2448, 0.0
        %v4869 = vmax.f32 %v3759, 0.0
        %v4870 = vmax.f32 %v3761, 0.0
        %v4871 = vmax.f32 %v2452, 0.0
        %v4872 = vmax.f32 %v2454, 0.0
        %v4873 = vmax.f32 %v3765, 0.0
        %v4874 = vmax.f32 %v3767, 0.0
        %v4875 = vmax.f32 %v2456, 0.0
        %v4876 = vmax.f32 %v2458, 0.0
        %v4877 = vmax.f32 %v3769, 0.0
        %v4878 = vmax.f32 %v3771, 0.0
        %v4879 = vmax.f32 %v2462, 0.0
        %v4880 = vmax.f32 %v2464, 0.0
        %v4881 = vmax.f32 %v3775, 0.0
        %v4882 = vmax.f32 %v3777, 0.0
        %v4883 = vmax.f32 %v2466, 0.0
        %v4884 = vmax.f32 %v2468, 0.0
        %v4885 = vmax.f32 %v3779, 0.0
        %v4886 = vmax.f32 %v3781, 0.0
        %v4887 = vmax.f32 %v2472, 0.0
        %v4888 = vmax.f32 %v2474, 0.0
        %v4889 = vmax.f32 %v3785, 0.0
        %v4890 = vmax.f32 %v3787, 0.0
        %v4891 = vmax.f32 %v2476, 0.0
        %v4892 = vmax.f32 %v2478, 0.0
        %v4893 = vmax.f32 %v3789, 0.0
        %v4894 = vmax.f32 %v3791, 0.0
        %v4895 = vmax.f32 %v2482, 0.0
        %v4896 = vmax.f32 %v2484, 0.0
        %v4897 = vmax.f32 %v3795, 0.0
        %v4898 = vmax.f32 %v3797, 0.0
        %v4899 = vmax.f32 %v2486, 0.0
        %v4900 = vmax.f32 %v2488, 0.0
        %v4901 = vmax.f32 %v3799, 0.0
        %v4902 = vmax.f32 %v3801, 0.0
        %v4903 = vmax.f32 %v2492, 0.0
        %v4904 = vmax.f32 %v2494, 0.0
        %v4905 = vmax.f32 %v3805, 0.0
        %v4906 = vmax.f32 %v3807, 0.0
        %v4907 = vmax.f32 %v2496, 0.0
        %v4908 = vmax.f32 %v2498, 0.0
        %v4909 = vmax.f32 %v3809, 0.0
        %v4910 = vmax.f32 %v3811, 0.0
        %v4911 = vmax.f32 %v2502, 0.0
        %v4912 = vmax.f32 %v2504, 0.0
        %v4913 = vmax.f32 %v3815, 0.0
        %v4914 = vmax.f32 %v3817, 0.0
        %v4915 = vmax.f32 %v2506, 0.0
        %v4916 = vmax.f32 %v2508, 0.0
        %v4917 = vmax.f32 %v3819, 0.0
        %v4918 = vmax.f32 %v3821, 0.0
        %v4919 = vmax.f32 %v2512, 0.0
        %v4920 = vmax.f32 %v2514, 0.0
        %v4921 = vmax.f32 %v3825, 0.0
        %v4922 = vmax.f32 %v3827, 0.0
        %v4923 = vmax.f32 %v2516, 0.0
        %v4924 = vmax.f32 %v2518, 0.0
        %v4925 = vmax.f32 %v3829, 0.0
        %v4926 = vmax.f32 %v3831, 0.0
        %v4927 = vmax.f32 %v2522, 0.0
        %v4928 = vmax.f32 %v2524, 0.0
        %v4929 = vmax.f32 %v3835, 0.0
        %v4930 = vmax.f32 %v3837, 0.0
        %v4931 = vmax.f32 %v2526, 0.0
        %v4932 = vmax.f32 %v2528, 0.0
        %v4933 = vmax.f32 %v3839, 0.0
        %v4934 = vmax.f32 %v3841, 0.0
        %v4935 = vmax.f32 %v2532, 0.0
        %v4936 = vmax.f32 %v2534, 0.0
        %v4937 = vmax.f32 %v3845, 0.0
        %v4938 = vmax.f32 %v3847, 0.0
        %v4939 = vmax.f32 %v2536, 0.0
        %v4940 = vmax.f32 %v2538, 0.0
        %v4941 = vmax.f32 %v3849, 0.0
        %v4942 = vmax.f32 %v3851, 0.0
        %v4943 = vmax.f32 %v2542, 0.0
        %v4944 = vmax.f32 %v2544, 0.0
        %v4945 = vmax.f32 %v3855, 0.0
        %v4946 = vmax.f32 %v3857, 0.0
        %v4947 = vmax.f32 %v2546, 0.0
        %v4948 = vmax.f32 %v2548, 0.0
        %v4949 = vmax.f32 %v3859, 0.0
        %v4950 = vmax.f32 %v3861, 0.0
        %v4951 = vmax.f32 %v2552, 0.0
        %v4952 = vmax.f32 %v2554, 0.0
        %v4953 = vmax.f32 %v3865, 0.0
        %v4954 = vmax.f32 %v3867, 0.0
        %v4955 = vmax.f32 %v2556, 0.0
        %v4956 = vmax.f32 %v2558, 0.0
        %v4957 = vmax.f32 %v3869, 0.0
        %v4958 = vmax.f32 %v3871, 0.0
        %v4959 = vmax.f32 %v2562, 0.0
        %v4960 = vmax.f32 %v2564, 0.0
        %v4961 = vmax.f32 %v3875, 0.0
        %v4962 = vmax.f32 %v3877, 0.0
        %v4963 = vmax.f32 %v2566, 0.0
        %v4964 = vmax.f32 %v2568, 0.0
        %v4965 = vmax.f32 %v3879, 0.0
        %v4966 = vmax.f32 %v3881, 0.0
        %v4967 = vmax.f32 %v2572, 0.0
        %v4968 = vmax.f32 %v2574, 0.0
        %v4969 = vmax.f32 %v3885, 0.0
        %v4970 = vmax.f32 %v3887, 0.0
        %v4971 = vmax.f32 %v2576, 0.0
        %v4972 = vmax.f32 %v2578, 0.0
        %v4973 = vmax.f32 %v3889, 0.0
        %v4974 = vmax.f32 %v3891, 0.0
        %v4975 = vmax.f32 %v2582, 0.0
        %v4976 = vmax.f32 %v2584, 0.0
        %v4977 = vmax.f32 %v3895, 0.0
        %v4978 = vmax.f32 %v3897, 0.0
        %v4979 = vmax.f32 %v2586, 0.0
        %v4980 = vmax.f32 %v2588, 0.0
        %v4981 = vmax.f32 %v3899, 0.0
        %v4982 = vmax.f32 %v3901, 0.0
        %v4983 = vmax.f32 %v2592, 0.0
        %v4984 = vmax.f32 %v2594, 0.0
        %v4985 = vmax.f32 %v3905, 0.0
        %v4986 = vmax.f32 %v3907, 0.0
        %v4987 = vmax.f32 %v2596, 0.0
        %v4988 = vmax.f32 %v2598, 0.0
        %v4989 = vmax.f32 %v3909, 0.0
        %v4990 = vmax.f32 %v3911, 0.0
        %v4991 = vmax.f32 %v2602, 0.0
        %v4992 = vmax.f32 %v2604, 0.0
        %v4993 = vmax.f32 %v3915, 0.0
        %v4994 = vmax.f32 %v3917, 0.0
        %v4995 = vmax.f32 %v2606, 0.0
        %v4996 = vmax.f32 %v2608, 0.0
        %v4997 = vmax.f32 %v3919, 0.0
        %v4998 = vmax.f32 %v3921, 0.0
        %v4999 = vmax.f32 %v2612, 0.0
        %v5000 = vmax.f32 %v2614, 0.0
        %v5001 = vmax.f32 %v3925, 0.0
        %v5002 = vmax.f32 %v3927, 0.0
        %v5003 = vmax.f32 %v2616, 0.0
        %v5004 = vmax.f32 %v2618, 0.0
        %v5005 = vmax.f32 %v3929, 0.0
        %v5006 = vmax.f32 %v3931, 0.0
        %v5007 = vmax.f32 %v2622, 0.0
        %v5008 = vmax.f32 %v2624, 0.0
        %v5009 = vmax.f32 %v3935, 0.0
        %v5010 = vmax.f32 %v3937, 0.0
        %v5011 = vmax.f32 %v2626, 0.0
        %v5012 = vmax.f32 %v2628, 0.0
        %v5013 = vmax.f32 %v3939, 0.0
        %v5014 = vmax.f32 %v3941, 0.0
        %v5015 = vmax.f32 %v2632, 0.0
        %v5016 = vmax.f32 %v2634, 0.0
        %v5017 = vmax.f32 %v3945, 0.0
        %v5018 = vmax.f32 %v3947, 0.0
        %v5019 = vmax.f32 %v2636, 0.0
        %v5020 = vmax.f32 %v2638, 0.0
        %v5021 = vmax.f32 %v3949, 0.0
        %v5022 = vmax.f32 %v3951, 0.0
        %v5023 = vmax.f32 %v2642, 0.0
        %v5024 = vmax.f32 %v2644, 0.0
        %v5025 = vmax.f32 %v3955, 0.0
        %v5026 = vmax.f32 %v3957, 0.0
        %v5027 = vmax.f32 %v2646, 0.0
        %v5028 = vmax.f32 %v2648, 0.0
        %v5029 = vmax.f32 %v3959, 0.0
        %v5030 = vmax.f32 %v3961, 0.0
        %v5031 = vmax.f32 %v2652, 0.0
        %v5032 = vmax.f32 %v2654, 0.0
        %v5033 = vmax.f32 %v3965, 0.0
        %v5034 = vmax.f32 %v3967, 0.0
        %v5035 = vmax.f32 %v2656, 0.0
        %v5036 = vmax.f32 %v2658, 0.0
        %v5037 = vmax.f32 %v3969, 0.0
        %v5038 = vmax.f32 %v3971, 0.0
        %v5039 = vmax.f32 %v2662, 0.0
        %v5040 = vmax.f32 %v2664, 0.0
        %v5041 = vmax.f32 %v3975, 0.0
        %v5042 = vmax.f32 %v3977, 0.0
        %v5043 = vmax.f32 %v2666, 0.0
        %v5044 = vmax.f32 %v2668, 0.0
        %v5045 = vmax.f32 %v3979, 0.0
        %v5046 = vmax.f32 %v3981, 0.0
        %v5047 = vmax.f32 %v2672, 0.0
        %v5048 = vmax.f32 %v2674, 0.0
        %v5049 = vmax.f32 %v3985, 0.0
        %v5050 = vmax.f32 %v3987, 0.0
        %v5051 = vmax.f32 %v2676, 0.0
        %v5052 = vmax.f32 %v2678, 0.0
        %v5053 = vmax.f32 %v3989, 0.0
        %v5054 = vmax.f32 %v3991, 0.0
        %v5055 = vmax.f32 %v2682, 0.0
        %v5056 = vmax.f32 %v2684, 0.0
        %v5057 = vmax.f32 %v3995, 0.0
        %v5058 = vmax.f32 %v3997, 0.0
        %v5059 = vmax.f32 %v2686, 0.0
        %v5060 = vmax.f32 %v2688, 0.0
        %v5061 = vmax.f32 %v3999, 0.0
        %v5062 = vmax.f32 %v4001, 0.0
        %v5063 = vmax.f32 %v2692, 0.0
        %v5064 = vmax.f32 %v2694, 0.0
        %v5065 = vmax.f32 %v4005, 0.0
        %v5066 = vmax.f32 %v4007, 0.0
        %v5067 = vmax.f32 %v2696, 0.0
        %v5068 = vmax.f32 %v2698, 0.0
        %v5069 = vmax.f32 %v4009, 0.0
        %v5070 = vmax.f32 %v4011, 0.0
        %v5071 = vmax.f32 %v2702, 0.0
        %v5072 = vmax.f32 %v2704, 0.0
        %v5073 = vmax.f32 %v4015, 0.0
        %v5074 = vmax.f32 %v4017, 0.0
        %v5075 = vmax.f32 %v2706, 0.0
        %v5076 = vmax.f32 %v2708, 0.0
        %v5077 = vmax.f32 %v4019, 0.0
        %v5078 = vmax.f32 %v4021, 0.0
        %v5079 = vmax.f32 %v2712, 0.0
        %v5080 = vmax.f32 %v2714, 0.0
        %v5081 = vmax.f32 %v4025, 0.0
        %v5082 = vmax.f32 %v4027, 0.0
        %v5083 = vmax.f32 %v2716, 0.0
        %v5084 = vmax.f32 %v2718, 0.0
        %v5085 = vmax.f32 %v4029, 0.0
        %v5086 = vmax.f32 %v4031, 0.0
        %v5087 = vmax.f32 %v2722, 0.0
        %v5088 = vmax.f32 %v2724, 0.0
        %v5089 = vmax.f32 %v4035, 0.0
        %v5090 = vmax.f32 %v4037, 0.0
        %v5091 = vmax.f32 %v2726, 0.0
        %v5092 = vmax.f32 %v2728, 0.0
        %v5093 = vmax.f32 %v4039, 0.0
        %v5094 = vmax.f32 %v4041, 0.0
        %v5095 = vmax.f32 %v2732, 0.0
        %v5096 = vmax.f32 %v2734, 0.0
        %v5097 = vmax.f32 %v4045, 0.0
        %v5098 = vmax.f32 %v4047, 0.0
        %v5099 = vmax.f32 %v2736, 0.0
        %v5100 = vmax.f32 %v2738, 0.0
        %v5101 = vmax.f32 %v4049, 0.0
        %v5102 = vmax.f32 %v4051, 0.0
        %v5103 = vmax.f32 %v2742, 0.0
        %v5104 = vmax.f32 %v2744, 0.0
        %v5105 = vmax.f32 %v4055, 0.0
        %v5106 = vmax.f32 %v4057, 0.0
        %v5107 = vmax.f32 %v2746, 0.0
        %v5108 = vmax.f32 %v2748, 0.0
        %v5109 = vmax.f32 %v4059, 0.0
        %v5110 = vmax.f32 %v4061, 0.0
        %v5111 = vmax.f32 %v2752, 0.0
        %v5112 = vmax.f32 %v2754, 0.0
        %v5113 = vmax.f32 %v4065, 0.0
        %v5114 = vmax.f32 %v4067, 0.0
        %v5115 = vmax.f32 %v2756, 0.0
        %v5116 = vmax.f32 %v2758, 0.0
        %v5117 = vmax.f32 %v4069, 0.0
        %v5118 = vmax.f32 %v4071, 0.0
        %v5119 = vmax.f32 %v2762, 0.0
        %v5120 = vmax.f32 %v2764, 0.0
        %v5121 = vmax.f32 %v4075, 0.0
        %v5122 = vmax.f32 %v4077, 0.0
        %v5123 = vmax.f32 %v2766, 0.0
        %v5124 = vmax.f32 %v2768, 0.0
        %v5125 = vmax.f32 %v4079, 0.0
        %v5126 = vmax.f32 %v4081, 0.0
        %v5127 = vmax.f32 %v2772, 0.0
        %v5128 = vmax.f32 %v2774, 0.0
        %v5129 = vmax.f32 %v4085, 0.0
        %v5130 = vmax.f32 %v4087, 0.0
        %v5131 = vmax.f32 %v2776, 0.0
        %v5132 = vmax.f32 %v2778, 0.0
        %v5133 = vmax.f32 %v4089, 0.0
        %v5134 = vmax.f32 %v4091, 0.0
        %v5135 = vmax.f32 %v2782, 0.0
        %v5136 = vmax.f32 %v2784, 0.0
        %v5137 = vmax.f32 %v4095, 0.0
        %v5138 = vmax.f32 %v4097, 0.0
        %v5139 = vmax.f32 %v2786, 0.0
        %v5140 = vmax.f32 %v2788, 0.0
        %v5141 = vmax.f32 %v4099, 0.0
        %v5142 = vmax.f32 %v4101, 0.0
        %v5143 = vmax.f32 %v2792, 0.0
        %v5144 = vmax.f32 %v2794, 0.0
        %v5145 = vmax.f32 %v4105, 0.0
        %v5146 = vmax.f32 %v4107, 0.0
        %v5147 = vmax.f32 %v2796, 0.0
        %v5148 = vmax.f32 %v2798, 0.0
        %v5149 = vmax.f32 %v4109, 0.0
        %v5150 = vmax.f32 %v4111, 0.0
        %v5151 = vmax.f32 %v2802, 0.0
        %v5152 = vmax.f32 %v2804, 0.0
        %v5153 = vmax.f32 %v4115, 0.0
        %v5154 = vmax.f32 %v4117, 0.0
        %v5155 = vmax.f32 %v2806, 0.0
        %v5156 = vmax.f32 %v2808, 0.0
        %v5157 = vmax.f32 %v4119, 0.0
        %v5158 = vmax.f32 %v4121, 0.0
        %v5159 = vmax.f32 %v2812, 0.0
        %v5160 = vmax.f32 %v2814, 0.0
        %v5161 = vmax.f32 %v4125, 0.0
        %v5162 = vmax.f32 %v4127, 0.0
        %v5163 = vmax.f32 %v2816, 0.0
        %v5164 = vmax.f32 %v2818, 0.0
        %v5165 = vmax.f32 %v4129, 0.0
        %v5166 = vmax.f32 %v4131, 0.0
        %v5167 = vmax.f32 %v2822, 0.0
        %v5168 = vmax.f32 %v2824, 0.0
        %v5169 = vmax.f32 %v4135, 0.0
        %v5170 = vmax.f32 %v4137, 0.0
        %v5171 = vmax.f32 %v2826, 0.0
        %v5172 = vmax.f32 %v2828, 0.0
        %v5173 = vmax.f32 %v4139, 0.0
        %v5174 = vmax.f32 %v4141, 0.0
        %v5175 = vmax.f32 %v2832, 0.0
        %v5176 = vmax.f32 %v2834, 0.0
        %v5177 = vmax.f32 %v4145, 0.0
        %v5178 = vmax.f32 %v4147, 0.0
        %v5179 = vmax.f32 %v2836, 0.0
        %v5180 = vmax.f32 %v2838, 0.0
        %v5181 = vmax.f32 %v4149, 0.0
        %v5182 = vmax.f32 %v4151, 0.0
        %v5183 = vmax.f32 %v2842, 0.0
        %v5184 = vmax.f32 %v2844, 0.0
        %v5185 = vmax.f32 %v4155, 0.0
        %v5186 = vmax.f32 %v4157, 0.0
        %v5187 = vmax.f32 %v2846, 0.0
        %v5188 = vmax.f32 %v2848, 0.0
        %v5189 = vmax.f32 %v4159, 0.0
        %v5190 = vmax.f32 %v4161, 0.0
        %v5191 = vmax.f32 %v2852, 0.0
        %v5192 = vmax.f32 %v2854, 0.0
        %v5193 = vmax.f32 %v4165, 0.0
        %v5194 = vmax.f32 %v4167, 0.0
        %v5195 = vmax.f32 %v2856, 0.0
        %v5196 = vmax.f32 %v2858, 0.0
        %v5197 = vmax.f32 %v4169, 0.0
        %v5198 = vmax.f32 %v4171, 0.0
        %v5199 = vmax.f32 %v2862, 0.0
        %v5200 = vmax.f32 %v2864, 0.0
        %v5201 = vmax.f32 %v4175, 0.0
        %v5202 = vmax.f32 %v4177, 0.0
        %v5203 = vmax.f32 %v2866, 0.0
        %v5204 = vmax.f32 %v2868, 0.0
        %v5205 = vmax.f32 %v4179, 0.0
        %v5206 = vmax.f32 %v4181, 0.0
        %v5207 = vlaneseq
        %v5208 = vshrl.u32 %v5207, 7
        %v5209 = vlaneseq
        %v5210 = vand.u32 %v5209, 127
        %v5211 = vadd.s32 %v5210, 128
        %v5212 = vadd.s32 %v5210, 256
        %v5213 = vadd.s32 %v5210, 384
        %v5214 = vadd.s32 %v5210, 512
        %v5215 = vadd.s32 %v5210, 640
        %v5216 = vadd.s32 %v5210, 768
        %v5217 = vadd.s32 %v5210, 896
        %v5218 = vadd.s32 %v5210, 1024
        %v5219 = vadd.s32 %v5210, 1152
        %v5220 = vadd.s32 %v5210, 1280
        %v5221 = vadd.s32 %v5210, 1408
        %v5222 = vadd.s32 %v5210, 1536
        %v5223 = vadd.s32 %v5210, 1664
        %v5224 = vadd.s32 %v5210, 1792
        %v5225 = vadd.s32 %v5210, 1920
        %v5226 = vmul.u32 %v5208, 256
        %vm5227 = vcmp.ge.s32.totalorder %v5210, %v5226
        %vm5228 = vcmp.ge.s32.totalorder %v5211, %v5226
        %vm5229 = vcmp.ge.s32.totalorder %v5212, %v5226
        %vm5230 = vcmp.ge.s32.totalorder %v5213, %v5226
        %vm5231 = vcmp.ge.s32.totalorder %v5214, %v5226
        %vm5232 = vcmp.ge.s32.totalorder %v5215, %v5226
        %vm5233 = vcmp.ge.s32.totalorder %v5216, %v5226
        %vm5234 = vcmp.ge.s32.totalorder %v5217, %v5226
        %vm5235 = vcmp.ge.s32.totalorder %v5218, %v5226
        %vm5236 = vcmp.ge.s32.totalorder %v5219, %v5226
        %vm5237 = vcmp.ge.s32.totalorder %v5220, %v5226
        %vm5238 = vcmp.ge.s32.totalorder %v5221, %v5226
        %vm5239 = vcmp.ge.s32.totalorder %v5222, %v5226
        %vm5240 = vcmp.ge.s32.totalorder %v5223, %v5226
        %vm5241 = vcmp.ge.s32.totalorder %v5224, %v5226
        %vm5242 = vcmp.ge.s32.totalorder %v5225, %v5226
        %v5243 = vadd.s32 %v5208, 1
        %v5244 = vmul.u32 %v5243, 256
        %vm5245 = vcmp.lt.s32.totalorder %v5210, %v5244
        %vm5246 = vcmp.lt.s32.totalorder %v5211, %v5244
        %vm5247 = vcmp.lt.s32.totalorder %v5212, %v5244
        %vm5248 = vcmp.lt.s32.totalorder %v5213, %v5244
        %vm5249 = vcmp.lt.s32.totalorder %v5214, %v5244
        %vm5250 = vcmp.lt.s32.totalorder %v5215, %v5244
        %vm5251 = vcmp.lt.s32.totalorder %v5216, %v5244
        %vm5252 = vcmp.lt.s32.totalorder %v5217, %v5244
        %vm5253 = vcmp.lt.s32.totalorder %v5218, %v5244
        %vm5254 = vcmp.lt.s32.totalorder %v5219, %v5244
        %vm5255 = vcmp.lt.s32.totalorder %v5220, %v5244
        %vm5256 = vcmp.lt.s32.totalorder %v5221, %v5244
        %vm5257 = vcmp.lt.s32.totalorder %v5222, %v5244
        %vm5258 = vcmp.lt.s32.totalorder %v5223, %v5244
        %vm5259 = vcmp.lt.s32.totalorder %v5224, %v5244
        %vm5260 = vcmp.lt.s32.totalorder %v5225, %v5244
        %vm5261 = vmand %vm5227, %vm5245
        %vm5262 = vmand %vm5228, %vm5246
        %vm5263 = vmand %vm5229, %vm5247
        %vm5264 = vmand %vm5230, %vm5248
        %vm5265 = vmand %vm5231, %vm5249
        %vm5266 = vmand %vm5232, %vm5250
        %vm5267 = vmand %vm5233, %vm5251
        %vm5268 = vmand %vm5234, %vm5252
        %vm5269 = vmand %vm5235, %vm5253
        %vm5270 = vmand %vm5236, %vm5254
        %vm5271 = vmand %vm5237, %vm5255
        %vm5272 = vmand %vm5238, %vm5256
        %vm5273 = vmand %vm5239, %vm5257
        %vm5274 = vmand %vm5240, %vm5258
        %vm5275 = vmand %vm5241, %vm5259
        %vm5276 = vmand %vm5242, %vm5260
        %v5277 = vsel %vm5261, 1, 0
        %v5278 = vsel %vm5262, 1, 0
        %v5279 = vsel %vm5263, 1, 0
        %v5280 = vsel %vm5264, 1, 0
        %v5281 = vsel %vm5265, 1, 0
        %v5282 = vsel %vm5266, 1, 0
        %v5283 = vsel %vm5267, 1, 0
        %v5284 = vsel %vm5268, 1, 0
        %v5285 = vsel %vm5269, 1, 0
        %v5286 = vsel %vm5270, 1, 0
        %v5287 = vsel %vm5271, 1, 0
        %v5288 = vsel %vm5272, 1, 0
        %v5289 = vsel %vm5273, 1, 0
        %v5290 = vsel %vm5274, 1, 0
        %v5291 = vsel %vm5275, 1, 0
        %v5292 = vsel %vm5276, 1, 0
        %v5293 = vcvt.s32.f32 %v5277
        %v5294 = vcvt.s32.f32 %v5278
        %v5295 = vcvt.s32.f32 %v5279
        %v5296 = vcvt.s32.f32 %v5280
        %v5297 = vcvt.s32.f32 %v5281
        %v5298 = vcvt.s32.f32 %v5282
        %v5299 = vcvt.s32.f32 %v5283
        %v5300 = vcvt.s32.f32 %v5284
        %v5301 = vcvt.s32.f32 %v5285
        %v5302 = vcvt.s32.f32 %v5286
        %v5303 = vcvt.s32.f32 %v5287
        %v5304 = vcvt.s32.f32 %v5288
        %v5305 = vcvt.s32.f32 %v5289
        %v5306 = vcvt.s32.f32 %v5290
        %v5307 = vcvt.s32.f32 %v5291
        %v5308 = vcvt.s32.f32 %v5292
        %v5309 = vmul.f32 %v5293, 0.00390625
        %v5310 = vmul.f32 %v5294, 0.00390625
        %v5311 = vmul.f32 %v5295, 0.00390625
        %v5312 = vmul.f32 %v5296, 0.00390625
        %v5313 = vmul.f32 %v5297, 0.00390625
        %v5314 = vmul.f32 %v5298, 0.00390625
        %v5315 = vmul.f32 %v5299, 0.00390625
        %v5316 = vmul.f32 %v5300, 0.00390625
        %v5317 = vmul.f32 %v5301, 0.00390625
        %v5318 = vmul.f32 %v5302, 0.00390625
        %v5319 = vmul.f32 %v5303, 0.00390625
        %v5320 = vmul.f32 %v5304, 0.00390625
        %v5321 = vmul.f32 %v5305, 0.00390625
        %v5322 = vmul.f32 %v5306, 0.00390625
        %v5323 = vmul.f32 %v5307, 0.00390625
        %v5324 = vmul.f32 %v5308, 0.00390625
        %5325 = vmatprep.subr.mxu0 %v4184
        %5326 = vmatpush1.msra.mxu0 %v4183
        %5327 = vmatprep.subr.mxu0 %v4188
        %5328 = vmatpush1.msra.mxu0 %v4187
        %5329 = vmatprep.subr.mxu0 %v4192
        %5330 = vmatpush1.msra.mxu0 %v4191
        %5331 = vmatprep.subr.mxu0 %v4196
        %5332 = vmatpush1.msra.mxu0 %v4195
        %5333 = vmatprep.subr.mxu0 %v4200
        %5334 = vmatpush1.msra.mxu0 %v4199
        %5335 = vmatprep.subr.mxu0 %v4204
        %5336 = vmatpush1.msra.mxu0 %v4203
        %5337 = vmatprep.subr.mxu0 %v4208
        %5338 = vmatpush1.msra.mxu0 %v4207
        %5339 = vmatprep.subr.mxu0 %v4212
        %5340 = vmatpush1.msra.mxu0 %v4211
        %5341 = vmatprep.subr.mxu0 %v4216
        %5342 = vmatpush1.msra.mxu0 %v4215
        %5343 = vmatprep.subr.mxu0 %v4220
        %5344 = vmatpush1.msra.mxu0 %v4219
        %5345 = vmatprep.subr.mxu0 %v4224
        %5346 = vmatpush1.msra.mxu0 %v4223
        %5347 = vmatprep.subr.mxu0 %v4228
        %5348 = vmatpush1.msra.mxu0 %v4227
        %5349 = vmatprep.subr.mxu0 %v4232
        %5350 = vmatpush1.msra.mxu0 %v4231
        %5351 = vmatprep.subr.mxu0 %v4236
        %5352 = vmatpush1.msra.mxu0 %v4235
        %5353 = vmatprep.subr.mxu0 %v4240
        %5354 = vmatpush1.msra.mxu0 %v4239
        %5355 = vmatprep.subr.mxu0 %v4244
        %5356 = vmatpush1.msra.mxu0 %v4243
        %5357 = vmatprep.subr.mxu0 %v4248
        %5358 = vmatpush1.msra.mxu0 %v4247
        %5359 = vmatprep.subr.mxu0 %v4252
        %5360 = vmatpush1.msra.mxu0 %v4251
        %5361 = vmatprep.subr.mxu0 %v4256
        %5362 = vmatpush1.msra.mxu0 %v4255
        %5363 = vmatprep.subr.mxu0 %v4260
        %5364 = vmatpush1.msra.mxu0 %v4259
        %5365 = vmatprep.subr.mxu0 %v4264
        %5366 = vmatpush1.msra.mxu0 %v4263
        %5367 = vmatprep.subr.mxu0 %v4268
        %5368 = vmatpush1.msra.mxu0 %v4267
        %5369 = vmatprep.subr.mxu0 %v4272
        %5370 = vmatpush1.msra.mxu0 %v4271
        %5371 = vmatprep.subr.mxu0 %v4276
        %5372 = vmatpush1.msra.mxu0 %v4275
        %5373 = vmatprep.subr.mxu0 %v4280
        %5374 = vmatpush1.msra.mxu0 %v4279
        %5375 = vmatprep.subr.mxu0 %v4284
        %5376 = vmatpush1.msra.mxu0 %v4283
        %5377 = vmatprep.subr.mxu0 %v4288
        %5378 = vmatpush1.msra.mxu0 %v4287
        %5379 = vmatprep.subr.mxu0 %v4292
        %5380 = vmatpush1.msra.mxu0 %v4291
        %5381 = vmatprep.subr.mxu0 %v4296
        %5382 = vmatpush1.msra.mxu0 %v4295
        %5383 = vmatprep.subr.mxu0 %v4300
        %5384 = vmatpush1.msra.mxu0 %v4299
        %5385 = vmatprep.subr.mxu0 %v4304
        %5386 = vmatpush1.msra.mxu0 %v4303
        %5387 = vmatprep.subr.mxu0 %v4308
        %5388 = vmatpush1.msra.mxu0 %v4307
        %5389 = vmatprep.mubr.f32.mxu0 %v5310
        %5390 = vmatmul.mubr.f32.gmra.mrb[0].mxu0 %v5309
        %v5391 = vpop.f32.mrb[0].mxu0
        %v5392 = vadd.f32 0.0, %v5391
        %v5393 = vpop.f32.mrb[0].mxu0
        %v5394 = vadd.f32 0.0, %v5393
        %5395 = vdwg.mxu0
        %5396 = vmatprep.subr.mxu0 %v4312
        %5397 = vmatpush1.msra.mxu0 %v4311
        %5398 = vmatprep.subr.mxu0 %v4316
        %5399 = vmatpush1.msra.mxu0 %v4315
        %5400 = vmatprep.subr.mxu0 %v4320
        %5401 = vmatpush1.msra.mxu0 %v4319
        %5402 = vmatprep.subr.mxu0 %v4324
        %5403 = vmatpush1.msra.mxu0 %v4323
        %5404 = vmatprep.subr.mxu0 %v4328
        %5405 = vmatpush1.msra.mxu0 %v4327
        %5406 = vmatprep.subr.mxu0 %v4332
        %5407 = vmatpush1.msra.mxu0 %v4331
        %5408 = vmatprep.subr.mxu0 %v4336
        %5409 = vmatpush1.msra.mxu0 %v4335
        %5410 = vmatprep.subr.mxu0 %v4340
        %5411 = vmatpush1.msra.mxu0 %v4339
        %5412 = vmatprep.subr.mxu0 %v4344
        %5413 = vmatpush1.msra.mxu0 %v4343
        %5414 = vmatprep.subr.mxu0 %v4348
        %5415 = vmatpush1.msra.mxu0 %v4347
        %5416 = vmatprep.subr.mxu0 %v4352
        %5417 = vmatpush1.msra.mxu0 %v4351
        %5418 = vmatprep.subr.mxu0 %v4356
        %5419 = vmatpush1.msra.mxu0 %v4355
        %5420 = vmatprep.subr.mxu0 %v4360
        %5421 = vmatpush1.msra.mxu0 %v4359
        %5422 = vmatprep.subr.mxu0 %v4364
        %5423 = vmatpush1.msra.mxu0 %v4363
        %5424 = vmatprep.subr.mxu0 %v4368
        %5425 = vmatpush1.msra.mxu0 %v4367
        %5426 = vmatprep.subr.mxu0 %v4372
        %5427 = vmatpush1.msra.mxu0 %v4371
        %5428 = vmatprep.subr.mxu0 %v4376
        %5429 = vmatpush1.msra.mxu0 %v4375
        %5430 = vmatprep.subr.mxu0 %v4380
        %5431 = vmatpush1.msra.mxu0 %v4379
        %5432 = vmatprep.subr.mxu0 %v4384
        %5433 = vmatpush1.msra.mxu0 %v4383
        %5434 = vmatprep.subr.mxu0 %v4388
        %5435 = vmatpush1.msra.mxu0 %v4387
        %5436 = vmatprep.subr.mxu0 %v4392
        %5437 = vmatpush1.msra.mxu0 %v4391
        %5438 = vmatprep.subr.mxu0 %v4396
        %5439 = vmatpush1.msra.mxu0 %v4395
        %5440 = vmatprep.subr.mxu0 %v4400
        %5441 = vmatpush1.msra.mxu0 %v4399
        %5442 = vmatprep.subr.mxu0 %v4404
        %5443 = vmatpush1.msra.mxu0 %v4403
        %5444 = vmatprep.subr.mxu0 %v4408
        %5445 = vmatpush1.msra.mxu0 %v4407
        %5446 = vmatprep.subr.mxu0 %v4412
        %5447 = vmatpush1.msra.mxu0 %v4411
        %5448 = vmatprep.subr.mxu0 %v4416
        %5449 = vmatpush1.msra.mxu0 %v4415
        %5450 = vmatprep.subr.mxu0 %v4420
        %5451 = vmatpush1.msra.mxu0 %v4419
        %5452 = vmatprep.subr.mxu0 %v4424
        %5453 = vmatpush1.msra.mxu0 %v4423
        %5454 = vmatprep.subr.mxu0 %v4428
        %5455 = vmatpush1.msra.mxu0 %v4427
        %5456 = vmatprep.subr.mxu0 %v4432
        %5457 = vmatpush1.msra.mxu0 %v4431
        %5458 = vmatprep.subr.mxu0 %v4436
        %5459 = vmatpush1.msra.mxu0 %v4435
        %5460 = vmatprep.mubr.f32.mxu0 %v5312
        %5461 = vmatmul.mubr.f32.gmra.mrb[0].mxu0 %v5311
        %v5462 = vpop.f32.mrb[0].mxu0
        %v5463 = vadd.f32 %v5392, %v5462
        %v5464 = vpop.f32.mrb[0].mxu0
        %v5465 = vadd.f32 %v5394, %v5464
        %5466 = vdwg.mxu0
        %5467 = vmatprep.subr.mxu0 %v4440
        %5468 = vmatpush1.msra.mxu0 %v4439
        %5469 = vmatprep.subr.mxu0 %v4444
        %5470 = vmatpush1.msra.mxu0 %v4443
        %5471 = vmatprep.subr.mxu0 %v4448
        %5472 = vmatpush1.msra.mxu0 %v4447
        %5473 = vmatprep.subr.mxu0 %v4452
        %5474 = vmatpush1.msra.mxu0 %v4451
        %5475 = vmatprep.subr.mxu0 %v4456
        %5476 = vmatpush1.msra.mxu0 %v4455
        %5477 = vmatprep.subr.mxu0 %v4460
        %5478 = vmatpush1.msra.mxu0 %v4459
        %5479 = vmatprep.subr.mxu0 %v4464
        %5480 = vmatpush1.msra.mxu0 %v4463
        %5481 = vmatprep.subr.mxu0 %v4468
        %5482 = vmatpush1.msra.mxu0 %v4467
        %5483 = vmatprep.subr.mxu0 %v4472
        %5484 = vmatpush1.msra.mxu0 %v4471
        %5485 = vmatprep.subr.mxu0 %v4476
        %5486 = vmatpush1.msra.mxu0 %v4475
        %5487 = vmatprep.subr.mxu0 %v4480
        %5488 = vmatpush1.msra.mxu0 %v4479
        %5489 = vmatprep.subr.mxu0 %v4484
        %5490 = vmatpush1.msra.mxu0 %v4483
        %5491 = vmatprep.subr.mxu0 %v4488
        %5492 = vmatpush1.msra.mxu0 %v4487
        %5493 = vmatprep.subr.mxu0 %v4492
        %5494 = vmatpush1.msra.mxu0 %v4491
        %5495 = vmatprep.subr.mxu0 %v4496
        %5496 = vmatpush1.msra.mxu0 %v4495
        %5497 = vmatprep.subr.mxu0 %v4500
        %5498 = vmatpush1.msra.mxu0 %v4499
        %5499 = vmatprep.subr.mxu0 %v4504
        %5500 = vmatpush1.msra.mxu0 %v4503
        %5501 = vmatprep.subr.mxu0 %v4508
        %5502 = vmatpush1.msra.mxu0 %v4507
        %5503 = vmatprep.subr.mxu0 %v4512
        %5504 = vmatpush1.msra.mxu0 %v4511
        %5505 = vmatprep.subr.mxu0 %v4516
        %5506 = vmatpush1.msra.mxu0 %v4515
        %5507 = vmatprep.subr.mxu0 %v4520
        %5508 = vmatpush1.msra.mxu0 %v4519
        %5509 = vmatprep.subr.mxu0 %v4524
        %5510 = vmatpush1.msra.mxu0 %v4523
        %5511 = vmatprep.subr.mxu0 %v4528
        %5512 = vmatpush1.msra.mxu0 %v4527
        %5513 = vmatprep.subr.mxu0 %v4532
        %5514 = vmatpush1.msra.mxu0 %v4531
        %5515 = vmatprep.subr.mxu0 %v4536
        %5516 = vmatpush1.msra.mxu0 %v4535
        %5517 = vmatprep.subr.mxu0 %v4540
        %5518 = vmatpush1.msra.mxu0 %v4539
        %5519 = vmatprep.subr.mxu0 %v4544
        %5520 = vmatpush1.msra.mxu0 %v4543
        %5521 = vmatprep.subr.mxu0 %v4548
        %5522 = vmatpush1.msra.mxu0 %v4547
        %5523 = vmatprep.subr.mxu0 %v4552
        %5524 = vmatpush1.msra.mxu0 %v4551
        %5525 = vmatprep.subr.mxu0 %v4556
        %5526 = vmatpush1.msra.mxu0 %v4555
        %5527 = vmatprep.subr.mxu0 %v4560
        %5528 = vmatpush1.msra.mxu0 %v4559
        %5529 = vmatprep.subr.mxu0 %v4564
        %5530 = vmatpush1.msra.mxu0 %v4563
        %5531 = vmatprep.mubr.f32.mxu0 %v5314
        %5532 = vmatmul.mubr.f32.gmra.mrb[0].mxu0 %v5313
        %v5533 = vpop.f32.mrb[0].mxu0
        %v5534 = vadd.f32 %v5463, %v5533
        %v5535 = vpop.f32.mrb[0].mxu0
        %v5536 = vadd.f32 %v5465, %v5535
        %5537 = vdwg.mxu0
        %5538 = vmatprep.subr.mxu0 %v4568
        %5539 = vmatpush1.msra.mxu0 %v4567
        %5540 = vmatprep.subr.mxu0 %v4572
        %5541 = vmatpush1.msra.mxu0 %v4571
        %5542 = vmatprep.subr.mxu0 %v4576
        %5543 = vmatpush1.msra.mxu0 %v4575
        %5544 = vmatprep.subr.mxu0 %v4580
        %5545 = vmatpush1.msra.mxu0 %v4579
        %5546 = vmatprep.subr.mxu0 %v4584
        %5547 = vmatpush1.msra.mxu0 %v4583
        %5548 = vmatprep.subr.mxu0 %v4588
        %5549 = vmatpush1.msra.mxu0 %v4587
        %5550 = vmatprep.subr.mxu0 %v4592
        %5551 = vmatpush1.msra.mxu0 %v4591
        %5552 = vmatprep.subr.mxu0 %v4596
        %5553 = vmatpush1.msra.mxu0 %v4595
        %5554 = vmatprep.subr.mxu0 %v4600
        %5555 = vmatpush1.msra.mxu0 %v4599
        %5556 = vmatprep.subr.mxu0 %v4604
        %5557 = vmatpush1.msra.mxu0 %v4603
        %5558 = vmatprep.subr.mxu0 %v4608
        %5559 = vmatpush1.msra.mxu0 %v4607
        %5560 = vmatprep.subr.mxu0 %v4612
        %5561 = vmatpush1.msra.mxu0 %v4611
        %5562 = vmatprep.subr.mxu0 %v4616
        %5563 = vmatpush1.msra.mxu0 %v4615
        %5564 = vmatprep.subr.mxu0 %v4620
        %5565 = vmatpush1.msra.mxu0 %v4619
        %5566 = vmatprep.subr.mxu0 %v4624
        %5567 = vmatpush1.msra.mxu0 %v4623
        %5568 = vmatprep.subr.mxu0 %v4628
        %5569 = vmatpush1.msra.mxu0 %v4627
        %5570 = vmatprep.subr.mxu0 %v4632
        %5571 = vmatpush1.msra.mxu0 %v4631
        %5572 = vmatprep.subr.mxu0 %v4636
        %5573 = vmatpush1.msra.mxu0 %v4635
        %5574 = vmatprep.subr.mxu0 %v4640
        %5575 = vmatpush1.msra.mxu0 %v4639
        %5576 = vmatprep.subr.mxu0 %v4644
        %5577 = vmatpush1.msra.mxu0 %v4643
        %5578 = vmatprep.subr.mxu0 %v4648
        %5579 = vmatpush1.msra.mxu0 %v4647
        %5580 = vmatprep.subr.mxu0 %v4652
        %5581 = vmatpush1.msra.mxu0 %v4651
        %5582 = vmatprep.subr.mxu0 %v4656
        %5583 = vmatpush1.msra.mxu0 %v4655
        %5584 = vmatprep.subr.mxu0 %v4660
        %5585 = vmatpush1.msra.mxu0 %v4659
        %5586 = vmatprep.subr.mxu0 %v4664
        %5587 = vmatpush1.msra.mxu0 %v4663
        %5588 = vmatprep.subr.mxu0 %v4668
        %5589 = vmatpush1.msra.mxu0 %v4667
        %5590 = vmatprep.subr.mxu0 %v4672
        %5591 = vmatpush1.msra.mxu0 %v4671
        %5592 = vmatprep.subr.mxu0 %v4676
        %5593 = vmatpush1.msra.mxu0 %v4675
        %5594 = vmatprep.subr.mxu0 %v4680
        %5595 = vmatpush1.msra.mxu0 %v4679
        %5596 = vmatprep.subr.mxu0 %v4684
        %5597 = vmatpush1.msra.mxu0 %v4683
        %5598 = vmatprep.subr.mxu0 %v4688
        %5599 = vmatpush1.msra.mxu0 %v4687
        %5600 = vmatprep.subr.mxu0 %v4692
        %5601 = vmatpush1.msra.mxu0 %v4691
        %5602 = vmatprep.mubr.f32.mxu0 %v5316
        %5603 = vmatmul.mubr.f32.gmra.mrb[0].mxu0 %v5315
        %v5604 = vpop.f32.mrb[0].mxu0
        %v5605 = vadd.f32 %v5534, %v5604
        %v5606 = vpop.f32.mrb[0].mxu0
        %v5607 = vadd.f32 %v5536, %v5606
        %5608 = vdwg.mxu0
        %5609 = vmatprep.subr.mxu0 %v4696
        %5610 = vmatpush1.msra.mxu0 %v4695
        %5611 = vmatprep.subr.mxu0 %v4700
        %5612 = vmatpush1.msra.mxu0 %v4699
        %5613 = vmatprep.subr.mxu0 %v4704
        %5614 = vmatpush1.msra.mxu0 %v4703
        %5615 = vmatprep.subr.mxu0 %v4708
        %5616 = vmatpush1.msra.mxu0 %v4707
        %5617 = vmatprep.subr.mxu0 %v4712
        %5618 = vmatpush1.msra.mxu0 %v4711
        %5619 = vmatprep.subr.mxu0 %v4716
        %5620 = vmatpush1.msra.mxu0 %v4715
        %5621 = vmatprep.subr.mxu0 %v4720
        %5622 = vmatpush1.msra.mxu0 %v4719
        %5623 = vmatprep.subr.mxu0 %v4724
        %5624 = vmatpush1.msra.mxu0 %v4723
        %5625 = vmatprep.subr.mxu0 %v4728
        %5626 = vmatpush1.msra.mxu0 %v4727
        %5627 = vmatprep.subr.mxu0 %v4732
        %5628 = vmatpush1.msra.mxu0 %v4731
        %5629 = vmatprep.subr.mxu0 %v4736
        %5630 = vmatpush1.msra.mxu0 %v4735
        %5631 = vmatprep.subr.mxu0 %v4740
        %5632 = vmatpush1.msra.mxu0 %v4739
        %5633 = vmatprep.subr.mxu0 %v4744
        %5634 = vmatpush1.msra.mxu0 %v4743
        %5635 = vmatprep.subr.mxu0 %v4748
        %5636 = vmatpush1.msra.mxu0 %v4747
        %5637 = vmatprep.subr.mxu0 %v4752
        %5638 = vmatpush1.msra.mxu0 %v4751
        %5639 = vmatprep.subr.mxu0 %v4756
        %5640 = vmatpush1.msra.mxu0 %v4755
        %5641 = vmatprep.subr.mxu0 %v4760
        %5642 = vmatpush1.msra.mxu0 %v4759
        %5643 = vmatprep.subr.mxu0 %v4764
        %5644 = vmatpush1.msra.mxu0 %v4763
        %5645 = vmatprep.subr.mxu0 %v4768
        %5646 = vmatpush1.msra.mxu0 %v4767
        %5647 = vmatprep.subr.mxu0 %v4772
        %5648 = vmatpush1.msra.mxu0 %v4771
        %5649 = vmatprep.subr.mxu0 %v4776
        %5650 = vmatpush1.msra.mxu0 %v4775
        %5651 = vmatprep.subr.mxu0 %v4780
        %5652 = vmatpush1.msra.mxu0 %v4779
        %5653 = vmatprep.subr.mxu0 %v4784
        %5654 = vmatpush1.msra.mxu0 %v4783
        %5655 = vmatprep.subr.mxu0 %v4788
        %5656 = vmatpush1.msra.mxu0 %v4787
        %5657 = vmatprep.subr.mxu0 %v4792
        %5658 = vmatpush1.msra.mxu0 %v4791
        %5659 = vmatprep.subr.mxu0 %v4796
        %5660 = vmatpush1.msra.mxu0 %v4795
        %5661 = vmatprep.subr.mxu0 %v4800
        %5662 = vmatpush1.msra.mxu0 %v4799
        %5663 = vmatprep.subr.mxu0 %v4804
        %5664 = vmatpush1.msra.mxu0 %v4803
        %5665 = vmatprep.subr.mxu0 %v4808
        %5666 = vmatpush1.msra.mxu0 %v4807
        %5667 = vmatprep.subr.mxu0 %v4812
        %5668 = vmatpush1.msra.mxu0 %v4811
        %5669 = vmatprep.subr.mxu0 %v4816
        %5670 = vmatpush1.msra.mxu0 %v4815
        %5671 = vmatprep.subr.mxu0 %v4820
        %5672 = vmatpush1.msra.mxu0 %v4819
        %5673 = vmatprep.mubr.f32.mxu0 %v5318
        %5674 = vmatmul.mubr.f32.gmra.mrb[0].mxu0 %v5317
        %v5675 = vpop.f32.mrb[0].mxu0
        %v5676 = vadd.f32 %v5605, %v5675
        %v5677 = vpop.f32.mrb[0].mxu0
        %v5678 = vadd.f32 %v5607, %v5677
        %5679 = vdwg.mxu0
        %5680 = vmatprep.subr.mxu0 %v4824
        %5681 = vmatpush1.msra.mxu0 %v4823
        %5682 = vmatprep.subr.mxu0 %v4828
        %5683 = vmatpush1.msra.mxu0 %v4827
        %5684 = vmatprep.subr.mxu0 %v4832
        %5685 = vmatpush1.msra.mxu0 %v4831
        %5686 = vmatprep.subr.mxu0 %v4836
        %5687 = vmatpush1.msra.mxu0 %v4835
        %5688 = vmatprep.subr.mxu0 %v4840
        %5689 = vmatpush1.msra.mxu0 %v4839
        %5690 = vmatprep.subr.mxu0 %v4844
        %5691 = vmatpush1.msra.mxu0 %v4843
        %5692 = vmatprep.subr.mxu0 %v4848
        %5693 = vmatpush1.msra.mxu0 %v4847
        %5694 = vmatprep.subr.mxu0 %v4852
        %5695 = vmatpush1.msra.mxu0 %v4851
        %5696 = vmatprep.subr.mxu0 %v4856
        %5697 = vmatpush1.msra.mxu0 %v4855
        %5698 = vmatprep.subr.mxu0 %v4860
        %5699 = vmatpush1.msra.mxu0 %v4859
        %5700 = vmatprep.subr.mxu0 %v4864
        %5701 = vmatpush1.msra.mxu0 %v4863
        %5702 = vmatprep.subr.mxu0 %v4868
        %5703 = vmatpush1.msra.mxu0 %v4867
        %5704 = vmatprep.subr.mxu0 %v4872
        %5705 = vmatpush1.msra.mxu0 %v4871
        %5706 = vmatprep.subr.mxu0 %v4876
        %5707 = vmatpush1.msra.mxu0 %v4875
        %5708 = vmatprep.subr.mxu0 %v4880
        %5709 = vmatpush1.msra.mxu0 %v4879
        %5710 = vmatprep.subr.mxu0 %v4884
        %5711 = vmatpush1.msra.mxu0 %v4883
        %5712 = vmatprep.subr.mxu0 %v4888
        %5713 = vmatpush1.msra.mxu0 %v4887
        %5714 = vmatprep.subr.mxu0 %v4892
        %5715 = vmatpush1.msra.mxu0 %v4891
        %5716 = vmatprep.subr.mxu0 %v4896
        %5717 = vmatpush1.msra.mxu0 %v4895
        %5718 = vmatprep.subr.mxu0 %v4900
        %5719 = vmatpush1.msra.mxu0 %v4899
        %5720 = vmatprep.subr.mxu0 %v4904
        %5721 = vmatpush1.msra.mxu0 %v4903
        %5722 = vmatprep.subr.mxu0 %v4908
        %5723 = vmatpush1.msra.mxu0 %v4907
        %5724 = vmatprep.subr.mxu0 %v4912
        %5725 = vmatpush1.msra.mxu0 %v4911
        %5726 = vmatprep.subr.mxu0 %v4916
        %5727 = vmatpush1.msra.mxu0 %v4915
        %5728 = vmatprep.subr.mxu0 %v4920
        %5729 = vmatpush1.msra.mxu0 %v4919
        %5730 = vmatprep.subr.mxu0 %v4924
        %5731 = vmatpush1.msra.mxu0 %v4923
        %5732 = vmatprep.subr.mxu0 %v4928
        %5733 = vmatpush1.msra.mxu0 %v4927
        %5734 = vmatprep.subr.mxu0 %v4932
        %5735 = vmatpush1.msra.mxu0 %v4931
        %5736 = vmatprep.subr.mxu0 %v4936
        %5737 = vmatpush1.msra.mxu0 %v4935
        %5738 = vmatprep.subr.mxu0 %v4940
        %5739 = vmatpush1.msra.mxu0 %v4939
        %5740 = vmatprep.subr.mxu0 %v4944
        %5741 = vmatpush1.msra.mxu0 %v4943
        %5742 = vmatprep.subr.mxu0 %v4948
        %5743 = vmatpush1.msra.mxu0 %v4947
        %5744 = vmatprep.mubr.f32.mxu0 %v5320
        %5745 = vmatmul.mubr.f32.gmra.mrb[0].mxu0 %v5319
        %v5746 = vpop.f32.mrb[0].mxu0
        %v5747 = vadd.f32 %v5676, %v5746
        %v5748 = vpop.f32.mrb[0].mxu0
        %v5749 = vadd.f32 %v5678, %v5748
        %5750 = vdwg.mxu0
        %5751 = vmatprep.subr.mxu0 %v4952
        %5752 = vmatpush1.msra.mxu0 %v4951
        %5753 = vmatprep.subr.mxu0 %v4956
        %5754 = vmatpush1.msra.mxu0 %v4955
        %5755 = vmatprep.subr.mxu0 %v4960
        %5756 = vmatpush1.msra.mxu0 %v4959
        %5757 = vmatprep.subr.mxu0 %v4964
        %5758 = vmatpush1.msra.mxu0 %v4963
        %5759 = vmatprep.subr.mxu0 %v4968
        %5760 = vmatpush1.msra.mxu0 %v4967
        %5761 = vmatprep.subr.mxu0 %v4972
        %5762 = vmatpush1.msra.mxu0 %v4971
        %5763 = vmatprep.subr.mxu0 %v4976
        %5764 = vmatpush1.msra.mxu0 %v4975
        %5765 = vmatprep.subr.mxu0 %v4980
        %5766 = vmatpush1.msra.mxu0 %v4979
        %5767 = vmatprep.subr.mxu0 %v4984
        %5768 = vmatpush1.msra.mxu0 %v4983
        %5769 = vmatprep.subr.mxu0 %v4988
        %5770 = vmatpush1.msra.mxu0 %v4987
        %5771 = vmatprep.subr.mxu0 %v4992
        %5772 = vmatpush1.msra.mxu0 %v4991
        %5773 = vmatprep.subr.mxu0 %v4996
        %5774 = vmatpush1.msra.mxu0 %v4995
        %5775 = vmatprep.subr.mxu0 %v5000
        %5776 = vmatpush1.msra.mxu0 %v4999
        %5777 = vmatprep.subr.mxu0 %v5004
        %5778 = vmatpush1.msra.mxu0 %v5003
        %5779 = vmatprep.subr.mxu0 %v5008
        %5780 = vmatpush1.msra.mxu0 %v5007
        %5781 = vmatprep.subr.mxu0 %v5012
        %5782 = vmatpush1.msra.mxu0 %v5011
        %5783 = vmatprep.subr.mxu0 %v5016
        %5784 = vmatpush1.msra.mxu0 %v5015
        %5785 = vmatprep.subr.mxu0 %v5020
        %5786 = vmatpush1.msra.mxu0 %v5019
        %5787 = vmatprep.subr.mxu0 %v5024
        %5788 = vmatpush1.msra.mxu0 %v5023
        %5789 = vmatprep.subr.mxu0 %v5028
        %5790 = vmatpush1.msra.mxu0 %v5027
        %5791 = vmatprep.subr.mxu0 %v5032
        %5792 = vmatpush1.msra.mxu0 %v5031
        %5793 = vmatprep.subr.mxu0 %v5036
        %5794 = vmatpush1.msra.mxu0 %v5035
        %5795 = vmatprep.subr.mxu0 %v5040
        %5796 = vmatpush1.msra.mxu0 %v5039
        %5797 = vmatprep.subr.mxu0 %v5044
        %5798 = vmatpush1.msra.mxu0 %v5043
        %5799 = vmatprep.subr.mxu0 %v5048
        %5800 = vmatpush1.msra.mxu0 %v5047
        %5801 = vmatprep.subr.mxu0 %v5052
        %5802 = vmatpush1.msra.mxu0 %v5051
        %5803 = vmatprep.subr.mxu0 %v5056
        %5804 = vmatpush1.msra.mxu0 %v5055
        %5805 = vmatprep.subr.mxu0 %v5060
        %5806 = vmatpush1.msra.mxu0 %v5059
        %5807 = vmatprep.subr.mxu0 %v5064
        %5808 = vmatpush1.msra.mxu0 %v5063
        %5809 = vmatprep.subr.mxu0 %v5068
        %5810 = vmatpush1.msra.mxu0 %v5067
        %5811 = vmatprep.subr.mxu0 %v5072
        %5812 = vmatpush1.msra.mxu0 %v5071
        %5813 = vmatprep.subr.mxu0 %v5076
        %5814 = vmatpush1.msra.mxu0 %v5075
        %5815 = vmatprep.mubr.f32.mxu0 %v5322
        %5816 = vmatmul.mubr.f32.gmra.mrb[0].mxu0 %v5321
        %v5817 = vpop.f32.mrb[0].mxu0
        %v5818 = vadd.f32 %v5747, %v5817
        %v5819 = vpop.f32.mrb[0].mxu0
        %v5820 = vadd.f32 %v5749, %v5819
        %5821 = vdwg.mxu0
        %5822 = vmatprep.subr.mxu0 %v5080
        %5823 = vmatpush1.msra.mxu0 %v5079
        %5824 = vmatprep.subr.mxu0 %v5084
        %5825 = vmatpush1.msra.mxu0 %v5083
        %5826 = vmatprep.subr.mxu0 %v5088
        %5827 = vmatpush1.msra.mxu0 %v5087
        %5828 = vmatprep.subr.mxu0 %v5092
        %5829 = vmatpush1.msra.mxu0 %v5091
        %5830 = vmatprep.subr.mxu0 %v5096
        %5831 = vmatpush1.msra.mxu0 %v5095
        %5832 = vmatprep.subr.mxu0 %v5100
        %5833 = vmatpush1.msra.mxu0 %v5099
        %5834 = vmatprep.subr.mxu0 %v5104
        %5835 = vmatpush1.msra.mxu0 %v5103
        %5836 = vmatprep.subr.mxu0 %v5108
        %5837 = vmatpush1.msra.mxu0 %v5107
        %5838 = vmatprep.subr.mxu0 %v5112
        %5839 = vmatpush1.msra.mxu0 %v5111
        %5840 = vmatprep.subr.mxu0 %v5116
        %5841 = vmatpush1.msra.mxu0 %v5115
        %5842 = vmatprep.subr.mxu0 %v5120
        %5843 = vmatpush1.msra.mxu0 %v5119
        %5844 = vmatprep.subr.mxu0 %v5124
        %5845 = vmatpush1.msra.mxu0 %v5123
        %5846 = vmatprep.subr.mxu0 %v5128
        %5847 = vmatpush1.msra.mxu0 %v5127
        %5848 = vmatprep.subr.mxu0 %v5132
        %5849 = vmatpush1.msra.mxu0 %v5131
        %5850 = vmatprep.subr.mxu0 %v5136
        %5851 = vmatpush1.msra.mxu0 %v5135
        %5852 = vmatprep.subr.mxu0 %v5140
        %5853 = vmatpush1.msra.mxu0 %v5139
        %5854 = vmatprep.subr.mxu0 %v5144
        %5855 = vmatpush1.msra.mxu0 %v5143
        %5856 = vmatprep.subr.mxu0 %v5148
        %5857 = vmatpush1.msra.mxu0 %v5147
        %5858 = vmatprep.subr.mxu0 %v5152
        %5859 = vmatpush1.msra.mxu0 %v5151
        %5860 = vmatprep.subr.mxu0 %v5156
        %5861 = vmatpush1.msra.mxu0 %v5155
        %5862 = vmatprep.subr.mxu0 %v5160
        %5863 = vmatpush1.msra.mxu0 %v5159
        %5864 = vmatprep.subr.mxu0 %v5164
        %5865 = vmatpush1.msra.mxu0 %v5163
        %5866 = vmatprep.subr.mxu0 %v5168
        %5867 = vmatpush1.msra.mxu0 %v5167
        %5868 = vmatprep.subr.mxu0 %v5172
        %5869 = vmatpush1.msra.mxu0 %v5171
        %5870 = vmatprep.subr.mxu0 %v5176
        %5871 = vmatpush1.msra.mxu0 %v5175
        %5872 = vmatprep.subr.mxu0 %v5180
        %5873 = vmatpush1.msra.mxu0 %v5179
        %5874 = vmatprep.subr.mxu0 %v5184
        %5875 = vmatpush1.msra.mxu0 %v5183
        %5876 = vmatprep.subr.mxu0 %v5188
        %5877 = vmatpush1.msra.mxu0 %v5187
        %5878 = vmatprep.subr.mxu0 %v5192
        %5879 = vmatpush1.msra.mxu0 %v5191
        %5880 = vmatprep.subr.mxu0 %v5196
        %5881 = vmatpush1.msra.mxu0 %v5195
        %5882 = vmatprep.subr.mxu0 %v5200
        %5883 = vmatpush1.msra.mxu0 %v5199
        %5884 = vmatprep.subr.mxu0 %v5204
        %5885 = vmatpush1.msra.mxu0 %v5203
        %5886 = vmatprep.mubr.f32.mxu0 %v5324
        %5887 = vmatmul.mubr.f32.gmra.mrb[0].mxu0 %v5323
        %v5888 = vpop.f32.mrb[0].mxu0
        %v5889 = vadd.f32 %v5818, %v5888
        %v5890 = vpop.f32.mrb[0].mxu0
        %v5891 = vadd.f32 %v5820, %v5890
        %5892 = vdwg.mxu0
        %5893 = vmatprep.subr.mxu0 %v4186
        %5894 = vmatpush1.msra.mxu0 %v4185
        %5895 = vmatprep.subr.mxu0 %v4190
        %5896 = vmatpush1.msra.mxu0 %v4189
        %5897 = vmatprep.subr.mxu0 %v4194
        %5898 = vmatpush1.msra.mxu0 %v4193
        %5899 = vmatprep.subr.mxu0 %v4198
        %5900 = vmatpush1.msra.mxu0 %v4197
        %5901 = vmatprep.subr.mxu0 %v4202
        %5902 = vmatpush1.msra.mxu0 %v4201
        %5903 = vmatprep.subr.mxu0 %v4206
        %5904 = vmatpush1.msra.mxu0 %v4205
        %5905 = vmatprep.subr.mxu0 %v4210
        %5906 = vmatpush1.msra.mxu0 %v4209
        %5907 = vmatprep.subr.mxu0 %v4214
        %5908 = vmatpush1.msra.mxu0 %v4213
        %5909 = vmatprep.subr.mxu0 %v4218
        %5910 = vmatpush1.msra.mxu0 %v4217
        %5911 = vmatprep.subr.mxu0 %v4222
        %5912 = vmatpush1.msra.mxu0 %v4221
        %5913 = vmatprep.subr.mxu0 %v4226
        %5914 = vmatpush1.msra.mxu0 %v4225
        %5915 = vmatprep.subr.mxu0 %v4230
        %5916 = vmatpush1.msra.mxu0 %v4229
        %5917 = vmatprep.subr.mxu0 %v4234
        %5918 = vmatpush1.msra.mxu0 %v4233
        %5919 = vmatprep.subr.mxu0 %v4238
        %5920 = vmatpush1.msra.mxu0 %v4237
        %5921 = vmatprep.subr.mxu0 %v4242
        %5922 = vmatpush1.msra.mxu0 %v4241
        %5923 = vmatprep.subr.mxu0 %v4246
        %5924 = vmatpush1.msra.mxu0 %v4245
        %5925 = vmatprep.subr.mxu0 %v4250
        %5926 = vmatpush1.msra.mxu0 %v4249
        %5927 = vmatprep.subr.mxu0 %v4254
        %5928 = vmatpush1.msra.mxu0 %v4253
        %5929 = vmatprep.subr.mxu0 %v4258
        %5930 = vmatpush1.msra.mxu0 %v4257
        %5931 = vmatprep.subr.mxu0 %v4262
        %5932 = vmatpush1.msra.mxu0 %v4261
        %5933 = vmatprep.subr.mxu0 %v4266
        %5934 = vmatpush1.msra.mxu0 %v4265
        %5935 = vmatprep.subr.mxu0 %v4270
        %5936 = vmatpush1.msra.mxu0 %v4269
        %5937 = vmatprep.subr.mxu0 %v4274
        %5938 = vmatpush1.msra.mxu0 %v4273
        %5939 = vmatprep.subr.mxu0 %v4278
        %5940 = vmatpush1.msra.mxu0 %v4277
        %5941 = vmatprep.subr.mxu0 %v4282
        %5942 = vmatpush1.msra.mxu0 %v4281
        %5943 = vmatprep.subr.mxu0 %v4286
        %5944 = vmatpush1.msra.mxu0 %v4285
        %5945 = vmatprep.subr.mxu0 %v4290
        %5946 = vmatpush1.msra.mxu0 %v4289
        %5947 = vmatprep.subr.mxu0 %v4294
        %5948 = vmatpush1.msra.mxu0 %v4293
        %5949 = vmatprep.subr.mxu0 %v4298
        %5950 = vmatpush1.msra.mxu0 %v4297
        %5951 = vmatprep.subr.mxu0 %v4302
        %5952 = vmatpush1.msra.mxu0 %v4301
        %5953 = vmatprep.subr.mxu0 %v4306
        %5954 = vmatpush1.msra.mxu0 %v4305
        %5955 = vmatprep.subr.mxu0 %v4310
        %5956 = vmatpush1.msra.mxu0 %v4309
        %5957 = vmatprep.mubr.f32.mxu0 %v5310
        %5958 = vmatmul.mubr.f32.gmra.mrb[0].mxu0 %v5309
        %v5959 = vpop.f32.mrb[0].mxu0
        %v5960 = vadd.f32 0.0, %v5959
        %v5961 = vpop.f32.mrb[0].mxu0
        %v5962 = vadd.f32 0.0, %v5961
        %5963 = vdwg.mxu0
        %5964 = vmatprep.subr.mxu0 %v4314
        %5965 = vmatpush1.msra.mxu0 %v4313
        %5966 = vmatprep.subr.mxu0 %v4318
        %5967 = vmatpush1.msra.mxu0 %v4317
        %5968 = vmatprep.subr.mxu0 %v4322
        %5969 = vmatpush1.msra.mxu0 %v4321
        %5970 = vmatprep.subr.mxu0 %v4326
        %5971 = vmatpush1.msra.mxu0 %v4325
        %5972 = vmatprep.subr.mxu0 %v4330
        %5973 = vmatpush1.msra.mxu0 %v4329
        %5974 = vmatprep.subr.mxu0 %v4334
        %5975 = vmatpush1.msra.mxu0 %v4333
        %5976 = vmatprep.subr.mxu0 %v4338
        %5977 = vmatpush1.msra.mxu0 %v4337
        %5978 = vmatprep.subr.mxu0 %v4342
        %5979 = vmatpush1.msra.mxu0 %v4341
        %5980 = vmatprep.subr.mxu0 %v4346
        %5981 = vmatpush1.msra.mxu0 %v4345
        %5982 = vmatprep.subr.mxu0 %v4350
        %5983 = vmatpush1.msra.mxu0 %v4349
        %5984 = vmatprep.subr.mxu0 %v4354
        %5985 = vmatpush1.msra.mxu0 %v4353
        %5986 = vmatprep.subr.mxu0 %v4358
        %5987 = vmatpush1.msra.mxu0 %v4357
        %5988 = vmatprep.subr.mxu0 %v4362
        %5989 = vmatpush1.msra.mxu0 %v4361
        %5990 = vmatprep.subr.mxu0 %v4366
        %5991 = vmatpush1.msra.mxu0 %v4365
        %5992 = vmatprep.subr.mxu0 %v4370
        %5993 = vmatpush1.msra.mxu0 %v4369
        %5994 = vmatprep.subr.mxu0 %v4374
        %5995 = vmatpush1.msra.mxu0 %v4373
        %5996 = vmatprep.subr.mxu0 %v4378
        %5997 = vmatpush1.msra.mxu0 %v4377
        %5998 = vmatprep.subr.mxu0 %v4382
        %5999 = vmatpush1.msra.mxu0 %v4381
        %6000 = vmatprep.subr.mxu0 %v4386
        %6001 = vmatpush1.msra.mxu0 %v4385
        %6002 = vmatprep.subr.mxu0 %v4390
        %6003 = vmatpush1.msra.mxu0 %v4389
        %6004 = vmatprep.subr.mxu0 %v4394
        %6005 = vmatpush1.msra.mxu0 %v4393
        %6006 = vmatprep.subr.mxu0 %v4398
        %6007 = vmatpush1.msra.mxu0 %v4397
        %6008 = vmatprep.subr.mxu0 %v4402
        %6009 = vmatpush1.msra.mxu0 %v4401
        %6010 = vmatprep.subr.mxu0 %v4406
        %6011 = vmatpush1.msra.mxu0 %v4405
        %6012 = vmatprep.subr.mxu0 %v4410
        %6013 = vmatpush1.msra.mxu0 %v4409
        %6014 = vmatprep.subr.mxu0 %v4414
        %6015 = vmatpush1.msra.mxu0 %v4413
        %6016 = vmatprep.subr.mxu0 %v4418
        %6017 = vmatpush1.msra.mxu0 %v4417
        %6018 = vmatprep.subr.mxu0 %v4422
        %6019 = vmatpush1.msra.mxu0 %v4421
        %6020 = vmatprep.subr.mxu0 %v4426
        %6021 = vmatpush1.msra.mxu0 %v4425
        %6022 = vmatprep.subr.mxu0 %v4430
        %6023 = vmatpush1.msra.mxu0 %v4429
        %6024 = vmatprep.subr.mxu0 %v4434
        %6025 = vmatpush1.msra.mxu0 %v4433
        %6026 = vmatprep.subr.mxu0 %v4438
        %6027 = vmatpush1.msra.mxu0 %v4437
        %6028 = vmatprep.mubr.f32.mxu0 %v5312
        %6029 = vmatmul.mubr.f32.gmra.mrb[0].mxu0 %v5311
        %v6030 = vpop.f32.mrb[0].mxu0
        %v6031 = vadd.f32 %v5960, %v6030
        %v6032 = vpop.f32.mrb[0].mxu0
        %v6033 = vadd.f32 %v5962, %v6032
        %6034 = vdwg.mxu0
        %6035 = vmatprep.subr.mxu0 %v4442
        %6036 = vmatpush1.msra.mxu0 %v4441
        %6037 = vmatprep.subr.mxu0 %v4446
        %6038 = vmatpush1.msra.mxu0 %v4445
        %6039 = vmatprep.subr.mxu0 %v4450
        %6040 = vmatpush1.msra.mxu0 %v4449
        %6041 = vmatprep.subr.mxu0 %v4454
        %6042 = vmatpush1.msra.mxu0 %v4453
        %6043 = vmatprep.subr.mxu0 %v4458
        %6044 = vmatpush1.msra.mxu0 %v4457
        %6045 = vmatprep.subr.mxu0 %v4462
        %6046 = vmatpush1.msra.mxu0 %v4461
        %6047 = vmatprep.subr.mxu0 %v4466
        %6048 = vmatpush1.msra.mxu0 %v4465
        %6049 = vmatprep.subr.mxu0 %v4470
        %6050 = vmatpush1.msra.mxu0 %v4469
        %6051 = vmatprep.subr.mxu0 %v4474
        %6052 = vmatpush1.msra.mxu0 %v4473
        %6053 = vmatprep.subr.mxu0 %v4478
        %6054 = vmatpush1.msra.mxu0 %v4477
        %6055 = vmatprep.subr.mxu0 %v4482
        %6056 = vmatpush1.msra.mxu0 %v4481
        %6057 = vmatprep.subr.mxu0 %v4486
        %6058 = vmatpush1.msra.mxu0 %v4485
        %6059 = vmatprep.subr.mxu0 %v4490
        %6060 = vmatpush1.msra.mxu0 %v4489
        %6061 = vmatprep.subr.mxu0 %v4494
        %6062 = vmatpush1.msra.mxu0 %v4493
        %6063 = vmatprep.subr.mxu0 %v4498
        %6064 = vmatpush1.msra.mxu0 %v4497
        %6065 = vmatprep.subr.mxu0 %v4502
        %6066 = vmatpush1.msra.mxu0 %v4501
        %6067 = vmatprep.subr.mxu0 %v4506
        %6068 = vmatpush1.msra.mxu0 %v4505
        %6069 = vmatprep.subr.mxu0 %v4510
        %6070 = vmatpush1.msra.mxu0 %v4509
        %6071 = vmatprep.subr.mxu0 %v4514
        %6072 = vmatpush1.msra.mxu0 %v4513
        %6073 = vmatprep.subr.mxu0 %v4518
        %6074 = vmatpush1.msra.mxu0 %v4517
        %6075 = vmatprep.subr.mxu0 %v4522
        %6076 = vmatpush1.msra.mxu0 %v4521
        %6077 = vmatprep.subr.mxu0 %v4526
        %6078 = vmatpush1.msra.mxu0 %v4525
        %6079 = vmatprep.subr.mxu0 %v4530
        %6080 = vmatpush1.msra.mxu0 %v4529
        %6081 = vmatprep.subr.mxu0 %v4534
        %6082 = vmatpush1.msra.mxu0 %v4533
        %6083 = vmatprep.subr.mxu0 %v4538
        %6084 = vmatpush1.msra.mxu0 %v4537
        %6085 = vmatprep.subr.mxu0 %v4542
        %6086 = vmatpush1.msra.mxu0 %v4541
        %6087 = vmatprep.subr.mxu0 %v4546
        %6088 = vmatpush1.msra.mxu0 %v4545
        %6089 = vmatprep.subr.mxu0 %v4550
        %6090 = vmatpush1.msra.mxu0 %v4549
        %6091 = vmatprep.subr.mxu0 %v4554
        %6092 = vmatpush1.msra.mxu0 %v4553
        %6093 = vmatprep.subr.mxu0 %v4558
        %6094 = vmatpush1.msra.mxu0 %v4557
        %6095 = vmatprep.subr.mxu0 %v4562
        %6096 = vmatpush1.msra.mxu0 %v4561
        %6097 = vmatprep.subr.mxu0 %v4566
        %6098 = vmatpush1.msra.mxu0 %v4565
        %6099 = vmatprep.mubr.f32.mxu0 %v5314
        %6100 = vmatmul.mubr.f32.gmra.mrb[0].mxu0 %v5313
        %v6101 = vpop.f32.mrb[0].mxu0
        %v6102 = vadd.f32 %v6031, %v6101
        %v6103 = vpop.f32.mrb[0].mxu0
        %v6104 = vadd.f32 %v6033, %v6103
        %6105 = vdwg.mxu0
        %6106 = vmatprep.subr.mxu0 %v4570
        %6107 = vmatpush1.msra.mxu0 %v4569
        %6108 = vmatprep.subr.mxu0 %v4574
        %6109 = vmatpush1.msra.mxu0 %v4573
        %6110 = vmatprep.subr.mxu0 %v4578
        %6111 = vmatpush1.msra.mxu0 %v4577
        %6112 = vmatprep.subr.mxu0 %v4582
        %6113 = vmatpush1.msra.mxu0 %v4581
        %6114 = vmatprep.subr.mxu0 %v4586
        %6115 = vmatpush1.msra.mxu0 %v4585
        %6116 = vmatprep.subr.mxu0 %v4590
        %6117 = vmatpush1.msra.mxu0 %v4589
        %6118 = vmatprep.subr.mxu0 %v4594
        %6119 = vmatpush1.msra.mxu0 %v4593
        %6120 = vmatprep.subr.mxu0 %v4598
        %6121 = vmatpush1.msra.mxu0 %v4597
        %6122 = vmatprep.subr.mxu0 %v4602
        %6123 = vmatpush1.msra.mxu0 %v4601
        %6124 = vmatprep.subr.mxu0 %v4606
        %6125 = vmatpush1.msra.mxu0 %v4605
        %6126 = vmatprep.subr.mxu0 %v4610
        %6127 = vmatpush1.msra.mxu0 %v4609
        %6128 = vmatprep.subr.mxu0 %v4614
        %6129 = vmatpush1.msra.mxu0 %v4613
        %6130 = vmatprep.subr.mxu0 %v4618
        %6131 = vmatpush1.msra.mxu0 %v4617
        %6132 = vmatprep.subr.mxu0 %v4622
        %6133 = vmatpush1.msra.mxu0 %v4621
        %6134 = vmatprep.subr.mxu0 %v4626
        %6135 = vmatpush1.msra.mxu0 %v4625
        %6136 = vmatprep.subr.mxu0 %v4630
        %6137 = vmatpush1.msra.mxu0 %v4629
        %6138 = vmatprep.subr.mxu0 %v4634
        %6139 = vmatpush1.msra.mxu0 %v4633
        %6140 = vmatprep.subr.mxu0 %v4638
        %6141 = vmatpush1.msra.mxu0 %v4637
        %6142 = vmatprep.subr.mxu0 %v4642
        %6143 = vmatpush1.msra.mxu0 %v4641
        %6144 = vmatprep.subr.mxu0 %v4646
        %6145 = vmatpush1.msra.mxu0 %v4645
        %6146 = vmatprep.subr.mxu0 %v4650
        %6147 = vmatpush1.msra.mxu0 %v4649
        %6148 = vmatprep.subr.mxu0 %v4654
        %6149 = vmatpush1.msra.mxu0 %v4653
        %6150 = vmatprep.subr.mxu0 %v4658
        %6151 = vmatpush1.msra.mxu0 %v4657
        %6152 = vmatprep.subr.mxu0 %v4662
        %6153 = vmatpush1.msra.mxu0 %v4661
        %6154 = vmatprep.subr.mxu0 %v4666
        %6155 = vmatpush1.msra.mxu0 %v4665
        %6156 = vmatprep.subr.mxu0 %v4670
        %6157 = vmatpush1.msra.mxu0 %v4669
        %6158 = vmatprep.subr.mxu0 %v4674
        %6159 = vmatpush1.msra.mxu0 %v4673
        %6160 = vmatprep.subr.mxu0 %v4678
        %6161 = vmatpush1.msra.mxu0 %v4677
        %6162 = vmatprep.subr.mxu0 %v4682
        %6163 = vmatpush1.msra.mxu0 %v4681
        %6164 = vmatprep.subr.mxu0 %v4686
        %6165 = vmatpush1.msra.mxu0 %v4685
        %6166 = vmatprep.subr.mxu0 %v4690
        %6167 = vmatpush1.msra.mxu0 %v4689
        %6168 = vmatprep.subr.mxu0 %v4694
        %6169 = vmatpush1.msra.mxu0 %v4693
        %6170 = vmatprep.mubr.f32.mxu0 %v5316
        %6171 = vmatmul.mubr.f32.gmra.mrb[0].mxu0 %v5315
        %v6172 = vpop.f32.mrb[0].mxu0
        %v6173 = vadd.f32 %v6102, %v6172
        %v6174 = vpop.f32.mrb[0].mxu0
        %v6175 = vadd.f32 %v6104, %v6174
        %6176 = vdwg.mxu0
        %6177 = vmatprep.subr.mxu0 %v4698
        %6178 = vmatpush1.msra.mxu0 %v4697
        %6179 = vmatprep.subr.mxu0 %v4702
        %6180 = vmatpush1.msra.mxu0 %v4701
        %6181 = vmatprep.subr.mxu0 %v4706
        %6182 = vmatpush1.msra.mxu0 %v4705
        %6183 = vmatprep.subr.mxu0 %v4710
        %6184 = vmatpush1.msra.mxu0 %v4709
        %6185 = vmatprep.subr.mxu0 %v4714
        %6186 = vmatpush1.msra.mxu0 %v4713
        %6187 = vmatprep.subr.mxu0 %v4718
        %6188 = vmatpush1.msra.mxu0 %v4717
        %6189 = vmatprep.subr.mxu0 %v4722
        %6190 = vmatpush1.msra.mxu0 %v4721
        %6191 = vmatprep.subr.mxu0 %v4726
        %6192 = vmatpush1.msra.mxu0 %v4725
        %6193 = vmatprep.subr.mxu0 %v4730
        %6194 = vmatpush1.msra.mxu0 %v4729
        %6195 = vmatprep.subr.mxu0 %v4734
        %6196 = vmatpush1.msra.mxu0 %v4733
        %6197 = vmatprep.subr.mxu0 %v4738
        %6198 = vmatpush1.msra.mxu0 %v4737
        %6199 = vmatprep.subr.mxu0 %v4742
        %6200 = vmatpush1.msra.mxu0 %v4741
        %6201 = vmatprep.subr.mxu0 %v4746
        %6202 = vmatpush1.msra.mxu0 %v4745
        %6203 = vmatprep.subr.mxu0 %v4750
        %6204 = vmatpush1.msra.mxu0 %v4749
        %6205 = vmatprep.subr.mxu0 %v4754
        %6206 = vmatpush1.msra.mxu0 %v4753
        %6207 = vmatprep.subr.mxu0 %v4758
        %6208 = vmatpush1.msra.mxu0 %v4757
        %6209 = vmatprep.subr.mxu0 %v4762
        %6210 = vmatpush1.msra.mxu0 %v4761
        %6211 = vmatprep.subr.mxu0 %v4766
        %6212 = vmatpush1.msra.mxu0 %v4765
        %6213 = vmatprep.subr.mxu0 %v4770
        %6214 = vmatpush1.msra.mxu0 %v4769
        %6215 = vmatprep.subr.mxu0 %v4774
        %6216 = vmatpush1.msra.mxu0 %v4773
        %6217 = vmatprep.subr.mxu0 %v4778
        %6218 = vmatpush1.msra.mxu0 %v4777
        %6219 = vmatprep.subr.mxu0 %v4782
        %6220 = vmatpush1.msra.mxu0 %v4781
        %6221 = vmatprep.subr.mxu0 %v4786
        %6222 = vmatpush1.msra.mxu0 %v4785
        %6223 = vmatprep.subr.mxu0 %v4790
        %6224 = vmatpush1.msra.mxu0 %v4789
        %6225 = vmatprep.subr.mxu0 %v4794
        %6226 = vmatpush1.msra.mxu0 %v4793
        %6227 = vmatprep.subr.mxu0 %v4798
        %6228 = vmatpush1.msra.mxu0 %v4797
        %6229 = vmatprep.subr.mxu0 %v4802
        %6230 = vmatpush1.msra.mxu0 %v4801
        %6231 = vmatprep.subr.mxu0 %v4806
        %6232 = vmatpush1.msra.mxu0 %v4805
        %6233 = vmatprep.subr.mxu0 %v4810
        %6234 = vmatpush1.msra.mxu0 %v4809
        %6235 = vmatprep.subr.mxu0 %v4814
        %6236 = vmatpush1.msra.mxu0 %v4813
        %6237 = vmatprep.subr.mxu0 %v4818
        %6238 = vmatpush1.msra.mxu0 %v4817
        %6239 = vmatprep.subr.mxu0 %v4822
        %6240 = vmatpush1.msra.mxu0 %v4821
        %6241 = vmatprep.mubr.f32.mxu0 %v5318
        %6242 = vmatmul.mubr.f32.gmra.mrb[0].mxu0 %v5317
        %v6243 = vpop.f32.mrb[0].mxu0
        %v6244 = vadd.f32 %v6173, %v6243
        %v6245 = vpop.f32.mrb[0].mxu0
        %v6246 = vadd.f32 %v6175, %v6245
        %6247 = vdwg.mxu0
        %6248 = vmatprep.subr.mxu0 %v4826
        %6249 = vmatpush1.msra.mxu0 %v4825
        %6250 = vmatprep.subr.mxu0 %v4830
        %6251 = vmatpush1.msra.mxu0 %v4829
        %6252 = vmatprep.subr.mxu0 %v4834
        %6253 = vmatpush1.msra.mxu0 %v4833
        %6254 = vmatprep.subr.mxu0 %v4838
        %6255 = vmatpush1.msra.mxu0 %v4837
        %6256 = vmatprep.subr.mxu0 %v4842
        %6257 = vmatpush1.msra.mxu0 %v4841
        %6258 = vmatprep.subr.mxu0 %v4846
        %6259 = vmatpush1.msra.mxu0 %v4845
        %6260 = vmatprep.subr.mxu0 %v4850
        %6261 = vmatpush1.msra.mxu0 %v4849
        %6262 = vmatprep.subr.mxu0 %v4854
        %6263 = vmatpush1.msra.mxu0 %v4853
        %6264 = vmatprep.subr.mxu0 %v4858
        %6265 = vmatpush1.msra.mxu0 %v4857
        %6266 = vmatprep.subr.mxu0 %v4862
        %6267 = vmatpush1.msra.mxu0 %v4861
        %6268 = vmatprep.subr.mxu0 %v4866
        %6269 = vmatpush1.msra.mxu0 %v4865
        %6270 = vmatprep.subr.mxu0 %v4870
        %6271 = vmatpush1.msra.mxu0 %v4869
        %6272 = vmatprep.subr.mxu0 %v4874
        %6273 = vmatpush1.msra.mxu0 %v4873
        %6274 = vmatprep.subr.mxu0 %v4878
        %6275 = vmatpush1.msra.mxu0 %v4877
        %6276 = vmatprep.subr.mxu0 %v4882
        %6277 = vmatpush1.msra.mxu0 %v4881
        %6278 = vmatprep.subr.mxu0 %v4886
        %6279 = vmatpush1.msra.mxu0 %v4885
        %6280 = vmatprep.subr.mxu0 %v4890
        %6281 = vmatpush1.msra.mxu0 %v4889
        %6282 = vmatprep.subr.mxu0 %v4894
        %6283 = vmatpush1.msra.mxu0 %v4893
        %6284 = vmatprep.subr.mxu0 %v4898
        %6285 = vmatpush1.msra.mxu0 %v4897
        %6286 = vmatprep.subr.mxu0 %v4902
        %6287 = vmatpush1.msra.mxu0 %v4901
        %6288 = vmatprep.subr.mxu0 %v4906
        %6289 = vmatpush1.msra.mxu0 %v4905
        %6290 = vmatprep.subr.mxu0 %v4910
        %6291 = vmatpush1.msra.mxu0 %v4909
        %6292 = vmatprep.subr.mxu0 %v4914
        %6293 = vmatpush1.msra.mxu0 %v4913
        %6294 = vmatprep.subr.mxu0 %v4918
        %6295 = vmatpush1.msra.mxu0 %v4917
        %6296 = vmatprep.subr.mxu0 %v4922
        %6297 = vmatpush1.msra.mxu0 %v4921
        %6298 = vmatprep.subr.mxu0 %v4926
        %6299 = vmatpush1.msra.mxu0 %v4925
        %6300 = vmatprep.subr.mxu0 %v4930
        %6301 = vmatpush1.msra.mxu0 %v4929
        %6302 = vmatprep.subr.mxu0 %v4934
        %6303 = vmatpush1.msra.mxu0 %v4933
        %6304 = vmatprep.subr.mxu0 %v4938
        %6305 = vmatpush1.msra.mxu0 %v4937
        %6306 = vmatprep.subr.mxu0 %v4942
        %6307 = vmatpush1.msra.mxu0 %v4941
        %6308 = vmatprep.subr.mxu0 %v4946
        %6309 = vmatpush1.msra.mxu0 %v4945
        %6310 = vmatprep.subr.mxu0 %v4950
        %6311 = vmatpush1.msra.mxu0 %v4949
        %6312 = vmatprep.mubr.f32.mxu0 %v5320
        %6313 = vmatmul.mubr.f32.gmra.mrb[0].mxu0 %v5319
        %v6314 = vpop.f32.mrb[0].mxu0
        %v6315 = vadd.f32 %v6244, %v6314
        %v6316 = vpop.f32.mrb[0].mxu0
        %v6317 = vadd.f32 %v6246, %v6316
        %6318 = vdwg.mxu0
        %6319 = vmatprep.subr.mxu0 %v4954
        %6320 = vmatpush1.msra.mxu0 %v4953
        %6321 = vmatprep.subr.mxu0 %v4958
        %6322 = vmatpush1.msra.mxu0 %v4957
        %6323 = vmatprep.subr.mxu0 %v4962
        %6324 = vmatpush1.msra.mxu0 %v4961
        %6325 = vmatprep.subr.mxu0 %v4966
        %6326 = vmatpush1.msra.mxu0 %v4965
        %6327 = vmatprep.subr.mxu0 %v4970
        %6328 = vmatpush1.msra.mxu0 %v4969
        %6329 = vmatprep.subr.mxu0 %v4974
        %6330 = vmatpush1.msra.mxu0 %v4973
        %6331 = vmatprep.subr.mxu0 %v4978
        %6332 = vmatpush1.msra.mxu0 %v4977
        %6333 = vmatprep.subr.mxu0 %v4982
        %6334 = vmatpush1.msra.mxu0 %v4981
        %6335 = vmatprep.subr.mxu0 %v4986
        %6336 = vmatpush1.msra.mxu0 %v4985
        %6337 = vmatprep.subr.mxu0 %v4990
        %6338 = vmatpush1.msra.mxu0 %v4989
        %6339 = vmatprep.subr.mxu0 %v4994
        %6340 = vmatpush1.msra.mxu0 %v4993
        %6341 = vmatprep.subr.mxu0 %v4998
        %6342 = vmatpush1.msra.mxu0 %v4997
        %6343 = vmatprep.subr.mxu0 %v5002
        %6344 = vmatpush1.msra.mxu0 %v5001
        %6345 = vmatprep.subr.mxu0 %v5006
        %6346 = vmatpush1.msra.mxu0 %v5005
        %6347 = vmatprep.subr.mxu0 %v5010
        %6348 = vmatpush1.msra.mxu0 %v5009
        %6349 = vmatprep.subr.mxu0 %v5014
        %6350 = vmatpush1.msra.mxu0 %v5013
        %6351 = vmatprep.subr.mxu0 %v5018
        %6352 = vmatpush1.msra.mxu0 %v5017
        %6353 = vmatprep.subr.mxu0 %v5022
        %6354 = vmatpush1.msra.mxu0 %v5021
        %6355 = vmatprep.subr.mxu0 %v5026
        %6356 = vmatpush1.msra.mxu0 %v5025
        %6357 = vmatprep.subr.mxu0 %v5030
        %6358 = vmatpush1.msra.mxu0 %v5029
        %6359 = vmatprep.subr.mxu0 %v5034
        %6360 = vmatpush1.msra.mxu0 %v5033
        %6361 = vmatprep.subr.mxu0 %v5038
        %6362 = vmatpush1.msra.mxu0 %v5037
        %6363 = vmatprep.subr.mxu0 %v5042
        %6364 = vmatpush1.msra.mxu0 %v5041
        %6365 = vmatprep.subr.mxu0 %v5046
        %6366 = vmatpush1.msra.mxu0 %v5045
        %6367 = vmatprep.subr.mxu0 %v5050
        %6368 = vmatpush1.msra.mxu0 %v5049
        %6369 = vmatprep.subr.mxu0 %v5054
        %6370 = vmatpush1.msra.mxu0 %v5053
        %6371 = vmatprep.subr.mxu0 %v5058
        %6372 = vmatpush1.msra.mxu0 %v5057
        %6373 = vmatprep.subr.mxu0 %v5062
        %6374 = vmatpush1.msra.mxu0 %v5061
        %6375 = vmatprep.subr.mxu0 %v5066
        %6376 = vmatpush1.msra.mxu0 %v5065
        %6377 = vmatprep.subr.mxu0 %v5070
        %6378 = vmatpush1.msra.mxu0 %v5069
        %6379 = vmatprep.subr.mxu0 %v5074
        %6380 = vmatpush1.msra.mxu0 %v5073
        %6381 = vmatprep.subr.mxu0 %v5078
        %6382 = vmatpush1.msra.mxu0 %v5077
        %6383 = vmatprep.mubr.f32.mxu0 %v5322
        %6384 = vmatmul.mubr.f32.gmra.mrb[0].mxu0 %v5321
        %v6385 = vpop.f32.mrb[0].mxu0
        %v6386 = vadd.f32 %v6315, %v6385
        %v6387 = vpop.f32.mrb[0].mxu0
        %v6388 = vadd.f32 %v6317, %v6387
        %6389 = vdwg.mxu0
        %6390 = vmatprep.subr.mxu0 %v5082
        %6391 = vmatpush1.msra.mxu0 %v5081
        %6392 = vmatprep.subr.mxu0 %v5086
        %6393 = vmatpush1.msra.mxu0 %v5085
        %6394 = vmatprep.subr.mxu0 %v5090
        %6395 = vmatpush1.msra.mxu0 %v5089
        %6396 = vmatprep.subr.mxu0 %v5094
        %6397 = vmatpush1.msra.mxu0 %v5093
        %6398 = vmatprep.subr.mxu0 %v5098
        %6399 = vmatpush1.msra.mxu0 %v5097
        %6400 = vmatprep.subr.mxu0 %v5102
        %6401 = vmatpush1.msra.mxu0 %v5101
        %6402 = vmatprep.subr.mxu0 %v5106
        %6403 = vmatpush1.msra.mxu0 %v5105
        %6404 = vmatprep.subr.mxu0 %v5110
        %6405 = vmatpush1.msra.mxu0 %v5109
        %6406 = vmatprep.subr.mxu0 %v5114
        %6407 = vmatpush1.msra.mxu0 %v5113
        %6408 = vmatprep.subr.mxu0 %v5118
        %6409 = vmatpush1.msra.mxu0 %v5117
        %6410 = vmatprep.subr.mxu0 %v5122
        %6411 = vmatpush1.msra.mxu0 %v5121
        %6412 = vmatprep.subr.mxu0 %v5126
        %6413 = vmatpush1.msra.mxu0 %v5125
        %6414 = vmatprep.subr.mxu0 %v5130
        %6415 = vmatpush1.msra.mxu0 %v5129
        %6416 = vmatprep.subr.mxu0 %v5134
        %6417 = vmatpush1.msra.mxu0 %v5133
        %6418 = vmatprep.subr.mxu0 %v5138
        %6419 = vmatpush1.msra.mxu0 %v5137
        %6420 = vmatprep.subr.mxu0 %v5142
        %6421 = vmatpush1.msra.mxu0 %v5141
        %6422 = vmatprep.subr.mxu0 %v5146
        %6423 = vmatpush1.msra.mxu0 %v5145
        %6424 = vmatprep.subr.mxu0 %v5150
        %6425 = vmatpush1.msra.mxu0 %v5149
        %6426 = vmatprep.subr.mxu0 %v5154
        %6427 = vmatpush1.msra.mxu0 %v5153
        %6428 = vmatprep.subr.mxu0 %v5158
        %6429 = vmatpush1.msra.mxu0 %v5157
        %6430 = vmatprep.subr.mxu0 %v5162
        %6431 = vmatpush1.msra.mxu0 %v5161
        %6432 = vmatprep.subr.mxu0 %v5166
        %6433 = vmatpush1.msra.mxu0 %v5165
        %6434 = vmatprep.subr.mxu0 %v5170
        %6435 = vmatpush1.msra.mxu0 %v5169
        %6436 = vmatprep.subr.mxu0 %v5174
        %6437 = vmatpush1.msra.mxu0 %v5173
        %6438 = vmatprep.subr.mxu0 %v5178
        %6439 = vmatpush1.msra.mxu0 %v5177
        %6440 = vmatprep.subr.mxu0 %v5182
        %6441 = vmatpush1.msra.mxu0 %v5181
        %6442 = vmatprep.subr.mxu0 %v5186
        %6443 = vmatpush1.msra.mxu0 %v5185
        %6444 = vmatprep.subr.mxu0 %v5190
        %6445 = vmatpush1.msra.mxu0 %v5189
        %6446 = vmatprep.subr.mxu0 %v5194
        %6447 = vmatpush1.msra.mxu0 %v5193
        %6448 = vmatprep.subr.mxu0 %v5198
        %6449 = vmatpush1.msra.mxu0 %v5197
        %6450 = vmatprep.subr.mxu0 %v5202
        %6451 = vmatpush1.msra.mxu0 %v5201
        %6452 = vmatprep.subr.mxu0 %v5206
        %6453 = vmatpush1.msra.mxu0 %v5205
        %6454 = vmatprep.mubr.f32.mxu0 %v5324
        %6455 = vmatmul.mubr.f32.gmra.mrb[0].mxu0 %v5323
        %v6456 = vpop.f32.mrb[0].mxu0
        %v6457 = vadd.f32 %v6386, %v6456
        %v6458 = vpop.f32.mrb[0].mxu0
        %v6459 = vadd.f32 %v6388, %v6458
        %6460 = vdwg.mxu0
        %v6461 = vpack.c.bf16 %v5889, %v5889
        %v6462 = vpack.c.bf16 %v5891, %v5891
        %v6463 = vpack.c.bf16 %v6457, %v6457
        %v6464 = vpack.c.bf16 %v6459, %v6459
        %v6469 = vunpack.c.l.b16 %v6461
        %v6470 = vunpack.c.l.b16 %v6462
        %v6471 = vunpack.c.l.b16 %v6463
        %v6472 = vunpack.c.l.b16 %v6464
        %v6473 = vpack.c.b16 %v6470, %v6469
        %v6474 = vpack.c.b16 %v6472, %v6471
        %6477 = vst [vmem:[%s316] sm:$0xff] %v6473
        %6478 = vst [vmem:[%s316 + $0x8] sm:$0xff] %v6474
        %s6479 = smul.u32 4, %s19
        %p6480 = scmp.lt.s32.totalorder %s18, 0
        %s6481 = scalar_select %p6480, %s18, 0
        %p6482 = scmp.lt.s32.totalorder %s6479, 15
        %s6483 = scalar_select %p6482, %s6479, 15
        %s6484 = smul.addr %s6481, 16
        %s6485 = sadd.s32 %s6483, %s6484
        %s6486 = smul.addr %s6485, 4
        %s6487 = scalar_lea.vmem %s3, %s6486
        // Predicated region
        $region56: #{cnn_encoder_forward.2} parent=50 // pred_check
          %p6488 = pneg %p124
        $region57: #{cnn_encoder_forward.2} parent=50 // pred_check_branch
          %6490 = sbr.rel (%p6488) target = $region59
        $region58: #{cnn_encoder_forward.2} parent=50 // pred_region
          %s6491 = smul.u32 4, %s19
        $region59: #{cnn_encoder_forward.2} parent=50 // pred_fallthru
          _
      $region51: #{cnn_encoder_forward.2} parent=5 // pred_fallthru
        _
      %p6492 = scmp.le.s32.totalorder 2, %s9
      // Predicated region
      $region60: #{cnn_encoder_forward.2} parent=5 // pred_check
        %p6493 = pneg %p6492
      $region61: #{cnn_encoder_forward.2} parent=5 // pred_check_branch
        %6495 = sbr.rel (%p6493) target = $region63
      $region62: #{cnn_encoder_forward.2} parent=5 // pred_region
        %s6496 = ssub.s32 %s9, 2
        // Predicated region
        $region64: #{cnn_encoder_forward.2} parent=62 // pred_check
          %p6497 = pneg %p130
        $region65: #{cnn_encoder_forward.2} parent=62 // pred_check_branch
          %6499 = sbr.rel (%p6497) target = $region67
        $region66: #{cnn_encoder_forward.2} parent=62 // pred_region
          %s6500 = smul.u32 4, %s21
          %p6501 = scmp.lt.s32.totalorder %s20, 0
          %s6502 = scalar_select %p6501, %s20, 0
          %p6503 = scmp.lt.s32.totalorder %s6500, 15
          %s6504 = scalar_select %p6503, %s6500, 15
          %s6505 = smul.addr %s6502, 16
          %s6506 = sadd.s32 %s6504, %s6505
          %s6507 = smul.addr %s6506, 4
          %s6508 = scalar_lea.vmem %s3, %s6507
        $region67: #{cnn_encoder_forward.2} parent=62 // pred_fallthru
          _
      $region63: #{cnn_encoder_forward.2} parent=5 // pred_fallthru
        _
    $region6: #{cnn_encoder_forward.2} parent=1 // loop_footer
      %s13 = sadd.s32 1, %s9
    $region7: #{cnn_encoder_forward.2} parent=1 // loop_footer_branch
      %8 = sbr.rel target = $region3
    $region8: #{cnn_encoder_forward.2} parent=1 // loop_exit
      _

// kernel: cnn_encoder_forward.3
$region0: #{cnn_encoder_forward.3}
  #allocation0 [shape = 'u32[]', space=smem, size = 0x4, offset = 0x4, fixed_abs, tag = 'smem constant byte address 0x4 - core index']
  #allocation1 [shape = 'u32[144,128]{1,0:T(1,128)}', space=vmem, size = 0x12000, scoped, tag = 'internal scratch']
  %s0 = inlined_call_operand.vmem [shape: bf16[8,2048], index: 0, kind: input, shape index: {}]
  %s1 = inlined_call_operand.vmem [shape: bf16[2048,512], index: 1, kind: input, shape index: {}]
  %s2 = inlined_call_operand.vmem [shape: bf16[512,512], index: 2, kind: input, shape index: {}]
  %s3 = inlined_call_operand.vmem [shape: bf16[512,256], index: 3, kind: input, shape index: {}]
  %s4 = inlined_call_operand.vmem [shape: f32[8,512], index: 4, kind: input, shape index: {}]
  %s5 = inlined_call_operand.vmem [shape: f32[8,512], index: 5, kind: input, shape index: {}]
  %s6 = inlined_call_operand.vmem [shape: f32[8,256], index: 6, kind: output, shape index: {}]
  %s7 = sld [smem:[#allocation0]]
  $region34: #{cnn_encoder_forward.3} parent=0
    _
  %s9 = ssub.s32 1, %s7
  %s10 = scalar_select 0, %s9, %s7
  // Predicated region
  $region2: #{cnn_encoder_forward.3} parent=0 // pred_check
    _
  $region3: #{cnn_encoder_forward.3} parent=0 // pred_check_branch
    %12 = sbr.rel (0) target = $region5
  $region4: #{cnn_encoder_forward.3} parent=0 // pred_region
    _
  $region5: #{cnn_encoder_forward.3} parent=0 // pred_fallthru
    _
  // Predicated region
  $region6: #{cnn_encoder_forward.3} parent=0 // pred_check
    _
  $region7: #{cnn_encoder_forward.3} parent=0 // pred_check_branch
    %14 = sbr.rel (0) target = $region9
  $region8: #{cnn_encoder_forward.3} parent=0 // pred_region
    _
  $region9: #{cnn_encoder_forward.3} parent=0 // pred_fallthru
    _
  // Predicated region
  $region10: #{cnn_encoder_forward.3} parent=0 // pred_check
    _
  $region11: #{cnn_encoder_forward.3} parent=0 // pred_check_branch
    %16 = sbr.rel (0) target = $region13
  $region12: #{cnn_encoder_forward.3} parent=0 // pred_region
    _
  $region13: #{cnn_encoder_forward.3} parent=0 // pred_fallthru
    _
  // Predicated region
  $region14: #{cnn_encoder_forward.3} parent=0 // pred_check
    _
  $region15: #{cnn_encoder_forward.3} parent=0 // pred_check_branch
    %18 = sbr.rel (0) target = $region17
  $region16: #{cnn_encoder_forward.3} parent=0 // pred_region
    _
  $region17: #{cnn_encoder_forward.3} parent=0 // pred_fallthru
    _
  // Predicated region
  $region18: #{cnn_encoder_forward.3} parent=0 // pred_check
    _
  $region19: #{cnn_encoder_forward.3} parent=0 // pred_check_branch
    %20 = sbr.rel (0) target = $region21
  $region20: #{cnn_encoder_forward.3} parent=0 // pred_region
    _
  $region21: #{cnn_encoder_forward.3} parent=0 // pred_fallthru
    _
  // Predicated region
  $region22: #{cnn_encoder_forward.3} parent=0 // pred_check
    _
  $region23: #{cnn_encoder_forward.3} parent=0 // pred_check_branch
    %22 = sbr.rel (0) target = $region25
  $region24: #{cnn_encoder_forward.3} parent=0 // pred_region
    _
  $region25: #{cnn_encoder_forward.3} parent=0 // pred_fallthru
    _
  %v23 = vld [vmem:[%s4] sm:$0xff]
  %v24 = vld [vmem:[%s4 + $0x8] sm:$0xff]
  %v25 = vld [vmem:[%s4 + $0x10] sm:$0xff]
  %v26 = vld [vmem:[%s4 + $0x18] sm:$0xff]
  %v27 = vlaneseq
  %v28 = vshrl.u32 %v27, 7
  %v29 = vlaneseq
  %v30 = vand.u32 %v29, 127
  %v31 = vmul.u32 %v28, 2
  %vm32 = vcmp.ge.s32.totalorder %v30, %v31
  %v33 = vadd.s32 %v28, 1
  %v34 = vmul.u32 %v33, 2
  %vm35 = vcmp.lt.s32.totalorder %v30, %v34
  %vm36 = vmand %vm32, %vm35
  %v37 = vsel %vm36, 1, 0
  %v38 = vcvt.s32.f32 %v37
  %v39 = vmul.f32 %v38, 0.5
  %v40 = vmul.u32 %v30, 2
  %vm41 = vcmp.ge.s32.totalorder %v28, %v40
  %v42 = vadd.s32 %v30, 1
  %v43 = vmul.u32 %v42, 2
  %vm44 = vcmp.lt.s32.totalorder %v28, %v43
  %vm45 = vmand %vm41, %vm44
  %v46 = vsel %vm45, 1, 0
  %v47 = vcvt.s32.f32 %v46
  %v48 = vld [vmem:[%s0] sm:$0xff]
  %v49 = vld [vmem:[%s0 + $0x8] sm:$0xff]
  %v50 = vld [vmem:[%s0 + $0x10] sm:$0xff]
  %v51 = vld [vmem:[%s0 + $0x18] sm:$0xff]
  %v52 = vld [vmem:[%s0 + $0x20] sm:$0xff]
  %v53 = vld [vmem:[%s0 + $0x28] sm:$0xff]
  %v54 = vld [vmem:[%s0 + $0x30] sm:$0xff]
  %v55 = vld [vmem:[%s0 + $0x38] sm:$0xff]
  %v56 = vld [vmem:[%s1] sm:$0xff]
  %v57 = vld [vmem:[%s1 + $0x8] sm:$0xff]
  %v58 = vld [vmem:[%s1 + $0x10] sm:$0xff]
  %v59 = vld [vmem:[%s1 + $0x18] sm:$0xff]
  %v60 = vld [vmem:[%s1 + $0x20] sm:$0xff]
  %v61 = vld [vmem:[%s1 + $0x28] sm:$0xff]
  %v62 = vld [vmem:[%s1 + $0x30] sm:$0xff]
  %v63 = vld [vmem:[%s1 + $0x38] sm:$0xff]
  %v64 = vld [vmem:[%s1 + $0x40] sm:$0xff]
  %v65 = vld [vmem:[%s1 + $0x48] sm:$0xff]
  %v66 = vld [vmem:[%s1 + $0x50] sm:$0xff]
  %v67 = vld [vmem:[%s1 + $0x58] sm:$0xff]
  %v68 = vld [vmem:[%s1 + $0x60] sm:$0xff]
  %v69 = vld [vmem:[%s1 + $0x68] sm:$0xff]
  %v70 = vld [vmem:[%s1 + $0x70] sm:$0xff]
  %v71 = vld [vmem:[%s1 + $0x78] sm:$0xff]
  %v72 = vld [vmem:[%s1 + $0x80] sm:$0xff]
  %v73 = vld [vmem:[%s1 + $0x88] sm:$0xff]
  %v74 = vld [vmem:[%s1 + $0x90] sm:$0xff]
  %v75 = vld [vmem:[%s1 + $0x98] sm:$0xff]
  %v76 = vld [vmem:[%s1 + $0xa0] sm:$0xff]
  %v77 = vld [vmem:[%s1 + $0xa8] sm:$0xff]
  %v78 = vld [vmem:[%s1 + $0xb0] sm:$0xff]
  %v79 = vld [vmem:[%s1 + $0xb8] sm:$0xff]
  %v80 = vld [vmem:[%s1 + $0xc0] sm:$0xff]
  %v81 = vld [vmem:[%s1 + $0xc8] sm:$0xff]
  %v82 = vld [vmem:[%s1 + $0xd0] sm:$0xff]
  %v83 = vld [vmem:[%s1 + $0xd8] sm:$0xff]
  %v84 = vld [vmem:[%s1 + $0xe0] sm:$0xff]
  %v85 = vld [vmem:[%s1 + $0xe8] sm:$0xff]
  %v86 = vld [vmem:[%s1 + $0xf0] sm:$0xff]
  %v87 = vld [vmem:[%s1 + $0xf8] sm:$0xff]
  %v88 = vld [vmem:[%s1 + $0x100] sm:$0xff]
  %v89 = vld [vmem:[%s1 + $0x108] sm:$0xff]
  %v90 = vld [vmem:[%s1 + $0x110] sm:$0xff]
  %v91 = vld [vmem:[%s1 + $0x118] sm:$0xff]
  %v92 = vld [vmem:[%s1 + $0x120] sm:$0xff]
  %v93 = vld [vmem:[%s1 + $0x128] sm:$0xff]
  %v94 = vld [vmem:[%s1 + $0x130] sm:$0xff]
  %v95 = vld [vmem:[%s1 + $0x138] sm:$0xff]
  %v96 = vld [vmem:[%s1 + $0x140] sm:$0xff]
  %v97 = vld [vmem:[%s1 + $0x148] sm:$0xff]
  %v98 = vld [vmem:[%s1 + $0x150] sm:$0xff]
  %v99 = vld [vmem:[%s1 + $0x158] sm:$0xff]
  %v100 = vld [vmem:[%s1 + $0x160] sm:$0xff]
  %v101 = vld [vmem:[%s1 + $0x168] sm:$0xff]
  %v102 = vld [vmem:[%s1 + $0x170] sm:$0xff]
  %v103 = vld [vmem:[%s1 + $0x178] sm:$0xff]
  %v104 = vld [vmem:[%s1 + $0x180] sm:$0xff]
  %v105 = vld [vmem:[%s1 + $0x188] sm:$0xff]
  %v106 = vld [vmem:[%s1 + $0x190] sm:$0xff]
  %v107 = vld [vmem:[%s1 + $0x198] sm:$0xff]
  %v108 = vld [vmem:[%s1 + $0x1a0] sm:$0xff]
  %v109 = vld [vmem:[%s1 + $0x1a8] sm:$0xff]
  %v110 = vld [vmem:[%s1 + $0x1b0] sm:$0xff]
  %v111 = vld [vmem:[%s1 + $0x1b8] sm:$0xff]
  %v112 = vld [vmem:[%s1 + $0x1c0] sm:$0xff]
  %v113 = vld [vmem:[%s1 + $0x1c8] sm:$0xff]
  %v114 = vld [vmem:[%s1 + $0x1d0] sm:$0xff]
  %v115 = vld [vmem:[%s1 + $0x1d8] sm:$0xff]
  %v116 = vld [vmem:[%s1 + $0x1e0] sm:$0xff]
  %v117 = vld [vmem:[%s1 + $0x1e8] sm:$0xff]
  %v118 = vld [vmem:[%s1 + $0x1f0] sm:$0xff]
  %v119 = vld [vmem:[%s1 + $0x1f8] sm:$0xff]
  %v120 = vld [vmem:[%s1 + $0x200] sm:$0xff]
  %v121 = vld [vmem:[%s1 + $0x208] sm:$0xff]
  %v122 = vld [vmem:[%s1 + $0x210] sm:$0xff]
  %v123 = vld [vmem:[%s1 + $0x218] sm:$0xff]
  %v124 = vld [vmem:[%s1 + $0x220] sm:$0xff]
  %v125 = vld [vmem:[%s1 + $0x228] sm:$0xff]
  %v126 = vld [vmem:[%s1 + $0x230] sm:$0xff]
  %v127 = vld [vmem:[%s1 + $0x238] sm:$0xff]
  %v128 = vld [vmem:[%s1 + $0x240] sm:$0xff]
  %v129 = vld [vmem:[%s1 + $0x248] sm:$0xff]
  %v130 = vld [vmem:[%s1 + $0x250] sm:$0xff]
  %v131 = vld [vmem:[%s1 + $0x258] sm:$0xff]
  %v132 = vld [vmem:[%s1 + $0x260] sm:$0xff]
  %v133 = vld [vmem:[%s1 + $0x268] sm:$0xff]
  %v134 = vld [vmem:[%s1 + $0x270] sm:$0xff]
  %v135 = vld [vmem:[%s1 + $0x278] sm:$0xff]
  %v136 = vld [vmem:[%s1 + $0x280] sm:$0xff]
  %v137 = vld [vmem:[%s1 + $0x288] sm:$0xff]
  %v138 = vld [vmem:[%s1 + $0x290] sm:$0xff]
  %v139 = vld [vmem:[%s1 + $0x298] sm:$0xff]
  %v140 = vld [vmem:[%s1 + $0x2a0] sm:$0xff]
  %v141 = vld [vmem:[%s1 + $0x2a8] sm:$0xff]
  %v142 = vld [vmem:[%s1 + $0x2b0] sm:$0xff]
  %v143 = vld [vmem:[%s1 + $0x2b8] sm:$0xff]
  %v144 = vld [vmem:[%s1 + $0x2c0] sm:$0xff]
  %v145 = vld [vmem:[%s1 + $0x2c8] sm:$0xff]
  %v146 = vld [vmem:[%s1 + $0x2d0] sm:$0xff]
  %v147 = vld [vmem:[%s1 + $0x2d8] sm:$0xff]
  %v148 = vld [vmem:[%s1 + $0x2e0] sm:$0xff]
  %v149 = vld [vmem:[%s1 + $0x2e8] sm:$0xff]
  %v150 = vld [vmem:[%s1 + $0x2f0] sm:$0xff]
  %v151 = vld [vmem:[%s1 + $0x2f8] sm:$0xff]
  %v152 = vld [vmem:[%s1 + $0x300] sm:$0xff]
  %v153 = vld [vmem:[%s1 + $0x308] sm:$0xff]
  %v154 = vld [vmem:[%s1 + $0x310] sm:$0xff]
  %v155 = vld [vmem:[%s1 + $0x318] sm:$0xff]
  %v156 = vld [vmem:[%s1 + $0x320] sm:$0xff]
  %v157 = vld [vmem:[%s1 + $0x328] sm:$0xff]
  %v158 = vld [vmem:[%s1 + $0x330] sm:$0xff]
  %v159 = vld [vmem:[%s1 + $0x338] sm:$0xff]
  %v160 = vld [vmem:[%s1 + $0x340] sm:$0xff]
  %v161 = vld [vmem:[%s1 + $0x348] sm:$0xff]
  %v162 = vld [vmem:[%s1 + $0x350] sm:$0xff]
  %v163 = vld [vmem:[%s1 + $0x358] sm:$0xff]
  %v164 = vld [vmem:[%s1 + $0x360] sm:$0xff]
  %v165 = vld [vmem:[%s1 + $0x368] sm:$0xff]
  %v166 = vld [vmem:[%s1 + $0x370] sm:$0xff]
  %v167 = vld [vmem:[%s1 + $0x378] sm:$0xff]
  %v168 = vld [vmem:[%s1 + $0x380] sm:$0xff]
  %v169 = vld [vmem:[%s1 + $0x388] sm:$0xff]
  %v170 = vld [vmem:[%s1 + $0x390] sm:$0xff]
  %v171 = vld [vmem:[%s1 + $0x398] sm:$0xff]
  %v172 = vld [vmem:[%s1 + $0x3a0] sm:$0xff]
  %v173 = vld [vmem:[%s1 + $0x3a8] sm:$0xff]
  %v174 = vld [vmem:[%s1 + $0x3b0] sm:$0xff]
  %v175 = vld [vmem:[%s1 + $0x3b8] sm:$0xff]
  %v176 = vld [vmem:[%s1 + $0x3c0] sm:$0xff]
  %v177 = vld [vmem:[%s1 + $0x3c8] sm:$0xff]
  %v178 = vld [vmem:[%s1 + $0x3d0] sm:$0xff]
  %v179 = vld [vmem:[%s1 + $0x3d8] sm:$0xff]
  %v180 = vld [vmem:[%s1 + $0x3e0] sm:$0xff]
  %v181 = vld [vmem:[%s1 + $0x3e8] sm:$0xff]
  %v182 = vld [vmem:[%s1 + $0x3f0] sm:$0xff]
  %v183 = vld [vmem:[%s1 + $0x3f8] sm:$0xff]
  %v184 = vld [vmem:[%s1 + $0x400] sm:$0xff]
  %v185 = vld [vmem:[%s1 + $0x408] sm:$0xff]
  %v186 = vld [vmem:[%s1 + $0x410] sm:$0xff]
  %v187 = vld [vmem:[%s1 + $0x418] sm:$0xff]
  %v188 = vld [vmem:[%s1 + $0x420] sm:$0xff]
  %v189 = vld [vmem:[%s1 + $0x428] sm:$0xff]
  %v190 = vld [vmem:[%s1 + $0x430] sm:$0xff]
  %v191 = vld [vmem:[%s1 + $0x438] sm:$0xff]
  %v192 = vld [vmem:[%s1 + $0x440] sm:$0xff]
  %v193 = vld [vmem:[%s1 + $0x448] sm:$0xff]
  %v194 = vld [vmem:[%s1 + $0x450] sm:$0xff]
  %v195 = vld [vmem:[%s1 + $0x458] sm:$0xff]
  %v196 = vld [vmem:[%s1 + $0x460] sm:$0xff]
  %v197 = vld [vmem:[%s1 + $0x468] sm:$0xff]
  %v198 = vld [vmem:[%s1 + $0x470] sm:$0xff]
  %v199 = vld [vmem:[%s1 + $0x478] sm:$0xff]
  %v200 = vld [vmem:[%s1 + $0x480] sm:$0xff]
  %v201 = vld [vmem:[%s1 + $0x488] sm:$0xff]
  %v202 = vld [vmem:[%s1 + $0x490] sm:$0xff]
  %v203 = vld [vmem:[%s1 + $0x498] sm:$0xff]
  %v204 = vld [vmem:[%s1 + $0x4a0] sm:$0xff]
  %v205 = vld [vmem:[%s1 + $0x4a8] sm:$0xff]
  %v206 = vld [vmem:[%s1 + $0x4b0] sm:$0xff]
  %v207 = vld [vmem:[%s1 + $0x4b8] sm:$0xff]
  %v208 = vld [vmem:[%s1 + $0x4c0] sm:$0xff]
  %v209 = vld [vmem:[%s1 + $0x4c8] sm:$0xff]
  %v210 = vld [vmem:[%s1 + $0x4d0] sm:$0xff]
  %v211 = vld [vmem:[%s1 + $0x4d8] sm:$0xff]
  %v212 = vld [vmem:[%s1 + $0x4e0] sm:$0xff]
  %v213 = vld [vmem:[%s1 + $0x4e8] sm:$0xff]
  %v214 = vld [vmem:[%s1 + $0x4f0] sm:$0xff]
  %v215 = vld [vmem:[%s1 + $0x4f8] sm:$0xff]
  %v216 = vld [vmem:[%s1 + $0x500] sm:$0xff]
  %v217 = vld [vmem:[%s1 + $0x508] sm:$0xff]
  %v218 = vld [vmem:[%s1 + $0x510] sm:$0xff]
  %v219 = vld [vmem:[%s1 + $0x518] sm:$0xff]
  %v220 = vld [vmem:[%s1 + $0x520] sm:$0xff]
  %v221 = vld [vmem:[%s1 + $0x528] sm:$0xff]
  %v222 = vld [vmem:[%s1 + $0x530] sm:$0xff]
  %v223 = vld [vmem:[%s1 + $0x538] sm:$0xff]
  %v224 = vld [vmem:[%s1 + $0x540] sm:$0xff]
  %v225 = vld [vmem:[%s1 + $0x548] sm:$0xff]
  %v226 = vld [vmem:[%s1 + $0x550] sm:$0xff]
  %v227 = vld [vmem:[%s1 + $0x558] sm:$0xff]
  %v228 = vld [vmem:[%s1 + $0x560] sm:$0xff]
  %v229 = vld [vmem:[%s1 + $0x568] sm:$0xff]
  %v230 = vld [vmem:[%s1 + $0x570] sm:$0xff]
  %v231 = vld [vmem:[%s1 + $0x578] sm:$0xff]
  %v232 = vld [vmem:[%s1 + $0x580] sm:$0xff]
  %v233 = vld [vmem:[%s1 + $0x588] sm:$0xff]
  %v234 = vld [vmem:[%s1 + $0x590] sm:$0xff]
  %v235 = vld [vmem:[%s1 + $0x598] sm:$0xff]
  %v236 = vld [vmem:[%s1 + $0x5a0] sm:$0xff]
  %v237 = vld [vmem:[%s1 + $0x5a8] sm:$0xff]
  %v238 = vld [vmem:[%s1 + $0x5b0] sm:$0xff]
  %v239 = vld [vmem:[%s1 + $0x5b8] sm:$0xff]
  %v240 = vld [vmem:[%s1 + $0x5c0] sm:$0xff]
  %v241 = vld [vmem:[%s1 + $0x5c8] sm:$0xff]
  %v242 = vld [vmem:[%s1 + $0x5d0] sm:$0xff]
  %v243 = vld [vmem:[%s1 + $0x5d8] sm:$0xff]
  %v244 = vld [vmem:[%s1 + $0x5e0] sm:$0xff]
  %v245 = vld [vmem:[%s1 + $0x5e8] sm:$0xff]
  %v246 = vld [vmem:[%s1 + $0x5f0] sm:$0xff]
  %v247 = vld [vmem:[%s1 + $0x5f8] sm:$0xff]
  %v248 = vld [vmem:[%s1 + $0x600] sm:$0xff]
  %v249 = vld [vmem:[%s1 + $0x608] sm:$0xff]
  %v250 = vld [vmem:[%s1 + $0x610] sm:$0xff]
  %v251 = vld [vmem:[%s1 + $0x618] sm:$0xff]
  %v252 = vld [vmem:[%s1 + $0x620] sm:$0xff]
  %v253 = vld [vmem:[%s1 + $0x628] sm:$0xff]
  %v254 = vld [vmem:[%s1 + $0x630] sm:$0xff]
  %v255 = vld [vmem:[%s1 + $0x638] sm:$0xff]
  %v256 = vld [vmem:[%s1 + $0x640] sm:$0xff]
  %v257 = vld [vmem:[%s1 + $0x648] sm:$0xff]
  %v258 = vld [vmem:[%s1 + $0x650] sm:$0xff]
  %v259 = vld [vmem:[%s1 + $0x658] sm:$0xff]
  %v260 = vld [vmem:[%s1 + $0x660] sm:$0xff]
  %v261 = vld [vmem:[%s1 + $0x668] sm:$0xff]
  %v262 = vld [vmem:[%s1 + $0x670] sm:$0xff]
  %v263 = vld [vmem:[%s1 + $0x678] sm:$0xff]
  %v264 = vld [vmem:[%s1 + $0x680] sm:$0xff]
  %v265 = vld [vmem:[%s1 + $0x688] sm:$0xff]
  %v266 = vld [vmem:[%s1 + $0x690] sm:$0xff]
  %v267 = vld [vmem:[%s1 + $0x698] sm:$0xff]
  %v268 = vld [vmem:[%s1 + $0x6a0] sm:$0xff]
  %v269 = vld [vmem:[%s1 + $0x6a8] sm:$0xff]
  %v270 = vld [vmem:[%s1 + $0x6b0] sm:$0xff]
  %v271 = vld [vmem:[%s1 + $0x6b8] sm:$0xff]
  %v272 = vld [vmem:[%s1 + $0x6c0] sm:$0xff]
  %v273 = vld [vmem:[%s1 + $0x6c8] sm:$0xff]
  %v274 = vld [vmem:[%s1 + $0x6d0] sm:$0xff]
  %v275 = vld [vmem:[%s1 + $0x6d8] sm:$0xff]
  %v276 = vld [vmem:[%s1 + $0x6e0] sm:$0xff]
  %v277 = vld [vmem:[%s1 + $0x6e8] sm:$0xff]
  %v278 = vld [vmem:[%s1 + $0x6f0] sm:$0xff]
  %v279 = vld [vmem:[%s1 + $0x6f8] sm:$0xff]
  %v280 = vld [vmem:[%s1 + $0x700] sm:$0xff]
  %v281 = vld [vmem:[%s1 + $0x708] sm:$0xff]
  %v282 = vld [vmem:[%s1 + $0x710] sm:$0xff]
  %v283 = vld [vmem:[%s1 + $0x718] sm:$0xff]
  %v284 = vld [vmem:[%s1 + $0x720] sm:$0xff]
  %v285 = vld [vmem:[%s1 + $0x728] sm:$0xff]
  %v286 = vld [vmem:[%s1 + $0x730] sm:$0xff]
  %v287 = vld [vmem:[%s1 + $0x738] sm:$0xff]
  %v288 = vld [vmem:[%s1 + $0x740] sm:$0xff]
  %v289 = vld [vmem:[%s1 + $0x748] sm:$0xff]
  %v290 = vld [vmem:[%s1 + $0x750] sm:$0xff]
  %v291 = vld [vmem:[%s1 + $0x758] sm:$0xff]
  %v292 = vld [vmem:[%s1 + $0x760] sm:$0xff]
  %v293 = vld [vmem:[%s1 + $0x768] sm:$0xff]
  %v294 = vld [vmem:[%s1 + $0x770] sm:$0xff]
  %v295 = vld [vmem:[%s1 + $0x778] sm:$0xff]
  %v296 = vld [vmem:[%s1 + $0x780] sm:$0xff]
  %v297 = vld [vmem:[%s1 + $0x788] sm:$0xff]
  %v298 = vld [vmem:[%s1 + $0x790] sm:$0xff]
  %v299 = vld [vmem:[%s1 + $0x798] sm:$0xff]
  %v300 = vld [vmem:[%s1 + $0x7a0] sm:$0xff]
  %v301 = vld [vmem:[%s1 + $0x7a8] sm:$0xff]
  %v302 = vld [vmem:[%s1 + $0x7b0] sm:$0xff]
  %v303 = vld [vmem:[%s1 + $0x7b8] sm:$0xff]
  %v304 = vld [vmem:[%s1 + $0x7c0] sm:$0xff]
  %v305 = vld [vmem:[%s1 + $0x7c8] sm:$0xff]
  %v306 = vld [vmem:[%s1 + $0x7d0] sm:$0xff]
  %v307 = vld [vmem:[%s1 + $0x7d8] sm:$0xff]
  %v308 = vld [vmem:[%s1 + $0x7e0] sm:$0xff]
  %v309 = vld [vmem:[%s1 + $0x7e8] sm:$0xff]
  %v310 = vld [vmem:[%s1 + $0x7f0] sm:$0xff]
  %v311 = vld [vmem:[%s1 + $0x7f8] sm:$0xff]
  %v312 = vld [vmem:[%s1 + $0x800] sm:$0xff]
  %v313 = vld [vmem:[%s1 + $0x808] sm:$0xff]
  %v314 = vld [vmem:[%s1 + $0x810] sm:$0xff]
  %v315 = vld [vmem:[%s1 + $0x818] sm:$0xff]
  %v316 = vld [vmem:[%s1 + $0x820] sm:$0xff]
  %v317 = vld [vmem:[%s1 + $0x828] sm:$0xff]
  %v318 = vld [vmem:[%s1 + $0x830] sm:$0xff]
  %v319 = vld [vmem:[%s1 + $0x838] sm:$0xff]
  %v320 = vld [vmem:[%s1 + $0x840] sm:$0xff]
  %v321 = vld [vmem:[%s1 + $0x848] sm:$0xff]
  %v322 = vld [vmem:[%s1 + $0x850] sm:$0xff]
  %v323 = vld [vmem:[%s1 + $0x858] sm:$0xff]
  %v324 = vld [vmem:[%s1 + $0x860] sm:$0xff]
  %v325 = vld [vmem:[%s1 + $0x868] sm:$0xff]
  %v326 = vld [vmem:[%s1 + $0x870] sm:$0xff]
  %v327 = vld [vmem:[%s1 + $0x878] sm:$0xff]
  %v328 = vld [vmem:[%s1 + $0x880] sm:$0xff]
  %v329 = vld [vmem:[%s1 + $0x888] sm:$0xff]
  %v330 = vld [vmem:[%s1 + $0x890] sm:$0xff]
  %v331 = vld [vmem:[%s1 + $0x898] sm:$0xff]
  %v332 = vld [vmem:[%s1 + $0x8a0] sm:$0xff]
  %v333 = vld [vmem:[%s1 + $0x8a8] sm:$0xff]
  %v334 = vld [vmem:[%s1 + $0x8b0] sm:$0xff]
  %v335 = vld [vmem:[%s1 + $0x8b8] sm:$0xff]
  %v336 = vld [vmem:[%s1 + $0x8c0] sm:$0xff]
  %v337 = vld [vmem:[%s1 + $0x8c8] sm:$0xff]
  %v338 = vld [vmem:[%s1 + $0x8d0] sm:$0xff]
  %v339 = vld [vmem:[%s1 + $0x8d8] sm:$0xff]
  %v340 = vld [vmem:[%s1 + $0x8e0] sm:$0xff]
  %v341 = vld [vmem:[%s1 + $0x8e8] sm:$0xff]
  %v342 = vld [vmem:[%s1 + $0x8f0] sm:$0xff]
  %v343 = vld [vmem:[%s1 + $0x8f8] sm:$0xff]
  %v344 = vld [vmem:[%s1 + $0x900] sm:$0xff]
  %v345 = vld [vmem:[%s1 + $0x908] sm:$0xff]
  %v346 = vld [vmem:[%s1 + $0x910] sm:$0xff]
  %v347 = vld [vmem:[%s1 + $0x918] sm:$0xff]
  %v348 = vld [vmem:[%s1 + $0x920] sm:$0xff]
  %v349 = vld [vmem:[%s1 + $0x928] sm:$0xff]
  %v350 = vld [vmem:[%s1 + $0x930] sm:$0xff]
  %v351 = vld [vmem:[%s1 + $0x938] sm:$0xff]
  %v352 = vld [vmem:[%s1 + $0x940] sm:$0xff]
  %v353 = vld [vmem:[%s1 + $0x948] sm:$0xff]
  %v354 = vld [vmem:[%s1 + $0x950] sm:$0xff]
  %v355 = vld [vmem:[%s1 + $0x958] sm:$0xff]
  %v356 = vld [vmem:[%s1 + $0x960] sm:$0xff]
  %v357 = vld [vmem:[%s1 + $0x968] sm:$0xff]
  %v358 = vld [vmem:[%s1 + $0x970] sm:$0xff]
  %v359 = vld [vmem:[%s1 + $0x978] sm:$0xff]
  %v360 = vld [vmem:[%s1 + $0x980] sm:$0xff]
  %v361 = vld [vmem:[%s1 + $0x988] sm:$0xff]
  %v362 = vld [vmem:[%s1 + $0x990] sm:$0xff]
  %v363 = vld [vmem:[%s1 + $0x998] sm:$0xff]
  %v364 = vld [vmem:[%s1 + $0x9a0] sm:$0xff]
  %v365 = vld [vmem:[%s1 + $0x9a8] sm:$0xff]
  %v366 = vld [vmem:[%s1 + $0x9b0] sm:$0xff]
  %v367 = vld [vmem:[%s1 + $0x9b8] sm:$0xff]
  %v368 = vld [vmem:[%s1 + $0x9c0] sm:$0xff]
  %v369 = vld [vmem:[%s1 + $0x9c8] sm:$0xff]
  %v370 = vld [vmem:[%s1 + $0x9d0] sm:$0xff]
  %v371 = vld [vmem:[%s1 + $0x9d8] sm:$0xff]
  %v372 = vld [vmem:[%s1 + $0x9e0] sm:$0xff]
  %v373 = vld [vmem:[%s1 + $0x9e8] sm:$0xff]
  %v374 = vld [vmem:[%s1 + $0x9f0] sm:$0xff]
  %v375 = vld [vmem:[%s1 + $0x9f8] sm:$0xff]
  %v376 = vld [vmem:[%s1 + $0xa00] sm:$0xff]
  %v377 = vld [vmem:[%s1 + $0xa08] sm:$0xff]
  %v378 = vld [vmem:[%s1 + $0xa10] sm:$0xff]
  %v379 = vld [vmem:[%s1 + $0xa18] sm:$0xff]
  %v380 = vld [vmem:[%s1 + $0xa20] sm:$0xff]
  %v381 = vld [vmem:[%s1 + $0xa28] sm:$0xff]
  %v382 = vld [vmem:[%s1 + $0xa30] sm:$0xff]
  %v383 = vld [vmem:[%s1 + $0xa38] sm:$0xff]
  %v384 = vld [vmem:[%s1 + $0xa40] sm:$0xff]
  %v385 = vld [vmem:[%s1 + $0xa48] sm:$0xff]
  %v386 = vld [vmem:[%s1 + $0xa50] sm:$0xff]
  %v387 = vld [vmem:[%s1 + $0xa58] sm:$0xff]
  %v388 = vld [vmem:[%s1 + $0xa60] sm:$0xff]
  %v389 = vld [vmem:[%s1 + $0xa68] sm:$0xff]
  %v390 = vld [vmem:[%s1 + $0xa70] sm:$0xff]
  %v391 = vld [vmem:[%s1 + $0xa78] sm:$0xff]
  %v392 = vld [vmem:[%s1 + $0xa80] sm:$0xff]
  %v393 = vld [vmem:[%s1 + $0xa88] sm:$0xff]
  %v394 = vld [vmem:[%s1 + $0xa90] sm:$0xff]
  %v395 = vld [vmem:[%s1 + $0xa98] sm:$0xff]
  %v396 = vld [vmem:[%s1 + $0xaa0] sm:$0xff]
  %v397 = vld [vmem:[%s1 + $0xaa8] sm:$0xff]
  %v398 = vld [vmem:[%s1 + $0xab0] sm:$0xff]
  %v399 = vld [vmem:[%s1 + $0xab8] sm:$0xff]
  %v400 = vld [vmem:[%s1 + $0xac0] sm:$0xff]
  %v401 = vld [vmem:[%s1 + $0xac8] sm:$0xff]
  %v402 = vld [vmem:[%s1 + $0xad0] sm:$0xff]
  %v403 = vld [vmem:[%s1 + $0xad8] sm:$0xff]
  %v404 = vld [vmem:[%s1 + $0xae0] sm:$0xff]
  %v405 = vld [vmem:[%s1 + $0xae8] sm:$0xff]
  %v406 = vld [vmem:[%s1 + $0xaf0] sm:$0xff]
  %v407 = vld [vmem:[%s1 + $0xaf8] sm:$0xff]
  %v408 = vld [vmem:[%s1 + $0xb00] sm:$0xff]
  %v409 = vld [vmem:[%s1 + $0xb08] sm:$0xff]
  %v410 = vld [vmem:[%s1 + $0xb10] sm:$0xff]
  %v411 = vld [vmem:[%s1 + $0xb18] sm:$0xff]
  %v412 = vld [vmem:[%s1 + $0xb20] sm:$0xff]
  %v413 = vld [vmem:[%s1 + $0xb28] sm:$0xff]
  %v414 = vld [vmem:[%s1 + $0xb30] sm:$0xff]
  %v415 = vld [vmem:[%s1 + $0xb38] sm:$0xff]
  %v416 = vld [vmem:[%s1 + $0xb40] sm:$0xff]
  %v417 = vld [vmem:[%s1 + $0xb48] sm:$0xff]
  %v418 = vld [vmem:[%s1 + $0xb50] sm:$0xff]
  %v419 = vld [vmem:[%s1 + $0xb58] sm:$0xff]
  %v420 = vld [vmem:[%s1 + $0xb60] sm:$0xff]
  %v421 = vld [vmem:[%s1 + $0xb68] sm:$0xff]
  %v422 = vld [vmem:[%s1 + $0xb70] sm:$0xff]
  %v423 = vld [vmem:[%s1 + $0xb78] sm:$0xff]
  %v424 = vld [vmem:[%s1 + $0xb80] sm:$0xff]
  %v425 = vld [vmem:[%s1 + $0xb88] sm:$0xff]
  %v426 = vld [vmem:[%s1 + $0xb90] sm:$0xff]
  %v427 = vld [vmem:[%s1 + $0xb98] sm:$0xff]
  %v428 = vld [vmem:[%s1 + $0xba0] sm:$0xff]
  %v429 = vld [vmem:[%s1 + $0xba8] sm:$0xff]
  %v430 = vld [vmem:[%s1 + $0xbb0] sm:$0xff]
  %v431 = vld [vmem:[%s1 + $0xbb8] sm:$0xff]
  %v432 = vld [vmem:[%s1 + $0xbc0] sm:$0xff]
  %v433 = vld [vmem:[%s1 + $0xbc8] sm:$0xff]
  %v434 = vld [vmem:[%s1 + $0xbd0] sm:$0xff]
  %v435 = vld [vmem:[%s1 + $0xbd8] sm:$0xff]
  %v436 = vld [vmem:[%s1 + $0xbe0] sm:$0xff]
  %v437 = vld [vmem:[%s1 + $0xbe8] sm:$0xff]
  %v438 = vld [vmem:[%s1 + $0xbf0] sm:$0xff]
  %v439 = vld [vmem:[%s1 + $0xbf8] sm:$0xff]
  %v440 = vld [vmem:[%s1 + $0xc00] sm:$0xff]
  %v441 = vld [vmem:[%s1 + $0xc08] sm:$0xff]
  %v442 = vld [vmem:[%s1 + $0xc10] sm:$0xff]
  %v443 = vld [vmem:[%s1 + $0xc18] sm:$0xff]
  %v444 = vld [vmem:[%s1 + $0xc20] sm:$0xff]
  %v445 = vld [vmem:[%s1 + $0xc28] sm:$0xff]
  %v446 = vld [vmem:[%s1 + $0xc30] sm:$0xff]
  %v447 = vld [vmem:[%s1 + $0xc38] sm:$0xff]
  %v448 = vld [vmem:[%s1 + $0xc40] sm:$0xff]
  %v449 = vld [vmem:[%s1 + $0xc48] sm:$0xff]
  %v450 = vld [vmem:[%s1 + $0xc50] sm:$0xff]
  %v451 = vld [vmem:[%s1 + $0xc58] sm:$0xff]
  %v452 = vld [vmem:[%s1 + $0xc60] sm:$0xff]
  %v453 = vld [vmem:[%s1 + $0xc68] sm:$0xff]
  %v454 = vld [vmem:[%s1 + $0xc70] sm:$0xff]
  %v455 = vld [vmem:[%s1 + $0xc78] sm:$0xff]
  %v456 = vld [vmem:[%s1 + $0xc80] sm:$0xff]
  %v457 = vld [vmem:[%s1 + $0xc88] sm:$0xff]
  %v458 = vld [vmem:[%s1 + $0xc90] sm:$0xff]
  %v459 = vld [vmem:[%s1 + $0xc98] sm:$0xff]
  %v460 = vld [vmem:[%s1 + $0xca0] sm:$0xff]
  %v461 = vld [vmem:[%s1 + $0xca8] sm:$0xff]
  %v462 = vld [vmem:[%s1 + $0xcb0] sm:$0xff]
  %v463 = vld [vmem:[%s1 + $0xcb8] sm:$0xff]
  %v464 = vld [vmem:[%s1 + $0xcc0] sm:$0xff]
  %v465 = vld [vmem:[%s1 + $0xcc8] sm:$0xff]
  %v466 = vld [vmem:[%s1 + $0xcd0] sm:$0xff]
  %v467 = vld [vmem:[%s1 + $0xcd8] sm:$0xff]
  %v468 = vld [vmem:[%s1 + $0xce0] sm:$0xff]
  %v469 = vld [vmem:[%s1 + $0xce8] sm:$0xff]
  %v470 = vld [vmem:[%s1 + $0xcf0] sm:$0xff]
  %v471 = vld [vmem:[%s1 + $0xcf8] sm:$0xff]
  %v472 = vld [vmem:[%s1 + $0xd00] sm:$0xff]
  %v473 = vld [vmem:[%s1 + $0xd08] sm:$0xff]
  %v474 = vld [vmem:[%s1 + $0xd10] sm:$0xff]
  %v475 = vld [vmem:[%s1 + $0xd18] sm:$0xff]
  %v476 = vld [vmem:[%s1 + $0xd20] sm:$0xff]
  %v477 = vld [vmem:[%s1 + $0xd28] sm:$0xff]
  %v478 = vld [vmem:[%s1 + $0xd30] sm:$0xff]
  %v479 = vld [vmem:[%s1 + $0xd38] sm:$0xff]
  %v480 = vld [vmem:[%s1 + $0xd40] sm:$0xff]
  %v481 = vld [vmem:[%s1 + $0xd48] sm:$0xff]
  %v482 = vld [vmem:[%s1 + $0xd50] sm:$0xff]
  %v483 = vld [vmem:[%s1 + $0xd58] sm:$0xff]
  %v484 = vld [vmem:[%s1 + $0xd60] sm:$0xff]
  %v485 = vld [vmem:[%s1 + $0xd68] sm:$0xff]
  %v486 = vld [vmem:[%s1 + $0xd70] sm:$0xff]
  %v487 = vld [vmem:[%s1 + $0xd78] sm:$0xff]
  %v488 = vld [vmem:[%s1 + $0xd80] sm:$0xff]
  %v489 = vld [vmem:[%s1 + $0xd88] sm:$0xff]
  %v490 = vld [vmem:[%s1 + $0xd90] sm:$0xff]
  %v491 = vld [vmem:[%s1 + $0xd98] sm:$0xff]
  %v492 = vld [vmem:[%s1 + $0xda0] sm:$0xff]
  %v493 = vld [vmem:[%s1 + $0xda8] sm:$0xff]
  %v494 = vld [vmem:[%s1 + $0xdb0] sm:$0xff]
  %v495 = vld [vmem:[%s1 + $0xdb8] sm:$0xff]
  %v496 = vld [vmem:[%s1 + $0xdc0] sm:$0xff]
  %v497 = vld [vmem:[%s1 + $0xdc8] sm:$0xff]
  %v498 = vld [vmem:[%s1 + $0xdd0] sm:$0xff]
  %v499 = vld [vmem:[%s1 + $0xdd8] sm:$0xff]
  %v500 = vld [vmem:[%s1 + $0xde0] sm:$0xff]
  %v501 = vld [vmem:[%s1 + $0xde8] sm:$0xff]
  %v502 = vld [vmem:[%s1 + $0xdf0] sm:$0xff]
  %v503 = vld [vmem:[%s1 + $0xdf8] sm:$0xff]
  %v504 = vld [vmem:[%s1 + $0xe00] sm:$0xff]
  %v505 = vld [vmem:[%s1 + $0xe08] sm:$0xff]
  %v506 = vld [vmem:[%s1 + $0xe10] sm:$0xff]
  %v507 = vld [vmem:[%s1 + $0xe18] sm:$0xff]
  %v508 = vld [vmem:[%s1 + $0xe20] sm:$0xff]
  %v509 = vld [vmem:[%s1 + $0xe28] sm:$0xff]
  %v510 = vld [vmem:[%s1 + $0xe30] sm:$0xff]
  %v511 = vld [vmem:[%s1 + $0xe38] sm:$0xff]
  %v512 = vld [vmem:[%s1 + $0xe40] sm:$0xff]
  %v513 = vld [vmem:[%s1 + $0xe48] sm:$0xff]
  %v514 = vld [vmem:[%s1 + $0xe50] sm:$0xff]
  %v515 = vld [vmem:[%s1 + $0xe58] sm:$0xff]
  %v516 = vld [vmem:[%s1 + $0xe60] sm:$0xff]
  %v517 = vld [vmem:[%s1 + $0xe68] sm:$0xff]
  %v518 = vld [vmem:[%s1 + $0xe70] sm:$0xff]
  %v519 = vld [vmem:[%s1 + $0xe78] sm:$0xff]
  %v520 = vld [vmem:[%s1 + $0xe80] sm:$0xff]
  %v521 = vld [vmem:[%s1 + $0xe88] sm:$0xff]
  %v522 = vld [vmem:[%s1 + $0xe90] sm:$0xff]
  %v523 = vld [vmem:[%s1 + $0xe98] sm:$0xff]
  %v524 = vld [vmem:[%s1 + $0xea0] sm:$0xff]
  %v525 = vld [vmem:[%s1 + $0xea8] sm:$0xff]
  %v526 = vld [vmem:[%s1 + $0xeb0] sm:$0xff]
  %v527 = vld [vmem:[%s1 + $0xeb8] sm:$0xff]
  %v528 = vld [vmem:[%s1 + $0xec0] sm:$0xff]
  %v529 = vld [vmem:[%s1 + $0xec8] sm:$0xff]
  %v530 = vld [vmem:[%s1 + $0xed0] sm:$0xff]
  %v531 = vld [vmem:[%s1 + $0xed8] sm:$0xff]
  %v532 = vld [vmem:[%s1 + $0xee0] sm:$0xff]
  %v533 = vld [vmem:[%s1 + $0xee8] sm:$0xff]
  %v534 = vld [vmem:[%s1 + $0xef0] sm:$0xff]
  %v535 = vld [vmem:[%s1 + $0xef8] sm:$0xff]
  %v536 = vld [vmem:[%s1 + $0xf00] sm:$0xff]
  %v537 = vld [vmem:[%s1 + $0xf08] sm:$0xff]
  %v538 = vld [vmem:[%s1 + $0xf10] sm:$0xff]
  %v539 = vld [vmem:[%s1 + $0xf18] sm:$0xff]
  %v540 = vld [vmem:[%s1 + $0xf20] sm:$0xff]
  %v541 = vld [vmem:[%s1 + $0xf28] sm:$0xff]
  %v542 = vld [vmem:[%s1 + $0xf30] sm:$0xff]
  %v543 = vld [vmem:[%s1 + $0xf38] sm:$0xff]
  %v544 = vld [vmem:[%s1 + $0xf40] sm:$0xff]
  %v545 = vld [vmem:[%s1 + $0xf48] sm:$0xff]
  %v546 = vld [vmem:[%s1 + $0xf50] sm:$0xff]
  %v547 = vld [vmem:[%s1 + $0xf58] sm:$0xff]
  %v548 = vld [vmem:[%s1 + $0xf60] sm:$0xff]
  %v549 = vld [vmem:[%s1 + $0xf68] sm:$0xff]
  %v550 = vld [vmem:[%s1 + $0xf70] sm:$0xff]
  %v551 = vld [vmem:[%s1 + $0xf78] sm:$0xff]
  %v552 = vld [vmem:[%s1 + $0xf80] sm:$0xff]
  %v553 = vld [vmem:[%s1 + $0xf88] sm:$0xff]
  %v554 = vld [vmem:[%s1 + $0xf90] sm:$0xff]
  %v555 = vld [vmem:[%s1 + $0xf98] sm:$0xff]
  %v556 = vld [vmem:[%s1 + $0xfa0] sm:$0xff]
  %v557 = vld [vmem:[%s1 + $0xfa8] sm:$0xff]
  %v558 = vld [vmem:[%s1 + $0xfb0] sm:$0xff]
  %v559 = vld [vmem:[%s1 + $0xfb8] sm:$0xff]
  %v560 = vld [vmem:[%s1 + $0xfc0] sm:$0xff]
  %v561 = vld [vmem:[%s1 + $0xfc8] sm:$0xff]
  %v562 = vld [vmem:[%s1 + $0xfd0] sm:$0xff]
  %v563 = vld [vmem:[%s1 + $0xfd8] sm:$0xff]
  %v564 = vld [vmem:[%s1 + $0xfe0] sm:$0xff]
  %v565 = vld [vmem:[%s1 + $0xfe8] sm:$0xff]
  %v566 = vld [vmem:[%s1 + $0xff0] sm:$0xff]
  %v567 = vld [vmem:[%s1 + $0xff8] sm:$0xff]
  %v568 = vlaneseq
  %v569 = vshrl.u32 %v568, 7
  %v570 = vsub.s32 0, %v569
  %v571 = vrot.slane %v23, %v570
  %v572 = vlaneseq
  %v573 = vshrl.u32 %v572, 7
  %v574 = vsub.s32 0, %v573
  %v575 = vrot.slane %v24, %v574
  %v576 = vlaneseq
  %v577 = vshrl.u32 %v576, 7
  %v578 = vsub.s32 0, %v577
  %v579 = vrot.slane %v25, %v578
  %v580 = vlaneseq
  %v581 = vshrl.u32 %v580, 7
  %v582 = vsub.s32 0, %v581
  %v583 = vrot.slane %v26, %v582
  %v592 = vunpack.c.l.b16 %v48
  %v593 = vunpack.c.h.b16 %v48
  %v594 = vunpack.c.l.b16 %v49
  %v595 = vunpack.c.h.b16 %v49
  %v596 = vunpack.c.l.b16 %v50
  %v597 = vunpack.c.h.b16 %v50
  %v598 = vunpack.c.l.b16 %v51
  %v599 = vunpack.c.h.b16 %v51
  %v600 = vunpack.c.l.b16 %v52
  %v601 = vunpack.c.h.b16 %v52
  %v602 = vunpack.c.l.b16 %v53
  %v603 = vunpack.c.h.b16 %v53
  %v604 = vunpack.c.l.b16 %v54
  %v605 = vunpack.c.h.b16 %v54
  %v606 = vunpack.c.l.b16 %v55
  %v607 = vunpack.c.h.b16 %v55
  %v608 = vpack.c.b16 %v592, %v592
  %v609 = vpack.c.b16 %v593, %v593
  %v610 = vpack.c.b16 %v594, %v594
  %v611 = vpack.c.b16 %v595, %v595
  %v612 = vpack.c.b16 %v596, %v596
  %v613 = vpack.c.b16 %v597, %v597
  %v614 = vpack.c.b16 %v598, %v598
  %v615 = vpack.c.b16 %v599, %v599
  %v616 = vpack.c.b16 %v600, %v600
  %v617 = vpack.c.b16 %v601, %v601
  %v618 = vpack.c.b16 %v602, %v602
  %v619 = vpack.c.b16 %v603, %v603
  %v620 = vpack.c.b16 %v604, %v604
  %v621 = vpack.c.b16 %v605, %v605
  %v622 = vpack.c.b16 %v606, %v606
  %v623 = vpack.c.b16 %v607, %v607
  %v1152 = vunpack.c.l.b16 %v56
  %v1153 = vunpack.c.h.b16 %v56
  %v1154 = vunpack.c.l.b16 %v57
  %v1155 = vunpack.c.h.b16 %v57
  %v1156 = vunpack.c.l.b16 %v58
  %v1157 = vunpack.c.h.b16 %v58
  %v1158 = vunpack.c.l.b16 %v59
  %v1159 = vunpack.c.h.b16 %v59
  %v1160 = vunpack.c.l.b16 %v60
  %v1161 = vunpack.c.h.b16 %v60
  %v1162 = vunpack.c.l.b16 %v61
  %v1163 = vunpack.c.h.b16 %v61
  %v1164 = vunpack.c.l.b16 %v62
  %v1165 = vunpack.c.h.b16 %v62
  %v1166 = vunpack.c.l.b16 %v63
  %v1167 = vunpack.c.h.b16 %v63
  %v1168 = vunpack.c.l.b16 %v64
  %v1169 = vunpack.c.h.b16 %v64
  %v1170 = vunpack.c.l.b16 %v65
  %v1171 = vunpack.c.h.b16 %v65
  %v1172 = vunpack.c.l.b16 %v66
  %v1173 = vunpack.c.h.b16 %v66
  %v1174 = vunpack.c.l.b16 %v67
  %v1175 = vunpack.c.h.b16 %v67
  %v1176 = vunpack.c.l.b16 %v68
  %v1177 = vunpack.c.h.b16 %v68
  %v1178 = vunpack.c.l.b16 %v69
  %v1179 = vunpack.c.h.b16 %v69
  %v1180 = vunpack.c.l.b16 %v70
  %v1181 = vunpack.c.h.b16 %v70
  %v1182 = vunpack.c.l.b16 %v71
  %v1183 = vunpack.c.h.b16 %v71
  %v1184 = vunpack.c.l.b16 %v72
  %v1185 = vunpack.c.h.b16 %v72
  %v1186 = vunpack.c.l.b16 %v73
  %v1187 = vunpack.c.h.b16 %v73
  %v1188 = vunpack.c.l.b16 %v74
  %v1189 = vunpack.c.h.b16 %v74
  %v1190 = vunpack.c.l.b16 %v75
  %v1191 = vunpack.c.h.b16 %v75
  %v1192 = vunpack.c.l.b16 %v76
  %v1193 = vunpack.c.h.b16 %v76
  %v1194 = vunpack.c.l.b16 %v77
  %v1195 = vunpack.c.h.b16 %v77
  %v1196 = vunpack.c.l.b16 %v78
  %v1197 = vunpack.c.h.b16 %v78
  %v1198 = vunpack.c.l.b16 %v79
  %v1199 = vunpack.c.h.b16 %v79
  %v1200 = vunpack.c.l.b16 %v80
  %v1201 = vunpack.c.h.b16 %v80
  %v1202 = vunpack.c.l.b16 %v81
  %v1203 = vunpack.c.h.b16 %v81
  %v1204 = vunpack.c.l.b16 %v82
  %v1205 = vunpack.c.h.b16 %v82
  %v1206 = vunpack.c.l.b16 %v83
  %v1207 = vunpack.c.h.b16 %v83
  %v1208 = vunpack.c.l.b16 %v84
  %v1209 = vunpack.c.h.b16 %v84
  %v1210 = vunpack.c.l.b16 %v85
  %v1211 = vunpack.c.h.b16 %v85
  %v1212 = vunpack.c.l.b16 %v86
  %v1213 = vunpack.c.h.b16 %v86
  %v1214 = vunpack.c.l.b16 %v87
  %v1215 = vunpack.c.h.b16 %v87
  %v1216 = vunpack.c.l.b16 %v88
  %v1217 = vunpack.c.h.b16 %v88
  %v1218 = vunpack.c.l.b16 %v89
  %v1219 = vunpack.c.h.b16 %v89
  %v1220 = vunpack.c.l.b16 %v90
  %v1221 = vunpack.c.h.b16 %v90
  %v1222 = vunpack.c.l.b16 %v91
  %v1223 = vunpack.c.h.b16 %v91
  %v1224 = vunpack.c.l.b16 %v92
  %v1225 = vunpack.c.h.b16 %v92
  %v1226 = vunpack.c.l.b16 %v93
  %v1227 = vunpack.c.h.b16 %v93
  %v1228 = vunpack.c.l.b16 %v94
  %v1229 = vunpack.c.h.b16 %v94
  %v1230 = vunpack.c.l.b16 %v95
  %v1231 = vunpack.c.h.b16 %v95
  %v1232 = vunpack.c.l.b16 %v96
  %v1233 = vunpack.c.h.b16 %v96
  %v1234 = vunpack.c.l.b16 %v97
  %v1235 = vunpack.c.h.b16 %v97
  %v1236 = vunpack.c.l.b16 %v98
  %v1237 = vunpack.c.h.b16 %v98
  %v1238 = vunpack.c.l.b16 %v99
  %v1239 = vunpack.c.h.b16 %v99
  %v1240 = vunpack.c.l.b16 %v100
  %v1241 = vunpack.c.h.b16 %v100
  %v1242 = vunpack.c.l.b16 %v101
  %v1243 = vunpack.c.h.b16 %v101
  %v1244 = vunpack.c.l.b16 %v102
  %v1245 = vunpack.c.h.b16 %v102
  %v1246 = vunpack.c.l.b16 %v103
  %v1247 = vunpack.c.h.b16 %v103
  %v1248 = vunpack.c.l.b16 %v104
  %v1249 = vunpack.c.h.b16 %v104
  %v1250 = vunpack.c.l.b16 %v105
  %v1251 = vunpack.c.h.b16 %v105
  %v1252 = vunpack.c.l.b16 %v106
  %v1253 = vunpack.c.h.b16 %v106
  %v1254 = vunpack.c.l.b16 %v107
  %v1255 = vunpack.c.h.b16 %v107
  %v1256 = vunpack.c.l.b16 %v108
  %v1257 = vunpack.c.h.b16 %v108
  %v1258 = vunpack.c.l.b16 %v109
  %v1259 = vunpack.c.h.b16 %v109
  %v1260 = vunpack.c.l.b16 %v110
  %v1261 = vunpack.c.h.b16 %v110
  %v1262 = vunpack.c.l.b16 %v111
  %v1263 = vunpack.c.h.b16 %v111
  %v1264 = vunpack.c.l.b16 %v112
  %v1265 = vunpack.c.h.b16 %v112
  %v1266 = vunpack.c.l.b16 %v113
  %v1267 = vunpack.c.h.b16 %v113
  %v1268 = vunpack.c.l.b16 %v114
  %v1269 = vunpack.c.h.b16 %v114
  %v1270 = vunpack.c.l.b16 %v115
  %v1271 = vunpack.c.h.b16 %v115
  %v1272 = vunpack.c.l.b16 %v116
  %v1273 = vunpack.c.h.b16 %v116
  %v1274 = vunpack.c.l.b16 %v117
  %v1275 = vunpack.c.h.b16 %v117
  %v1276 = vunpack.c.l.b16 %v118
  %v1277 = vunpack.c.h.b16 %v118
  %v1278 = vunpack.c.l.b16 %v119
  %v1279 = vunpack.c.h.b16 %v119
  %v1280 = vunpack.c.l.b16 %v120
  %v1281 = vunpack.c.h.b16 %v120
  %v1282 = vunpack.c.l.b16 %v121
  %v1283 = vunpack.c.h.b16 %v121
  %v1284 = vunpack.c.l.b16 %v122
  %v1285 = vunpack.c.h.b16 %v122
  %v1286 = vunpack.c.l.b16 %v123
  %v1287 = vunpack.c.h.b16 %v123
  %v1288 = vunpack.c.l.b16 %v124
  %v1289 = vunpack.c.h.b16 %v124
  %v1290 = vunpack.c.l.b16 %v125
  %v1291 = vunpack.c.h.b16 %v125
  %v1292 = vunpack.c.l.b16 %v126
  %v1293 = vunpack.c.h.b16 %v126
  %v1294 = vunpack.c.l.b16 %v127
  %v1295 = vunpack.c.h.b16 %v127
  %v1296 = vunpack.c.l.b16 %v128
  %v1297 = vunpack.c.h.b16 %v128
  %v1298 = vunpack.c.l.b16 %v129
  %v1299 = vunpack.c.h.b16 %v129
  %v1300 = vunpack.c.l.b16 %v130
  %v1301 = vunpack.c.h.b16 %v130
  %v1302 = vunpack.c.l.b16 %v131
  %v1303 = vunpack.c.h.b16 %v131
  %v1304 = vunpack.c.l.b16 %v132
  %v1305 = vunpack.c.h.b16 %v132
  %v1306 = vunpack.c.l.b16 %v133
  %v1307 = vunpack.c.h.b16 %v133
  %v1308 = vunpack.c.l.b16 %v134
  %v1309 = vunpack.c.h.b16 %v134
  %v1310 = vunpack.c.l.b16 %v135
  %v1311 = vunpack.c.h.b16 %v135
  %v1312 = vunpack.c.l.b16 %v136
  %v1313 = vunpack.c.h.b16 %v136
  %v1314 = vunpack.c.l.b16 %v137
  %v1315 = vunpack.c.h.b16 %v137
  %v1316 = vunpack.c.l.b16 %v138
  %v1317 = vunpack.c.h.b16 %v138
  %v1318 = vunpack.c.l.b16 %v139
  %v1319 = vunpack.c.h.b16 %v139
  %v1320 = vunpack.c.l.b16 %v140
  %v1321 = vunpack.c.h.b16 %v140
  %v1322 = vunpack.c.l.b16 %v141
  %v1323 = vunpack.c.h.b16 %v141
  %v1324 = vunpack.c.l.b16 %v142
  %v1325 = vunpack.c.h.b16 %v142
  %v1326 = vunpack.c.l.b16 %v143
  %v1327 = vunpack.c.h.b16 %v143
  %v1328 = vunpack.c.l.b16 %v144
  %v1329 = vunpack.c.h.b16 %v144
  %v1330 = vunpack.c.l.b16 %v145
  %v1331 = vunpack.c.h.b16 %v145
  %v1332 = vunpack.c.l.b16 %v146
  %v1333 = vunpack.c.h.b16 %v146
  %v1334 = vunpack.c.l.b16 %v147
  %v1335 = vunpack.c.h.b16 %v147
  %v1336 = vunpack.c.l.b16 %v148
  %v1337 = vunpack.c.h.b16 %v148
  %v1338 = vunpack.c.l.b16 %v149
  %v1339 = vunpack.c.h.b16 %v149
  %v1340 = vunpack.c.l.b16 %v150
  %v1341 = vunpack.c.h.b16 %v150
  %v1342 = vunpack.c.l.b16 %v151
  %v1343 = vunpack.c.h.b16 %v151
  %v1344 = vunpack.c.l.b16 %v152
  %v1345 = vunpack.c.h.b16 %v152
  %v1346 = vunpack.c.l.b16 %v153
  %v1347 = vunpack.c.h.b16 %v153
  %v1348 = vunpack.c.l.b16 %v154
  %v1349 = vunpack.c.h.b16 %v154
  %v1350 = vunpack.c.l.b16 %v155
  %v1351 = vunpack.c.h.b16 %v155
  %v1352 = vunpack.c.l.b16 %v156
  %v1353 = vunpack.c.h.b16 %v156
  %v1354 = vunpack.c.l.b16 %v157
  %v1355 = vunpack.c.h.b16 %v157
  %v1356 = vunpack.c.l.b16 %v158
  %v1357 = vunpack.c.h.b16 %v158
  %v1358 = vunpack.c.l.b16 %v159
  %v1359 = vunpack.c.h.b16 %v159
  %v1360 = vunpack.c.l.b16 %v160
  %v1361 = vunpack.c.h.b16 %v160
  %v1362 = vunpack.c.l.b16 %v161
  %v1363 = vunpack.c.h.b16 %v161
  %v1364 = vunpack.c.l.b16 %v162
  %v1365 = vunpack.c.h.b16 %v162
  %v1366 = vunpack.c.l.b16 %v163
  %v1367 = vunpack.c.h.b16 %v163
  %v1368 = vunpack.c.l.b16 %v164
  %v1369 = vunpack.c.h.b16 %v164
  %v1370 = vunpack.c.l.b16 %v165
  %v1371 = vunpack.c.h.b16 %v165
  %v1372 = vunpack.c.l.b16 %v166
  %v1373 = vunpack.c.h.b16 %v166
  %v1374 = vunpack.c.l.b16 %v167
  %v1375 = vunpack.c.h.b16 %v167
  %v1376 = vunpack.c.l.b16 %v168
  %v1377 = vunpack.c.h.b16 %v168
  %v1378 = vunpack.c.l.b16 %v169
  %v1379 = vunpack.c.h.b16 %v169
  %v1380 = vunpack.c.l.b16 %v170
  %v1381 = vunpack.c.h.b16 %v170
  %v1382 = vunpack.c.l.b16 %v171
  %v1383 = vunpack.c.h.b16 %v171
  %v1384 = vunpack.c.l.b16 %v172
  %v1385 = vunpack.c.h.b16 %v172
  %v1386 = vunpack.c.l.b16 %v173
  %v1387 = vunpack.c.h.b16 %v173
  %v1388 = vunpack.c.l.b16 %v174
  %v1389 = vunpack.c.h.b16 %v174
  %v1390 = vunpack.c.l.b16 %v175
  %v1391 = vunpack.c.h.b16 %v175
  %v1392 = vunpack.c.l.b16 %v176
  %v1393 = vunpack.c.h.b16 %v176
  %v1394 = vunpack.c.l.b16 %v177
  %v1395 = vunpack.c.h.b16 %v177
  %v1396 = vunpack.c.l.b16 %v178
  %v1397 = vunpack.c.h.b16 %v178
  %v1398 = vunpack.c.l.b16 %v179
  %v1399 = vunpack.c.h.b16 %v179
  %v1400 = vunpack.c.l.b16 %v180
  %v1401 = vunpack.c.h.b16 %v180
  %v1402 = vunpack.c.l.b16 %v181
  %v1403 = vunpack.c.h.b16 %v181
  %v1404 = vunpack.c.l.b16 %v182
  %v1405 = vunpack.c.h.b16 %v182
  %v1406 = vunpack.c.l.b16 %v183
  %v1407 = vunpack.c.h.b16 %v183
  %v1408 = vunpack.c.l.b16 %v184
  %v1409 = vunpack.c.h.b16 %v184
  %v1410 = vunpack.c.l.b16 %v185
  %v1411 = vunpack.c.h.b16 %v185
  %v1412 = vunpack.c.l.b16 %v186
  %v1413 = vunpack.c.h.b16 %v186
  %v1414 = vunpack.c.l.b16 %v187
  %v1415 = vunpack.c.h.b16 %v187
  %v1416 = vunpack.c.l.b16 %v188
  %v1417 = vunpack.c.h.b16 %v188
  %v1418 = vunpack.c.l.b16 %v189
  %v1419 = vunpack.c.h.b16 %v189
  %v1420 = vunpack.c.l.b16 %v190
  %v1421 = vunpack.c.h.b16 %v190
  %v1422 = vunpack.c.l.b16 %v191
  %v1423 = vunpack.c.h.b16 %v191
  %v1424 = vunpack.c.l.b16 %v192
  %v1425 = vunpack.c.h.b16 %v192
  %v1426 = vunpack.c.l.b16 %v193
  %v1427 = vunpack.c.h.b16 %v193
  %v1428 = vunpack.c.l.b16 %v194
  %v1429 = vunpack.c.h.b16 %v194
  %v1430 = vunpack.c.l.b16 %v195
  %v1431 = vunpack.c.h.b16 %v195
  %v1432 = vunpack.c.l.b16 %v196
  %v1433 = vunpack.c.h.b16 %v196
  %v1434 = vunpack.c.l.b16 %v197
  %v1435 = vunpack.c.h.b16 %v197
  %v1436 = vunpack.c.l.b16 %v198
  %v1437 = vunpack.c.h.b16 %v198
  %v1438 = vunpack.c.l.b16 %v199
  %v1439 = vunpack.c.h.b16 %v199
  %v1440 = vunpack.c.l.b16 %v200
  %v1441 = vunpack.c.h.b16 %v200
  %v1442 = vunpack.c.l.b16 %v201
  %v1443 = vunpack.c.h.b16 %v201
  %v1444 = vunpack.c.l.b16 %v202
  %v1445 = vunpack.c.h.b16 %v202
  %v1446 = vunpack.c.l.b16 %v203
  %v1447 = vunpack.c.h.b16 %v203
  %v1448 = vunpack.c.l.b16 %v204
  %v1449 = vunpack.c.h.b16 %v204
  %v1450 = vunpack.c.l.b16 %v205
  %v1451 = vunpack.c.h.b16 %v205
  %v1452 = vunpack.c.l.b16 %v206
  %v1453 = vunpack.c.h.b16 %v206
  %v1454 = vunpack.c.l.b16 %v207
  %v1455 = vunpack.c.h.b16 %v207
  %v1456 = vunpack.c.l.b16 %v208
  %v1457 = vunpack.c.h.b16 %v208
  %v1458 = vunpack.c.l.b16 %v209
  %v1459 = vunpack.c.h.b16 %v209
  %v1460 = vunpack.c.l.b16 %v210
  %v1461 = vunpack.c.h.b16 %v210
  %v1462 = vunpack.c.l.b16 %v211
  %v1463 = vunpack.c.h.b16 %v211
  %v1464 = vunpack.c.l.b16 %v212
  %v1465 = vunpack.c.h.b16 %v212
  %v1466 = vunpack.c.l.b16 %v213
  %v1467 = vunpack.c.h.b16 %v213
  %v1468 = vunpack.c.l.b16 %v214
  %v1469 = vunpack.c.h.b16 %v214
  %v1470 = vunpack.c.l.b16 %v215
  %v1471 = vunpack.c.h.b16 %v215
  %v1472 = vunpack.c.l.b16 %v216
  %v1473 = vunpack.c.h.b16 %v216
  %v1474 = vunpack.c.l.b16 %v217
  %v1475 = vunpack.c.h.b16 %v217
  %v1476 = vunpack.c.l.b16 %v218
  %v1477 = vunpack.c.h.b16 %v218
  %v1478 = vunpack.c.l.b16 %v219
  %v1479 = vunpack.c.h.b16 %v219
  %v1480 = vunpack.c.l.b16 %v220
  %v1481 = vunpack.c.h.b16 %v220
  %v1482 = vunpack.c.l.b16 %v221
  %v1483 = vunpack.c.h.b16 %v221
  %v1484 = vunpack.c.l.b16 %v222
  %v1485 = vunpack.c.h.b16 %v222
  %v1486 = vunpack.c.l.b16 %v223
  %v1487 = vunpack.c.h.b16 %v223
  %v1488 = vunpack.c.l.b16 %v224
  %v1489 = vunpack.c.h.b16 %v224
  %v1490 = vunpack.c.l.b16 %v225
  %v1491 = vunpack.c.h.b16 %v225
  %v1492 = vunpack.c.l.b16 %v226
  %v1493 = vunpack.c.h.b16 %v226
  %v1494 = vunpack.c.l.b16 %v227
  %v1495 = vunpack.c.h.b16 %v227
  %v1496 = vunpack.c.l.b16 %v228
  %v1497 = vunpack.c.h.b16 %v228
  %v1498 = vunpack.c.l.b16 %v229
  %v1499 = vunpack.c.h.b16 %v229
  %v1500 = vunpack.c.l.b16 %v230
  %v1501 = vunpack.c.h.b16 %v230
  %v1502 = vunpack.c.l.b16 %v231
  %v1503 = vunpack.c.h.b16 %v231
  %v1504 = vunpack.c.l.b16 %v232
  %v1505 = vunpack.c.h.b16 %v232
  %v1506 = vunpack.c.l.b16 %v233
  %v1507 = vunpack.c.h.b16 %v233
  %v1508 = vunpack.c.l.b16 %v234
  %v1509 = vunpack.c.h.b16 %v234
  %v1510 = vunpack.c.l.b16 %v235
  %v1511 = vunpack.c.h.b16 %v235
  %v1512 = vunpack.c.l.b16 %v236
  %v1513 = vunpack.c.h.b16 %v236
  %v1514 = vunpack.c.l.b16 %v237
  %v1515 = vunpack.c.h.b16 %v237
  %v1516 = vunpack.c.l.b16 %v238
  %v1517 = vunpack.c.h.b16 %v238
  %v1518 = vunpack.c.l.b16 %v239
  %v1519 = vunpack.c.h.b16 %v239
  %v1520 = vunpack.c.l.b16 %v240
  %v1521 = vunpack.c.h.b16 %v240
  %v1522 = vunpack.c.l.b16 %v241
  %v1523 = vunpack.c.h.b16 %v241
  %v1524 = vunpack.c.l.b16 %v242
  %v1525 = vunpack.c.h.b16 %v242
  %v1526 = vunpack.c.l.b16 %v243
  %v1527 = vunpack.c.h.b16 %v243
  %v1528 = vunpack.c.l.b16 %v244
  %v1529 = vunpack.c.h.b16 %v244
  %v1530 = vunpack.c.l.b16 %v245
  %v1531 = vunpack.c.h.b16 %v245
  %v1532 = vunpack.c.l.b16 %v246
  %v1533 = vunpack.c.h.b16 %v246
  %v1534 = vunpack.c.l.b16 %v247
  %v1535 = vunpack.c.h.b16 %v247
  %v1536 = vunpack.c.l.b16 %v248
  %v1537 = vunpack.c.h.b16 %v248
  %v1538 = vunpack.c.l.b16 %v249
  %v1539 = vunpack.c.h.b16 %v249
  %v1540 = vunpack.c.l.b16 %v250
  %v1541 = vunpack.c.h.b16 %v250
  %v1542 = vunpack.c.l.b16 %v251
  %v1543 = vunpack.c.h.b16 %v251
  %v1544 = vunpack.c.l.b16 %v252
  %v1545 = vunpack.c.h.b16 %v252
  %v1546 = vunpack.c.l.b16 %v253
  %v1547 = vunpack.c.h.b16 %v253
  %v1548 = vunpack.c.l.b16 %v254
  %v1549 = vunpack.c.h.b16 %v254
  %v1550 = vunpack.c.l.b16 %v255
  %v1551 = vunpack.c.h.b16 %v255
  %v1552 = vunpack.c.l.b16 %v256
  %v1553 = vunpack.c.h.b16 %v256
  %v1554 = vunpack.c.l.b16 %v257
  %v1555 = vunpack.c.h.b16 %v257
  %v1556 = vunpack.c.l.b16 %v258
  %v1557 = vunpack.c.h.b16 %v258
  %v1558 = vunpack.c.l.b16 %v259
  %v1559 = vunpack.c.h.b16 %v259
  %v1560 = vunpack.c.l.b16 %v260
  %v1561 = vunpack.c.h.b16 %v260
  %v1562 = vunpack.c.l.b16 %v261
  %v1563 = vunpack.c.h.b16 %v261
  %v1564 = vunpack.c.l.b16 %v262
  %v1565 = vunpack.c.h.b16 %v262
  %v1566 = vunpack.c.l.b16 %v263
  %v1567 = vunpack.c.h.b16 %v263
  %v1568 = vunpack.c.l.b16 %v264
  %v1569 = vunpack.c.h.b16 %v264
  %v1570 = vunpack.c.l.b16 %v265
  %v1571 = vunpack.c.h.b16 %v265
  %v1572 = vunpack.c.l.b16 %v266
  %v1573 = vunpack.c.h.b16 %v266
  %v1574 = vunpack.c.l.b16 %v267
  %v1575 = vunpack.c.h.b16 %v267
  %v1576 = vunpack.c.l.b16 %v268
  %v1577 = vunpack.c.h.b16 %v268
  %v1578 = vunpack.c.l.b16 %v269
  %v1579 = vunpack.c.h.b16 %v269
  %v1580 = vunpack.c.l.b16 %v270
  %v1581 = vunpack.c.h.b16 %v270
  %v1582 = vunpack.c.l.b16 %v271
  %v1583 = vunpack.c.h.b16 %v271
  %v1584 = vunpack.c.l.b16 %v272
  %v1585 = vunpack.c.h.b16 %v272
  %v1586 = vunpack.c.l.b16 %v273
  %v1587 = vunpack.c.h.b16 %v273
  %v1588 = vunpack.c.l.b16 %v274
  %v1589 = vunpack.c.h.b16 %v274
  %v1590 = vunpack.c.l.b16 %v275
  %v1591 = vunpack.c.h.b16 %v275
  %v1592 = vunpack.c.l.b16 %v276
  %v1593 = vunpack.c.h.b16 %v276
  %v1594 = vunpack.c.l.b16 %v277
  %v1595 = vunpack.c.h.b16 %v277
  %v1596 = vunpack.c.l.b16 %v278
  %v1597 = vunpack.c.h.b16 %v278
  %v1598 = vunpack.c.l.b16 %v279
  %v1599 = vunpack.c.h.b16 %v279
  %v1600 = vunpack.c.l.b16 %v280
  %v1601 = vunpack.c.h.b16 %v280
  %v1602 = vunpack.c.l.b16 %v281
  %v1603 = vunpack.c.h.b16 %v281
  %v1604 = vunpack.c.l.b16 %v282
  %v1605 = vunpack.c.h.b16 %v282
  %v1606 = vunpack.c.l.b16 %v283
  %v1607 = vunpack.c.h.b16 %v283
  %v1608 = vunpack.c.l.b16 %v284
  %v1609 = vunpack.c.h.b16 %v284
  %v1610 = vunpack.c.l.b16 %v285
  %v1611 = vunpack.c.h.b16 %v285
  %v1612 = vunpack.c.l.b16 %v286
  %v1613 = vunpack.c.h.b16 %v286
  %v1614 = vunpack.c.l.b16 %v287
  %v1615 = vunpack.c.h.b16 %v287
  %v1616 = vunpack.c.l.b16 %v288
  %v1617 = vunpack.c.h.b16 %v288
  %v1618 = vunpack.c.l.b16 %v289
  %v1619 = vunpack.c.h.b16 %v289
  %v1620 = vunpack.c.l.b16 %v290
  %v1621 = vunpack.c.h.b16 %v290
  %v1622 = vunpack.c.l.b16 %v291
  %v1623 = vunpack.c.h.b16 %v291
  %v1624 = vunpack.c.l.b16 %v292
  %v1625 = vunpack.c.h.b16 %v292
  %v1626 = vunpack.c.l.b16 %v293
  %v1627 = vunpack.c.h.b16 %v293
  %v1628 = vunpack.c.l.b16 %v294
  %v1629 = vunpack.c.h.b16 %v294
  %v1630 = vunpack.c.l.b16 %v295
  %v1631 = vunpack.c.h.b16 %v295
  %v1632 = vunpack.c.l.b16 %v296
  %v1633 = vunpack.c.h.b16 %v296
  %v1634 = vunpack.c.l.b16 %v297
  %v1635 = vunpack.c.h.b16 %v297
  %v1636 = vunpack.c.l.b16 %v298
  %v1637 = vunpack.c.h.b16 %v298
  %v1638 = vunpack.c.l.b16 %v299
  %v1639 = vunpack.c.h.b16 %v299
  %v1640 = vunpack.c.l.b16 %v300
  %v1641 = vunpack.c.h.b16 %v300
  %v1642 = vunpack.c.l.b16 %v301
  %v1643 = vunpack.c.h.b16 %v301
  %v1644 = vunpack.c.l.b16 %v302
  %v1645 = vunpack.c.h.b16 %v302
  %v1646 = vunpack.c.l.b16 %v303
  %v1647 = vunpack.c.h.b16 %v303
  %v1648 = vunpack.c.l.b16 %v304
  %v1649 = vunpack.c.h.b16 %v304
  %v1650 = vunpack.c.l.b16 %v305
  %v1651 = vunpack.c.h.b16 %v305
  %v1652 = vunpack.c.l.b16 %v306
  %v1653 = vunpack.c.h.b16 %v306
  %v1654 = vunpack.c.l.b16 %v307
  %v1655 = vunpack.c.h.b16 %v307
  %v1656 = vunpack.c.l.b16 %v308
  %v1657 = vunpack.c.h.b16 %v308
  %v1658 = vunpack.c.l.b16 %v309
  %v1659 = vunpack.c.h.b16 %v309
  %v1660 = vunpack.c.l.b16 %v310
  %v1661 = vunpack.c.h.b16 %v310
  %v1662 = vunpack.c.l.b16 %v311
  %v1663 = vunpack.c.h.b16 %v311
  %v1664 = vunpack.c.l.b16 %v312
  %v1665 = vunpack.c.h.b16 %v312
  %v1666 = vunpack.c.l.b16 %v313
  %v1667 = vunpack.c.h.b16 %v313
  %v1668 = vunpack.c.l.b16 %v314
  %v1669 = vunpack.c.h.b16 %v314
  %v1670 = vunpack.c.l.b16 %v315
  %v1671 = vunpack.c.h.b16 %v315
  %v1672 = vunpack.c.l.b16 %v316
  %v1673 = vunpack.c.h.b16 %v316
  %v1674 = vunpack.c.l.b16 %v317
  %v1675 = vunpack.c.h.b16 %v317
  %v1676 = vunpack.c.l.b16 %v318
  %v1677 = vunpack.c.h.b16 %v318
  %v1678 = vunpack.c.l.b16 %v319
  %v1679 = vunpack.c.h.b16 %v319
  %v1680 = vunpack.c.l.b16 %v320
  %v1681 = vunpack.c.h.b16 %v320
  %v1682 = vunpack.c.l.b16 %v321
  %v1683 = vunpack.c.h.b16 %v321
  %v1684 = vunpack.c.l.b16 %v322
  %v1685 = vunpack.c.h.b16 %v322
  %v1686 = vunpack.c.l.b16 %v323
  %v1687 = vunpack.c.h.b16 %v323
  %v1688 = vunpack.c.l.b16 %v324
  %v1689 = vunpack.c.h.b16 %v324
  %v1690 = vunpack.c.l.b16 %v325
  %v1691 = vunpack.c.h.b16 %v325
  %v1692 = vunpack.c.l.b16 %v326
  %v1693 = vunpack.c.h.b16 %v326
  %v1694 = vunpack.c.l.b16 %v327
  %v1695 = vunpack.c.h.b16 %v327
  %v1696 = vunpack.c.l.b16 %v328
  %v1697 = vunpack.c.h.b16 %v328
  %v1698 = vunpack.c.l.b16 %v329
  %v1699 = vunpack.c.h.b16 %v329
  %v1700 = vunpack.c.l.b16 %v330
  %v1701 = vunpack.c.h.b16 %v330
  %v1702 = vunpack.c.l.b16 %v331
  %v1703 = vunpack.c.h.b16 %v331
  %v1704 = vunpack.c.l.b16 %v332
  %v1705 = vunpack.c.h.b16 %v332
  %v1706 = vunpack.c.l.b16 %v333
  %v1707 = vunpack.c.h.b16 %v333
  %v1708 = vunpack.c.l.b16 %v334
  %v1709 = vunpack.c.h.b16 %v334
  %v1710 = vunpack.c.l.b16 %v335
  %v1711 = vunpack.c.h.b16 %v335
  %v1712 = vunpack.c.l.b16 %v336
  %v1713 = vunpack.c.h.b16 %v336
  %v1714 = vunpack.c.l.b16 %v337
  %v1715 = vunpack.c.h.b16 %v337
  %v1716 = vunpack.c.l.b16 %v338
  %v1717 = vunpack.c.h.b16 %v338
  %v1718 = vunpack.c.l.b16 %v339
  %v1719 = vunpack.c.h.b16 %v339
  %v1720 = vunpack.c.l.b16 %v340
  %v1721 = vunpack.c.h.b16 %v340
  %v1722 = vunpack.c.l.b16 %v341
  %v1723 = vunpack.c.h.b16 %v341
  %v1724 = vunpack.c.l.b16 %v342
  %v1725 = vunpack.c.h.b16 %v342
  %v1726 = vunpack.c.l.b16 %v343
  %v1727 = vunpack.c.h.b16 %v343
  %v1728 = vunpack.c.l.b16 %v344
  %v1729 = vunpack.c.h.b16 %v344
  %v1730 = vunpack.c.l.b16 %v345
  %v1731 = vunpack.c.h.b16 %v345
  %v1732 = vunpack.c.l.b16 %v346
  %v1733 = vunpack.c.h.b16 %v346
  %v1734 = vunpack.c.l.b16 %v347
  %v1735 = vunpack.c.h.b16 %v347
  %v1736 = vunpack.c.l.b16 %v348
  %v1737 = vunpack.c.h.b16 %v348
  %v1738 = vunpack.c.l.b16 %v349
  %v1739 = vunpack.c.h.b16 %v349
  %v1740 = vunpack.c.l.b16 %v350
  %v1741 = vunpack.c.h.b16 %v350
  %v1742 = vunpack.c.l.b16 %v351
  %v1743 = vunpack.c.h.b16 %v351
  %v1744 = vunpack.c.l.b16 %v352
  %v1745 = vunpack.c.h.b16 %v352
  %v1746 = vunpack.c.l.b16 %v353
  %v1747 = vunpack.c.h.b16 %v353
  %v1748 = vunpack.c.l.b16 %v354
  %v1749 = vunpack.c.h.b16 %v354
  %v1750 = vunpack.c.l.b16 %v355
  %v1751 = vunpack.c.h.b16 %v355
  %v1752 = vunpack.c.l.b16 %v356
  %v1753 = vunpack.c.h.b16 %v356
  %v1754 = vunpack.c.l.b16 %v357
  %v1755 = vunpack.c.h.b16 %v357
  %v1756 = vunpack.c.l.b16 %v358
  %v1757 = vunpack.c.h.b16 %v358
  %v1758 = vunpack.c.l.b16 %v359
  %v1759 = vunpack.c.h.b16 %v359
  %v1760 = vunpack.c.l.b16 %v360
  %v1761 = vunpack.c.h.b16 %v360
  %v1762 = vunpack.c.l.b16 %v361
  %v1763 = vunpack.c.h.b16 %v361
  %v1764 = vunpack.c.l.b16 %v362
  %v1765 = vunpack.c.h.b16 %v362
  %v1766 = vunpack.c.l.b16 %v363
  %v1767 = vunpack.c.h.b16 %v363
  %v1768 = vunpack.c.l.b16 %v364
  %v1769 = vunpack.c.h.b16 %v364
  %v1770 = vunpack.c.l.b16 %v365
  %v1771 = vunpack.c.h.b16 %v365
  %v1772 = vunpack.c.l.b16 %v366
  %v1773 = vunpack.c.h.b16 %v366
  %v1774 = vunpack.c.l.b16 %v367
  %v1775 = vunpack.c.h.b16 %v367
  %v1776 = vunpack.c.l.b16 %v368
  %v1777 = vunpack.c.h.b16 %v368
  %v1778 = vunpack.c.l.b16 %v369
  %v1779 = vunpack.c.h.b16 %v369
  %v1780 = vunpack.c.l.b16 %v370
  %v1781 = vunpack.c.h.b16 %v370
  %v1782 = vunpack.c.l.b16 %v371
  %v1783 = vunpack.c.h.b16 %v371
  %v1784 = vunpack.c.l.b16 %v372
  %v1785 = vunpack.c.h.b16 %v372
  %v1786 = vunpack.c.l.b16 %v373
  %v1787 = vunpack.c.h.b16 %v373
  %v1788 = vunpack.c.l.b16 %v374
  %v1789 = vunpack.c.h.b16 %v374
  %v1790 = vunpack.c.l.b16 %v375
  %v1791 = vunpack.c.h.b16 %v375
  %v1792 = vunpack.c.l.b16 %v376
  %v1793 = vunpack.c.h.b16 %v376
  %v1794 = vunpack.c.l.b16 %v377
  %v1795 = vunpack.c.h.b16 %v377
  %v1796 = vunpack.c.l.b16 %v378
  %v1797 = vunpack.c.h.b16 %v378
  %v1798 = vunpack.c.l.b16 %v379
  %v1799 = vunpack.c.h.b16 %v379
  %v1800 = vunpack.c.l.b16 %v380
  %v1801 = vunpack.c.h.b16 %v380
  %v1802 = vunpack.c.l.b16 %v381
  %v1803 = vunpack.c.h.b16 %v381
  %v1804 = vunpack.c.l.b16 %v382
  %v1805 = vunpack.c.h.b16 %v382
  %v1806 = vunpack.c.l.b16 %v383
  %v1807 = vunpack.c.h.b16 %v383
  %v1808 = vunpack.c.l.b16 %v384
  %v1809 = vunpack.c.h.b16 %v384
  %v1810 = vunpack.c.l.b16 %v385
  %v1811 = vunpack.c.h.b16 %v385
  %v1812 = vunpack.c.l.b16 %v386
  %v1813 = vunpack.c.h.b16 %v386
  %v1814 = vunpack.c.l.b16 %v387
  %v1815 = vunpack.c.h.b16 %v387
  %v1816 = vunpack.c.l.b16 %v388
  %v1817 = vunpack.c.h.b16 %v388
  %v1818 = vunpack.c.l.b16 %v389
  %v1819 = vunpack.c.h.b16 %v389
  %v1820 = vunpack.c.l.b16 %v390
  %v1821 = vunpack.c.h.b16 %v390
  %v1822 = vunpack.c.l.b16 %v391
  %v1823 = vunpack.c.h.b16 %v391
  %v1824 = vunpack.c.l.b16 %v392
  %v1825 = vunpack.c.h.b16 %v392
  %v1826 = vunpack.c.l.b16 %v393
  %v1827 = vunpack.c.h.b16 %v393
  %v1828 = vunpack.c.l.b16 %v394
  %v1829 = vunpack.c.h.b16 %v394
  %v1830 = vunpack.c.l.b16 %v395
  %v1831 = vunpack.c.h.b16 %v395
  %v1832 = vunpack.c.l.b16 %v396
  %v1833 = vunpack.c.h.b16 %v396
  %v1834 = vunpack.c.l.b16 %v397
  %v1835 = vunpack.c.h.b16 %v397
  %v1836 = vunpack.c.l.b16 %v398
  %v1837 = vunpack.c.h.b16 %v398
  %v1838 = vunpack.c.l.b16 %v399
  %v1839 = vunpack.c.h.b16 %v399
  %v1840 = vunpack.c.l.b16 %v400
  %v1841 = vunpack.c.h.b16 %v400
  %v1842 = vunpack.c.l.b16 %v401
  %v1843 = vunpack.c.h.b16 %v401
  %v1844 = vunpack.c.l.b16 %v402
  %v1845 = vunpack.c.h.b16 %v402
  %v1846 = vunpack.c.l.b16 %v403
  %v1847 = vunpack.c.h.b16 %v403
  %v1848 = vunpack.c.l.b16 %v404
  %v1849 = vunpack.c.h.b16 %v404
  %v1850 = vunpack.c.l.b16 %v405
  %v1851 = vunpack.c.h.b16 %v405
  %v1852 = vunpack.c.l.b16 %v406
  %v1853 = vunpack.c.h.b16 %v406
  %v1854 = vunpack.c.l.b16 %v407
  %v1855 = vunpack.c.h.b16 %v407
  %v1856 = vunpack.c.l.b16 %v408
  %v1857 = vunpack.c.h.b16 %v408
  %v1858 = vunpack.c.l.b16 %v409
  %v1859 = vunpack.c.h.b16 %v409
  %v1860 = vunpack.c.l.b16 %v410
  %v1861 = vunpack.c.h.b16 %v410
  %v1862 = vunpack.c.l.b16 %v411
  %v1863 = vunpack.c.h.b16 %v411
  %v1864 = vunpack.c.l.b16 %v412
  %v1865 = vunpack.c.h.b16 %v412
  %v1866 = vunpack.c.l.b16 %v413
  %v1867 = vunpack.c.h.b16 %v413
  %v1868 = vunpack.c.l.b16 %v414
  %v1869 = vunpack.c.h.b16 %v414
  %v1870 = vunpack.c.l.b16 %v415
  %v1871 = vunpack.c.h.b16 %v415
  %v1872 = vunpack.c.l.b16 %v416
  %v1873 = vunpack.c.h.b16 %v416
  %v1874 = vunpack.c.l.b16 %v417
  %v1875 = vunpack.c.h.b16 %v417
  %v1876 = vunpack.c.l.b16 %v418
  %v1877 = vunpack.c.h.b16 %v418
  %v1878 = vunpack.c.l.b16 %v419
  %v1879 = vunpack.c.h.b16 %v419
  %v1880 = vunpack.c.l.b16 %v420
  %v1881 = vunpack.c.h.b16 %v420
  %v1882 = vunpack.c.l.b16 %v421
  %v1883 = vunpack.c.h.b16 %v421
  %v1884 = vunpack.c.l.b16 %v422
  %v1885 = vunpack.c.h.b16 %v422
  %v1886 = vunpack.c.l.b16 %v423
  %v1887 = vunpack.c.h.b16 %v423
  %v1888 = vunpack.c.l.b16 %v424
  %v1889 = vunpack.c.h.b16 %v424
  %v1890 = vunpack.c.l.b16 %v425
  %v1891 = vunpack.c.h.b16 %v425
  %v1892 = vunpack.c.l.b16 %v426
  %v1893 = vunpack.c.h.b16 %v426
  %v1894 = vunpack.c.l.b16 %v427
  %v1895 = vunpack.c.h.b16 %v427
  %v1896 = vunpack.c.l.b16 %v428
  %v1897 = vunpack.c.h.b16 %v428
  %v1898 = vunpack.c.l.b16 %v429
  %v1899 = vunpack.c.h.b16 %v429
  %v1900 = vunpack.c.l.b16 %v430
  %v1901 = vunpack.c.h.b16 %v430
  %v1902 = vunpack.c.l.b16 %v431
  %v1903 = vunpack.c.h.b16 %v431
  %v1904 = vunpack.c.l.b16 %v432
  %v1905 = vunpack.c.h.b16 %v432
  %v1906 = vunpack.c.l.b16 %v433
  %v1907 = vunpack.c.h.b16 %v433
  %v1908 = vunpack.c.l.b16 %v434
  %v1909 = vunpack.c.h.b16 %v434
  %v1910 = vunpack.c.l.b16 %v435
  %v1911 = vunpack.c.h.b16 %v435
  %v1912 = vunpack.c.l.b16 %v436
  %v1913 = vunpack.c.h.b16 %v436
  %v1914 = vunpack.c.l.b16 %v437
  %v1915 = vunpack.c.h.b16 %v437
  %v1916 = vunpack.c.l.b16 %v438
  %v1917 = vunpack.c.h.b16 %v438
  %v1918 = vunpack.c.l.b16 %v439
  %v1919 = vunpack.c.h.b16 %v439
  %v1920 = vunpack.c.l.b16 %v440
  %v1921 = vunpack.c.h.b16 %v440
  %v1922 = vunpack.c.l.b16 %v441
  %v1923 = vunpack.c.h.b16 %v441
  %v1924 = vunpack.c.l.b16 %v442
  %v1925 = vunpack.c.h.b16 %v442
  %v1926 = vunpack.c.l.b16 %v443
  %v1927 = vunpack.c.h.b16 %v443
  %v1928 = vunpack.c.l.b16 %v444
  %v1929 = vunpack.c.h.b16 %v444
  %v1930 = vunpack.c.l.b16 %v445
  %v1931 = vunpack.c.h.b16 %v445
  %v1932 = vunpack.c.l.b16 %v446
  %v1933 = vunpack.c.h.b16 %v446
  %v1934 = vunpack.c.l.b16 %v447
  %v1935 = vunpack.c.h.b16 %v447
  %v1936 = vunpack.c.l.b16 %v448
  %v1937 = vunpack.c.h.b16 %v448
  %v1938 = vunpack.c.l.b16 %v449
  %v1939 = vunpack.c.h.b16 %v449
  %v1940 = vunpack.c.l.b16 %v450
  %v1941 = vunpack.c.h.b16 %v450
  %v1942 = vunpack.c.l.b16 %v451
  %v1943 = vunpack.c.h.b16 %v451
  %v1944 = vunpack.c.l.b16 %v452
  %v1945 = vunpack.c.h.b16 %v452
  %v1946 = vunpack.c.l.b16 %v453
  %v1947 = vunpack.c.h.b16 %v453
  %v1948 = vunpack.c.l.b16 %v454
  %v1949 = vunpack.c.h.b16 %v454
  %v1950 = vunpack.c.l.b16 %v455
  %v1951 = vunpack.c.h.b16 %v455
  %v1952 = vunpack.c.l.b16 %v456
  %v1953 = vunpack.c.h.b16 %v456
  %v1954 = vunpack.c.l.b16 %v457
  %v1955 = vunpack.c.h.b16 %v457
  %v1956 = vunpack.c.l.b16 %v458
  %v1957 = vunpack.c.h.b16 %v458
  %v1958 = vunpack.c.l.b16 %v459
  %v1959 = vunpack.c.h.b16 %v459
  %v1960 = vunpack.c.l.b16 %v460
  %v1961 = vunpack.c.h.b16 %v460
  %v1962 = vunpack.c.l.b16 %v461
  %v1963 = vunpack.c.h.b16 %v461
  %v1964 = vunpack.c.l.b16 %v462
  %v1965 = vunpack.c.h.b16 %v462
  %v1966 = vunpack.c.l.b16 %v463
  %v1967 = vunpack.c.h.b16 %v463
  %v1968 = vunpack.c.l.b16 %v464
  %v1969 = vunpack.c.h.b16 %v464
  %v1970 = vunpack.c.l.b16 %v465
  %v1971 = vunpack.c.h.b16 %v465
  %v1972 = vunpack.c.l.b16 %v466
  %v1973 = vunpack.c.h.b16 %v466
  %v1974 = vunpack.c.l.b16 %v467
  %v1975 = vunpack.c.h.b16 %v467
  %v1976 = vunpack.c.l.b16 %v468
  %v1977 = vunpack.c.h.b16 %v468
  %v1978 = vunpack.c.l.b16 %v469
  %v1979 = vunpack.c.h.b16 %v469
  %v1980 = vunpack.c.l.b16 %v470
  %v1981 = vunpack.c.h.b16 %v470
  %v1982 = vunpack.c.l.b16 %v471
  %v1983 = vunpack.c.h.b16 %v471
  %v1984 = vunpack.c.l.b16 %v472
  %v1985 = vunpack.c.h.b16 %v472
  %v1986 = vunpack.c.l.b16 %v473
  %v1987 = vunpack.c.h.b16 %v473
  %v1988 = vunpack.c.l.b16 %v474
  %v1989 = vunpack.c.h.b16 %v474
  %v1990 = vunpack.c.l.b16 %v475
  %v1991 = vunpack.c.h.b16 %v475
  %v1992 = vunpack.c.l.b16 %v476
  %v1993 = vunpack.c.h.b16 %v476
  %v1994 = vunpack.c.l.b16 %v477
  %v1995 = vunpack.c.h.b16 %v477
  %v1996 = vunpack.c.l.b16 %v478
  %v1997 = vunpack.c.h.b16 %v478
  %v1998 = vunpack.c.l.b16 %v479
  %v1999 = vunpack.c.h.b16 %v479
  %v2000 = vunpack.c.l.b16 %v480
  %v2001 = vunpack.c.h.b16 %v480
  %v2002 = vunpack.c.l.b16 %v481
  %v2003 = vunpack.c.h.b16 %v481
  %v2004 = vunpack.c.l.b16 %v482
  %v2005 = vunpack.c.h.b16 %v482
  %v2006 = vunpack.c.l.b16 %v483
  %v2007 = vunpack.c.h.b16 %v483
  %v2008 = vunpack.c.l.b16 %v484
  %v2009 = vunpack.c.h.b16 %v484
  %v2010 = vunpack.c.l.b16 %v485
  %v2011 = vunpack.c.h.b16 %v485
  %v2012 = vunpack.c.l.b16 %v486
  %v2013 = vunpack.c.h.b16 %v486
  %v2014 = vunpack.c.l.b16 %v487
  %v2015 = vunpack.c.h.b16 %v487
  %v2016 = vunpack.c.l.b16 %v488
  %v2017 = vunpack.c.h.b16 %v488
  %v2018 = vunpack.c.l.b16 %v489
  %v2019 = vunpack.c.h.b16 %v489
  %v2020 = vunpack.c.l.b16 %v490
  %v2021 = vunpack.c.h.b16 %v490
  %v2022 = vunpack.c.l.b16 %v491
  %v2023 = vunpack.c.h.b16 %v491
  %v2024 = vunpack.c.l.b16 %v492
  %v2025 = vunpack.c.h.b16 %v492
  %v2026 = vunpack.c.l.b16 %v493
  %v2027 = vunpack.c.h.b16 %v493
  %v2028 = vunpack.c.l.b16 %v494
  %v2029 = vunpack.c.h.b16 %v494
  %v2030 = vunpack.c.l.b16 %v495
  %v2031 = vunpack.c.h.b16 %v495
  %v2032 = vunpack.c.l.b16 %v496
  %v2033 = vunpack.c.h.b16 %v496
  %v2034 = vunpack.c.l.b16 %v497
  %v2035 = vunpack.c.h.b16 %v497
  %v2036 = vunpack.c.l.b16 %v498
  %v2037 = vunpack.c.h.b16 %v498
  %v2038 = vunpack.c.l.b16 %v499
  %v2039 = vunpack.c.h.b16 %v499
  %v2040 = vunpack.c.l.b16 %v500
  %v2041 = vunpack.c.h.b16 %v500
  %v2042 = vunpack.c.l.b16 %v501
  %v2043 = vunpack.c.h.b16 %v501
  %v2044 = vunpack.c.l.b16 %v502
  %v2045 = vunpack.c.h.b16 %v502
  %v2046 = vunpack.c.l.b16 %v503
  %v2047 = vunpack.c.h.b16 %v503
  %v2048 = vunpack.c.l.b16 %v504
  %v2049 = vunpack.c.h.b16 %v504
  %v2050 = vunpack.c.l.b16 %v505
  %v2051 = vunpack.c.h.b16 %v505
  %v2052 = vunpack.c.l.b16 %v506
  %v2053 = vunpack.c.h.b16 %v506
  %v2054 = vunpack.c.l.b16 %v507
  %v2055 = vunpack.c.h.b16 %v507
  %v2056 = vunpack.c.l.b16 %v508
  %v2057 = vunpack.c.h.b16 %v508
  %v2058 = vunpack.c.l.b16 %v509
  %v2059 = vunpack.c.h.b16 %v509
  %v2060 = vunpack.c.l.b16 %v510
  %v2061 = vunpack.c.h.b16 %v510
  %v2062 = vunpack.c.l.b16 %v511
  %v2063 = vunpack.c.h.b16 %v511
  %v2064 = vunpack.c.l.b16 %v512
  %v2065 = vunpack.c.h.b16 %v512
  %v2066 = vunpack.c.l.b16 %v513
  %v2067 = vunpack.c.h.b16 %v513
  %v2068 = vunpack.c.l.b16 %v514
  %v2069 = vunpack.c.h.b16 %v514
  %v2070 = vunpack.c.l.b16 %v515
  %v2071 = vunpack.c.h.b16 %v515
  %v2072 = vunpack.c.l.b16 %v516
  %v2073 = vunpack.c.h.b16 %v516
  %v2074 = vunpack.c.l.b16 %v517
  %v2075 = vunpack.c.h.b16 %v517
  %v2076 = vunpack.c.l.b16 %v518
  %v2077 = vunpack.c.h.b16 %v518
  %v2078 = vunpack.c.l.b16 %v519
  %v2079 = vunpack.c.h.b16 %v519
  %v2080 = vunpack.c.l.b16 %v520
  %v2081 = vunpack.c.h.b16 %v520
  %v2082 = vunpack.c.l.b16 %v521
  %v2083 = vunpack.c.h.b16 %v521
  %v2084 = vunpack.c.l.b16 %v522
  %v2085 = vunpack.c.h.b16 %v522
  %v2086 = vunpack.c.l.b16 %v523
  %v2087 = vunpack.c.h.b16 %v523
  %v2088 = vunpack.c.l.b16 %v524
  %v2089 = vunpack.c.h.b16 %v524
  %v2090 = vunpack.c.l.b16 %v525
  %v2091 = vunpack.c.h.b16 %v525
  %v2092 = vunpack.c.l.b16 %v526
  %v2093 = vunpack.c.h.b16 %v526
  %v2094 = vunpack.c.l.b16 %v527
  %v2095 = vunpack.c.h.b16 %v527
  %v2096 = vunpack.c.l.b16 %v528
  %v2097 = vunpack.c.h.b16 %v528
  %v2098 = vunpack.c.l.b16 %v529
  %v2099 = vunpack.c.h.b16 %v529
  %v2100 = vunpack.c.l.b16 %v530
  %v2101 = vunpack.c.h.b16 %v530
  %v2102 = vunpack.c.l.b16 %v531
  %v2103 = vunpack.c.h.b16 %v531
  %v2104 = vunpack.c.l.b16 %v532
  %v2105 = vunpack.c.h.b16 %v532
  %v2106 = vunpack.c.l.b16 %v533
  %v2107 = vunpack.c.h.b16 %v533
  %v2108 = vunpack.c.l.b16 %v534
  %v2109 = vunpack.c.h.b16 %v534
  %v2110 = vunpack.c.l.b16 %v535
  %v2111 = vunpack.c.h.b16 %v535
  %v2112 = vunpack.c.l.b16 %v536
  %v2113 = vunpack.c.h.b16 %v536
  %v2114 = vunpack.c.l.b16 %v537
  %v2115 = vunpack.c.h.b16 %v537
  %v2116 = vunpack.c.l.b16 %v538
  %v2117 = vunpack.c.h.b16 %v538
  %v2118 = vunpack.c.l.b16 %v539
  %v2119 = vunpack.c.h.b16 %v539
  %v2120 = vunpack.c.l.b16 %v540
  %v2121 = vunpack.c.h.b16 %v540
  %v2122 = vunpack.c.l.b16 %v541
  %v2123 = vunpack.c.h.b16 %v541
  %v2124 = vunpack.c.l.b16 %v542
  %v2125 = vunpack.c.h.b16 %v542
  %v2126 = vunpack.c.l.b16 %v543
  %v2127 = vunpack.c.h.b16 %v543
  %v2128 = vunpack.c.l.b16 %v544
  %v2129 = vunpack.c.h.b16 %v544
  %v2130 = vunpack.c.l.b16 %v545
  %v2131 = vunpack.c.h.b16 %v545
  %v2132 = vunpack.c.l.b16 %v546
  %v2133 = vunpack.c.h.b16 %v546
  %v2134 = vunpack.c.l.b16 %v547
  %v2135 = vunpack.c.h.b16 %v547
  %v2136 = vunpack.c.l.b16 %v548
  %v2137 = vunpack.c.h.b16 %v548
  %v2138 = vunpack.c.l.b16 %v549
  %v2139 = vunpack.c.h.b16 %v549
  %v2140 = vunpack.c.l.b16 %v550
  %v2141 = vunpack.c.h.b16 %v550
  %v2142 = vunpack.c.l.b16 %v551
  %v2143 = vunpack.c.h.b16 %v551
  %v2144 = vunpack.c.l.b16 %v552
  %v2145 = vunpack.c.h.b16 %v552
  %v2146 = vunpack.c.l.b16 %v553
  %v2147 = vunpack.c.h.b16 %v553
  %v2148 = vunpack.c.l.b16 %v554
  %v2149 = vunpack.c.h.b16 %v554
  %v2150 = vunpack.c.l.b16 %v555
  %v2151 = vunpack.c.h.b16 %v555
  %v2152 = vunpack.c.l.b16 %v556
  %v2153 = vunpack.c.h.b16 %v556
  %v2154 = vunpack.c.l.b16 %v557
  %v2155 = vunpack.c.h.b16 %v557
  %v2156 = vunpack.c.l.b16 %v558
  %v2157 = vunpack.c.h.b16 %v558
  %v2158 = vunpack.c.l.b16 %v559
  %v2159 = vunpack.c.h.b16 %v559
  %v2160 = vunpack.c.l.b16 %v560
  %v2161 = vunpack.c.h.b16 %v560
  %v2162 = vunpack.c.l.b16 %v561
  %v2163 = vunpack.c.h.b16 %v561
  %v2164 = vunpack.c.l.b16 %v562
  %v2165 = vunpack.c.h.b16 %v562
  %v2166 = vunpack.c.l.b16 %v563
  %v2167 = vunpack.c.h.b16 %v563
  %v2168 = vunpack.c.l.b16 %v564
  %v2169 = vunpack.c.h.b16 %v564
  %v2170 = vunpack.c.l.b16 %v565
  %v2171 = vunpack.c.h.b16 %v565
  %v2172 = vunpack.c.l.b16 %v566
  %v2173 = vunpack.c.h.b16 %v566
  %v2174 = vunpack.c.l.b16 %v567
  %v2175 = vunpack.c.h.b16 %v567
  %v2176 = vpack.c.b16 %v1156, %v1152
  %v2177 = vpack.c.b16 %v1157, %v1153
  %v2178 = vpack.c.b16 %v1158, %v1154
  %v2179 = vpack.c.b16 %v1159, %v1155
  %v2180 = vpack.c.b16 %v1164, %v1160
  %v2181 = vpack.c.b16 %v1165, %v1161
  %v2182 = vpack.c.b16 %v1166, %v1162
  %v2183 = vpack.c.b16 %v1167, %v1163
  %v2184 = vpack.c.b16 %v1172, %v1168
  %v2185 = vpack.c.b16 %v1173, %v1169
  %v2186 = vpack.c.b16 %v1174, %v1170
  %v2187 = vpack.c.b16 %v1175, %v1171
  %v2188 = vpack.c.b16 %v1180, %v1176
  %v2189 = vpack.c.b16 %v1181, %v1177
  %v2190 = vpack.c.b16 %v1182, %v1178
  %v2191 = vpack.c.b16 %v1183, %v1179
  %v2192 = vpack.c.b16 %v1188, %v1184
  %v2193 = vpack.c.b16 %v1189, %v1185
  %v2194 = vpack.c.b16 %v1190, %v1186
  %v2195 = vpack.c.b16 %v1191, %v1187
  %v2196 = vpack.c.b16 %v1196, %v1192
  %v2197 = vpack.c.b16 %v1197, %v1193
  %v2198 = vpack.c.b16 %v1198, %v1194
  %v2199 = vpack.c.b16 %v1199, %v1195
  %v2200 = vpack.c.b16 %v1204, %v1200
  %v2201 = vpack.c.b16 %v1205, %v1201
  %v2202 = vpack.c.b16 %v1206, %v1202
  %v2203 = vpack.c.b16 %v1207, %v1203
  %v2204 = vpack.c.b16 %v1212, %v1208
  %v2205 = vpack.c.b16 %v1213, %v1209
  %v2206 = vpack.c.b16 %v1214, %v1210
  %v2207 = vpack.c.b16 %v1215, %v1211
  %v2208 = vpack.c.b16 %v1220, %v1216
  %v2209 = vpack.c.b16 %v1221, %v1217
  %v2210 = vpack.c.b16 %v1222, %v1218
  %v2211 = vpack.c.b16 %v1223, %v1219
  %v2212 = vpack.c.b16 %v1228, %v1224
  %v2213 = vpack.c.b16 %v1229, %v1225
  %v2214 = vpack.c.b16 %v1230, %v1226
  %v2215 = vpack.c.b16 %v1231, %v1227
  %v2216 = vpack.c.b16 %v1236, %v1232
  %v2217 = vpack.c.b16 %v1237, %v1233
  %v2218 = vpack.c.b16 %v1238, %v1234
  %v2219 = vpack.c.b16 %v1239, %v1235
  %v2220 = vpack.c.b16 %v1244, %v1240
  %v2221 = vpack.c.b16 %v1245, %v1241
  %v2222 = vpack.c.b16 %v1246, %v1242
  %v2223 = vpack.c.b16 %v1247, %v1243
  %v2224 = vpack.c.b16 %v1252, %v1248
  %v2225 = vpack.c.b16 %v1253, %v1249
  %v2226 = vpack.c.b16 %v1254, %v1250
  %v2227 = vpack.c.b16 %v1255, %v1251
  %v2228 = vpack.c.b16 %v1260, %v1256
  %v2229 = vpack.c.b16 %v1261, %v1257
  %v2230 = vpack.c.b16 %v1262, %v1258
  %v2231 = vpack.c.b16 %v1263, %v1259
  %v2232 = vpack.c.b16 %v1268, %v1264
  %v2233 = vpack.c.b16 %v1269, %v1265
  %v2234 = vpack.c.b16 %v1270, %v1266
  %v2235 = vpack.c.b16 %v1271, %v1267
  %v2236 = vpack.c.b16 %v1276, %v1272
  %v2237 = vpack.c.b16 %v1277, %v1273
  %v2238 = vpack.c.b16 %v1278, %v1274
  %v2239 = vpack.c.b16 %v1279, %v1275
  %v2240 = vpack.c.b16 %v1284, %v1280
  %v2241 = vpack.c.b16 %v1285, %v1281
  %v2242 = vpack.c.b16 %v1286, %v1282
  %v2243 = vpack.c.b16 %v1287, %v1283
  %v2244 = vpack.c.b16 %v1292, %v1288
  %v2245 = vpack.c.b16 %v1293, %v1289
  %v2246 = vpack.c.b16 %v1294, %v1290
  %v2247 = vpack.c.b16 %v1295, %v1291
  %v2248 = vpack.c.b16 %v1300, %v1296
  %v2249 = vpack.c.b16 %v1301, %v1297
  %v2250 = vpack.c.b16 %v1302, %v1298
  %v2251 = vpack.c.b16 %v1303, %v1299
  %v2252 = vpack.c.b16 %v1308, %v1304
  %v2253 = vpack.c.b16 %v1309, %v1305
  %v2254 = vpack.c.b16 %v1310, %v1306
  %v2255 = vpack.c.b16 %v1311, %v1307
  %v2256 = vpack.c.b16 %v1316, %v1312
  %v2257 = vpack.c.b16 %v1317, %v1313
  %v2258 = vpack.c.b16 %v1318, %v1314
  %v2259 = vpack.c.b16 %v1319, %v1315
  %v2260 = vpack.c.b16 %v1324, %v1320
  %v2261 = vpack.c.b16 %v1325, %v1321
  %v2262 = vpack.c.b16 %v1326, %v1322
  %v2263 = vpack.c.b16 %v1327, %v1323
  %v2264 = vpack.c.b16 %v1332, %v1328
  %v2265 = vpack.c.b16 %v1333, %v1329
  %v2266 = vpack.c.b16 %v1334, %v1330
  %v2267 = vpack.c.b16 %v1335, %v1331
  %v2268 = vpack.c.b16 %v1340, %v1336
  %v2269 = vpack.c.b16 %v1341, %v1337
  %v2270 = vpack.c.b16 %v1342, %v1338
  %v2271 = vpack.c.b16 %v1343, %v1339
  %v2272 = vpack.c.b16 %v1348, %v1344
  %v2273 = vpack.c.b16 %v1349, %v1345
  %v2274 = vpack.c.b16 %v1350, %v1346
  %v2275 = vpack.c.b16 %v1351, %v1347
  %v2276 = vpack.c.b16 %v1356, %v1352
  %v2277 = vpack.c.b16 %v1357, %v1353
  %v2278 = vpack.c.b16 %v1358, %v1354
  %v2279 = vpack.c.b16 %v1359, %v1355
  %v2280 = vpack.c.b16 %v1364, %v1360
  %v2281 = vpack.c.b16 %v1365, %v1361
  %v2282 = vpack.c.b16 %v1366, %v1362
  %v2283 = vpack.c.b16 %v1367, %v1363
  %v2284 = vpack.c.b16 %v1372, %v1368
  %v2285 = vpack.c.b16 %v1373, %v1369
  %v2286 = vpack.c.b16 %v1374, %v1370
  %v2287 = vpack.c.b16 %v1375, %v1371
  %v2288 = vpack.c.b16 %v1380, %v1376
  %v2289 = vpack.c.b16 %v1381, %v1377
  %v2290 = vpack.c.b16 %v1382, %v1378
  %v2291 = vpack.c.b16 %v1383, %v1379
  %v2292 = vpack.c.b16 %v1388, %v1384
  %v2293 = vpack.c.b16 %v1389, %v1385
  %v2294 = vpack.c.b16 %v1390, %v1386
  %v2295 = vpack.c.b16 %v1391, %v1387
  %v2296 = vpack.c.b16 %v1396, %v1392
  %v2297 = vpack.c.b16 %v1397, %v1393
  %v2298 = vpack.c.b16 %v1398, %v1394
  %v2299 = vpack.c.b16 %v1399, %v1395
  %v2300 = vpack.c.b16 %v1404, %v1400
  %v2301 = vpack.c.b16 %v1405, %v1401
  %v2302 = vpack.c.b16 %v1406, %v1402
  %v2303 = vpack.c.b16 %v1407, %v1403
  %v2304 = vpack.c.b16 %v1412, %v1408
  %v2305 = vpack.c.b16 %v1413, %v1409
  %v2306 = vpack.c.b16 %v1414, %v1410
  %v2307 = vpack.c.b16 %v1415, %v1411
  %v2308 = vpack.c.b16 %v1420, %v1416
  %v2309 = vpack.c.b16 %v1421, %v1417
  %v2310 = vpack.c.b16 %v1422, %v1418
  %v2311 = vpack.c.b16 %v1423, %v1419
  %v2312 = vpack.c.b16 %v1428, %v1424
  %v2313 = vpack.c.b16 %v1429, %v1425
  %v2314 = vpack.c.b16 %v1430, %v1426
  %v2315 = vpack.c.b16 %v1431, %v1427
  %v2316 = vpack.c.b16 %v1436, %v1432
  %v2317 = vpack.c.b16 %v1437, %v1433
  %v2318 = vpack.c.b16 %v1438, %v1434
  %v2319 = vpack.c.b16 %v1439, %v1435
  %v2320 = vpack.c.b16 %v1444, %v1440
  %v2321 = vpack.c.b16 %v1445, %v1441
  %v2322 = vpack.c.b16 %v1446, %v1442
  %v2323 = vpack.c.b16 %v1447, %v1443
  %v2324 = vpack.c.b16 %v1452, %v1448
  %v2325 = vpack.c.b16 %v1453, %v1449
  %v2326 = vpack.c.b16 %v1454, %v1450
  %v2327 = vpack.c.b16 %v1455, %v1451
  %v2328 = vpack.c.b16 %v1460, %v1456
  %v2329 = vpack.c.b16 %v1461, %v1457
  %v2330 = vpack.c.b16 %v1462, %v1458
  %v2331 = vpack.c.b16 %v1463, %v1459
  %v2332 = vpack.c.b16 %v1468, %v1464
  %v2333 = vpack.c.b16 %v1469, %v1465
  %v2334 = vpack.c.b16 %v1470, %v1466
  %v2335 = vpack.c.b16 %v1471, %v1467
  %v2336 = vpack.c.b16 %v1476, %v1472
  %v2337 = vpack.c.b16 %v1477, %v1473
  %v2338 = vpack.c.b16 %v1478, %v1474
  %v2339 = vpack.c.b16 %v1479, %v1475
  %v2340 = vpack.c.b16 %v1484, %v1480
  %v2341 = vpack.c.b16 %v1485, %v1481
  %v2342 = vpack.c.b16 %v1486, %v1482
  %v2343 = vpack.c.b16 %v1487, %v1483
  %v2344 = vpack.c.b16 %v1492, %v1488
  %v2345 = vpack.c.b16 %v1493, %v1489
  %v2346 = vpack.c.b16 %v1494, %v1490
  %v2347 = vpack.c.b16 %v1495, %v1491
  %v2348 = vpack.c.b16 %v1500, %v1496
  %v2349 = vpack.c.b16 %v1501, %v1497
  %v2350 = vpack.c.b16 %v1502, %v1498
  %v2351 = vpack.c.b16 %v1503, %v1499
  %v2352 = vpack.c.b16 %v1508, %v1504
  %v2353 = vpack.c.b16 %v1509, %v1505
  %v2354 = vpack.c.b16 %v1510, %v1506
  %v2355 = vpack.c.b16 %v1511, %v1507
  %v2356 = vpack.c.b16 %v1516, %v1512
  %v2357 = vpack.c.b16 %v1517, %v1513
  %v2358 = vpack.c.b16 %v1518, %v1514
  %v2359 = vpack.c.b16 %v1519, %v1515
  %v2360 = vpack.c.b16 %v1524, %v1520
  %v2361 = vpack.c.b16 %v1525, %v1521
  %v2362 = vpack.c.b16 %v1526, %v1522
  %v2363 = vpack.c.b16 %v1527, %v1523
  %v2364 = vpack.c.b16 %v1532, %v1528
  %v2365 = vpack.c.b16 %v1533, %v1529
  %v2366 = vpack.c.b16 %v1534, %v1530
  %v2367 = vpack.c.b16 %v1535, %v1531
  %v2368 = vpack.c.b16 %v1540, %v1536
  %v2369 = vpack.c.b16 %v1541, %v1537
  %v2370 = vpack.c.b16 %v1542, %v1538
  %v2371 = vpack.c.b16 %v1543, %v1539
  %v2372 = vpack.c.b16 %v1548, %v1544
  %v2373 = vpack.c.b16 %v1549, %v1545
  %v2374 = vpack.c.b16 %v1550, %v1546
  %v2375 = vpack.c.b16 %v1551, %v1547
  %v2376 = vpack.c.b16 %v1556, %v1552
  %v2377 = vpack.c.b16 %v1557, %v1553
  %v2378 = vpack.c.b16 %v1558, %v1554
  %v2379 = vpack.c.b16 %v1559, %v1555
  %v2380 = vpack.c.b16 %v1564, %v1560
  %v2381 = vpack.c.b16 %v1565, %v1561
  %v2382 = vpack.c.b16 %v1566, %v1562
  %v2383 = vpack.c.b16 %v1567, %v1563
  %v2384 = vpack.c.b16 %v1572, %v1568
  %v2385 = vpack.c.b16 %v1573, %v1569
  %v2386 = vpack.c.b16 %v1574, %v1570
  %v2387 = vpack.c.b16 %v1575, %v1571
  %v2388 = vpack.c.b16 %v1580, %v1576
  %v2389 = vpack.c.b16 %v1581, %v1577
  %v2390 = vpack.c.b16 %v1582, %v1578
  %v2391 = vpack.c.b16 %v1583, %v1579
  %v2392 = vpack.c.b16 %v1588, %v1584
  %v2393 = vpack.c.b16 %v1589, %v1585
  %v2394 = vpack.c.b16 %v1590, %v1586
  %v2395 = vpack.c.b16 %v1591, %v1587
  %v2396 = vpack.c.b16 %v1596, %v1592
  %v2397 = vpack.c.b16 %v1597, %v1593
  %v2398 = vpack.c.b16 %v1598, %v1594
  %v2399 = vpack.c.b16 %v1599, %v1595
  %v2400 = vpack.c.b16 %v1604, %v1600
  %v2401 = vpack.c.b16 %v1605, %v1601
  %v2402 = vpack.c.b16 %v1606, %v1602
  %v2403 = vpack.c.b16 %v1607, %v1603
  %v2404 = vpack.c.b16 %v1612, %v1608
  %v2405 = vpack.c.b16 %v1613, %v1609
  %v2406 = vpack.c.b16 %v1614, %v1610
  %v2407 = vpack.c.b16 %v1615, %v1611
  %v2408 = vpack.c.b16 %v1620, %v1616
  %v2409 = vpack.c.b16 %v1621, %v1617
  %v2410 = vpack.c.b16 %v1622, %v1618
  %v2411 = vpack.c.b16 %v1623, %v1619
  %v2412 = vpack.c.b16 %v1628, %v1624
  %v2413 = vpack.c.b16 %v1629, %v1625
  %v2414 = vpack.c.b16 %v1630, %v1626
  %v2415 = vpack.c.b16 %v1631, %v1627
  %v2416 = vpack.c.b16 %v1636, %v1632
  %v2417 = vpack.c.b16 %v1637, %v1633
  %v2418 = vpack.c.b16 %v1638, %v1634
  %v2419 = vpack.c.b16 %v1639, %v1635
  %v2420 = vpack.c.b16 %v1644, %v1640
  %v2421 = vpack.c.b16 %v1645, %v1641
  %v2422 = vpack.c.b16 %v1646, %v1642
  %v2423 = vpack.c.b16 %v1647, %v1643
  %v2424 = vpack.c.b16 %v1652, %v1648
  %v2425 = vpack.c.b16 %v1653, %v1649
  %v2426 = vpack.c.b16 %v1654, %v1650
  %v2427 = vpack.c.b16 %v1655, %v1651
  %v2428 = vpack.c.b16 %v1660, %v1656
  %v2429 = vpack.c.b16 %v1661, %v1657
  %v2430 = vpack.c.b16 %v1662, %v1658
  %v2431 = vpack.c.b16 %v1663, %v1659
  %v2432 = vpack.c.b16 %v1668, %v1664
  %v2433 = vpack.c.b16 %v1669, %v1665
  %v2434 = vpack.c.b16 %v1670, %v1666
  %v2435 = vpack.c.b16 %v1671, %v1667
  %v2436 = vpack.c.b16 %v1676, %v1672
  %v2437 = vpack.c.b16 %v1677, %v1673
  %v2438 = vpack.c.b16 %v1678, %v1674
  %v2439 = vpack.c.b16 %v1679, %v1675
  %v2440 = vpack.c.b16 %v1684, %v1680
  %v2441 = vpack.c.b16 %v1685, %v1681
  %v2442 = vpack.c.b16 %v1686, %v1682
  %v2443 = vpack.c.b16 %v1687, %v1683
  %v2444 = vpack.c.b16 %v1692, %v1688
  %v2445 = vpack.c.b16 %v1693, %v1689
  %v2446 = vpack.c.b16 %v1694, %v1690
  %v2447 = vpack.c.b16 %v1695, %v1691
  %v2448 = vpack.c.b16 %v1700, %v1696
  %v2449 = vpack.c.b16 %v1701, %v1697
  %v2450 = vpack.c.b16 %v1702, %v1698
  %v2451 = vpack.c.b16 %v1703, %v1699
  %v2452 = vpack.c.b16 %v1708, %v1704
  %v2453 = vpack.c.b16 %v1709, %v1705
  %v2454 = vpack.c.b16 %v1710, %v1706
  %v2455 = vpack.c.b16 %v1711, %v1707
  %v2456 = vpack.c.b16 %v1716, %v1712
  %v2457 = vpack.c.b16 %v1717, %v1713
  %v2458 = vpack.c.b16 %v1718, %v1714
  %v2459 = vpack.c.b16 %v1719, %v1715
  %v2460 = vpack.c.b16 %v1724, %v1720
  %v2461 = vpack.c.b16 %v1725, %v1721
  %v2462 = vpack.c.b16 %v1726, %v1722
  %v2463 = vpack.c.b16 %v1727, %v1723
  %v2464 = vpack.c.b16 %v1732, %v1728
  %v2465 = vpack.c.b16 %v1733, %v1729
  %v2466 = vpack.c.b16 %v1734, %v1730
  %v2467 = vpack.c.b16 %v1735, %v1731
  %v2468 = vpack.c.b16 %v1740, %v1736
  %v2469 = vpack.c.b16 %v1741, %v1737
  %v2470 = vpack.c.b16 %v1742, %v1738
  %v2471 = vpack.c.b16 %v1743, %v1739
  %v2472 = vpack.c.b16 %v1748, %v1744
  %v2473 = vpack.c.b16 %v1749, %v1745
  %v2474 = vpack.c.b16 %v1750, %v1746
  %v2475 = vpack.c.b16 %v1751, %v1747
  %v2476 = vpack.c.b16 %v1756, %v1752
  %v2477 = vpack.c.b16 %v1757, %v1753
  %v2478 = vpack.c.b16 %v1758, %v1754
  %v2479 = vpack.c.b16 %v1759, %v1755
  %v2480 = vpack.c.b16 %v1764, %v1760
  %v2481 = vpack.c.b16 %v1765, %v1761
  %v2482 = vpack.c.b16 %v1766, %v1762
  %v2483 = vpack.c.b16 %v1767, %v1763
  %v2484 = vpack.c.b16 %v1772, %v1768
  %v2485 = vpack.c.b16 %v1773, %v1769
  %v2486 = vpack.c.b16 %v1774, %v1770
  %v2487 = vpack.c.b16 %v1775, %v1771
  %v2488 = vpack.c.b16 %v1780, %v1776
  %v2489 = vpack.c.b16 %v1781, %v1777
  %v2490 = vpack.c.b16 %v1782, %v1778
  %v2491 = vpack.c.b16 %v1783, %v1779
  %v2492 = vpack.c.b16 %v1788, %v1784
  %v2493 = vpack.c.b16 %v1789, %v1785
  %v2494 = vpack.c.b16 %v1790, %v1786
  %v2495 = vpack.c.b16 %v1791, %v1787
  %v2496 = vpack.c.b16 %v1796, %v1792
  %v2497 = vpack.c.b16 %v1797, %v1793
  %v2498 = vpack.c.b16 %v1798, %v1794
  %v2499 = vpack.c.b16 %v1799, %v1795
  %v2500 = vpack.c.b16 %v1804, %v1800
  %v2501 = vpack.c.b16 %v1805, %v1801
  %v2502 = vpack.c.b16 %v1806, %v1802
  %v2503 = vpack.c.b16 %v1807, %v1803
  %v2504 = vpack.c.b16 %v1812, %v1808
  %v2505 = vpack.c.b16 %v1813, %v1809
  %v2506 = vpack.c.b16 %v1814, %v1810
  %v2507 = vpack.c.b16 %v1815, %v1811
  %v2508 = vpack.c.b16 %v1820, %v1816
  %v2509 = vpack.c.b16 %v1821, %v1817
  %v2510 = vpack.c.b16 %v1822, %v1818
  %v2511 = vpack.c.b16 %v1823, %v1819
  %v2512 = vpack.c.b16 %v1828, %v1824
  %v2513 = vpack.c.b16 %v1829, %v1825
  %v2514 = vpack.c.b16 %v1830, %v1826
  %v2515 = vpack.c.b16 %v1831, %v1827
  %v2516 = vpack.c.b16 %v1836, %v1832
  %v2517 = vpack.c.b16 %v1837, %v1833
  %v2518 = vpack.c.b16 %v1838, %v1834
  %v2519 = vpack.c.b16 %v1839, %v1835
  %v2520 = vpack.c.b16 %v1844, %v1840
  %v2521 = vpack.c.b16 %v1845, %v1841
  %v2522 = vpack.c.b16 %v1846, %v1842
  %v2523 = vpack.c.b16 %v1847, %v1843
  %v2524 = vpack.c.b16 %v1852, %v1848
  %v2525 = vpack.c.b16 %v1853, %v1849
  %v2526 = vpack.c.b16 %v1854, %v1850
  %v2527 = vpack.c.b16 %v1855, %v1851
  %v2528 = vpack.c.b16 %v1860, %v1856
  %v2529 = vpack.c.b16 %v1861, %v1857
  %v2530 = vpack.c.b16 %v1862, %v1858
  %v2531 = vpack.c.b16 %v1863, %v1859
  %v2532 = vpack.c.b16 %v1868, %v1864
  %v2533 = vpack.c.b16 %v1869, %v1865
  %v2534 = vpack.c.b16 %v1870, %v1866
  %v2535 = vpack.c.b16 %v1871, %v1867
  %v2536 = vpack.c.b16 %v1876, %v1872
  %v2537 = vpack.c.b16 %v1877, %v1873
  %v2538 = vpack.c.b16 %v1878, %v1874
  %v2539 = vpack.c.b16 %v1879, %v1875
  %v2540 = vpack.c.b16 %v1884, %v1880
  %v2541 = vpack.c.b16 %v1885, %v1881
  %v2542 = vpack.c.b16 %v1886, %v1882
  %v2543 = vpack.c.b16 %v1887, %v1883
  %v2544 = vpack.c.b16 %v1892, %v1888
  %v2545 = vpack.c.b16 %v1893, %v1889
  %v2546 = vpack.c.b16 %v1894, %v1890
  %v2547 = vpack.c.b16 %v1895, %v1891
  %v2548 = vpack.c.b16 %v1900, %v1896
  %v2549 = vpack.c.b16 %v1901, %v1897
  %v2550 = vpack.c.b16 %v1902, %v1898
  %v2551 = vpack.c.b16 %v1903, %v1899
  %v2552 = vpack.c.b16 %v1908, %v1904
  %v2553 = vpack.c.b16 %v1909, %v1905
  %v2554 = vpack.c.b16 %v1910, %v1906
  %v2555 = vpack.c.b16 %v1911, %v1907
  %v2556 = vpack.c.b16 %v1916, %v1912
  %v2557 = vpack.c.b16 %v1917, %v1913
  %v2558 = vpack.c.b16 %v1918, %v1914
  %v2559 = vpack.c.b16 %v1919, %v1915
  %v2560 = vpack.c.b16 %v1924, %v1920
  %v2561 = vpack.c.b16 %v1925, %v1921
  %v2562 = vpack.c.b16 %v1926, %v1922
  %v2563 = vpack.c.b16 %v1927, %v1923
  %v2564 = vpack.c.b16 %v1932, %v1928
  %v2565 = vpack.c.b16 %v1933, %v1929
  %v2566 = vpack.c.b16 %v1934, %v1930
  %v2567 = vpack.c.b16 %v1935, %v1931
  %v2568 = vpack.c.b16 %v1940, %v1936
  %v2569 = vpack.c.b16 %v1941, %v1937
  %v2570 = vpack.c.b16 %v1942, %v1938
  %v2571 = vpack.c.b16 %v1943, %v1939
  %v2572 = vpack.c.b16 %v1948, %v1944
  %v2573 = vpack.c.b16 %v1949, %v1945
  %v2574 = vpack.c.b16 %v1950, %v1946
  %v2575 = vpack.c.b16 %v1951, %v1947
  %v2576 = vpack.c.b16 %v1956, %v1952
  %v2577 = vpack.c.b16 %v1957, %v1953
  %v2578 = vpack.c.b16 %v1958, %v1954
  %v2579 = vpack.c.b16 %v1959, %v1955
  %v2580 = vpack.c.b16 %v1964, %v1960
  %v2581 = vpack.c.b16 %v1965, %v1961
  %v2582 = vpack.c.b16 %v1966, %v1962
  %v2583 = vpack.c.b16 %v1967, %v1963
  %v2584 = vpack.c.b16 %v1972, %v1968
  %v2585 = vpack.c.b16 %v1973, %v1969
  %v2586 = vpack.c.b16 %v1974, %v1970
  %v2587 = vpack.c.b16 %v1975, %v1971
  %v2588 = vpack.c.b16 %v1980, %v1976
  %v2589 = vpack.c.b16 %v1981, %v1977
  %v2590 = vpack.c.b16 %v1982, %v1978
  %v2591 = vpack.c.b16 %v1983, %v1979
  %v2592 = vpack.c.b16 %v1988, %v1984
  %v2593 = vpack.c.b16 %v1989, %v1985
  %v2594 = vpack.c.b16 %v1990, %v1986
  %v2595 = vpack.c.b16 %v1991, %v1987
  %v2596 = vpack.c.b16 %v1996, %v1992
  %v2597 = vpack.c.b16 %v1997, %v1993
  %v2598 = vpack.c.b16 %v1998, %v1994
  %v2599 = vpack.c.b16 %v1999, %v1995
  %v2600 = vpack.c.b16 %v2004, %v2000
  %v2601 = vpack.c.b16 %v2005, %v2001
  %v2602 = vpack.c.b16 %v2006, %v2002
  %v2603 = vpack.c.b16 %v2007, %v2003
  %v2604 = vpack.c.b16 %v2012, %v2008
  %v2605 = vpack.c.b16 %v2013, %v2009
  %v2606 = vpack.c.b16 %v2014, %v2010
  %v2607 = vpack.c.b16 %v2015, %v2011
  %v2608 = vpack.c.b16 %v2020, %v2016
  %v2609 = vpack.c.b16 %v2021, %v2017
  %v2610 = vpack.c.b16 %v2022, %v2018
  %v2611 = vpack.c.b16 %v2023, %v2019
  %v2612 = vpack.c.b16 %v2028, %v2024
  %v2613 = vpack.c.b16 %v2029, %v2025
  %v2614 = vpack.c.b16 %v2030, %v2026
  %v2615 = vpack.c.b16 %v2031, %v2027
  %v2616 = vpack.c.b16 %v2036, %v2032
  %v2617 = vpack.c.b16 %v2037, %v2033
  %v2618 = vpack.c.b16 %v2038, %v2034
  %v2619 = vpack.c.b16 %v2039, %v2035
  %v2620 = vpack.c.b16 %v2044, %v2040
  %v2621 = vpack.c.b16 %v2045, %v2041
  %v2622 = vpack.c.b16 %v2046, %v2042
  %v2623 = vpack.c.b16 %v2047, %v2043
  %v2624 = vpack.c.b16 %v2052, %v2048
  %v2625 = vpack.c.b16 %v2053, %v2049
  %v2626 = vpack.c.b16 %v2054, %v2050
  %v2627 = vpack.c.b16 %v2055, %v2051
  %v2628 = vpack.c.b16 %v2060, %v2056
  %v2629 = vpack.c.b16 %v2061, %v2057
  %v2630 = vpack.c.b16 %v2062, %v2058
  %v2631 = vpack.c.b16 %v2063, %v2059
  %v2632 = vpack.c.b16 %v2068, %v2064
  %v2633 = vpack.c.b16 %v2069, %v2065
  %v2634 = vpack.c.b16 %v2070, %v2066
  %v2635 = vpack.c.b16 %v2071, %v2067
  %v2636 = vpack.c.b16 %v2076, %v2072
  %v2637 = vpack.c.b16 %v2077, %v2073
  %v2638 = vpack.c.b16 %v2078, %v2074
  %v2639 = vpack.c.b16 %v2079, %v2075
  %v2640 = vpack.c.b16 %v2084, %v2080
  %v2641 = vpack.c.b16 %v2085, %v2081
  %v2642 = vpack.c.b16 %v2086, %v2082
  %v2643 = vpack.c.b16 %v2087, %v2083
  %v2644 = vpack.c.b16 %v2092, %v2088
  %v2645 = vpack.c.b16 %v2093, %v2089
  %v2646 = vpack.c.b16 %v2094, %v2090
  %v2647 = vpack.c.b16 %v2095, %v2091
  %v2648 = vpack.c.b16 %v2100, %v2096
  %v2649 = vpack.c.b16 %v2101, %v2097
  %v2650 = vpack.c.b16 %v2102, %v2098
  %v2651 = vpack.c.b16 %v2103, %v2099
  %v2652 = vpack.c.b16 %v2108, %v2104
  %v2653 = vpack.c.b16 %v2109, %v2105
  %v2654 = vpack.c.b16 %v2110, %v2106
  %v2655 = vpack.c.b16 %v2111, %v2107
  %v2656 = vpack.c.b16 %v2116, %v2112
  %v2657 = vpack.c.b16 %v2117, %v2113
  %v2658 = vpack.c.b16 %v2118, %v2114
  %v2659 = vpack.c.b16 %v2119, %v2115
  %v2660 = vpack.c.b16 %v2124, %v2120
  %v2661 = vpack.c.b16 %v2125, %v2121
  %v2662 = vpack.c.b16 %v2126, %v2122
  %v2663 = vpack.c.b16 %v2127, %v2123
  %v2664 = vpack.c.b16 %v2132, %v2128
  %v2665 = vpack.c.b16 %v2133, %v2129
  %v2666 = vpack.c.b16 %v2134, %v2130
  %v2667 = vpack.c.b16 %v2135, %v2131
  %v2668 = vpack.c.b16 %v2140, %v2136
  %v2669 = vpack.c.b16 %v2141, %v2137
  %v2670 = vpack.c.b16 %v2142, %v2138
  %v2671 = vpack.c.b16 %v2143, %v2139
  %v2672 = vpack.c.b16 %v2148, %v2144
  %v2673 = vpack.c.b16 %v2149, %v2145
  %v2674 = vpack.c.b16 %v2150, %v2146
  %v2675 = vpack.c.b16 %v2151, %v2147
  %v2676 = vpack.c.b16 %v2156, %v2152
  %v2677 = vpack.c.b16 %v2157, %v2153
  %v2678 = vpack.c.b16 %v2158, %v2154
  %v2679 = vpack.c.b16 %v2159, %v2155
  %v2680 = vpack.c.b16 %v2164, %v2160
  %v2681 = vpack.c.b16 %v2165, %v2161
  %v2682 = vpack.c.b16 %v2166, %v2162
  %v2683 = vpack.c.b16 %v2167, %v2163
  %v2684 = vpack.c.b16 %v2172, %v2168
  %v2685 = vpack.c.b16 %v2173, %v2169
  %v2686 = vpack.c.b16 %v2174, %v2170
  %v2687 = vpack.c.b16 %v2175, %v2171
  %3200 = vmatprep.subr.bf16.mxu0 %v2177
  %3201 = vmatpush1.bf16.msra.mxu0 %v2176
  %3202 = vmatprep.subr.bf16.mxu0 %v2181
  %3203 = vmatpush1.bf16.msra.mxu0 %v2180
  %3204 = vmatprep.subr.bf16.mxu0 %v2185
  %3205 = vmatpush1.bf16.msra.mxu0 %v2184
  %3206 = vmatprep.subr.bf16.mxu0 %v2189
  %3207 = vmatpush1.bf16.msra.mxu0 %v2188
  %3208 = vmatprep.subr.bf16.mxu0 %v2193
  %3209 = vmatpush1.bf16.msra.mxu0 %v2192
  %3210 = vmatprep.subr.bf16.mxu0 %v2197
  %3211 = vmatpush1.bf16.msra.mxu0 %v2196
  %3212 = vmatprep.subr.bf16.mxu0 %v2201
  %3213 = vmatpush1.bf16.msra.mxu0 %v2200
  %3214 = vmatprep.subr.bf16.mxu0 %v2205
  %3215 = vmatpush1.bf16.msra.mxu0 %v2204
  %3216 = vmatprep.subr.bf16.mxu0 %v2209
  %3217 = vmatpush1.bf16.msra.mxu0 %v2208
  %3218 = vmatprep.subr.bf16.mxu0 %v2213
  %3219 = vmatpush1.bf16.msra.mxu0 %v2212
  %3220 = vmatprep.subr.bf16.mxu0 %v2217
  %3221 = vmatpush1.bf16.msra.mxu0 %v2216
  %3222 = vmatprep.subr.bf16.mxu0 %v2221
  %3223 = vmatpush1.bf16.msra.mxu0 %v2220
  %3224 = vmatprep.subr.bf16.mxu0 %v2225
  %3225 = vmatpush1.bf16.msra.mxu0 %v2224
  %3226 = vmatprep.subr.bf16.mxu0 %v2229
  %3227 = vmatpush1.bf16.msra.mxu0 %v2228
  %3228 = vmatprep.subr.bf16.mxu0 %v2233
  %3229 = vmatpush1.bf16.msra.mxu0 %v2232
  %3230 = vmatprep.subr.bf16.mxu0 %v2237
  %3231 = vmatpush1.bf16.msra.mxu0 %v2236
  %3232 = vmatprep.mubr.bf16.mxu0 %v609
  %3233 = vmatmul.mubr.bf16.gmra.mrb[0].mxu0 %v608
  %v3234 = vpop.f32.mrb[0].mxu0
  %v3235 = vadd.f32 %v571, %v3234
  %v3236 = vpop.f32.mrb[0].mxu0
  %v3237 = vadd.f32 %v575, %v3236
  %v3238 = vpop.f32.mrb[0].mxu0
  %v3239 = vpop.f32.mrb[0].mxu0
  %3240 = vdwg.mxu0
  %3241 = vmatprep.subr.bf16.mxu0 %v2241
  %3242 = vmatpush1.bf16.msra.mxu0 %v2240
  %3243 = vmatprep.subr.bf16.mxu0 %v2245
  %3244 = vmatpush1.bf16.msra.mxu0 %v2244
  %3245 = vmatprep.subr.bf16.mxu0 %v2249
  %3246 = vmatpush1.bf16.msra.mxu0 %v2248
  %3247 = vmatprep.subr.bf16.mxu0 %v2253
  %3248 = vmatpush1.bf16.msra.mxu0 %v2252
  %3249 = vmatprep.subr.bf16.mxu0 %v2257
  %3250 = vmatpush1.bf16.msra.mxu0 %v2256
  %3251 = vmatprep.subr.bf16.mxu0 %v2261
  %3252 = vmatpush1.bf16.msra.mxu0 %v2260
  %3253 = vmatprep.subr.bf16.mxu0 %v2265
  %3254 = vmatpush1.bf16.msra.mxu0 %v2264
  %3255 = vmatprep.subr.bf16.mxu0 %v2269
  %3256 = vmatpush1.bf16.msra.mxu0 %v2268
  %3257 = vmatprep.subr.bf16.mxu0 %v2273
  %3258 = vmatpush1.bf16.msra.mxu0 %v2272
  %3259 = vmatprep.subr.bf16.mxu0 %v2277
  %3260 = vmatpush1.bf16.msra.mxu0 %v2276
  %3261 = vmatprep.subr.bf16.mxu0 %v2281
  %3262 = vmatpush1.bf16.msra.mxu0 %v2280
  %3263 = vmatprep.subr.bf16.mxu0 %v2285
  %3264 = vmatpush1.bf16.msra.mxu0 %v2284
  %3265 = vmatprep.subr.bf16.mxu0 %v2289
  %3266 = vmatpush1.bf16.msra.mxu0 %v2288
  %3267 = vmatprep.subr.bf16.mxu0 %v2293
  %3268 = vmatpush1.bf16.msra.mxu0 %v2292
  %3269 = vmatprep.subr.bf16.mxu0 %v2297
  %3270 = vmatpush1.bf16.msra.mxu0 %v2296
  %3271 = vmatprep.subr.bf16.mxu0 %v2301
  %3272 = vmatpush1.bf16.msra.mxu0 %v2300
  %3273 = vmatprep.mubr.bf16.mxu0 %v611
  %3274 = vmatmul.mubr.bf16.gmra.mrb[0].mxu0 %v610
  %v3275 = vpop.f32.mrb[0].mxu0
  %v3276 = vadd.f32 %v3235, %v3275
  %v3277 = vpop.f32.mrb[0].mxu0
  %v3278 = vadd.f32 %v3237, %v3277
  %v3279 = vpop.f32.mrb[0].mxu0
  %v3280 = vpop.f32.mrb[0].mxu0
  %3281 = vdwg.mxu0
  %3282 = vmatprep.subr.bf16.mxu0 %v2305
  %3283 = vmatpush1.bf16.msra.mxu0 %v2304
  %3284 = vmatprep.subr.bf16.mxu0 %v2309
  %3285 = vmatpush1.bf16.msra.mxu0 %v2308
  %3286 = vmatprep.subr.bf16.mxu0 %v2313
  %3287 = vmatpush1.bf16.msra.mxu0 %v2312
  %3288 = vmatprep.subr.bf16.mxu0 %v2317
  %3289 = vmatpush1.bf16.msra.mxu0 %v2316
  %3290 = vmatprep.subr.bf16.mxu0 %v2321
  %3291 = vmatpush1.bf16.msra.mxu0 %v2320
  %3292 = vmatprep.subr.bf16.mxu0 %v2325
  %3293 = vmatpush1.bf16.msra.mxu0 %v2324
  %3294 = vmatprep.subr.bf16.mxu0 %v2329
  %3295 = vmatpush1.bf16.msra.mxu0 %v2328
  %3296 = vmatprep.subr.bf16.mxu0 %v2333
  %3297 = vmatpush1.bf16.msra.mxu0 %v2332
  %3298 = vmatprep.subr.bf16.mxu0 %v2337
  %3299 = vmatpush1.bf16.msra.mxu0 %v2336
  %3300 = vmatprep.subr.bf16.mxu0 %v2341
  %3301 = vmatpush1.bf16.msra.mxu0 %v2340
  %3302 = vmatprep.subr.bf16.mxu0 %v2345
  %3303 = vmatpush1.bf16.msra.mxu0 %v2344
  %3304 = vmatprep.subr.bf16.mxu0 %v2349
  %3305 = vmatpush1.bf16.msra.mxu0 %v2348
  %3306 = vmatprep.subr.bf16.mxu0 %v2353
  %3307 = vmatpush1.bf16.msra.mxu0 %v2352
  %3308 = vmatprep.subr.bf16.mxu0 %v2357
  %3309 = vmatpush1.bf16.msra.mxu0 %v2356
  %3310 = vmatprep.subr.bf16.mxu0 %v2361
  %3311 = vmatpush1.bf16.msra.mxu0 %v2360
  %3312 = vmatprep.subr.bf16.mxu0 %v2365
  %3313 = vmatpush1.bf16.msra.mxu0 %v2364
  %3314 = vmatprep.mubr.bf16.mxu0 %v613
  %3315 = vmatmul.mubr.bf16.gmra.mrb[0].mxu0 %v612
  %v3316 = vpop.f32.mrb[0].mxu0
  %v3317 = vadd.f32 %v3276, %v3316
  %v3318 = vpop.f32.mrb[0].mxu0
  %v3319 = vadd.f32 %v3278, %v3318
  %v3320 = vpop.f32.mrb[0].mxu0
  %v3321 = vpop.f32.mrb[0].mxu0
  %3322 = vdwg.mxu0
  %3323 = vmatprep.subr.bf16.mxu0 %v2369
  %3324 = vmatpush1.bf16.msra.mxu0 %v2368
  %3325 = vmatprep.subr.bf16.mxu0 %v2373
  %3326 = vmatpush1.bf16.msra.mxu0 %v2372
  %3327 = vmatprep.subr.bf16.mxu0 %v2377
  %3328 = vmatpush1.bf16.msra.mxu0 %v2376
  %3329 = vmatprep.subr.bf16.mxu0 %v2381
  %3330 = vmatpush1.bf16.msra.mxu0 %v2380
  %3331 = vmatprep.subr.bf16.mxu0 %v2385
  %3332 = vmatpush1.bf16.msra.mxu0 %v2384
  %3333 = vmatprep.subr.bf16.mxu0 %v2389
  %3334 = vmatpush1.bf16.msra.mxu0 %v2388
  %3335 = vmatprep.subr.bf16.mxu0 %v2393
  %3336 = vmatpush1.bf16.msra.mxu0 %v2392
  %3337 = vmatprep.subr.bf16.mxu0 %v2397
  %3338 = vmatpush1.bf16.msra.mxu0 %v2396
  %3339 = vmatprep.subr.bf16.mxu0 %v2401
  %3340 = vmatpush1.bf16.msra.mxu0 %v2400
  %3341 = vmatprep.subr.bf16.mxu0 %v2405
  %3342 = vmatpush1.bf16.msra.mxu0 %v2404
  %3343 = vmatprep.subr.bf16.mxu0 %v2409
  %3344 = vmatpush1.bf16.msra.mxu0 %v2408
  %3345 = vmatprep.subr.bf16.mxu0 %v2413
  %3346 = vmatpush1.bf16.msra.mxu0 %v2412
  %3347 = vmatprep.subr.bf16.mxu0 %v2417
  %3348 = vmatpush1.bf16.msra.mxu0 %v2416
  %3349 = vmatprep.subr.bf16.mxu0 %v2421
  %3350 = vmatpush1.bf16.msra.mxu0 %v2420
  %3351 = vmatprep.subr.bf16.mxu0 %v2425
  %3352 = vmatpush1.bf16.msra.mxu0 %v2424
  %3353 = vmatprep.subr.bf16.mxu0 %v2429
  %3354 = vmatpush1.bf16.msra.mxu0 %v2428
  %3355 = vmatprep.mubr.bf16.mxu0 %v615
  %3356 = vmatmul.mubr.bf16.gmra.mrb[0].mxu0 %v614
  %v3357 = vpop.f32.mrb[0].mxu0
  %v3358 = vadd.f32 %v3317, %v3357
  %v3359 = vpop.f32.mrb[0].mxu0
  %v3360 = vadd.f32 %v3319, %v3359
  %v3361 = vpop.f32.mrb[0].mxu0
  %v3362 = vpop.f32.mrb[0].mxu0
  %3363 = vdwg.mxu0
  %3364 = vmatprep.subr.bf16.mxu0 %v2433
  %3365 = vmatpush1.bf16.msra.mxu0 %v2432
  %3366 = vmatprep.subr.bf16.mxu0 %v2437
  %3367 = vmatpush1.bf16.msra.mxu0 %v2436
  %3368 = vmatprep.subr.bf16.mxu0 %v2441
  %3369 = vmatpush1.bf16.msra.mxu0 %v2440
  %3370 = vmatprep.subr.bf16.mxu0 %v2445
  %3371 = vmatpush1.bf16.msra.mxu0 %v2444
  %3372 = vmatprep.subr.bf16.mxu0 %v2449
  %3373 = vmatpush1.bf16.msra.mxu0 %v2448
  %3374 = vmatprep.subr.bf16.mxu0 %v2453
  %3375 = vmatpush1.bf16.msra.mxu0 %v2452
  %3376 = vmatprep.subr.bf16.mxu0 %v2457
  %3377 = vmatpush1.bf16.msra.mxu0 %v2456
  %3378 = vmatprep.subr.bf16.mxu0 %v2461
  %3379 = vmatpush1.bf16.msra.mxu0 %v2460
  %3380 = vmatprep.subr.bf16.mxu0 %v2465
  %3381 = vmatpush1.bf16.msra.mxu0 %v2464
  %3382 = vmatprep.subr.bf16.mxu0 %v2469
  %3383 = vmatpush1.bf16.msra.mxu0 %v2468
  %3384 = vmatprep.subr.bf16.mxu0 %v2473
  %3385 = vmatpush1.bf16.msra.mxu0 %v2472
  %3386 = vmatprep.subr.bf16.mxu0 %v2477
  %3387 = vmatpush1.bf16.msra.mxu0 %v2476
  %3388 = vmatprep.subr.bf16.mxu0 %v2481
  %3389 = vmatpush1.bf16.msra.mxu0 %v2480
  %3390 = vmatprep.subr.bf16.mxu0 %v2485
  %3391 = vmatpush1.bf16.msra.mxu0 %v2484
  %3392 = vmatprep.subr.bf16.mxu0 %v2489
  %3393 = vmatpush1.bf16.msra.mxu0 %v2488
  %3394 = vmatprep.subr.bf16.mxu0 %v2493
  %3395 = vmatpush1.bf16.msra.mxu0 %v2492
  %3396 = vmatprep.mubr.bf16.mxu0 %v617
  %3397 = vmatmul.mubr.bf16.gmra.mrb[0].mxu0 %v616
  %v3398 = vpop.f32.mrb[0].mxu0
  %v3399 = vadd.f32 %v3358, %v3398
  %v3400 = vpop.f32.mrb[0].mxu0
  %v3401 = vadd.f32 %v3360, %v3400
  %v3402 = vpop.f32.mrb[0].mxu0
  %v3403 = vpop.f32.mrb[0].mxu0
  %3404 = vdwg.mxu0
  %3405 = vmatprep.subr.bf16.mxu0 %v2497
  %3406 = vmatpush1.bf16.msra.mxu0 %v2496
  %3407 = vmatprep.subr.bf16.mxu0 %v2501
  %3408 = vmatpush1.bf16.msra.mxu0 %v2500
  %3409 = vmatprep.subr.bf16.mxu0 %v2505
  %3410 = vmatpush1.bf16.msra.mxu0 %v2504
  %3411 = vmatprep.subr.bf16.mxu0 %v2509
  %3412 = vmatpush1.bf16.msra.mxu0 %v2508
  %3413 = vmatprep.subr.bf16.mxu0 %v2513
  %3414 = vmatpush1.bf16.msra.mxu0 %v2512
  %3415 = vmatprep.subr.bf16.mxu0 %v2517
  %3416 = vmatpush1.bf16.msra.mxu0 %v2516
  %3417 = vmatprep.subr.bf16.mxu0 %v2521
  %3418 = vmatpush1.bf16.msra.mxu0 %v2520
  %3419 = vmatprep.subr.bf16.mxu0 %v2525
  %3420 = vmatpush1.bf16.msra.mxu0 %v2524
  %3421 = vmatprep.subr.bf16.mxu0 %v2529
  %3422 = vmatpush1.bf16.msra.mxu0 %v2528
  %3423 = vmatprep.subr.bf16.mxu0 %v2533
  %3424 = vmatpush1.bf16.msra.mxu0 %v2532
  %3425 = vmatprep.subr.bf16.mxu0 %v2537
  %3426 = vmatpush1.bf16.msra.mxu0 %v2536
  %3427 = vmatprep.subr.bf16.mxu0 %v2541
  %3428 = vmatpush1.bf16.msra.mxu0 %v2540
  %3429 = vmatprep.subr.bf16.mxu0 %v2545
  %3430 = vmatpush1.bf16.msra.mxu0 %v2544
  %3431 = vmatprep.subr.bf16.mxu0 %v2549
  %3432 = vmatpush1.bf16.msra.mxu0 %v2548
  %3433 = vmatprep.subr.bf16.mxu0 %v2553
  %3434 = vmatpush1.bf16.msra.mxu0 %v2552
  %3435 = vmatprep.subr.bf16.mxu0 %v2557
  %3436 = vmatpush1.bf16.msra.mxu0 %v2556
  %3437 = vmatprep.mubr.bf16.mxu0 %v619
  %3438 = vmatmul.mubr.bf16.gmra.mrb[0].mxu0 %v618
  %v3439 = vpop.f32.mrb[0].mxu0
  %v3440 = vadd.f32 %v3399, %v3439
  %v3441 = vpop.f32.mrb[0].mxu0
  %v3442 = vadd.f32 %v3401, %v3441
  %v3443 = vpop.f32.mrb[0].mxu0
  %v3444 = vpop.f32.mrb[0].mxu0
  %3445 = vdwg.mxu0
  %3446 = vmatprep.subr.bf16.mxu0 %v2561
  %3447 = vmatpush1.bf16.msra.mxu0 %v2560
  %3448 = vmatprep.subr.bf16.mxu0 %v2565
  %3449 = vmatpush1.bf16.msra.mxu0 %v2564
  %3450 = vmatprep.subr.bf16.mxu0 %v2569
  %3451 = vmatpush1.bf16.msra.mxu0 %v2568
  %3452 = vmatprep.subr.bf16.mxu0 %v2573
  %3453 = vmatpush1.bf16.msra.mxu0 %v2572
  %3454 = vmatprep.subr.bf16.mxu0 %v2577
  %3455 = vmatpush1.bf16.msra.mxu0 %v2576
  %3456 = vmatprep.subr.bf16.mxu0 %v2581
  %3457 = vmatpush1.bf16.msra.mxu0 %v2580
  %3458 = vmatprep.subr.bf16.mxu0 %v2585
  %3459 = vmatpush1.bf16.msra.mxu0 %v2584
  %3460 = vmatprep.subr.bf16.mxu0 %v2589
  %3461 = vmatpush1.bf16.msra.mxu0 %v2588
  %3462 = vmatprep.subr.bf16.mxu0 %v2593
  %3463 = vmatpush1.bf16.msra.mxu0 %v2592
  %3464 = vmatprep.subr.bf16.mxu0 %v2597
  %3465 = vmatpush1.bf16.msra.mxu0 %v2596
  %3466 = vmatprep.subr.bf16.mxu0 %v2601
  %3467 = vmatpush1.bf16.msra.mxu0 %v2600
  %3468 = vmatprep.subr.bf16.mxu0 %v2605
  %3469 = vmatpush1.bf16.msra.mxu0 %v2604
  %3470 = vmatprep.subr.bf16.mxu0 %v2609
  %3471 = vmatpush1.bf16.msra.mxu0 %v2608
  %3472 = vmatprep.subr.bf16.mxu0 %v2613
  %3473 = vmatpush1.bf16.msra.mxu0 %v2612
  %3474 = vmatprep.subr.bf16.mxu0 %v2617
  %3475 = vmatpush1.bf16.msra.mxu0 %v2616
  %3476 = vmatprep.subr.bf16.mxu0 %v2621
  %3477 = vmatpush1.bf16.msra.mxu0 %v2620
  %3478 = vmatprep.mubr.bf16.mxu0 %v621
  %3479 = vmatmul.mubr.bf16.gmra.mrb[0].mxu0 %v620
  %v3480 = vpop.f32.mrb[0].mxu0
  %v3481 = vadd.f32 %v3440, %v3480
  %v3482 = vpop.f32.mrb[0].mxu0
  %v3483 = vadd.f32 %v3442, %v3482
  %v3484 = vpop.f32.mrb[0].mxu0
  %v3485 = vpop.f32.mrb[0].mxu0
  %3486 = vdwg.mxu0
  %3487 = vmatprep.subr.bf16.mxu0 %v2625
  %3488 = vmatpush1.bf16.msra.mxu0 %v2624
  %3489 = vmatprep.subr.bf16.mxu0 %v2629
  %3490 = vmatpush1.bf16.msra.mxu0 %v2628
  %3491 = vmatprep.subr.bf16.mxu0 %v2633
  %3492 = vmatpush1.bf16.msra.mxu0 %v2632
  %3493 = vmatprep.subr.bf16.mxu0 %v2637
  %3494 = vmatpush1.bf16.msra.mxu0 %v2636
  %3495 = vmatprep.subr.bf16.mxu0 %v2641
  %3496 = vmatpush1.bf16.msra.mxu0 %v2640
  %3497 = vmatprep.subr.bf16.mxu0 %v2645
  %3498 = vmatpush1.bf16.msra.mxu0 %v2644
  %3499 = vmatprep.subr.bf16.mxu0 %v2649
  %3500 = vmatpush1.bf16.msra.mxu0 %v2648
  %3501 = vmatprep.subr.bf16.mxu0 %v2653
  %3502 = vmatpush1.bf16.msra.mxu0 %v2652
  %3503 = vmatprep.subr.bf16.mxu0 %v2657
  %3504 = vmatpush1.bf16.msra.mxu0 %v2656
  %3505 = vmatprep.subr.bf16.mxu0 %v2661
  %3506 = vmatpush1.bf16.msra.mxu0 %v2660
  %3507 = vmatprep.subr.bf16.mxu0 %v2665
  %3508 = vmatpush1.bf16.msra.mxu0 %v2664
  %3509 = vmatprep.subr.bf16.mxu0 %v2669
  %3510 = vmatpush1.bf16.msra.mxu0 %v2668
  %3511 = vmatprep.subr.bf16.mxu0 %v2673
  %3512 = vmatpush1.bf16.msra.mxu0 %v2672
  %3513 = vmatprep.subr.bf16.mxu0 %v2677
  %3514 = vmatpush1.bf16.msra.mxu0 %v2676
  %3515 = vmatprep.subr.bf16.mxu0 %v2681
  %3516 = vmatpush1.bf16.msra.mxu0 %v2680
  %3517 = vmatprep.subr.bf16.mxu0 %v2685
  %3518 = vmatpush1.bf16.msra.mxu0 %v2684
  %3519 = vmatprep.mubr.bf16.mxu0 %v623
  %3520 = vmatmul.mubr.bf16.gmra.mrb[0].mxu0 %v622
  %v3521 = vpop.f32.mrb[0].mxu0
  %v3522 = vadd.f32 %v3481, %v3521
  %v3523 = vpop.f32.mrb[0].mxu0
  %v3524 = vadd.f32 %v3483, %v3523
  %v3525 = vpop.f32.mrb[0].mxu0
  %v3526 = vpop.f32.mrb[0].mxu0
  %3527 = vdwg.mxu0
  %3528 = vmatprep.subr.bf16.mxu0 %v2179
  %3529 = vmatpush1.bf16.msra.mxu0 %v2178
  %3530 = vmatprep.subr.bf16.mxu0 %v2183
  %3531 = vmatpush1.bf16.msra.mxu0 %v2182
  %3532 = vmatprep.subr.bf16.mxu0 %v2187
  %3533 = vmatpush1.bf16.msra.mxu0 %v2186
  %3534 = vmatprep.subr.bf16.mxu0 %v2191
  %3535 = vmatpush1.bf16.msra.mxu0 %v2190
  %3536 = vmatprep.subr.bf16.mxu0 %v2195
  %3537 = vmatpush1.bf16.msra.mxu0 %v2194
  %3538 = vmatprep.subr.bf16.mxu0 %v2199
  %3539 = vmatpush1.bf16.msra.mxu0 %v2198
  %3540 = vmatprep.subr.bf16.mxu0 %v2203
  %3541 = vmatpush1.bf16.msra.mxu0 %v2202
  %3542 = vmatprep.subr.bf16.mxu0 %v2207
  %3543 = vmatpush1.bf16.msra.mxu0 %v2206
  %3544 = vmatprep.subr.bf16.mxu0 %v2211
  %3545 = vmatpush1.bf16.msra.mxu0 %v2210
  %3546 = vmatprep.subr.bf16.mxu0 %v2215
  %3547 = vmatpush1.bf16.msra.mxu0 %v2214
  %3548 = vmatprep.subr.bf16.mxu0 %v2219
  %3549 = vmatpush1.bf16.msra.mxu0 %v2218
  %3550 = vmatprep.subr.bf16.mxu0 %v2223
  %3551 = vmatpush1.bf16.msra.mxu0 %v2222
  %3552 = vmatprep.subr.bf16.mxu0 %v2227
  %3553 = vmatpush1.bf16.msra.mxu0 %v2226
  %3554 = vmatprep.subr.bf16.mxu0 %v2231
  %3555 = vmatpush1.bf16.msra.mxu0 %v2230
  %3556 = vmatprep.subr.bf16.mxu0 %v2235
  %3557 = vmatpush1.bf16.msra.mxu0 %v2234
  %3558 = vmatprep.subr.bf16.mxu0 %v2239
  %3559 = vmatpush1.bf16.msra.mxu0 %v2238
  %3560 = vmatprep.mubr.bf16.mxu0 %v609
  %3561 = vmatmul.mubr.bf16.gmra.mrb[0].mxu0 %v608
  %v3562 = vpop.f32.mrb[0].mxu0
  %v3563 = vadd.f32 %v579, %v3562
  %v3564 = vpop.f32.mrb[0].mxu0
  %v3565 = vadd.f32 %v583, %v3564
  %v3566 = vpop.f32.mrb[0].mxu0
  %v3567 = vpop.f32.mrb[0].mxu0
  %3568 = vdwg.mxu0
  %3569 = vmatprep.subr.bf16.mxu0 %v2243
  %3570 = vmatpush1.bf16.msra.mxu0 %v2242
  %3571 = vmatprep.subr.bf16.mxu0 %v2247
  %3572 = vmatpush1.bf16.msra.mxu0 %v2246
  %3573 = vmatprep.subr.bf16.mxu0 %v2251
  %3574 = vmatpush1.bf16.msra.mxu0 %v2250
  %3575 = vmatprep.subr.bf16.mxu0 %v2255
  %3576 = vmatpush1.bf16.msra.mxu0 %v2254
  %3577 = vmatprep.subr.bf16.mxu0 %v2259
  %3578 = vmatpush1.bf16.msra.mxu0 %v2258
  %3579 = vmatprep.subr.bf16.mxu0 %v2263
  %3580 = vmatpush1.bf16.msra.mxu0 %v2262
  %3581 = vmatprep.subr.bf16.mxu0 %v2267
  %3582 = vmatpush1.bf16.msra.mxu0 %v2266
  %3583 = vmatprep.subr.bf16.mxu0 %v2271
  %3584 = vmatpush1.bf16.msra.mxu0 %v2270
  %3585 = vmatprep.subr.bf16.mxu0 %v2275
  %3586 = vmatpush1.bf16.msra.mxu0 %v2274
  %3587 = vmatprep.subr.bf16.mxu0 %v2279
  %3588 = vmatpush1.bf16.msra.mxu0 %v2278
  %3589 = vmatprep.subr.bf16.mxu0 %v2283
  %3590 = vmatpush1.bf16.msra.mxu0 %v2282
  %3591 = vmatprep.subr.bf16.mxu0 %v2287
  %3592 = vmatpush1.bf16.msra.mxu0 %v2286
  %3593 = vmatprep.subr.bf16.mxu0 %v2291
  %3594 = vmatpush1.bf16.msra.mxu0 %v2290
  %3595 = vmatprep.subr.bf16.mxu0 %v2295
  %3596 = vmatpush1.bf16.msra.mxu0 %v2294
  %3597 = vmatprep.subr.bf16.mxu0 %v2299
  %3598 = vmatpush1.bf16.msra.mxu0 %v2298
  %3599 = vmatprep.subr.bf16.mxu0 %v2303
  %3600 = vmatpush1.bf16.msra.mxu0 %v2302
  %3601 = vmatprep.mubr.bf16.mxu0 %v611
  %3602 = vmatmul.mubr.bf16.gmra.mrb[0].mxu0 %v610
  %v3603 = vpop.f32.mrb[0].mxu0
  %v3604 = vadd.f32 %v3563, %v3603
  %v3605 = vpop.f32.mrb[0].mxu0
  %v3606 = vadd.f32 %v3565, %v3605
  %v3607 = vpop.f32.mrb[0].mxu0
  %v3608 = vpop.f32.mrb[0].mxu0
  %3609 = vdwg.mxu0
  %3610 = vmatprep.subr.bf16.mxu0 %v2307
  %3611 = vmatpush1.bf16.msra.mxu0 %v2306
  %3612 = vmatprep.subr.bf16.mxu0 %v2311
  %3613 = vmatpush1.bf16.msra.mxu0 %v2310
  %3614 = vmatprep.subr.bf16.mxu0 %v2315
  %3615 = vmatpush1.bf16.msra.mxu0 %v2314
  %3616 = vmatprep.subr.bf16.mxu0 %v2319
  %3617 = vmatpush1.bf16.msra.mxu0 %v2318
  %3618 = vmatprep.subr.bf16.mxu0 %v2323
  %3619 = vmatpush1.bf16.msra.mxu0 %v2322
  %3620 = vmatprep.subr.bf16.mxu0 %v2327
  %3621 = vmatpush1.bf16.msra.mxu0 %v2326
  %3622 = vmatprep.subr.bf16.mxu0 %v2331
  %3623 = vmatpush1.bf16.msra.mxu0 %v2330
  %3624 = vmatprep.subr.bf16.mxu0 %v2335
  %3625 = vmatpush1.bf16.msra.mxu0 %v2334
  %3626 = vmatprep.subr.bf16.mxu0 %v2339
  %3627 = vmatpush1.bf16.msra.mxu0 %v2338
  %3628 = vmatprep.subr.bf16.mxu0 %v2343
  %3629 = vmatpush1.bf16.msra.mxu0 %v2342
  %3630 = vmatprep.subr.bf16.mxu0 %v2347
  %3631 = vmatpush1.bf16.msra.mxu0 %v2346
  %3632 = vmatprep.subr.bf16.mxu0 %v2351
  %3633 = vmatpush1.bf16.msra.mxu0 %v2350
  %3634 = vmatprep.subr.bf16.mxu0 %v2355
  %3635 = vmatpush1.bf16.msra.mxu0 %v2354
  %3636 = vmatprep.subr.bf16.mxu0 %v2359
  %3637 = vmatpush1.bf16.msra.mxu0 %v2358
  %3638 = vmatprep.subr.bf16.mxu0 %v2363
  %3639 = vmatpush1.bf16.msra.mxu0 %v2362
  %3640 = vmatprep.subr.bf16.mxu0 %v2367
  %3641 = vmatpush1.bf16.msra.mxu0 %v2366
  %3642 = vmatprep.mubr.bf16.mxu0 %v613
  %3643 = vmatmul.mubr.bf16.gmra.mrb[0].mxu0 %v612
  %v3644 = vpop.f32.mrb[0].mxu0
  %v3645 = vadd.f32 %v3604, %v3644
  %v3646 = vpop.f32.mrb[0].mxu0
  %v3647 = vadd.f32 %v3606, %v3646
  %v3648 = vpop.f32.mrb[0].mxu0
  %v3649 = vpop.f32.mrb[0].mxu0
  %3650 = vdwg.mxu0
  %3651 = vmatprep.subr.bf16.mxu0 %v2371
  %3652 = vmatpush1.bf16.msra.mxu0 %v2370
  %3653 = vmatprep.subr.bf16.mxu0 %v2375
  %3654 = vmatpush1.bf16.msra.mxu0 %v2374
  %3655 = vmatprep.subr.bf16.mxu0 %v2379
  %3656 = vmatpush1.bf16.msra.mxu0 %v2378
  %3657 = vmatprep.subr.bf16.mxu0 %v2383
  %3658 = vmatpush1.bf16.msra.mxu0 %v2382
  %3659 = vmatprep.subr.bf16.mxu0 %v2387
  %3660 = vmatpush1.bf16.msra.mxu0 %v2386
  %3661 = vmatprep.subr.bf16.mxu0 %v2391
  %3662 = vmatpush1.bf16.msra.mxu0 %v2390
  %3663 = vmatprep.subr.bf16.mxu0 %v2395
  %3664 = vmatpush1.bf16.msra.mxu0 %v2394
  %3665 = vmatprep.subr.bf16.mxu0 %v2399
  %3666 = vmatpush1.bf16.msra.mxu0 %v2398
  %3667 = vmatprep.subr.bf16.mxu0 %v2403
  %3668 = vmatpush1.bf16.msra.mxu0 %v2402
  %3669 = vmatprep.subr.bf16.mxu0 %v2407
  %3670 = vmatpush1.bf16.msra.mxu0 %v2406
  %3671 = vmatprep.subr.bf16.mxu0 %v2411
  %3672 = vmatpush1.bf16.msra.mxu0 %v2410
  %3673 = vmatprep.subr.bf16.mxu0 %v2415
  %3674 = vmatpush1.bf16.msra.mxu0 %v2414
  %3675 = vmatprep.subr.bf16.mxu0 %v2419
  %3676 = vmatpush1.bf16.msra.mxu0 %v2418
  %3677 = vmatprep.subr.bf16.mxu0 %v2423
  %3678 = vmatpush1.bf16.msra.mxu0 %v2422
  %3679 = vmatprep.subr.bf16.mxu0 %v2427
  %3680 = vmatpush1.bf16.msra.mxu0 %v2426
  %3681 = vmatprep.subr.bf16.mxu0 %v2431
  %3682 = vmatpush1.bf16.msra.mxu0 %v2430
  %3683 = vmatprep.mubr.bf16.mxu0 %v615
  %3684 = vmatmul.mubr.bf16.gmra.mrb[0].mxu0 %v614
  %v3685 = vpop.f32.mrb[0].mxu0
  %v3686 = vadd.f32 %v3645, %v3685
  %v3687 = vpop.f32.mrb[0].mxu0
  %v3688 = vadd.f32 %v3647, %v3687
  %v3689 = vpop.f32.mrb[0].mxu0
  %v3690 = vpop.f32.mrb[0].mxu0
  %3691 = vdwg.mxu0
  %3692 = vmatprep.subr.bf16.mxu0 %v2435
  %3693 = vmatpush1.bf16.msra.mxu0 %v2434
  %3694 = vmatprep.subr.bf16.mxu0 %v2439
  %3695 = vmatpush1.bf16.msra.mxu0 %v2438
  %3696 = vmatprep.subr.bf16.mxu0 %v2443
  %3697 = vmatpush1.bf16.msra.mxu0 %v2442
  %3698 = vmatprep.subr.bf16.mxu0 %v2447
  %3699 = vmatpush1.bf16.msra.mxu0 %v2446
  %3700 = vmatprep.subr.bf16.mxu0 %v2451
  %3701 = vmatpush1.bf16.msra.mxu0 %v2450
  %3702 = vmatprep.subr.bf16.mxu0 %v2455
  %3703 = vmatpush1.bf16.msra.mxu0 %v2454
  %3704 = vmatprep.subr.bf16.mxu0 %v2459
  %3705 = vmatpush1.bf16.msra.mxu0 %v2458
  %3706 = vmatprep.subr.bf16.mxu0 %v2463
  %3707 = vmatpush1.bf16.msra.mxu0 %v2462
  %3708 = vmatprep.subr.bf16.mxu0 %v2467
  %3709 = vmatpush1.bf16.msra.mxu0 %v2466
  %3710 = vmatprep.subr.bf16.mxu0 %v2471
  %3711 = vmatpush1.bf16.msra.mxu0 %v2470
  %3712 = vmatprep.subr.bf16.mxu0 %v2475
  %3713 = vmatpush1.bf16.msra.mxu0 %v2474
  %3714 = vmatprep.subr.bf16.mxu0 %v2479
  %3715 = vmatpush1.bf16.msra.mxu0 %v2478
  %3716 = vmatprep.subr.bf16.mxu0 %v2483
  %3717 = vmatpush1.bf16.msra.mxu0 %v2482
  %3718 = vmatprep.subr.bf16.mxu0 %v2487
  %3719 = vmatpush1.bf16.msra.mxu0 %v2486
  %3720 = vmatprep.subr.bf16.mxu0 %v2491
  %3721 = vmatpush1.bf16.msra.mxu0 %v2490
  %3722 = vmatprep.subr.bf16.mxu0 %v2495
  %3723 = vmatpush1.bf16.msra.mxu0 %v2494
  %3724 = vmatprep.mubr.bf16.mxu0 %v617
  %3725 = vmatmul.mubr.bf16.gmra.mrb[0].mxu0 %v616
  %v3726 = vpop.f32.mrb[0].mxu0
  %v3727 = vadd.f32 %v3686, %v3726
  %v3728 = vpop.f32.mrb[0].mxu0
  %v3729 = vadd.f32 %v3688, %v3728
  %v3730 = vpop.f32.mrb[0].mxu0
  %v3731 = vpop.f32.mrb[0].mxu0
  %3732 = vdwg.mxu0
  %3733 = vmatprep.subr.bf16.mxu0 %v2499
  %3734 = vmatpush1.bf16.msra.mxu0 %v2498
  %3735 = vmatprep.subr.bf16.mxu0 %v2503
  %3736 = vmatpush1.bf16.msra.mxu0 %v2502
  %3737 = vmatprep.subr.bf16.mxu0 %v2507
  %3738 = vmatpush1.bf16.msra.mxu0 %v2506
  %3739 = vmatprep.subr.bf16.mxu0 %v2511
  %3740 = vmatpush1.bf16.msra.mxu0 %v2510
  %3741 = vmatprep.subr.bf16.mxu0 %v2515
  %3742 = vmatpush1.bf16.msra.mxu0 %v2514
  %3743 = vmatprep.subr.bf16.mxu0 %v2519
  %3744 = vmatpush1.bf16.msra.mxu0 %v2518
  %3745 = vmatprep.subr.bf16.mxu0 %v2523
  %3746 = vmatpush1.bf16.msra.mxu0 %v2522
  %3747 = vmatprep.subr.bf16.mxu0 %v2527
  %3748 = vmatpush1.bf16.msra.mxu0 %v2526
  %3749 = vmatprep.subr.bf16.mxu0 %v2531
  %3750 = vmatpush1.bf16.msra.mxu0 %v2530
  %3751 = vmatprep.subr.bf16.mxu0 %v2535
  %3752 = vmatpush1.bf16.msra.mxu0 %v2534
  %3753 = vmatprep.subr.bf16.mxu0 %v2539
  %3754 = vmatpush1.bf16.msra.mxu0 %v2538
  %3755 = vmatprep.subr.bf16.mxu0 %v2543
  %3756 = vmatpush1.bf16.msra.mxu0 %v2542
  %3757 = vmatprep.subr.bf16.mxu0 %v2547
  %3758 = vmatpush1.bf16.msra.mxu0 %v2546
  %3759 = vmatprep.subr.bf16.mxu0 %v2551
  %3760 = vmatpush1.bf16.msra.mxu0 %v2550
  %3761 = vmatprep.subr.bf16.mxu0 %v2555
  %3762 = vmatpush1.bf16.msra.mxu0 %v2554
  %3763 = vmatprep.subr.bf16.mxu0 %v2559
  %3764 = vmatpush1.bf16.msra.mxu0 %v2558
  %3765 = vmatprep.mubr.bf16.mxu0 %v619
  %3766 = vmatmul.mubr.bf16.gmra.mrb[0].mxu0 %v618
  %v3767 = vpop.f32.mrb[0].mxu0
  %v3768 = vadd.f32 %v3727, %v3767
  %v3769 = vpop.f32.mrb[0].mxu0
  %v3770 = vadd.f32 %v3729, %v3769
  %v3771 = vpop.f32.mrb[0].mxu0
  %v3772 = vpop.f32.mrb[0].mxu0
  %3773 = vdwg.mxu0
  %3774 = vmatprep.subr.bf16.mxu0 %v2563
  %3775 = vmatpush1.bf16.msra.mxu0 %v2562
  %3776 = vmatprep.subr.bf16.mxu0 %v2567
  %3777 = vmatpush1.bf16.msra.mxu0 %v2566
  %3778 = vmatprep.subr.bf16.mxu0 %v2571
  %3779 = vmatpush1.bf16.msra.mxu0 %v2570
  %3780 = vmatprep.subr.bf16.mxu0 %v2575
  %3781 = vmatpush1.bf16.msra.mxu0 %v2574
  %3782 = vmatprep.subr.bf16.mxu0 %v2579
  %3783 = vmatpush1.bf16.msra.mxu0 %v2578
  %3784 = vmatprep.subr.bf16.mxu0 %v2583
  %3785 = vmatpush1.bf16.msra.mxu0 %v2582
  %3786 = vmatprep.subr.bf16.mxu0 %v2587
  %3787 = vmatpush1.bf16.msra.mxu0 %v2586
  %3788 = vmatprep.subr.bf16.mxu0 %v2591
  %3789 = vmatpush1.bf16.msra.mxu0 %v2590
  %3790 = vmatprep.subr.bf16.mxu0 %v2595
  %3791 = vmatpush1.bf16.msra.mxu0 %v2594
  %3792 = vmatprep.subr.bf16.mxu0 %v2599
  %3793 = vmatpush1.bf16.msra.mxu0 %v2598
  %3794 = vmatprep.subr.bf16.mxu0 %v2603
  %3795 = vmatpush1.bf16.msra.mxu0 %v2602
  %3796 = vmatprep.subr.bf16.mxu0 %v2607
  %3797 = vmatpush1.bf16.msra.mxu0 %v2606
  %3798 = vmatprep.subr.bf16.mxu0 %v2611
  %3799 = vmatpush1.bf16.msra.mxu0 %v2610
  %3800 = vmatprep.subr.bf16.mxu0 %v2615
  %3801 = vmatpush1.bf16.msra.mxu0 %v2614
  %3802 = vmatprep.subr.bf16.mxu0 %v2619
  %3803 = vmatpush1.bf16.msra.mxu0 %v2618
  %3804 = vmatprep.subr.bf16.mxu0 %v2623
  %3805 = vmatpush1.bf16.msra.mxu0 %v2622
  %3806 = vmatprep.mubr.bf16.mxu0 %v621
  %3807 = vmatmul.mubr.bf16.gmra.mrb[0].mxu0 %v620
  %v3808 = vpop.f32.mrb[0].mxu0
  %v3809 = vadd.f32 %v3768, %v3808
  %v3810 = vpop.f32.mrb[0].mxu0
  %v3811 = vadd.f32 %v3770, %v3810
  %v3812 = vpop.f32.mrb[0].mxu0
  %v3813 = vpop.f32.mrb[0].mxu0
  %3814 = vdwg.mxu0
  %3815 = vmatprep.subr.bf16.mxu0 %v2627
  %3816 = vmatpush1.bf16.msra.mxu0 %v2626
  %3817 = vmatprep.subr.bf16.mxu0 %v2631
  %3818 = vmatpush1.bf16.msra.mxu0 %v2630
  %3819 = vmatprep.subr.bf16.mxu0 %v2635
  %3820 = vmatpush1.bf16.msra.mxu0 %v2634
  %3821 = vmatprep.subr.bf16.mxu0 %v2639
  %3822 = vmatpush1.bf16.msra.mxu0 %v2638
  %3823 = vmatprep.subr.bf16.mxu0 %v2643
  %3824 = vmatpush1.bf16.msra.mxu0 %v2642
  %3825 = vmatprep.subr.bf16.mxu0 %v2647
  %3826 = vmatpush1.bf16.msra.mxu0 %v2646
  %3827 = vmatprep.subr.bf16.mxu0 %v2651
  %3828 = vmatpush1.bf16.msra.mxu0 %v2650
  %3829 = vmatprep.subr.bf16.mxu0 %v2655
  %3830 = vmatpush1.bf16.msra.mxu0 %v2654
  %3831 = vmatprep.subr.bf16.mxu0 %v2659
  %3832 = vmatpush1.bf16.msra.mxu0 %v2658
  %3833 = vmatprep.subr.bf16.mxu0 %v2663
  %3834 = vmatpush1.bf16.msra.mxu0 %v2662
  %3835 = vmatprep.subr.bf16.mxu0 %v2667
  %3836 = vmatpush1.bf16.msra.mxu0 %v2666
  %3837 = vmatprep.subr.bf16.mxu0 %v2671
  %3838 = vmatpush1.bf16.msra.mxu0 %v2670
  %3839 = vmatprep.subr.bf16.mxu0 %v2675
  %3840 = vmatpush1.bf16.msra.mxu0 %v2674
  %3841 = vmatprep.subr.bf16.mxu0 %v2679
  %3842 = vmatpush1.bf16.msra.mxu0 %v2678
  %3843 = vmatprep.subr.bf16.mxu0 %v2683
  %3844 = vmatpush1.bf16.msra.mxu0 %v2682
  %3845 = vmatprep.subr.bf16.mxu0 %v2687
  %3846 = vmatpush1.bf16.msra.mxu0 %v2686
  %3847 = vmatprep.mubr.bf16.mxu0 %v623
  %3848 = vmatmul.mubr.bf16.gmra.mrb[0].mxu0 %v622
  %v3849 = vpop.f32.mrb[0].mxu0
  %v3850 = vadd.f32 %v3809, %v3849
  %v3851 = vpop.f32.mrb[0].mxu0
  %v3852 = vadd.f32 %v3811, %v3851
  %v3853 = vpop.f32.mrb[0].mxu0
  %v3854 = vpop.f32.mrb[0].mxu0
  %3855 = vdwg.mxu0
  %vm3856 = vcmask 64512
  %v3858 = vsel %vm3856, %v39, 0
  %3860 = vmatprep.subr.mxu0 %v3524
  %3861 = vmatpush1.msra.mxu0 %v3522
  %3862 = vmatprep.subr.mxu0 0.0
  %3863 = vmatpush1.msra.mxu0 0.0
  %3864 = vmatprep.subr.mxu0 0.0
  %3865 = vmatpush1.msra.mxu0 0.0
  %3866 = vmatprep.subr.mxu0 0.0
  %3867 = vmatpush1.msra.mxu0 0.0
  %3868 = vmatprep.subr.mxu0 0.0
  %3869 = vmatpush1.msra.mxu0 0.0
  %3870 = vmatprep.subr.mxu0 0.0
  %3871 = vmatpush1.msra.mxu0 0.0
  %3872 = vmatprep.subr.mxu0 0.0
  %3873 = vmatpush1.msra.mxu0 0.0
  %3874 = vmatprep.subr.mxu0 0.0
  %3875 = vmatpush1.msra.mxu0 0.0
  %3876 = vmatprep.subr.mxu0 0.0
  %3877 = vmatpush1.msra.mxu0 0.0
  %3878 = vmatprep.subr.mxu0 0.0
  %3879 = vmatpush1.msra.mxu0 0.0
  %3880 = vmatprep.subr.mxu0 0.0
  %3881 = vmatpush1.msra.mxu0 0.0
  %3882 = vmatprep.subr.mxu0 0.0
  %3883 = vmatpush1.msra.mxu0 0.0
  %3884 = vmatprep.subr.mxu0 0.0
  %3885 = vmatpush1.msra.mxu0 0.0
  %3886 = vmatprep.subr.mxu0 0.0
  %3887 = vmatpush1.msra.mxu0 0.0
  %3888 = vmatprep.subr.mxu0 0.0
  %3889 = vmatpush1.msra.mxu0 0.0
  %3890 = vmatprep.subr.mxu0 0.0
  %3891 = vmatpush1.msra.mxu0 0.0
  %3892 = vmatprep.subr.mxu0 0.0
  %3893 = vmatpush1.msra.mxu0 0.0
  %3894 = vmatprep.subr.mxu0 0.0
  %3895 = vmatpush1.msra.mxu0 0.0
  %3896 = vmatprep.subr.mxu0 0.0
  %3897 = vmatpush1.msra.mxu0 0.0
  %3898 = vmatprep.subr.mxu0 0.0
  %3899 = vmatpush1.msra.mxu0 0.0
  %3900 = vmatprep.subr.mxu0 0.0
  %3901 = vmatpush1.msra.mxu0 0.0
  %3902 = vmatprep.subr.mxu0 0.0
  %3903 = vmatpush1.msra.mxu0 0.0
  %3904 = vmatprep.subr.mxu0 0.0
  %3905 = vmatpush1.msra.mxu0 0.0
  %3906 = vmatprep.subr.mxu0 0.0
  %3907 = vmatpush1.msra.mxu0 0.0
  %3908 = vmatprep.subr.mxu0 0.0
  %3909 = vmatpush1.msra.mxu0 0.0
  %3910 = vmatprep.subr.mxu0 0.0
  %3911 = vmatpush1.msra.mxu0 0.0
  %3912 = vmatprep.subr.mxu0 0.0
  %3913 = vmatpush1.msra.mxu0 0.0
  %3914 = vmatprep.subr.mxu0 0.0
  %3915 = vmatpush1.msra.mxu0 0.0
  %3916 = vmatprep.subr.mxu0 0.0
  %3917 = vmatpush1.msra.mxu0 0.0
  %3918 = vmatprep.subr.mxu0 0.0
  %3919 = vmatpush1.msra.mxu0 0.0
  %3920 = vmatprep.subr.mxu0 0.0
  %3921 = vmatpush1.msra.mxu0 0.0
  %3922 = vmatprep.subr.mxu0 0.0
  %3923 = vmatpush1.msra.mxu0 0.0
  %3924 = vmatprep.mubr.f32.mxu0 0.0
  %3925 = vmatmul.mubr.f32.gmra.mrb[0].mxu0 %v3858
  %v3926 = vpop.f32.mrb[0].mxu0
  %v3927 = vadd.f32 0.0, %v3926
  %v3928 = vpop.f32.mrb[0].mxu0
  %v3929 = vadd.f32 0.0, %v3928
  %3930 = vdwg.mxu0
  %3931 = vmatprep.subr.mxu0 %v3852
  %3932 = vmatpush1.msra.mxu0 %v3850
  %3933 = vmatprep.subr.mxu0 0.0
  %3934 = vmatpush1.msra.mxu0 0.0
  %3935 = vmatprep.subr.mxu0 0.0
  %3936 = vmatpush1.msra.mxu0 0.0
  %3937 = vmatprep.subr.mxu0 0.0
  %3938 = vmatpush1.msra.mxu0 0.0
  %3939 = vmatprep.subr.mxu0 0.0
  %3940 = vmatpush1.msra.mxu0 0.0
  %3941 = vmatprep.subr.mxu0 0.0
  %3942 = vmatpush1.msra.mxu0 0.0
  %3943 = vmatprep.subr.mxu0 0.0
  %3944 = vmatpush1.msra.mxu0 0.0
  %3945 = vmatprep.subr.mxu0 0.0
  %3946 = vmatpush1.msra.mxu0 0.0
  %3947 = vmatprep.subr.mxu0 0.0
  %3948 = vmatpush1.msra.mxu0 0.0
  %3949 = vmatprep.subr.mxu0 0.0
  %3950 = vmatpush1.msra.mxu0 0.0
  %3951 = vmatprep.subr.mxu0 0.0
  %3952 = vmatpush1.msra.mxu0 0.0
  %3953 = vmatprep.subr.mxu0 0.0
  %3954 = vmatpush1.msra.mxu0 0.0
  %3955 = vmatprep.subr.mxu0 0.0
  %3956 = vmatpush1.msra.mxu0 0.0
  %3957 = vmatprep.subr.mxu0 0.0
  %3958 = vmatpush1.msra.mxu0 0.0
  %3959 = vmatprep.subr.mxu0 0.0
  %3960 = vmatpush1.msra.mxu0 0.0
  %3961 = vmatprep.subr.mxu0 0.0
  %3962 = vmatpush1.msra.mxu0 0.0
  %3963 = vmatprep.subr.mxu0 0.0
  %3964 = vmatpush1.msra.mxu0 0.0
  %3965 = vmatprep.subr.mxu0 0.0
  %3966 = vmatpush1.msra.mxu0 0.0
  %3967 = vmatprep.subr.mxu0 0.0
  %3968 = vmatpush1.msra.mxu0 0.0
  %3969 = vmatprep.subr.mxu0 0.0
  %3970 = vmatpush1.msra.mxu0 0.0
  %3971 = vmatprep.subr.mxu0 0.0
  %3972 = vmatpush1.msra.mxu0 0.0
  %3973 = vmatprep.subr.mxu0 0.0
  %3974 = vmatpush1.msra.mxu0 0.0
  %3975 = vmatprep.subr.mxu0 0.0
  %3976 = vmatpush1.msra.mxu0 0.0
  %3977 = vmatprep.subr.mxu0 0.0
  %3978 = vmatpush1.msra.mxu0 0.0
  %3979 = vmatprep.subr.mxu0 0.0
  %3980 = vmatpush1.msra.mxu0 0.0
  %3981 = vmatprep.subr.mxu0 0.0
  %3982 = vmatpush1.msra.mxu0 0.0
  %3983 = vmatprep.subr.mxu0 0.0
  %3984 = vmatpush1.msra.mxu0 0.0
  %3985 = vmatprep.subr.mxu0 0.0
  %3986 = vmatpush1.msra.mxu0 0.0
  %3987 = vmatprep.subr.mxu0 0.0
  %3988 = vmatpush1.msra.mxu0 0.0
  %3989 = vmatprep.subr.mxu0 0.0
  %3990 = vmatpush1.msra.mxu0 0.0
  %3991 = vmatprep.subr.mxu0 0.0
  %3992 = vmatpush1.msra.mxu0 0.0
  %3993 = vmatprep.subr.mxu0 0.0
  %3994 = vmatpush1.msra.mxu0 0.0
  %3995 = vmatprep.mubr.f32.mxu0 0.0
  %3996 = vmatmul.mubr.f32.gmra.mrb[0].mxu0 %v3858
  %v3997 = vpop.f32.mrb[0].mxu0
  %v3998 = vadd.f32 0.0, %v3997
  %v3999 = vpop.f32.mrb[0].mxu0
  %v4000 = vadd.f32 0.0, %v3999
  %4001 = vdwg.mxu0
  %v4002 = vmul.f32 %v3522, %v3522
  %v4003 = vmul.f32 %v3524, %v3524
  %v4004 = vmul.f32 %v3850, %v3850
  %v4005 = vmul.f32 %v3852, %v3852
  %4006 = vmatprep.subr.mxu0 %v4003
  %4007 = vmatpush1.msra.mxu0 %v4002
  %4008 = vmatprep.subr.mxu0 0.0
  %4009 = vmatpush1.msra.mxu0 0.0
  %4010 = vmatprep.subr.mxu0 0.0
  %4011 = vmatpush1.msra.mxu0 0.0
  %4012 = vmatprep.subr.mxu0 0.0
  %4013 = vmatpush1.msra.mxu0 0.0
  %4014 = vmatprep.subr.mxu0 0.0
  %4015 = vmatpush1.msra.mxu0 0.0
  %4016 = vmatprep.subr.mxu0 0.0
  %4017 = vmatpush1.msra.mxu0 0.0
  %4018 = vmatprep.subr.mxu0 0.0
  %4019 = vmatpush1.msra.mxu0 0.0
  %4020 = vmatprep.subr.mxu0 0.0
  %4021 = vmatpush1.msra.mxu0 0.0
  %4022 = vmatprep.subr.mxu0 0.0
  %4023 = vmatpush1.msra.mxu0 0.0
  %4024 = vmatprep.subr.mxu0 0.0
  %4025 = vmatpush1.msra.mxu0 0.0
  %4026 = vmatprep.subr.mxu0 0.0
  %4027 = vmatpush1.msra.mxu0 0.0
  %4028 = vmatprep.subr.mxu0 0.0
  %4029 = vmatpush1.msra.mxu0 0.0
  %4030 = vmatprep.subr.mxu0 0.0
  %4031 = vmatpush1.msra.mxu0 0.0
  %4032 = vmatprep.subr.mxu0 0.0
  %4033 = vmatpush1.msra.mxu0 0.0
  %4034 = vmatprep.subr.mxu0 0.0
  %4035 = vmatpush1.msra.mxu0 0.0
  %4036 = vmatprep.subr.mxu0 0.0
  %4037 = vmatpush1.msra.mxu0 0.0
  %4038 = vmatprep.subr.mxu0 0.0
  %4039 = vmatpush1.msra.mxu0 0.0
  %4040 = vmatprep.subr.mxu0 0.0
  %4041 = vmatpush1.msra.mxu0 0.0
  %4042 = vmatprep.subr.mxu0 0.0
  %4043 = vmatpush1.msra.mxu0 0.0
  %4044 = vmatprep.subr.mxu0 0.0
  %4045 = vmatpush1.msra.mxu0 0.0
  %4046 = vmatprep.subr.mxu0 0.0
  %4047 = vmatpush1.msra.mxu0 0.0
  %4048 = vmatprep.subr.mxu0 0.0
  %4049 = vmatpush1.msra.mxu0 0.0
  %4050 = vmatprep.subr.mxu0 0.0
  %4051 = vmatpush1.msra.mxu0 0.0
  %4052 = vmatprep.subr.mxu0 0.0
  %4053 = vmatpush1.msra.mxu0 0.0
  %4054 = vmatprep.subr.mxu0 0.0
  %4055 = vmatpush1.msra.mxu0 0.0
  %4056 = vmatprep.subr.mxu0 0.0
  %4057 = vmatpush1.msra.mxu0 0.0
  %4058 = vmatprep.subr.mxu0 0.0
  %4059 = vmatpush1.msra.mxu0 0.0
  %4060 = vmatprep.subr.mxu0 0.0
  %4061 = vmatpush1.msra.mxu0 0.0
  %4062 = vmatprep.subr.mxu0 0.0
  %4063 = vmatpush1.msra.mxu0 0.0
  %4064 = vmatprep.subr.mxu0 0.0
  %4065 = vmatpush1.msra.mxu0 0.0
  %4066 = vmatprep.subr.mxu0 0.0
  %4067 = vmatpush1.msra.mxu0 0.0
  %4068 = vmatprep.subr.mxu0 0.0
  %4069 = vmatpush1.msra.mxu0 0.0
  %4070 = vmatprep.mubr.f32.mxu0 0.0
  %4071 = vmatmul.mubr.f32.gmra.mrb[0].mxu0 %v3858
  %v4072 = vpop.f32.mrb[0].mxu0
  %v4073 = vadd.f32 0.0, %v4072
  %v4074 = vpop.f32.mrb[0].mxu0
  %v4075 = vadd.f32 0.0, %v4074
  %4076 = vdwg.mxu0
  %4077 = vmatprep.subr.mxu0 %v4005
  %4078 = vmatpush1.msra.mxu0 %v4004
  %4079 = vmatprep.subr.mxu0 0.0
  %4080 = vmatpush1.msra.mxu0 0.0
  %4081 = vmatprep.subr.mxu0 0.0
  %4082 = vmatpush1.msra.mxu0 0.0
  %4083 = vmatprep.subr.mxu0 0.0
  %4084 = vmatpush1.msra.mxu0 0.0
  %4085 = vmatprep.subr.mxu0 0.0
  %4086 = vmatpush1.msra.mxu0 0.0
  %4087 = vmatprep.subr.mxu0 0.0
  %4088 = vmatpush1.msra.mxu0 0.0
  %4089 = vmatprep.subr.mxu0 0.0
  %4090 = vmatpush1.msra.mxu0 0.0
  %4091 = vmatprep.subr.mxu0 0.0
  %4092 = vmatpush1.msra.mxu0 0.0
  %4093 = vmatprep.subr.mxu0 0.0
  %4094 = vmatpush1.msra.mxu0 0.0
  %4095 = vmatprep.subr.mxu0 0.0
  %4096 = vmatpush1.msra.mxu0 0.0
  %4097 = vmatprep.subr.mxu0 0.0
  %4098 = vmatpush1.msra.mxu0 0.0
  %4099 = vmatprep.subr.mxu0 0.0
  %4100 = vmatpush1.msra.mxu0 0.0
  %4101 = vmatprep.subr.mxu0 0.0
  %4102 = vmatpush1.msra.mxu0 0.0
  %4103 = vmatprep.subr.mxu0 0.0
  %4104 = vmatpush1.msra.mxu0 0.0
  %4105 = vmatprep.subr.mxu0 0.0
  %4106 = vmatpush1.msra.mxu0 0.0
  %4107 = vmatprep.subr.mxu0 0.0
  %4108 = vmatpush1.msra.mxu0 0.0
  %4109 = vmatprep.subr.mxu0 0.0
  %4110 = vmatpush1.msra.mxu0 0.0
  %4111 = vmatprep.subr.mxu0 0.0
  %4112 = vmatpush1.msra.mxu0 0.0
  %4113 = vmatprep.subr.mxu0 0.0
  %4114 = vmatpush1.msra.mxu0 0.0
  %4115 = vmatprep.subr.mxu0 0.0
  %4116 = vmatpush1.msra.mxu0 0.0
  %4117 = vmatprep.subr.mxu0 0.0
  %4118 = vmatpush1.msra.mxu0 0.0
  %4119 = vmatprep.subr.mxu0 0.0
  %4120 = vmatpush1.msra.mxu0 0.0
  %4121 = vmatprep.subr.mxu0 0.0
  %4122 = vmatpush1.msra.mxu0 0.0
  %4123 = vmatprep.subr.mxu0 0.0
  %4124 = vmatpush1.msra.mxu0 0.0
  %4125 = vmatprep.subr.mxu0 0.0
  %4126 = vmatpush1.msra.mxu0 0.0
  %4127 = vmatprep.subr.mxu0 0.0
  %4128 = vmatpush1.msra.mxu0 0.0
  %4129 = vmatprep.subr.mxu0 0.0
  %4130 = vmatpush1.msra.mxu0 0.0
  %4131 = vmatprep.subr.mxu0 0.0
  %4132 = vmatpush1.msra.mxu0 0.0
  %4133 = vmatprep.subr.mxu0 0.0
  %4134 = vmatpush1.msra.mxu0 0.0
  %4135 = vmatprep.subr.mxu0 0.0
  %4136 = vmatpush1.msra.mxu0 0.0
  %4137 = vmatprep.subr.mxu0 0.0
  %4138 = vmatpush1.msra.mxu0 0.0
  %4139 = vmatprep.subr.mxu0 0.0
  %4140 = vmatpush1.msra.mxu0 0.0
  %4141 = vmatprep.mubr.f32.mxu0 0.0
  %4142 = vmatmul.mubr.f32.gmra.mrb[0].mxu0 %v3858
  %v4143 = vpop.f32.mrb[0].mxu0
  %v4144 = vadd.f32 0.0, %v4143
  %v4145 = vpop.f32.mrb[0].mxu0
  %v4146 = vadd.f32 0.0, %v4145
  %4147 = vdwg.mxu0
  %v4148 = vmul.f32 %v3927, %v3927
  %v4149 = vmul.f32 %v3929, %v3929
  %v4150 = vmul.f32 %v3998, %v3998
  %v4151 = vmul.f32 %v4000, %v4000
  %v4152 = vsub.f32 %v4073, %v4148
  %v4153 = vsub.f32 %v4075, %v4149
  %v4154 = vsub.f32 %v4144, %v4150
  %v4155 = vsub.f32 %v4146, %v4151
  %v4156 = vmax.f32 %v4152, 0.0
  %v4157 = vmax.f32 %v4153, 0.0
  %v4158 = vmax.f32 %v4154, 0.0
  %v4159 = vmax.f32 %v4155, 0.0
  %vm4160 = vcmask 31744
  %v4162 = vsel %vm4160, %v47, 0
  %vm4164 = vcmask 1043456
  %v4166 = vsel %vm4164, %v3927, 0
  %v4169 = vsel %vm4164, %v3929, 0
  %v4172 = vsel %vm4164, %v3998, 0
  %v4175 = vsel %vm4164, %v4000, 0
  %4177 = vmatprep.subr.mxu0 %v4169
  %4178 = vmatpush1.msra.mxu0 %v4166
  %4179 = vmatprep.subr.mxu0 0.0
  %4180 = vmatpush1.msra.mxu0 0.0
  %4181 = vmatprep.subr.mxu0 0.0
  %4182 = vmatpush1.msra.mxu0 0.0
  %4183 = vmatprep.subr.mxu0 0.0
  %4184 = vmatpush1.msra.mxu0 0.0
  %4185 = vmatprep.subr.mxu0 0.0
  %4186 = vmatpush1.msra.mxu0 0.0
  %4187 = vmatprep.subr.mxu0 0.0
  %4188 = vmatpush1.msra.mxu0 0.0
  %4189 = vmatprep.subr.mxu0 0.0
  %4190 = vmatpush1.msra.mxu0 0.0
  %4191 = vmatprep.subr.mxu0 0.0
  %4192 = vmatpush1.msra.mxu0 0.0
  %4193 = vmatprep.subr.mxu0 0.0
  %4194 = vmatpush1.msra.mxu0 0.0
  %4195 = vmatprep.subr.mxu0 0.0
  %4196 = vmatpush1.msra.mxu0 0.0
  %4197 = vmatprep.subr.mxu0 0.0
  %4198 = vmatpush1.msra.mxu0 0.0
  %4199 = vmatprep.subr.mxu0 0.0
  %4200 = vmatpush1.msra.mxu0 0.0
  %4201 = vmatprep.subr.mxu0 0.0
  %4202 = vmatpush1.msra.mxu0 0.0
  %4203 = vmatprep.subr.mxu0 0.0
  %4204 = vmatpush1.msra.mxu0 0.0
  %4205 = vmatprep.subr.mxu0 0.0
  %4206 = vmatpush1.msra.mxu0 0.0
  %4207 = vmatprep.subr.mxu0 0.0
  %4208 = vmatpush1.msra.mxu0 0.0
  %4209 = vmatprep.subr.mxu0 0.0
  %4210 = vmatpush1.msra.mxu0 0.0
  %4211 = vmatprep.subr.mxu0 0.0
  %4212 = vmatpush1.msra.mxu0 0.0
  %4213 = vmatprep.subr.mxu0 0.0
  %4214 = vmatpush1.msra.mxu0 0.0
  %4215 = vmatprep.subr.mxu0 0.0
  %4216 = vmatpush1.msra.mxu0 0.0
  %4217 = vmatprep.subr.mxu0 0.0
  %4218 = vmatpush1.msra.mxu0 0.0
  %4219 = vmatprep.subr.mxu0 0.0
  %4220 = vmatpush1.msra.mxu0 0.0
  %4221 = vmatprep.subr.mxu0 0.0
  %4222 = vmatpush1.msra.mxu0 0.0
  %4223 = vmatprep.subr.mxu0 0.0
  %4224 = vmatpush1.msra.mxu0 0.0
  %4225 = vmatprep.subr.mxu0 0.0
  %4226 = vmatpush1.msra.mxu0 0.0
  %4227 = vmatprep.subr.mxu0 0.0
  %4228 = vmatpush1.msra.mxu0 0.0
  %4229 = vmatprep.subr.mxu0 0.0
  %4230 = vmatpush1.msra.mxu0 0.0
  %4231 = vmatprep.subr.mxu0 0.0
  %4232 = vmatpush1.msra.mxu0 0.0
  %4233 = vmatprep.subr.mxu0 0.0
  %4234 = vmatpush1.msra.mxu0 0.0
  %4235 = vmatprep.subr.mxu0 0.0
  %4236 = vmatpush1.msra.mxu0 0.0
  %4237 = vmatprep.subr.mxu0 0.0
  %4238 = vmatpush1.msra.mxu0 0.0
  %4239 = vmatprep.subr.mxu0 0.0
  %4240 = vmatpush1.msra.mxu0 0.0
  %4241 = vmatprep.mubr.f32.mxu0 0.0
  %4242 = vmatmul.mubr.f32.gmra.mrb[0].mxu0 %v4162
  %v4243 = vpop.f32.mrb[0].mxu0
  %v4244 = vadd.f32 0.0, %v4243
  %v4245 = vpop.f32.mrb[0].mxu0
  %v4246 = vadd.f32 0.0, %v4245
  %4247 = vdwg.mxu0
  %4248 = vmatprep.subr.mxu0 %v4175
  %4249 = vmatpush1.msra.mxu0 %v4172
  %4250 = vmatprep.subr.mxu0 0.0
  %4251 = vmatpush1.msra.mxu0 0.0
  %4252 = vmatprep.subr.mxu0 0.0
  %4253 = vmatpush1.msra.mxu0 0.0
  %4254 = vmatprep.subr.mxu0 0.0
  %4255 = vmatpush1.msra.mxu0 0.0
  %4256 = vmatprep.subr.mxu0 0.0
  %4257 = vmatpush1.msra.mxu0 0.0
  %4258 = vmatprep.subr.mxu0 0.0
  %4259 = vmatpush1.msra.mxu0 0.0
  %4260 = vmatprep.subr.mxu0 0.0
  %4261 = vmatpush1.msra.mxu0 0.0
  %4262 = vmatprep.subr.mxu0 0.0
  %4263 = vmatpush1.msra.mxu0 0.0
  %4264 = vmatprep.subr.mxu0 0.0
  %4265 = vmatpush1.msra.mxu0 0.0
  %4266 = vmatprep.subr.mxu0 0.0
  %4267 = vmatpush1.msra.mxu0 0.0
  %4268 = vmatprep.subr.mxu0 0.0
  %4269 = vmatpush1.msra.mxu0 0.0
  %4270 = vmatprep.subr.mxu0 0.0
  %4271 = vmatpush1.msra.mxu0 0.0
  %4272 = vmatprep.subr.mxu0 0.0
  %4273 = vmatpush1.msra.mxu0 0.0
  %4274 = vmatprep.subr.mxu0 0.0
  %4275 = vmatpush1.msra.mxu0 0.0
  %4276 = vmatprep.subr.mxu0 0.0
  %4277 = vmatpush1.msra.mxu0 0.0
  %4278 = vmatprep.subr.mxu0 0.0
  %4279 = vmatpush1.msra.mxu0 0.0
  %4280 = vmatprep.subr.mxu0 0.0
  %4281 = vmatpush1.msra.mxu0 0.0
  %4282 = vmatprep.subr.mxu0 0.0
  %4283 = vmatpush1.msra.mxu0 0.0
  %4284 = vmatprep.subr.mxu0 0.0
  %4285 = vmatpush1.msra.mxu0 0.0
  %4286 = vmatprep.subr.mxu0 0.0
  %4287 = vmatpush1.msra.mxu0 0.0
  %4288 = vmatprep.subr.mxu0 0.0
  %4289 = vmatpush1.msra.mxu0 0.0
  %4290 = vmatprep.subr.mxu0 0.0
  %4291 = vmatpush1.msra.mxu0 0.0
  %4292 = vmatprep.subr.mxu0 0.0
  %4293 = vmatpush1.msra.mxu0 0.0
  %4294 = vmatprep.subr.mxu0 0.0
  %4295 = vmatpush1.msra.mxu0 0.0
  %4296 = vmatprep.subr.mxu0 0.0
  %4297 = vmatpush1.msra.mxu0 0.0
  %4298 = vmatprep.subr.mxu0 0.0
  %4299 = vmatpush1.msra.mxu0 0.0
  %4300 = vmatprep.subr.mxu0 0.0
  %4301 = vmatpush1.msra.mxu0 0.0
  %4302 = vmatprep.subr.mxu0 0.0
  %4303 = vmatpush1.msra.mxu0 0.0
  %4304 = vmatprep.subr.mxu0 0.0
  %4305 = vmatpush1.msra.mxu0 0.0
  %4306 = vmatprep.subr.mxu0 0.0
  %4307 = vmatpush1.msra.mxu0 0.0
  %4308 = vmatprep.subr.mxu0 0.0
  %4309 = vmatpush1.msra.mxu0 0.0
  %4310 = vmatprep.subr.mxu0 0.0
  %4311 = vmatpush1.msra.mxu0 0.0
  %4312 = vmatprep.mubr.f32.mxu0 0.0
  %4313 = vmatmul.mubr.f32.gmra.mrb[0].mxu0 %v4162
  %v4314 = vpop.f32.mrb[0].mxu0
  %v4315 = vadd.f32 0.0, %v4314
  %v4316 = vpop.f32.mrb[0].mxu0
  %v4317 = vadd.f32 0.0, %v4316
  %4318 = vdwg.mxu0
  %v4319 = vsub.f32 %v3522, %v4244
  %v4320 = vsub.f32 %v3524, %v4246
  %v4321 = vsub.f32 %v3850, %v4315
  %v4322 = vsub.f32 %v3852, %v4317
  %v4324 = vsel %vm4164, %v4156, 0
  %v4327 = vsel %vm4164, %v4157, 0
  %v4330 = vsel %vm4164, %v4158, 0
  %v4333 = vsel %vm4164, %v4159, 0
  %4335 = vmatprep.subr.mxu0 %v4327
  %4336 = vmatpush1.msra.mxu0 %v4324
  %4337 = vmatprep.subr.mxu0 0.0
  %4338 = vmatpush1.msra.mxu0 0.0
  %4339 = vmatprep.subr.mxu0 0.0
  %4340 = vmatpush1.msra.mxu0 0.0
  %4341 = vmatprep.subr.mxu0 0.0
  %4342 = vmatpush1.msra.mxu0 0.0
  %4343 = vmatprep.subr.mxu0 0.0
  %4344 = vmatpush1.msra.mxu0 0.0
  %4345 = vmatprep.subr.mxu0 0.0
  %4346 = vmatpush1.msra.mxu0 0.0
  %4347 = vmatprep.subr.mxu0 0.0
  %4348 = vmatpush1.msra.mxu0 0.0
  %4349 = vmatprep.subr.mxu0 0.0
  %4350 = vmatpush1.msra.mxu0 0.0
  %4351 = vmatprep.subr.mxu0 0.0
  %4352 = vmatpush1.msra.mxu0 0.0
  %4353 = vmatprep.subr.mxu0 0.0
  %4354 = vmatpush1.msra.mxu0 0.0
  %4355 = vmatprep.subr.mxu0 0.0
  %4356 = vmatpush1.msra.mxu0 0.0
  %4357 = vmatprep.subr.mxu0 0.0
  %4358 = vmatpush1.msra.mxu0 0.0
  %4359 = vmatprep.subr.mxu0 0.0
  %4360 = vmatpush1.msra.mxu0 0.0
  %4361 = vmatprep.subr.mxu0 0.0
  %4362 = vmatpush1.msra.mxu0 0.0
  %4363 = vmatprep.subr.mxu0 0.0
  %4364 = vmatpush1.msra.mxu0 0.0
  %4365 = vmatprep.subr.mxu0 0.0
  %4366 = vmatpush1.msra.mxu0 0.0
  %4367 = vmatprep.subr.mxu0 0.0
  %4368 = vmatpush1.msra.mxu0 0.0
  %4369 = vmatprep.subr.mxu0 0.0
  %4370 = vmatpush1.msra.mxu0 0.0
  %4371 = vmatprep.subr.mxu0 0.0
  %4372 = vmatpush1.msra.mxu0 0.0
  %4373 = vmatprep.subr.mxu0 0.0
  %4374 = vmatpush1.msra.mxu0 0.0
  %4375 = vmatprep.subr.mxu0 0.0
  %4376 = vmatpush1.msra.mxu0 0.0
  %4377 = vmatprep.subr.mxu0 0.0
  %4378 = vmatpush1.msra.mxu0 0.0
  %4379 = vmatprep.subr.mxu0 0.0
  %4380 = vmatpush1.msra.mxu0 0.0
  %4381 = vmatprep.subr.mxu0 0.0
  %4382 = vmatpush1.msra.mxu0 0.0
  %4383 = vmatprep.subr.mxu0 0.0
  %4384 = vmatpush1.msra.mxu0 0.0
  %4385 = vmatprep.subr.mxu0 0.0
  %4386 = vmatpush1.msra.mxu0 0.0
  %4387 = vmatprep.subr.mxu0 0.0
  %4388 = vmatpush1.msra.mxu0 0.0
  %4389 = vmatprep.subr.mxu0 0.0
  %4390 = vmatpush1.msra.mxu0 0.0
  %4391 = vmatprep.subr.mxu0 0.0
  %4392 = vmatpush1.msra.mxu0 0.0
  %4393 = vmatprep.subr.mxu0 0.0
  %4394 = vmatpush1.msra.mxu0 0.0
  %4395 = vmatprep.subr.mxu0 0.0
  %4396 = vmatpush1.msra.mxu0 0.0
  %4397 = vmatprep.subr.mxu0 0.0
  %4398 = vmatpush1.msra.mxu0 0.0
  %4399 = vmatprep.mubr.f32.mxu0 0.0
  %4400 = vmatmul.mubr.f32.gmra.mrb[0].mxu0 %v4162
  %v4401 = vpop.f32.mrb[0].mxu0
  %v4402 = vadd.f32 1e-05, %v4401
  %v4403 = vpop.f32.mrb[0].mxu0
  %v4404 = vadd.f32 1e-05, %v4403
  %4405 = vdwg.mxu0
  %4406 = vmatprep.subr.mxu0 %v4333
  %4407 = vmatpush1.msra.mxu0 %v4330
  %4408 = vmatprep.subr.mxu0 0.0
  %4409 = vmatpush1.msra.mxu0 0.0
  %4410 = vmatprep.subr.mxu0 0.0
  %4411 = vmatpush1.msra.mxu0 0.0
  %4412 = vmatprep.subr.mxu0 0.0
  %4413 = vmatpush1.msra.mxu0 0.0
  %4414 = vmatprep.subr.mxu0 0.0
  %4415 = vmatpush1.msra.mxu0 0.0
  %4416 = vmatprep.subr.mxu0 0.0
  %4417 = vmatpush1.msra.mxu0 0.0
  %4418 = vmatprep.subr.mxu0 0.0
  %4419 = vmatpush1.msra.mxu0 0.0
  %4420 = vmatprep.subr.mxu0 0.0
  %4421 = vmatpush1.msra.mxu0 0.0
  %4422 = vmatprep.subr.mxu0 0.0
  %4423 = vmatpush1.msra.mxu0 0.0
  %4424 = vmatprep.subr.mxu0 0.0
  %4425 = vmatpush1.msra.mxu0 0.0
  %4426 = vmatprep.subr.mxu0 0.0
  %4427 = vmatpush1.msra.mxu0 0.0
  %4428 = vmatprep.subr.mxu0 0.0
  %4429 = vmatpush1.msra.mxu0 0.0
  %4430 = vmatprep.subr.mxu0 0.0
  %4431 = vmatpush1.msra.mxu0 0.0
  %4432 = vmatprep.subr.mxu0 0.0
  %4433 = vmatpush1.msra.mxu0 0.0
  %4434 = vmatprep.subr.mxu0 0.0
  %4435 = vmatpush1.msra.mxu0 0.0
  %4436 = vmatprep.subr.mxu0 0.0
  %4437 = vmatpush1.msra.mxu0 0.0
  %4438 = vmatprep.subr.mxu0 0.0
  %4439 = vmatpush1.msra.mxu0 0.0
  %4440 = vmatprep.subr.mxu0 0.0
  %4441 = vmatpush1.msra.mxu0 0.0
  %4442 = vmatprep.subr.mxu0 0.0
  %4443 = vmatpush1.msra.mxu0 0.0
  %4444 = vmatprep.subr.mxu0 0.0
  %4445 = vmatpush1.msra.mxu0 0.0
  %4446 = vmatprep.subr.mxu0 0.0
  %4447 = vmatpush1.msra.mxu0 0.0
  %4448 = vmatprep.subr.mxu0 0.0
  %4449 = vmatpush1.msra.mxu0 0.0
  %4450 = vmatprep.subr.mxu0 0.0
  %4451 = vmatpush1.msra.mxu0 0.0
  %4452 = vmatprep.subr.mxu0 0.0
  %4453 = vmatpush1.msra.mxu0 0.0
  %4454 = vmatprep.subr.mxu0 0.0
  %4455 = vmatpush1.msra.mxu0 0.0
  %4456 = vmatprep.subr.mxu0 0.0
  %4457 = vmatpush1.msra.mxu0 0.0
  %4458 = vmatprep.subr.mxu0 0.0
  %4459 = vmatpush1.msra.mxu0 0.0
  %4460 = vmatprep.subr.mxu0 0.0
  %4461 = vmatpush1.msra.mxu0 0.0
  %4462 = vmatprep.subr.mxu0 0.0
  %4463 = vmatpush1.msra.mxu0 0.0
  %4464 = vmatprep.subr.mxu0 0.0
  %4465 = vmatpush1.msra.mxu0 0.0
  %4466 = vmatprep.subr.mxu0 0.0
  %4467 = vmatpush1.msra.mxu0 0.0
  %4468 = vmatprep.subr.mxu0 0.0
  %4469 = vmatpush1.msra.mxu0 0.0
  %4470 = vmatprep.mubr.f32.mxu0 0.0
  %4471 = vmatmul.mubr.f32.gmra.mrb[0].mxu0 %v4162
  %v4472 = vpop.f32.mrb[0].mxu0
  %v4473 = vadd.f32 1e-05, %v4472
  %v4474 = vpop.f32.mrb[0].mxu0
  %v4475 = vadd.f32 1e-05, %v4474
  %4476 = vdwg.mxu0
  %v4477 = vrsqrt.pop %v4402
  %v4478 = vrsqrt.pop %v4404
  %v4479 = vrsqrt.pop %v4473
  %v4480 = vrsqrt.pop %v4475
  %v4481 = vmul.f32 %v4319, %v4477
  %v4482 = vmul.f32 %v4320, %v4478
  %v4483 = vmul.f32 %v4321, %v4479
  %v4484 = vmul.f32 %v4322, %v4480
  %v4485 = vlaneseq
  %v4486 = vshrl.u32 %v4485, 7
  %v4487 = vsub.s32 1, %v4486
  %v4488 = vrot.slane %v23, %v4487
  %v4489 = vlaneseq
  %v4490 = vshrl.u32 %v4489, 7
  %v4491 = vsub.s32 1, %v4490
  %v4492 = vrot.slane %v24, %v4491
  %v4493 = vlaneseq
  %v4494 = vshrl.u32 %v4493, 7
  %v4495 = vsub.s32 1, %v4494
  %v4496 = vrot.slane %v25, %v4495
  %v4497 = vlaneseq
  %v4498 = vshrl.u32 %v4497, 7
  %v4499 = vsub.s32 1, %v4498
  %v4500 = vrot.slane %v26, %v4499
  %v4501 = vmul.f32 %v4481, %v4488
  %v4502 = vmul.f32 %v4482, %v4492
  %v4503 = vmul.f32 %v4483, %v4496
  %v4504 = vmul.f32 %v4484, %v4500
  %v4505 = vlaneseq
  %v4506 = vshrl.u32 %v4505, 7
  %v4507 = vsub.s32 2, %v4506
  %v4508 = vrot.slane %v23, %v4507
  %v4509 = vlaneseq
  %v4510 = vshrl.u32 %v4509, 7
  %v4511 = vsub.s32 2, %v4510
  %v4512 = vrot.slane %v24, %v4511
  %v4513 = vlaneseq
  %v4514 = vshrl.u32 %v4513, 7
  %v4515 = vsub.s32 2, %v4514
  %v4516 = vrot.slane %v25, %v4515
  %v4517 = vlaneseq
  %v4518 = vshrl.u32 %v4517, 7
  %v4519 = vsub.s32 2, %v4518
  %v4520 = vrot.slane %v26, %v4519
  %v4521 = vadd.f32 %v4501, %v4508
  %v4522 = vadd.f32 %v4502, %v4512
  %v4523 = vadd.f32 %v4503, %v4516
  %v4524 = vadd.f32 %v4504, %v4520
  %v4525 = vmax.f32 %v4521, 0.0
  %v4526 = vmax.f32 %v4522, 0.0
  %v4527 = vmax.f32 %v4523, 0.0
  %v4528 = vmax.f32 %v4524, 0.0
  %v4529 = vpack.c.bf16 %v4525, %v4525
  %v4530 = vpack.c.bf16 %v4526, %v4526
  %v4531 = vpack.c.bf16 %v4527, %v4527
  %v4532 = vpack.c.bf16 %v4528, %v4528
  %v4533 = vld [vmem:[%s2] sm:$0xff]
  %v4534 = vld [vmem:[%s2 + $0x8] sm:$0xff]
  %v4535 = vld [vmem:[%s2 + $0x10] sm:$0xff]
  %v4536 = vld [vmem:[%s2 + $0x18] sm:$0xff]
  %v4537 = vld [vmem:[%s2 + $0x20] sm:$0xff]
  %v4538 = vld [vmem:[%s2 + $0x28] sm:$0xff]
  %v4539 = vld [vmem:[%s2 + $0x30] sm:$0xff]
  %v4540 = vld [vmem:[%s2 + $0x38] sm:$0xff]
  %v4541 = vld [vmem:[%s2 + $0x40] sm:$0xff]
  %v4542 = vld [vmem:[%s2 + $0x48] sm:$0xff]
  %v4543 = vld [vmem:[%s2 + $0x50] sm:$0xff]
  %v4544 = vld [vmem:[%s2 + $0x58] sm:$0xff]
  %v4545 = vld [vmem:[%s2 + $0x60] sm:$0xff]
  %v4546 = vld [vmem:[%s2 + $0x68] sm:$0xff]
  %v4547 = vld [vmem:[%s2 + $0x70] sm:$0xff]
  %v4548 = vld [vmem:[%s2 + $0x78] sm:$0xff]
  %v4549 = vld [vmem:[%s2 + $0x80] sm:$0xff]
  %v4550 = vld [vmem:[%s2 + $0x88] sm:$0xff]
  %v4551 = vld [vmem:[%s2 + $0x90] sm:$0xff]
  %v4552 = vld [vmem:[%s2 + $0x98] sm:$0xff]
  %v4553 = vld [vmem:[%s2 + $0xa0] sm:$0xff]
  %v4554 = vld [vmem:[%s2 + $0xa8] sm:$0xff]
  %v4555 = vld [vmem:[%s2 + $0xb0] sm:$0xff]
  %v4556 = vld [vmem:[%s2 + $0xb8] sm:$0xff]
  %v4557 = vld [vmem:[%s2 + $0xc0] sm:$0xff]
  %v4558 = vld [vmem:[%s2 + $0xc8] sm:$0xff]
  %v4559 = vld [vmem:[%s2 + $0xd0] sm:$0xff]
  %v4560 = vld [vmem:[%s2 + $0xd8] sm:$0xff]
  %v4561 = vld [vmem:[%s2 + $0xe0] sm:$0xff]
  %v4562 = vld [vmem:[%s2 + $0xe8] sm:$0xff]
  %v4563 = vld [vmem:[%s2 + $0xf0] sm:$0xff]
  %v4564 = vld [vmem:[%s2 + $0xf8] sm:$0xff]
  %v4565 = vld [vmem:[%s2 + $0x100] sm:$0xff]
  %v4566 = vld [vmem:[%s2 + $0x108] sm:$0xff]
  %v4567 = vld [vmem:[%s2 + $0x110] sm:$0xff]
  %v4568 = vld [vmem:[%s2 + $0x118] sm:$0xff]
  %v4569 = vld [vmem:[%s2 + $0x120] sm:$0xff]
  %v4570 = vld [vmem:[%s2 + $0x128] sm:$0xff]
  %v4571 = vld [vmem:[%s2 + $0x130] sm:$0xff]
  %v4572 = vld [vmem:[%s2 + $0x138] sm:$0xff]
  %v4573 = vld [vmem:[%s2 + $0x140] sm:$0xff]
  %v4574 = vld [vmem:[%s2 + $0x148] sm:$0xff]
  %v4575 = vld [vmem:[%s2 + $0x150] sm:$0xff]
  %v4576 = vld [vmem:[%s2 + $0x158] sm:$0xff]
  %v4577 = vld [vmem:[%s2 + $0x160] sm:$0xff]
  %v4578 = vld [vmem:[%s2 + $0x168] sm:$0xff]
  %v4579 = vld [vmem:[%s2 + $0x170] sm:$0xff]
  %v4580 = vld [vmem:[%s2 + $0x178] sm:$0xff]
  %v4581 = vld [vmem:[%s2 + $0x180] sm:$0xff]
  %v4582 = vld [vmem:[%s2 + $0x188] sm:$0xff]
  %v4583 = vld [vmem:[%s2 + $0x190] sm:$0xff]
  %v4584 = vld [vmem:[%s2 + $0x198] sm:$0xff]
  %v4585 = vld [vmem:[%s2 + $0x1a0] sm:$0xff]
  %v4586 = vld [vmem:[%s2 + $0x1a8] sm:$0xff]
  %v4587 = vld [vmem:[%s2 + $0x1b0] sm:$0xff]
  %v4588 = vld [vmem:[%s2 + $0x1b8] sm:$0xff]
  %v4589 = vld [vmem:[%s2 + $0x1c0] sm:$0xff]
  %v4590 = vld [vmem:[%s2 + $0x1c8] sm:$0xff]
  %v4591 = vld [vmem:[%s2 + $0x1d0] sm:$0xff]
  %v4592 = vld [vmem:[%s2 + $0x1d8] sm:$0xff]
  %v4593 = vld [vmem:[%s2 + $0x1e0] sm:$0xff]
  %v4594 = vld [vmem:[%s2 + $0x1e8] sm:$0xff]
  %v4595 = vld [vmem:[%s2 + $0x1f0] sm:$0xff]
  %v4596 = vld [vmem:[%s2 + $0x1f8] sm:$0xff]
  %v4597 = vld [vmem:[%s2 + $0x200] sm:$0xff]
  %v4598 = vld [vmem:[%s2 + $0x208] sm:$0xff]
  %v4599 = vld [vmem:[%s2 + $0x210] sm:$0xff]
  %v4600 = vld [vmem:[%s2 + $0x218] sm:$0xff]
  %v4601 = vld [vmem:[%s2 + $0x220] sm:$0xff]
  %v4602 = vld [vmem:[%s2 + $0x228] sm:$0xff]
  %v4603 = vld [vmem:[%s2 + $0x230] sm:$0xff]
  %v4604 = vld [vmem:[%s2 + $0x238] sm:$0xff]
  %v4605 = vld [vmem:[%s2 + $0x240] sm:$0xff]
  %v4606 = vld [vmem:[%s2 + $0x248] sm:$0xff]
  %v4607 = vld [vmem:[%s2 + $0x250] sm:$0xff]
  %v4608 = vld [vmem:[%s2 + $0x258] sm:$0xff]
  %v4609 = vld [vmem:[%s2 + $0x260] sm:$0xff]
  %v4610 = vld [vmem:[%s2 + $0x268] sm:$0xff]
  %v4611 = vld [vmem:[%s2 + $0x270] sm:$0xff]
  %v4612 = vld [vmem:[%s2 + $0x278] sm:$0xff]
  %v4613 = vld [vmem:[%s2 + $0x280] sm:$0xff]
  %v4614 = vld [vmem:[%s2 + $0x288] sm:$0xff]
  %v4615 = vld [vmem:[%s2 + $0x290] sm:$0xff]
  %v4616 = vld [vmem:[%s2 + $0x298] sm:$0xff]
  %v4617 = vld [vmem:[%s2 + $0x2a0] sm:$0xff]
  %v4618 = vld [vmem:[%s2 + $0x2a8] sm:$0xff]
  %v4619 = vld [vmem:[%s2 + $0x2b0] sm:$0xff]
  %v4620 = vld [vmem:[%s2 + $0x2b8] sm:$0xff]
  %v4621 = vld [vmem:[%s2 + $0x2c0] sm:$0xff]
  %v4622 = vld [vmem:[%s2 + $0x2c8] sm:$0xff]
  %v4623 = vld [vmem:[%s2 + $0x2d0] sm:$0xff]
  %v4624 = vld [vmem:[%s2 + $0x2d8] sm:$0xff]
  %v4625 = vld [vmem:[%s2 + $0x2e0] sm:$0xff]
  %v4626 = vld [vmem:[%s2 + $0x2e8] sm:$0xff]
  %v4627 = vld [vmem:[%s2 + $0x2f0] sm:$0xff]
  %v4628 = vld [vmem:[%s2 + $0x2f8] sm:$0xff]
  %v4629 = vld [vmem:[%s2 + $0x300] sm:$0xff]
  %v4630 = vld [vmem:[%s2 + $0x308] sm:$0xff]
  %v4631 = vld [vmem:[%s2 + $0x310] sm:$0xff]
  %v4632 = vld [vmem:[%s2 + $0x318] sm:$0xff]
  %v4633 = vld [vmem:[%s2 + $0x320] sm:$0xff]
  %v4634 = vld [vmem:[%s2 + $0x328] sm:$0xff]
  %v4635 = vld [vmem:[%s2 + $0x330] sm:$0xff]
  %v4636 = vld [vmem:[%s2 + $0x338] sm:$0xff]
  %v4637 = vld [vmem:[%s2 + $0x340] sm:$0xff]
  %v4638 = vld [vmem:[%s2 + $0x348] sm:$0xff]
  %v4639 = vld [vmem:[%s2 + $0x350] sm:$0xff]
  %v4640 = vld [vmem:[%s2 + $0x358] sm:$0xff]
  %v4641 = vld [vmem:[%s2 + $0x360] sm:$0xff]
  %v4642 = vld [vmem:[%s2 + $0x368] sm:$0xff]
  %v4643 = vld [vmem:[%s2 + $0x370] sm:$0xff]
  %v4644 = vld [vmem:[%s2 + $0x378] sm:$0xff]
  %v4645 = vld [vmem:[%s2 + $0x380] sm:$0xff]
  %v4646 = vld [vmem:[%s2 + $0x388] sm:$0xff]
  %v4647 = vld [vmem:[%s2 + $0x390] sm:$0xff]
  %v4648 = vld [vmem:[%s2 + $0x398] sm:$0xff]
  %v4649 = vld [vmem:[%s2 + $0x3a0] sm:$0xff]
  %v4650 = vld [vmem:[%s2 + $0x3a8] sm:$0xff]
  %v4651 = vld [vmem:[%s2 + $0x3b0] sm:$0xff]
  %v4652 = vld [vmem:[%s2 + $0x3b8] sm:$0xff]
  %v4653 = vld [vmem:[%s2 + $0x3c0] sm:$0xff]
  %v4654 = vld [vmem:[%s2 + $0x3c8] sm:$0xff]
  %v4655 = vld [vmem:[%s2 + $0x3d0] sm:$0xff]
  %v4656 = vld [vmem:[%s2 + $0x3d8] sm:$0xff]
  %v4657 = vld [vmem:[%s2 + $0x3e0] sm:$0xff]
  %v4658 = vld [vmem:[%s2 + $0x3e8] sm:$0xff]
  %v4659 = vld [vmem:[%s2 + $0x3f0] sm:$0xff]
  %v4660 = vld [vmem:[%s2 + $0x3f8] sm:$0xff]
  %v4661 = vlaneseq
  %v4662 = vshrl.u32 %v4661, 7
  %v4663 = vsub.s32 3, %v4662
  %v4664 = vrot.slane %v23, %v4663
  %v4665 = vlaneseq
  %v4666 = vshrl.u32 %v4665, 7
  %v4667 = vsub.s32 3, %v4666
  %v4668 = vrot.slane %v24, %v4667
  %v4669 = vlaneseq
  %v4670 = vshrl.u32 %v4669, 7
  %v4671 = vsub.s32 3, %v4670
  %v4672 = vrot.slane %v25, %v4671
  %v4673 = vlaneseq
  %v4674 = vshrl.u32 %v4673, 7
  %v4675 = vsub.s32 3, %v4674
  %v4676 = vrot.slane %v26, %v4675
  %v4805 = vunpack.c.l.b16 %v4533
  %v4806 = vunpack.c.h.b16 %v4533
  %v4807 = vunpack.c.l.b16 %v4534
  %v4808 = vunpack.c.h.b16 %v4534
  %v4809 = vunpack.c.l.b16 %v4535
  %v4810 = vunpack.c.h.b16 %v4535
  %v4811 = vunpack.c.l.b16 %v4536
  %v4812 = vunpack.c.h.b16 %v4536
  %v4813 = vunpack.c.l.b16 %v4537
  %v4814 = vunpack.c.h.b16 %v4537
  %v4815 = vunpack.c.l.b16 %v4538
  %v4816 = vunpack.c.h.b16 %v4538
  %v4817 = vunpack.c.l.b16 %v4539
  %v4818 = vunpack.c.h.b16 %v4539
  %v4819 = vunpack.c.l.b16 %v4540
  %v4820 = vunpack.c.h.b16 %v4540
  %v4821 = vunpack.c.l.b16 %v4541
  %v4822 = vunpack.c.h.b16 %v4541
  %v4823 = vunpack.c.l.b16 %v4542
  %v4824 = vunpack.c.h.b16 %v4542
  %v4825 = vunpack.c.l.b16 %v4543
  %v4826 = vunpack.c.h.b16 %v4543
  %v4827 = vunpack.c.l.b16 %v4544
  %v4828 = vunpack.c.h.b16 %v4544
  %v4829 = vunpack.c.l.b16 %v4545
  %v4830 = vunpack.c.h.b16 %v4545
  %v4831 = vunpack.c.l.b16 %v4546
  %v4832 = vunpack.c.h.b16 %v4546
  %v4833 = vunpack.c.l.b16 %v4547
  %v4834 = vunpack.c.h.b16 %v4547
  %v4835 = vunpack.c.l.b16 %v4548
  %v4836 = vunpack.c.h.b16 %v4548
  %v4837 = vunpack.c.l.b16 %v4549
  %v4838 = vunpack.c.h.b16 %v4549
  %v4839 = vunpack.c.l.b16 %v4550
  %v4840 = vunpack.c.h.b16 %v4550
  %v4841 = vunpack.c.l.b16 %v4551
  %v4842 = vunpack.c.h.b16 %v4551
  %v4843 = vunpack.c.l.b16 %v4552
  %v4844 = vunpack.c.h.b16 %v4552
  %v4845 = vunpack.c.l.b16 %v4553
  %v4846 = vunpack.c.h.b16 %v4553
  %v4847 = vunpack.c.l.b16 %v4554
  %v4848 = vunpack.c.h.b16 %v4554
  %v4849 = vunpack.c.l.b16 %v4555
  %v4850 = vunpack.c.h.b16 %v4555
  %v4851 = vunpack.c.l.b16 %v4556
  %v4852 = vunpack.c.h.b16 %v4556
  %v4853 = vunpack.c.l.b16 %v4557
  %v4854 = vunpack.c.h.b16 %v4557
  %v4855 = vunpack.c.l.b16 %v4558
  %v4856 = vunpack.c.h.b16 %v4558
  %v4857 = vunpack.c.l.b16 %v4559
  %v4858 = vunpack.c.h.b16 %v4559
  %v4859 = vunpack.c.l.b16 %v4560
  %v4860 = vunpack.c.h.b16 %v4560
  %v4861 = vunpack.c.l.b16 %v4561
  %v4862 = vunpack.c.h.b16 %v4561
  %v4863 = vunpack.c.l.b16 %v4562
  %v4864 = vunpack.c.h.b16 %v4562
  %v4865 = vunpack.c.l.b16 %v4563
  %v4866 = vunpack.c.h.b16 %v4563
  %v4867 = vunpack.c.l.b16 %v4564
  %v4868 = vunpack.c.h.b16 %v4564
  %v4869 = vunpack.c.l.b16 %v4565
  %v4870 = vunpack.c.h.b16 %v4565
  %v4871 = vunpack.c.l.b16 %v4566
  %v4872 = vunpack.c.h.b16 %v4566
  %v4873 = vunpack.c.l.b16 %v4567
  %v4874 = vunpack.c.h.b16 %v4567
  %v4875 = vunpack.c.l.b16 %v4568
  %v4876 = vunpack.c.h.b16 %v4568
  %v4877 = vunpack.c.l.b16 %v4569
  %v4878 = vunpack.c.h.b16 %v4569
  %v4879 = vunpack.c.l.b16 %v4570
  %v4880 = vunpack.c.h.b16 %v4570
  %v4881 = vunpack.c.l.b16 %v4571
  %v4882 = vunpack.c.h.b16 %v4571
  %v4883 = vunpack.c.l.b16 %v4572
  %v4884 = vunpack.c.h.b16 %v4572
  %v4885 = vunpack.c.l.b16 %v4573
  %v4886 = vunpack.c.h.b16 %v4573
  %v4887 = vunpack.c.l.b16 %v4574
  %v4888 = vunpack.c.h.b16 %v4574
  %v4889 = vunpack.c.l.b16 %v4575
  %v4890 = vunpack.c.h.b16 %v4575
  %v4891 = vunpack.c.l.b16 %v4576
  %v4892 = vunpack.c.h.b16 %v4576
  %v4893 = vunpack.c.l.b16 %v4577
  %v4894 = vunpack.c.h.b16 %v4577
  %v4895 = vunpack.c.l.b16 %v4578
  %v4896 = vunpack.c.h.b16 %v4578
  %v4897 = vunpack.c.l.b16 %v4579
  %v4898 = vunpack.c.h.b16 %v4579
  %v4899 = vunpack.c.l.b16 %v4580
  %v4900 = vunpack.c.h.b16 %v4580
  %v4901 = vunpack.c.l.b16 %v4581
  %v4902 = vunpack.c.h.b16 %v4581
  %v4903 = vunpack.c.l.b16 %v4582
  %v4904 = vunpack.c.h.b16 %v4582
  %v4905 = vunpack.c.l.b16 %v4583
  %v4906 = vunpack.c.h.b16 %v4583
  %v4907 = vunpack.c.l.b16 %v4584
  %v4908 = vunpack.c.h.b16 %v4584
  %v4909 = vunpack.c.l.b16 %v4585
  %v4910 = vunpack.c.h.b16 %v4585
  %v4911 = vunpack.c.l.b16 %v4586
  %v4912 = vunpack.c.h.b16 %v4586
  %v4913 = vunpack.c.l.b16 %v4587
  %v4914 = vunpack.c.h.b16 %v4587
  %v4915 = vunpack.c.l.b16 %v4588
  %v4916 = vunpack.c.h.b16 %v4588
  %v4917 = vunpack.c.l.b16 %v4589
  %v4918 = vunpack.c.h.b16 %v4589
  %v4919 = vunpack.c.l.b16 %v4590
  %v4920 = vunpack.c.h.b16 %v4590
  %v4921 = vunpack.c.l.b16 %v4591
  %v4922 = vunpack.c.h.b16 %v4591
  %v4923 = vunpack.c.l.b16 %v4592
  %v4924 = vunpack.c.h.b16 %v4592
  %v4925 = vunpack.c.l.b16 %v4593
  %v4926 = vunpack.c.h.b16 %v4593
  %v4927 = vunpack.c.l.b16 %v4594
  %v4928 = vunpack.c.h.b16 %v4594
  %v4929 = vunpack.c.l.b16 %v4595
  %v4930 = vunpack.c.h.b16 %v4595
  %v4931 = vunpack.c.l.b16 %v4596
  %v4932 = vunpack.c.h.b16 %v4596
  %v4933 = vunpack.c.l.b16 %v4597
  %v4934 = vunpack.c.h.b16 %v4597
  %v4935 = vunpack.c.l.b16 %v4598
  %v4936 = vunpack.c.h.b16 %v4598
  %v4937 = vunpack.c.l.b16 %v4599
  %v4938 = vunpack.c.h.b16 %v4599
  %v4939 = vunpack.c.l.b16 %v4600
  %v4940 = vunpack.c.h.b16 %v4600
  %v4941 = vunpack.c.l.b16 %v4601
  %v4942 = vunpack.c.h.b16 %v4601
  %v4943 = vunpack.c.l.b16 %v4602
  %v4944 = vunpack.c.h.b16 %v4602
  %v4945 = vunpack.c.l.b16 %v4603
  %v4946 = vunpack.c.h.b16 %v4603
  %v4947 = vunpack.c.l.b16 %v4604
  %v4948 = vunpack.c.h.b16 %v4604
  %v4949 = vunpack.c.l.b16 %v4605
  %v4950 = vunpack.c.h.b16 %v4605
  %v4951 = vunpack.c.l.b16 %v4606
  %v4952 = vunpack.c.h.b16 %v4606
  %v4953 = vunpack.c.l.b16 %v4607
  %v4954 = vunpack.c.h.b16 %v4607
  %v4955 = vunpack.c.l.b16 %v4608
  %v4956 = vunpack.c.h.b16 %v4608
  %v4957 = vunpack.c.l.b16 %v4609
  %v4958 = vunpack.c.h.b16 %v4609
  %v4959 = vunpack.c.l.b16 %v4610
  %v4960 = vunpack.c.h.b16 %v4610
  %v4961 = vunpack.c.l.b16 %v4611
  %v4962 = vunpack.c.h.b16 %v4611
  %v4963 = vunpack.c.l.b16 %v4612
  %v4964 = vunpack.c.h.b16 %v4612
  %v4965 = vunpack.c.l.b16 %v4613
  %v4966 = vunpack.c.h.b16 %v4613
  %v4967 = vunpack.c.l.b16 %v4614
  %v4968 = vunpack.c.h.b16 %v4614
  %v4969 = vunpack.c.l.b16 %v4615
  %v4970 = vunpack.c.h.b16 %v4615
  %v4971 = vunpack.c.l.b16 %v4616
  %v4972 = vunpack.c.h.b16 %v4616
  %v4973 = vunpack.c.l.b16 %v4617
  %v4974 = vunpack.c.h.b16 %v4617
  %v4975 = vunpack.c.l.b16 %v4618
  %v4976 = vunpack.c.h.b16 %v4618
  %v4977 = vunpack.c.l.b16 %v4619
  %v4978 = vunpack.c.h.b16 %v4619
  %v4979 = vunpack.c.l.b16 %v4620
  %v4980 = vunpack.c.h.b16 %v4620
  %v4981 = vunpack.c.l.b16 %v4621
  %v4982 = vunpack.c.h.b16 %v4621
  %v4983 = vunpack.c.l.b16 %v4622
  %v4984 = vunpack.c.h.b16 %v4622
  %v4985 = vunpack.c.l.b16 %v4623
  %v4986 = vunpack.c.h.b16 %v4623
  %v4987 = vunpack.c.l.b16 %v4624
  %v4988 = vunpack.c.h.b16 %v4624
  %v4989 = vunpack.c.l.b16 %v4625
  %v4990 = vunpack.c.h.b16 %v4625
  %v4991 = vunpack.c.l.b16 %v4626
  %v4992 = vunpack.c.h.b16 %v4626
  %v4993 = vunpack.c.l.b16 %v4627
  %v4994 = vunpack.c.h.b16 %v4627
  %v4995 = vunpack.c.l.b16 %v4628
  %v4996 = vunpack.c.h.b16 %v4628
  %v4997 = vunpack.c.l.b16 %v4629
  %v4998 = vunpack.c.h.b16 %v4629
  %v4999 = vunpack.c.l.b16 %v4630
  %v5000 = vunpack.c.h.b16 %v4630
  %v5001 = vunpack.c.l.b16 %v4631
  %v5002 = vunpack.c.h.b16 %v4631
  %v5003 = vunpack.c.l.b16 %v4632
  %v5004 = vunpack.c.h.b16 %v4632
  %v5005 = vunpack.c.l.b16 %v4633
  %v5006 = vunpack.c.h.b16 %v4633
  %v5007 = vunpack.c.l.b16 %v4634
  %v5008 = vunpack.c.h.b16 %v4634
  %v5009 = vunpack.c.l.b16 %v4635
  %v5010 = vunpack.c.h.b16 %v4635
  %v5011 = vunpack.c.l.b16 %v4636
  %v5012 = vunpack.c.h.b16 %v4636
  %v5013 = vunpack.c.l.b16 %v4637
  %v5014 = vunpack.c.h.b16 %v4637
  %v5015 = vunpack.c.l.b16 %v4638
  %v5016 = vunpack.c.h.b16 %v4638
  %v5017 = vunpack.c.l.b16 %v4639
  %v5018 = vunpack.c.h.b16 %v4639
  %v5019 = vunpack.c.l.b16 %v4640
  %v5020 = vunpack.c.h.b16 %v4640
  %v5021 = vunpack.c.l.b16 %v4641
  %v5022 = vunpack.c.h.b16 %v4641
  %v5023 = vunpack.c.l.b16 %v4642
  %v5024 = vunpack.c.h.b16 %v4642
  %v5025 = vunpack.c.l.b16 %v4643
  %v5026 = vunpack.c.h.b16 %v4643
  %v5027 = vunpack.c.l.b16 %v4644
  %v5028 = vunpack.c.h.b16 %v4644
  %v5029 = vunpack.c.l.b16 %v4645
  %v5030 = vunpack.c.h.b16 %v4645
  %v5031 = vunpack.c.l.b16 %v4646
  %v5032 = vunpack.c.h.b16 %v4646
  %v5033 = vunpack.c.l.b16 %v4647
  %v5034 = vunpack.c.h.b16 %v4647
  %v5035 = vunpack.c.l.b16 %v4648
  %v5036 = vunpack.c.h.b16 %v4648
  %v5037 = vunpack.c.l.b16 %v4649
  %v5038 = vunpack.c.h.b16 %v4649
  %v5039 = vunpack.c.l.b16 %v4650
  %v5040 = vunpack.c.h.b16 %v4650
  %v5041 = vunpack.c.l.b16 %v4651
  %v5042 = vunpack.c.h.b16 %v4651
  %v5043 = vunpack.c.l.b16 %v4652
  %v5044 = vunpack.c.h.b16 %v4652
  %v5045 = vunpack.c.l.b16 %v4653
  %v5046 = vunpack.c.h.b16 %v4653
  %v5047 = vunpack.c.l.b16 %v4654
  %v5048 = vunpack.c.h.b16 %v4654
  %v5049 = vunpack.c.l.b16 %v4655
  %v5050 = vunpack.c.h.b16 %v4655
  %v5051 = vunpack.c.l.b16 %v4656
  %v5052 = vunpack.c.h.b16 %v4656
  %v5053 = vunpack.c.l.b16 %v4657
  %v5054 = vunpack.c.h.b16 %v4657
  %v5055 = vunpack.c.l.b16 %v4658
  %v5056 = vunpack.c.h.b16 %v4658
  %v5057 = vunpack.c.l.b16 %v4659
  %v5058 = vunpack.c.h.b16 %v4659
  %v5059 = vunpack.c.l.b16 %v4660
  %v5060 = vunpack.c.h.b16 %v4660
  %v5061 = vpack.c.b16 %v4809, %v4805
  %v5062 = vpack.c.b16 %v4810, %v4806
  %v5063 = vpack.c.b16 %v4811, %v4807
  %v5064 = vpack.c.b16 %v4812, %v4808
  %v5065 = vpack.c.b16 %v4817, %v4813
  %v5066 = vpack.c.b16 %v4818, %v4814
  %v5067 = vpack.c.b16 %v4819, %v4815
  %v5068 = vpack.c.b16 %v4820, %v4816
  %v5069 = vpack.c.b16 %v4825, %v4821
  %v5070 = vpack.c.b16 %v4826, %v4822
  %v5071 = vpack.c.b16 %v4827, %v4823
  %v5072 = vpack.c.b16 %v4828, %v4824
  %v5073 = vpack.c.b16 %v4833, %v4829
  %v5074 = vpack.c.b16 %v4834, %v4830
  %v5075 = vpack.c.b16 %v4835, %v4831
  %v5076 = vpack.c.b16 %v4836, %v4832
  %v5077 = vpack.c.b16 %v4841, %v4837
  %v5078 = vpack.c.b16 %v4842, %v4838
  %v5079 = vpack.c.b16 %v4843, %v4839
  %v5080 = vpack.c.b16 %v4844, %v4840
  %v5081 = vpack.c.b16 %v4849, %v4845
  %v5082 = vpack.c.b16 %v4850, %v4846
  %v5083 = vpack.c.b16 %v4851, %v4847
  %v5084 = vpack.c.b16 %v4852, %v4848
  %v5085 = vpack.c.b16 %v4857, %v4853
  %v5086 = vpack.c.b16 %v4858, %v4854
  %v5087 = vpack.c.b16 %v4859, %v4855
  %v5088 = vpack.c.b16 %v4860, %v4856
  %v5089 = vpack.c.b16 %v4865, %v4861
  %v5090 = vpack.c.b16 %v4866, %v4862
  %v5091 = vpack.c.b16 %v4867, %v4863
  %v5092 = vpack.c.b16 %v4868, %v4864
  %v5093 = vpack.c.b16 %v4873, %v4869
  %v5094 = vpack.c.b16 %v4874, %v4870
  %v5095 = vpack.c.b16 %v4875, %v4871
  %v5096 = vpack.c.b16 %v4876, %v4872
  %v5097 = vpack.c.b16 %v4881, %v4877
  %v5098 = vpack.c.b16 %v4882, %v4878
  %v5099 = vpack.c.b16 %v4883, %v4879
  %v5100 = vpack.c.b16 %v4884, %v4880
  %v5101 = vpack.c.b16 %v4889, %v4885
  %v5102 = vpack.c.b16 %v4890, %v4886
  %v5103 = vpack.c.b16 %v4891, %v4887
  %v5104 = vpack.c.b16 %v4892, %v4888
  %v5105 = vpack.c.b16 %v4897, %v4893
  %v5106 = vpack.c.b16 %v4898, %v4894
  %v5107 = vpack.c.b16 %v4899, %v4895
  %v5108 = vpack.c.b16 %v4900, %v4896
  %v5109 = vpack.c.b16 %v4905, %v4901
  %v5110 = vpack.c.b16 %v4906, %v4902
  %v5111 = vpack.c.b16 %v4907, %v4903
  %v5112 = vpack.c.b16 %v4908, %v4904
  %v5113 = vpack.c.b16 %v4913, %v4909
  %v5114 = vpack.c.b16 %v4914, %v4910
  %v5115 = vpack.c.b16 %v4915, %v4911
  %v5116 = vpack.c.b16 %v4916, %v4912
  %v5117 = vpack.c.b16 %v4921, %v4917
  %v5118 = vpack.c.b16 %v4922, %v4918
  %v5119 = vpack.c.b16 %v4923, %v4919
  %v5120 = vpack.c.b16 %v4924, %v4920
  %v5121 = vpack.c.b16 %v4929, %v4925
  %v5122 = vpack.c.b16 %v4930, %v4926
  %v5123 = vpack.c.b16 %v4931, %v4927
  %v5124 = vpack.c.b16 %v4932, %v4928
  %v5125 = vpack.c.b16 %v4937, %v4933
  %v5126 = vpack.c.b16 %v4938, %v4934
  %v5127 = vpack.c.b16 %v4939, %v4935
  %v5128 = vpack.c.b16 %v4940, %v4936
  %v5129 = vpack.c.b16 %v4945, %v4941
  %v5130 = vpack.c.b16 %v4946, %v4942
  %v5131 = vpack.c.b16 %v4947, %v4943
  %v5132 = vpack.c.b16 %v4948, %v4944
  %v5133 = vpack.c.b16 %v4953, %v4949
  %v5134 = vpack.c.b16 %v4954, %v4950
  %v5135 = vpack.c.b16 %v4955, %v4951
  %v5136 = vpack.c.b16 %v4956, %v4952
  %v5137 = vpack.c.b16 %v4961, %v4957
  %v5138 = vpack.c.b16 %v4962, %v4958
  %v5139 = vpack.c.b16 %v4963, %v4959
  %v5140 = vpack.c.b16 %v4964, %v4960
  %v5141 = vpack.c.b16 %v4969, %v4965
  %v5142 = vpack.c.b16 %v4970, %v4966
  %v5143 = vpack.c.b16 %v4971, %v4967
  %v5144 = vpack.c.b16 %v4972, %v4968
  %v5145 = vpack.c.b16 %v4977, %v4973
  %v5146 = vpack.c.b16 %v4978, %v4974
  %v5147 = vpack.c.b16 %v4979, %v4975
  %v5148 = vpack.c.b16 %v4980, %v4976
  %v5149 = vpack.c.b16 %v4985, %v4981
  %v5150 = vpack.c.b16 %v4986, %v4982
  %v5151 = vpack.c.b16 %v4987, %v4983
  %v5152 = vpack.c.b16 %v4988, %v4984
  %v5153 = vpack.c.b16 %v4993, %v4989
  %v5154 = vpack.c.b16 %v4994, %v4990
  %v5155 = vpack.c.b16 %v4995, %v4991
  %v5156 = vpack.c.b16 %v4996, %v4992
  %v5157 = vpack.c.b16 %v5001, %v4997
  %v5158 = vpack.c.b16 %v5002, %v4998
  %v5159 = vpack.c.b16 %v5003, %v4999
  %v5160 = vpack.c.b16 %v5004, %v5000
  %v5161 = vpack.c.b16 %v5009, %v5005
  %v5162 = vpack.c.b16 %v5010, %v5006
  %v5163 = vpack.c.b16 %v5011, %v5007
  %v5164 = vpack.c.b16 %v5012, %v5008
  %v5165 = vpack.c.b16 %v5017, %v5013
  %v5166 = vpack.c.b16 %v5018, %v5014
  %v5167 = vpack.c.b16 %v5019, %v5015
  %v5168 = vpack.c.b16 %v5020, %v5016
  %v5169 = vpack.c.b16 %v5025, %v5021
  %v5170 = vpack.c.b16 %v5026, %v5022
  %v5171 = vpack.c.b16 %v5027, %v5023
  %v5172 = vpack.c.b16 %v5028, %v5024
  %v5173 = vpack.c.b16 %v5033, %v5029
  %v5174 = vpack.c.b16 %v5034, %v5030
  %v5175 = vpack.c.b16 %v5035, %v5031
  %v5176 = vpack.c.b16 %v5036, %v5032
  %v5177 = vpack.c.b16 %v5041, %v5037
  %v5178 = vpack.c.b16 %v5042, %v5038
  %v5179 = vpack.c.b16 %v5043, %v5039
  %v5180 = vpack.c.b16 %v5044, %v5040
  %v5181 = vpack.c.b16 %v5049, %v5045
  %v5182 = vpack.c.b16 %v5050, %v5046
  %v5183 = vpack.c.b16 %v5051, %v5047
  %v5184 = vpack.c.b16 %v5052, %v5048
  %v5185 = vpack.c.b16 %v5057, %v5053
  %v5186 = vpack.c.b16 %v5058, %v5054
  %v5187 = vpack.c.b16 %v5059, %v5055
  %v5188 = vpack.c.b16 %v5060, %v5056
  %5317 = vmatprep.subr.bf16.mxu0 %v5062
  %5318 = vmatpush1.bf16.msra.mxu0 %v5061
  %5319 = vmatprep.subr.bf16.mxu0 %v5066
  %5320 = vmatpush1.bf16.msra.mxu0 %v5065
  %5321 = vmatprep.subr.bf16.mxu0 %v5070
  %5322 = vmatpush1.bf16.msra.mxu0 %v5069
  %5323 = vmatprep.subr.bf16.mxu0 %v5074
  %5324 = vmatpush1.bf16.msra.mxu0 %v5073
  %5325 = vmatprep.subr.bf16.mxu0 %v5078
  %5326 = vmatpush1.bf16.msra.mxu0 %v5077
  %5327 = vmatprep.subr.bf16.mxu0 %v5082
  %5328 = vmatpush1.bf16.msra.mxu0 %v5081
  %5329 = vmatprep.subr.bf16.mxu0 %v5086
  %5330 = vmatpush1.bf16.msra.mxu0 %v5085
  %5331 = vmatprep.subr.bf16.mxu0 %v5090
  %5332 = vmatpush1.bf16.msra.mxu0 %v5089
  %5333 = vmatprep.subr.bf16.mxu0 %v5094
  %5334 = vmatpush1.bf16.msra.mxu0 %v5093
  %5335 = vmatprep.subr.bf16.mxu0 %v5098
  %5336 = vmatpush1.bf16.msra.mxu0 %v5097
  %5337 = vmatprep.subr.bf16.mxu0 %v5102
  %5338 = vmatpush1.bf16.msra.mxu0 %v5101
  %5339 = vmatprep.subr.bf16.mxu0 %v5106
  %5340 = vmatpush1.bf16.msra.mxu0 %v5105
  %5341 = vmatprep.subr.bf16.mxu0 %v5110
  %5342 = vmatpush1.bf16.msra.mxu0 %v5109
  %5343 = vmatprep.subr.bf16.mxu0 %v5114
  %5344 = vmatpush1.bf16.msra.mxu0 %v5113
  %5345 = vmatprep.subr.bf16.mxu0 %v5118
  %5346 = vmatpush1.bf16.msra.mxu0 %v5117
  %5347 = vmatprep.subr.bf16.mxu0 %v5122
  %5348 = vmatpush1.bf16.msra.mxu0 %v5121
  %5349 = vmatprep.mubr.bf16.mxu0 %v4530
  %5350 = vmatmul.mubr.bf16.gmra.mrb[0].mxu0 %v4529
  %v5351 = vpop.f32.mrb[0].mxu0
  %v5352 = vadd.f32 %v4664, %v5351
  %v5353 = vpop.f32.mrb[0].mxu0
  %v5354 = vadd.f32 %v4668, %v5353
  %v5355 = vpop.f32.mrb[0].mxu0
  %v5356 = vpop.f32.mrb[0].mxu0
  %5357 = vdwg.mxu0
  %5358 = vmatprep.subr.bf16.mxu0 %v5126
  %5359 = vmatpush1.bf16.msra.mxu0 %v5125
  %5360 = vmatprep.subr.bf16.mxu0 %v5130
  %5361 = vmatpush1.bf16.msra.mxu0 %v5129
  %5362 = vmatprep.subr.bf16.mxu0 %v5134
  %5363 = vmatpush1.bf16.msra.mxu0 %v5133
  %5364 = vmatprep.subr.bf16.mxu0 %v5138
  %5365 = vmatpush1.bf16.msra.mxu0 %v5137
  %5366 = vmatprep.subr.bf16.mxu0 %v5142
  %5367 = vmatpush1.bf16.msra.mxu0 %v5141
  %5368 = vmatprep.subr.bf16.mxu0 %v5146
  %5369 = vmatpush1.bf16.msra.mxu0 %v5145
  %5370 = vmatprep.subr.bf16.mxu0 %v5150
  %5371 = vmatpush1.bf16.msra.mxu0 %v5149
  %5372 = vmatprep.subr.bf16.mxu0 %v5154
  %5373 = vmatpush1.bf16.msra.mxu0 %v5153
  %5374 = vmatprep.subr.bf16.mxu0 %v5158
  %5375 = vmatpush1.bf16.msra.mxu0 %v5157
  %5376 = vmatprep.subr.bf16.mxu0 %v5162
  %5377 = vmatpush1.bf16.msra.mxu0 %v5161
  %5378 = vmatprep.subr.bf16.mxu0 %v5166
  %5379 = vmatpush1.bf16.msra.mxu0 %v5165
  %5380 = vmatprep.subr.bf16.mxu0 %v5170
  %5381 = vmatpush1.bf16.msra.mxu0 %v5169
  %5382 = vmatprep.subr.bf16.mxu0 %v5174
  %5383 = vmatpush1.bf16.msra.mxu0 %v5173
  %5384 = vmatprep.subr.bf16.mxu0 %v5178
  %5385 = vmatpush1.bf16.msra.mxu0 %v5177
  %5386 = vmatprep.subr.bf16.mxu0 %v5182
  %5387 = vmatpush1.bf16.msra.mxu0 %v5181
  %5388 = vmatprep.subr.bf16.mxu0 %v5186
  %5389 = vmatpush1.bf16.msra.mxu0 %v5185
  %5390 = vmatprep.mubr.bf16.mxu0 %v4532
  %5391 = vmatmul.mubr.bf16.gmra.mrb[0].mxu0 %v4531
  %v5392 = vpop.f32.mrb[0].mxu0
  %v5393 = vadd.f32 %v5352, %v5392
  %v5394 = vpop.f32.mrb[0].mxu0
  %v5395 = vadd.f32 %v5354, %v5394
  %v5396 = vpop.f32.mrb[0].mxu0
  %v5397 = vpop.f32.mrb[0].mxu0
  %5398 = vdwg.mxu0
  %5399 = vmatprep.subr.bf16.mxu0 %v5064
  %5400 = vmatpush1.bf16.msra.mxu0 %v5063
  %5401 = vmatprep.subr.bf16.mxu0 %v5068
  %5402 = vmatpush1.bf16.msra.mxu0 %v5067
  %5403 = vmatprep.subr.bf16.mxu0 %v5072
  %5404 = vmatpush1.bf16.msra.mxu0 %v5071
  %5405 = vmatprep.subr.bf16.mxu0 %v5076
  %5406 = vmatpush1.bf16.msra.mxu0 %v5075
  %5407 = vmatprep.subr.bf16.mxu0 %v5080
  %5408 = vmatpush1.bf16.msra.mxu0 %v5079
  %5409 = vmatprep.subr.bf16.mxu0 %v5084
  %5410 = vmatpush1.bf16.msra.mxu0 %v5083
  %5411 = vmatprep.subr.bf16.mxu0 %v5088
  %5412 = vmatpush1.bf16.msra.mxu0 %v5087
  %5413 = vmatprep.subr.bf16.mxu0 %v5092
  %5414 = vmatpush1.bf16.msra.mxu0 %v5091
  %5415 = vmatprep.subr.bf16.mxu0 %v5096
  %5416 = vmatpush1.bf16.msra.mxu0 %v5095
  %5417 = vmatprep.subr.bf16.mxu0 %v5100
  %5418 = vmatpush1.bf16.msra.mxu0 %v5099
  %5419 = vmatprep.subr.bf16.mxu0 %v5104
  %5420 = vmatpush1.bf16.msra.mxu0 %v5103
  %5421 = vmatprep.subr.bf16.mxu0 %v5108
  %5422 = vmatpush1.bf16.msra.mxu0 %v5107
  %5423 = vmatprep.subr.bf16.mxu0 %v5112
  %5424 = vmatpush1.bf16.msra.mxu0 %v5111
  %5425 = vmatprep.subr.bf16.mxu0 %v5116
  %5426 = vmatpush1.bf16.msra.mxu0 %v5115
  %5427 = vmatprep.subr.bf16.mxu0 %v5120
  %5428 = vmatpush1.bf16.msra.mxu0 %v5119
  %5429 = vmatprep.subr.bf16.mxu0 %v5124
  %5430 = vmatpush1.bf16.msra.mxu0 %v5123
  %5431 = vmatprep.mubr.bf16.mxu0 %v4530
  %5432 = vmatmul.mubr.bf16.gmra.mrb[0].mxu0 %v4529
  %v5433 = vpop.f32.mrb[0].mxu0
  %v5434 = vadd.f32 %v4672, %v5433
  %v5435 = vpop.f32.mrb[0].mxu0
  %v5436 = vadd.f32 %v4676, %v5435
  %v5437 = vpop.f32.mrb[0].mxu0
  %v5438 = vpop.f32.mrb[0].mxu0
  %5439 = vdwg.mxu0
  %5440 = vmatprep.subr.bf16.mxu0 %v5128
  %5441 = vmatpush1.bf16.msra.mxu0 %v5127
  %5442 = vmatprep.subr.bf16.mxu0 %v5132
  %5443 = vmatpush1.bf16.msra.mxu0 %v5131
  %5444 = vmatprep.subr.bf16.mxu0 %v5136
  %5445 = vmatpush1.bf16.msra.mxu0 %v5135
  %5446 = vmatprep.subr.bf16.mxu0 %v5140
  %5447 = vmatpush1.bf16.msra.mxu0 %v5139
  %5448 = vmatprep.subr.bf16.mxu0 %v5144
  %5449 = vmatpush1.bf16.msra.mxu0 %v5143
  %5450 = vmatprep.subr.bf16.mxu0 %v5148
  %5451 = vmatpush1.bf16.msra.mxu0 %v5147
  %5452 = vmatprep.subr.bf16.mxu0 %v5152
  %5453 = vmatpush1.bf16.msra.mxu0 %v5151
  %5454 = vmatprep.subr.bf16.mxu0 %v5156
  %5455 = vmatpush1.bf16.msra.mxu0 %v5155
  %5456 = vmatprep.subr.bf16.mxu0 %v5160
  %5457 = vmatpush1.bf16.msra.mxu0 %v5159
  %5458 = vmatprep.subr.bf16.mxu0 %v5164
  %5459 = vmatpush1.bf16.msra.mxu0 %v5163
  %5460 = vmatprep.subr.bf16.mxu0 %v5168
  %5461 = vmatpush1.bf16.msra.mxu0 %v5167
  %5462 = vmatprep.subr.bf16.mxu0 %v5172
  %5463 = vmatpush1.bf16.msra.mxu0 %v5171
  %5464 = vmatprep.subr.bf16.mxu0 %v5176
  %5465 = vmatpush1.bf16.msra.mxu0 %v5175
  %5466 = vmatprep.subr.bf16.mxu0 %v5180
  %5467 = vmatpush1.bf16.msra.mxu0 %v5179
  %5468 = vmatprep.subr.bf16.mxu0 %v5184
  %5469 = vmatpush1.bf16.msra.mxu0 %v5183
  %5470 = vmatprep.subr.bf16.mxu0 %v5188
  %5471 = vmatpush1.bf16.msra.mxu0 %v5187
  %5472 = vmatprep.mubr.bf16.mxu0 %v4532
  %5473 = vmatmul.mubr.bf16.gmra.mrb[0].mxu0 %v4531
  %v5474 = vpop.f32.mrb[0].mxu0
  %v5475 = vadd.f32 %v5434, %v5474
  %v5476 = vpop.f32.mrb[0].mxu0
  %v5477 = vadd.f32 %v5436, %v5476
  %v5478 = vpop.f32.mrb[0].mxu0
  %v5479 = vpop.f32.mrb[0].mxu0
  %5480 = vdwg.mxu0
  %5481 = vmatprep.subr.mxu0 %v5395
  %5482 = vmatpush1.msra.mxu0 %v5393
  %5483 = vmatprep.subr.mxu0 0.0
  %5484 = vmatpush1.msra.mxu0 0.0
  %5485 = vmatprep.subr.mxu0 0.0
  %5486 = vmatpush1.msra.mxu0 0.0
  %5487 = vmatprep.subr.mxu0 0.0
  %5488 = vmatpush1.msra.mxu0 0.0
  %5489 = vmatprep.subr.mxu0 0.0
  %5490 = vmatpush1.msra.mxu0 0.0
  %5491 = vmatprep.subr.mxu0 0.0
  %5492 = vmatpush1.msra.mxu0 0.0
  %5493 = vmatprep.subr.mxu0 0.0
  %5494 = vmatpush1.msra.mxu0 0.0
  %5495 = vmatprep.subr.mxu0 0.0
  %5496 = vmatpush1.msra.mxu0 0.0
  %5497 = vmatprep.subr.mxu0 0.0
  %5498 = vmatpush1.msra.mxu0 0.0
  %5499 = vmatprep.subr.mxu0 0.0
  %5500 = vmatpush1.msra.mxu0 0.0
  %5501 = vmatprep.subr.mxu0 0.0
  %5502 = vmatpush1.msra.mxu0 0.0
  %5503 = vmatprep.subr.mxu0 0.0
  %5504 = vmatpush1.msra.mxu0 0.0
  %5505 = vmatprep.subr.mxu0 0.0
  %5506 = vmatpush1.msra.mxu0 0.0
  %5507 = vmatprep.subr.mxu0 0.0
  %5508 = vmatpush1.msra.mxu0 0.0
  %5509 = vmatprep.subr.mxu0 0.0
  %5510 = vmatpush1.msra.mxu0 0.0
  %5511 = vmatprep.subr.mxu0 0.0
  %5512 = vmatpush1.msra.mxu0 0.0
  %5513 = vmatprep.subr.mxu0 0.0
  %5514 = vmatpush1.msra.mxu0 0.0
  %5515 = vmatprep.subr.mxu0 0.0
  %5516 = vmatpush1.msra.mxu0 0.0
  %5517 = vmatprep.subr.mxu0 0.0
  %5518 = vmatpush1.msra.mxu0 0.0
  %5519 = vmatprep.subr.mxu0 0.0
  %5520 = vmatpush1.msra.mxu0 0.0
  %5521 = vmatprep.subr.mxu0 0.0
  %5522 = vmatpush1.msra.mxu0 0.0
  %5523 = vmatprep.subr.mxu0 0.0
  %5524 = vmatpush1.msra.mxu0 0.0
  %5525 = vmatprep.subr.mxu0 0.0
  %5526 = vmatpush1.msra.mxu0 0.0
  %5527 = vmatprep.subr.mxu0 0.0
  %5528 = vmatpush1.msra.mxu0 0.0
  %5529 = vmatprep.subr.mxu0 0.0
  %5530 = vmatpush1.msra.mxu0 0.0
  %5531 = vmatprep.subr.mxu0 0.0
  %5532 = vmatpush1.msra.mxu0 0.0
  %5533 = vmatprep.subr.mxu0 0.0
  %5534 = vmatpush1.msra.mxu0 0.0
  %5535 = vmatprep.subr.mxu0 0.0
  %5536 = vmatpush1.msra.mxu0 0.0
  %5537 = vmatprep.subr.mxu0 0.0
  %5538 = vmatpush1.msra.mxu0 0.0
  %5539 = vmatprep.subr.mxu0 0.0
  %5540 = vmatpush1.msra.mxu0 0.0
  %5541 = vmatprep.subr.mxu0 0.0
  %5542 = vmatpush1.msra.mxu0 0.0
  %5543 = vmatprep.subr.mxu0 0.0
  %5544 = vmatpush1.msra.mxu0 0.0
  %5545 = vmatprep.mubr.f32.mxu0 0.0
  %5546 = vmatmul.mubr.f32.gmra.mrb[0].mxu0 %v3858
  %v5547 = vpop.f32.mrb[0].mxu0
  %v5548 = vadd.f32 0.0, %v5547
  %v5549 = vpop.f32.mrb[0].mxu0
  %v5550 = vadd.f32 0.0, %v5549
  %5551 = vdwg.mxu0
  %5552 = vmatprep.subr.mxu0 %v5477
  %5553 = vmatpush1.msra.mxu0 %v5475
  %5554 = vmatprep.subr.mxu0 0.0
  %5555 = vmatpush1.msra.mxu0 0.0
  %5556 = vmatprep.subr.mxu0 0.0
  %5557 = vmatpush1.msra.mxu0 0.0
  %5558 = vmatprep.subr.mxu0 0.0
  %5559 = vmatpush1.msra.mxu0 0.0
  %5560 = vmatprep.subr.mxu0 0.0
  %5561 = vmatpush1.msra.mxu0 0.0
  %5562 = vmatprep.subr.mxu0 0.0
  %5563 = vmatpush1.msra.mxu0 0.0
  %5564 = vmatprep.subr.mxu0 0.0
  %5565 = vmatpush1.msra.mxu0 0.0
  %5566 = vmatprep.subr.mxu0 0.0
  %5567 = vmatpush1.msra.mxu0 0.0
  %5568 = vmatprep.subr.mxu0 0.0
  %5569 = vmatpush1.msra.mxu0 0.0
  %5570 = vmatprep.subr.mxu0 0.0
  %5571 = vmatpush1.msra.mxu0 0.0
  %5572 = vmatprep.subr.mxu0 0.0
  %5573 = vmatpush1.msra.mxu0 0.0
  %5574 = vmatprep.subr.mxu0 0.0
  %5575 = vmatpush1.msra.mxu0 0.0
  %5576 = vmatprep.subr.mxu0 0.0
  %5577 = vmatpush1.msra.mxu0 0.0
  %5578 = vmatprep.subr.mxu0 0.0
  %5579 = vmatpush1.msra.mxu0 0.0
  %5580 = vmatprep.subr.mxu0 0.0
  %5581 = vmatpush1.msra.mxu0 0.0
  %5582 = vmatprep.subr.mxu0 0.0
  %5583 = vmatpush1.msra.mxu0 0.0
  %5584 = vmatprep.subr.mxu0 0.0
  %5585 = vmatpush1.msra.mxu0 0.0
  %5586 = vmatprep.subr.mxu0 0.0
  %5587 = vmatpush1.msra.mxu0 0.0
  %5588 = vmatprep.subr.mxu0 0.0
  %5589 = vmatpush1.msra.mxu0 0.0
  %5590 = vmatprep.subr.mxu0 0.0
  %5591 = vmatpush1.msra.mxu0 0.0
  %5592 = vmatprep.subr.mxu0 0.0
  %5593 = vmatpush1.msra.mxu0 0.0
  %5594 = vmatprep.subr.mxu0 0.0
  %5595 = vmatpush1.msra.mxu0 0.0
  %5596 = vmatprep.subr.mxu0 0.0
  %5597 = vmatpush1.msra.mxu0 0.0
  %5598 = vmatprep.subr.mxu0 0.0
  %5599 = vmatpush1.msra.mxu0 0.0
  %5600 = vmatprep.subr.mxu0 0.0
  %5601 = vmatpush1.msra.mxu0 0.0
  %5602 = vmatprep.subr.mxu0 0.0
  %5603 = vmatpush1.msra.mxu0 0.0
  %5604 = vmatprep.subr.mxu0 0.0
  %5605 = vmatpush1.msra.mxu0 0.0
  %5606 = vmatprep.subr.mxu0 0.0
  %5607 = vmatpush1.msra.mxu0 0.0
  %5608 = vmatprep.subr.mxu0 0.0
  %5609 = vmatpush1.msra.mxu0 0.0
  %5610 = vmatprep.subr.mxu0 0.0
  %5611 = vmatpush1.msra.mxu0 0.0
  %5612 = vmatprep.subr.mxu0 0.0
  %5613 = vmatpush1.msra.mxu0 0.0
  %5614 = vmatprep.subr.mxu0 0.0
  %5615 = vmatpush1.msra.mxu0 0.0
  %5616 = vmatprep.mubr.f32.mxu0 0.0
  %5617 = vmatmul.mubr.f32.gmra.mrb[0].mxu0 %v3858
  %v5618 = vpop.f32.mrb[0].mxu0
  %v5619 = vadd.f32 0.0, %v5618
  %v5620 = vpop.f32.mrb[0].mxu0
  %v5621 = vadd.f32 0.0, %v5620
  %5622 = vdwg.mxu0
  %v5623 = vmul.f32 %v5393, %v5393
  %v5624 = vmul.f32 %v5395, %v5395
  %v5625 = vmul.f32 %v5475, %v5475
  %v5626 = vmul.f32 %v5477, %v5477
  %5627 = vmatprep.subr.mxu0 %v5624
  %5628 = vmatpush1.msra.mxu0 %v5623
  %5629 = vmatprep.subr.mxu0 0.0
  %5630 = vmatpush1.msra.mxu0 0.0
  %5631 = vmatprep.subr.mxu0 0.0
  %5632 = vmatpush1.msra.mxu0 0.0
  %5633 = vmatprep.subr.mxu0 0.0
  %5634 = vmatpush1.msra.mxu0 0.0
  %5635 = vmatprep.subr.mxu0 0.0
  %5636 = vmatpush1.msra.mxu0 0.0
  %5637 = vmatprep.subr.mxu0 0.0
  %5638 = vmatpush1.msra.mxu0 0.0
  %5639 = vmatprep.subr.mxu0 0.0
  %5640 = vmatpush1.msra.mxu0 0.0
  %5641 = vmatprep.subr.mxu0 0.0
  %5642 = vmatpush1.msra.mxu0 0.0
  %5643 = vmatprep.subr.mxu0 0.0
  %5644 = vmatpush1.msra.mxu0 0.0
  %5645 = vmatprep.subr.mxu0 0.0
  %5646 = vmatpush1.msra.mxu0 0.0
  %5647 = vmatprep.subr.mxu0 0.0
  %5648 = vmatpush1.msra.mxu0 0.0
  %5649 = vmatprep.subr.mxu0 0.0
  %5650 = vmatpush1.msra.mxu0 0.0
  %5651 = vmatprep.subr.mxu0 0.0
  %5652 = vmatpush1.msra.mxu0 0.0
  %5653 = vmatprep.subr.mxu0 0.0
  %5654 = vmatpush1.msra.mxu0 0.0
  %5655 = vmatprep.subr.mxu0 0.0
  %5656 = vmatpush1.msra.mxu0 0.0
  %5657 = vmatprep.subr.mxu0 0.0
  %5658 = vmatpush1.msra.mxu0 0.0
  %5659 = vmatprep.subr.mxu0 0.0
  %5660 = vmatpush1.msra.mxu0 0.0
  %5661 = vmatprep.subr.mxu0 0.0
  %5662 = vmatpush1.msra.mxu0 0.0
  %5663 = vmatprep.subr.mxu0 0.0
  %5664 = vmatpush1.msra.mxu0 0.0
  %5665 = vmatprep.subr.mxu0 0.0
  %5666 = vmatpush1.msra.mxu0 0.0
  %5667 = vmatprep.subr.mxu0 0.0
  %5668 = vmatpush1.msra.mxu0 0.0
  %5669 = vmatprep.subr.mxu0 0.0
  %5670 = vmatpush1.msra.mxu0 0.0
  %5671 = vmatprep.subr.mxu0 0.0
  %5672 = vmatpush1.msra.mxu0 0.0
  %5673 = vmatprep.subr.mxu0 0.0
  %5674 = vmatpush1.msra.mxu0 0.0
  %5675 = vmatprep.subr.mxu0 0.0
  %5676 = vmatpush1.msra.mxu0 0.0
  %5677 = vmatprep.subr.mxu0 0.0
  %5678 = vmatpush1.msra.mxu0 0.0
  %5679 = vmatprep.subr.mxu0 0.0
  %5680 = vmatpush1.msra.mxu0 0.0
  %5681 = vmatprep.subr.mxu0 0.0
  %5682 = vmatpush1.msra.mxu0 0.0
  %5683 = vmatprep.subr.mxu0 0.0
  %5684 = vmatpush1.msra.mxu0 0.0
  %5685 = vmatprep.subr.mxu0 0.0
  %5686 = vmatpush1.msra.mxu0 0.0
  %5687 = vmatprep.subr.mxu0 0.0
  %5688 = vmatpush1.msra.mxu0 0.0
  %5689 = vmatprep.subr.mxu0 0.0
  %5690 = vmatpush1.msra.mxu0 0.0
  %5691 = vmatprep.mubr.f32.mxu0 0.0
  %5692 = vmatmul.mubr.f32.gmra.mrb[0].mxu0 %v3858
  %v5693 = vpop.f32.mrb[0].mxu0
  %v5694 = vadd.f32 0.0, %v5693
  %v5695 = vpop.f32.mrb[0].mxu0
  %v5696 = vadd.f32 0.0, %v5695
  %5697 = vdwg.mxu0
  %5698 = vmatprep.subr.mxu0 %v5626
  %5699 = vmatpush1.msra.mxu0 %v5625
  %5700 = vmatprep.subr.mxu0 0.0
  %5701 = vmatpush1.msra.mxu0 0.0
  %5702 = vmatprep.subr.mxu0 0.0
  %5703 = vmatpush1.msra.mxu0 0.0
  %5704 = vmatprep.subr.mxu0 0.0
  %5705 = vmatpush1.msra.mxu0 0.0
  %5706 = vmatprep.subr.mxu0 0.0
  %5707 = vmatpush1.msra.mxu0 0.0
  %5708 = vmatprep.subr.mxu0 0.0
  %5709 = vmatpush1.msra.mxu0 0.0
  %5710 = vmatprep.subr.mxu0 0.0
  %5711 = vmatpush1.msra.mxu0 0.0
  %5712 = vmatprep.subr.mxu0 0.0
  %5713 = vmatpush1.msra.mxu0 0.0
  %5714 = vmatprep.subr.mxu0 0.0
  %5715 = vmatpush1.msra.mxu0 0.0
  %5716 = vmatprep.subr.mxu0 0.0
  %5717 = vmatpush1.msra.mxu0 0.0
  %5718 = vmatprep.subr.mxu0 0.0
  %5719 = vmatpush1.msra.mxu0 0.0
  %5720 = vmatprep.subr.mxu0 0.0
  %5721 = vmatpush1.msra.mxu0 0.0
  %5722 = vmatprep.subr.mxu0 0.0
  %5723 = vmatpush1.msra.mxu0 0.0
  %5724 = vmatprep.subr.mxu0 0.0
  %5725 = vmatpush1.msra.mxu0 0.0
  %5726 = vmatprep.subr.mxu0 0.0
  %5727 = vmatpush1.msra.mxu0 0.0
  %5728 = vmatprep.subr.mxu0 0.0
  %5729 = vmatpush1.msra.mxu0 0.0
  %5730 = vmatprep.subr.mxu0 0.0
  %5731 = vmatpush1.msra.mxu0 0.0
  %5732 = vmatprep.subr.mxu0 0.0
  %5733 = vmatpush1.msra.mxu0 0.0
  %5734 = vmatprep.subr.mxu0 0.0
  %5735 = vmatpush1.msra.mxu0 0.0
  %5736 = vmatprep.subr.mxu0 0.0
  %5737 = vmatpush1.msra.mxu0 0.0
  %5738 = vmatprep.subr.mxu0 0.0
  %5739 = vmatpush1.msra.mxu0 0.0
  %5740 = vmatprep.subr.mxu0 0.0
  %5741 = vmatpush1.msra.mxu0 0.0
  %5742 = vmatprep.subr.mxu0 0.0
  %5743 = vmatpush1.msra.mxu0 0.0
  %5744 = vmatprep.subr.mxu0 0.0
  %5745 = vmatpush1.msra.mxu0 0.0
  %5746 = vmatprep.subr.mxu0 0.0
  %5747 = vmatpush1.msra.mxu0 0.0
  %5748 = vmatprep.subr.mxu0 0.0
  %5749 = vmatpush1.msra.mxu0 0.0
  %5750 = vmatprep.subr.mxu0 0.0
  %5751 = vmatpush1.msra.mxu0 0.0
  %5752 = vmatprep.subr.mxu0 0.0
  %5753 = vmatpush1.msra.mxu0 0.0
  %5754 = vmatprep.subr.mxu0 0.0
  %5755 = vmatpush1.msra.mxu0 0.0
  %5756 = vmatprep.subr.mxu0 0.0
  %5757 = vmatpush1.msra.mxu0 0.0
  %5758 = vmatprep.subr.mxu0 0.0
  %5759 = vmatpush1.msra.mxu0 0.0
  %5760 = vmatprep.subr.mxu0 0.0
  %5761 = vmatpush1.msra.mxu0 0.0
  %5762 = vmatprep.mubr.f32.mxu0 0.0
  %5763 = vmatmul.mubr.f32.gmra.mrb[0].mxu0 %v3858
  %v5764 = vpop.f32.mrb[0].mxu0
  %v5765 = vadd.f32 0.0, %v5764
  %v5766 = vpop.f32.mrb[0].mxu0
  %v5767 = vadd.f32 0.0, %v5766
  %5768 = vdwg.mxu0
  %v5769 = vmul.f32 %v5548, %v5548
  %v5770 = vmul.f32 %v5550, %v5550
  %v5771 = vmul.f32 %v5619, %v5619
  %v5772 = vmul.f32 %v5621, %v5621
  %v5773 = vsub.f32 %v5694, %v5769
  %v5774 = vsub.f32 %v5696, %v5770
  %v5775 = vsub.f32 %v5765, %v5771
  %v5776 = vsub.f32 %v5767, %v5772
  %v5777 = vmax.f32 %v5773, 0.0
  %v5778 = vmax.f32 %v5774, 0.0
  %v5779 = vmax.f32 %v5775, 0.0
  %v5780 = vmax.f32 %v5776, 0.0
  %v5782 = vsel %vm4164, %v5548, 0
  %v5785 = vsel %vm4164, %v5550, 0
  %v5788 = vsel %vm4164, %v5619, 0
  %v5791 = vsel %vm4164, %v5621, 0
  %5793 = vmatprep.subr.mxu0 %v5785
  %5794 = vmatpush1.msra.mxu0 %v5782
  %5795 = vmatprep.subr.mxu0 0.0
  %5796 = vmatpush1.msra.mxu0 0.0
  %5797 = vmatprep.subr.mxu0 0.0
  %5798 = vmatpush1.msra.mxu0 0.0
  %5799 = vmatprep.subr.mxu0 0.0
  %5800 = vmatpush1.msra.mxu0 0.0
  %5801 = vmatprep.subr.mxu0 0.0
  %5802 = vmatpush1.msra.mxu0 0.0
  %5803 = vmatprep.subr.mxu0 0.0
  %5804 = vmatpush1.msra.mxu0 0.0
  %5805 = vmatprep.subr.mxu0 0.0
  %5806 = vmatpush1.msra.mxu0 0.0
  %5807 = vmatprep.subr.mxu0 0.0
  %5808 = vmatpush1.msra.mxu0 0.0
  %5809 = vmatprep.subr.mxu0 0.0
  %5810 = vmatpush1.msra.mxu0 0.0
  %5811 = vmatprep.subr.mxu0 0.0
  %5812 = vmatpush1.msra.mxu0 0.0
  %5813 = vmatprep.subr.mxu0 0.0
  %5814 = vmatpush1.msra.mxu0 0.0
  %5815 = vmatprep.subr.mxu0 0.0
  %5816 = vmatpush1.msra.mxu0 0.0
  %5817 = vmatprep.subr.mxu0 0.0
  %5818 = vmatpush1.msra.mxu0 0.0
  %5819 = vmatprep.subr.mxu0 0.0
  %5820 = vmatpush1.msra.mxu0 0.0
  %5821 = vmatprep.subr.mxu0 0.0
  %5822 = vmatpush1.msra.mxu0 0.0
  %5823 = vmatprep.subr.mxu0 0.0
  %5824 = vmatpush1.msra.mxu0 0.0
  %5825 = vmatprep.subr.mxu0 0.0
  %5826 = vmatpush1.msra.mxu0 0.0
  %5827 = vmatprep.subr.mxu0 0.0
  %5828 = vmatpush1.msra.mxu0 0.0
  %5829 = vmatprep.subr.mxu0 0.0
  %5830 = vmatpush1.msra.mxu0 0.0
  %5831 = vmatprep.subr.mxu0 0.0
  %5832 = vmatpush1.msra.mxu0 0.0
  %5833 = vmatprep.subr.mxu0 0.0
  %5834 = vmatpush1.msra.mxu0 0.0
  %5835 = vmatprep.subr.mxu0 0.0
  %5836 = vmatpush1.msra.mxu0 0.0
  %5837 = vmatprep.subr.mxu0 0.0
  %5838 = vmatpush1.msra.mxu0 0.0
  %5839 = vmatprep.subr.mxu0 0.0
  %5840 = vmatpush1.msra.mxu0 0.0
  %5841 = vmatprep.subr.mxu0 0.0
  %5842 = vmatpush1.msra.mxu0 0.0
  %5843 = vmatprep.subr.mxu0 0.0
  %5844 = vmatpush1.msra.mxu0 0.0
  %5845 = vmatprep.subr.mxu0 0.0
  %5846 = vmatpush1.msra.mxu0 0.0
  %5847 = vmatprep.subr.mxu0 0.0
  %5848 = vmatpush1.msra.mxu0 0.0
  %5849 = vmatprep.subr.mxu0 0.0
  %5850 = vmatpush1.msra.mxu0 0.0
  %5851 = vmatprep.subr.mxu0 0.0
  %5852 = vmatpush1.msra.mxu0 0.0
  %5853 = vmatprep.subr.mxu0 0.0
  %5854 = vmatpush1.msra.mxu0 0.0
  %5855 = vmatprep.subr.mxu0 0.0
  %5856 = vmatpush1.msra.mxu0 0.0
  %5857 = vmatprep.mubr.f32.mxu0 0.0
  %5858 = vmatmul.mubr.f32.gmra.mrb[0].mxu0 %v4162
  %v5859 = vpop.f32.mrb[0].mxu0
  %v5860 = vadd.f32 0.0, %v5859
  %v5861 = vpop.f32.mrb[0].mxu0
  %v5862 = vadd.f32 0.0, %v5861
  %5863 = vdwg.mxu0
  %5864 = vmatprep.subr.mxu0 %v5791
  %5865 = vmatpush1.msra.mxu0 %v5788
  %5866 = vmatprep.subr.mxu0 0.0
  %5867 = vmatpush1.msra.mxu0 0.0
  %5868 = vmatprep.subr.mxu0 0.0
  %5869 = vmatpush1.msra.mxu0 0.0
  %5870 = vmatprep.subr.mxu0 0.0
  %5871 = vmatpush1.msra.mxu0 0.0
  %5872 = vmatprep.subr.mxu0 0.0
  %5873 = vmatpush1.msra.mxu0 0.0
  %5874 = vmatprep.subr.mxu0 0.0
  %5875 = vmatpush1.msra.mxu0 0.0
  %5876 = vmatprep.subr.mxu0 0.0
  %5877 = vmatpush1.msra.mxu0 0.0
  %5878 = vmatprep.subr.mxu0 0.0
  %5879 = vmatpush1.msra.mxu0 0.0
  %5880 = vmatprep.subr.mxu0 0.0
  %5881 = vmatpush1.msra.mxu0 0.0
  %5882 = vmatprep.subr.mxu0 0.0
  %5883 = vmatpush1.msra.mxu0 0.0
  %5884 = vmatprep.subr.mxu0 0.0
  %5885 = vmatpush1.msra.mxu0 0.0
  %5886 = vmatprep.subr.mxu0 0.0
  %5887 = vmatpush1.msra.mxu0 0.0
  %5888 = vmatprep.subr.mxu0 0.0
  %5889 = vmatpush1.msra.mxu0 0.0
  %5890 = vmatprep.subr.mxu0 0.0
  %5891 = vmatpush1.msra.mxu0 0.0
  %5892 = vmatprep.subr.mxu0 0.0
  %5893 = vmatpush1.msra.mxu0 0.0
  %5894 = vmatprep.subr.mxu0 0.0
  %5895 = vmatpush1.msra.mxu0 0.0
  %5896 = vmatprep.subr.mxu0 0.0
  %5897 = vmatpush1.msra.mxu0 0.0
  %5898 = vmatprep.subr.mxu0 0.0
  %5899 = vmatpush1.msra.mxu0 0.0
  %5900 = vmatprep.subr.mxu0 0.0
  %5901 = vmatpush1.msra.mxu0 0.0
  %5902 = vmatprep.subr.mxu0 0.0
  %5903 = vmatpush1.msra.mxu0 0.0
  %5904 = vmatprep.subr.mxu0 0.0
  %5905 = vmatpush1.msra.mxu0 0.0
  %5906 = vmatprep.subr.mxu0 0.0
  %5907 = vmatpush1.msra.mxu0 0.0
  %5908 = vmatprep.subr.mxu0 0.0
  %5909 = vmatpush1.msra.mxu0 0.0
  %5910 = vmatprep.subr.mxu0 0.0
  %5911 = vmatpush1.msra.mxu0 0.0
  %5912 = vmatprep.subr.mxu0 0.0
  %5913 = vmatpush1.msra.mxu0 0.0
  %5914 = vmatprep.subr.mxu0 0.0
  %5915 = vmatpush1.msra.mxu0 0.0
  %5916 = vmatprep.subr.mxu0 0.0
  %5917 = vmatpush1.msra.mxu0 0.0
  %5918 = vmatprep.subr.mxu0 0.0
  %5919 = vmatpush1.msra.mxu0 0.0
  %5920 = vmatprep.subr.mxu0 0.0
  %5921 = vmatpush1.msra.mxu0 0.0
  %5922 = vmatprep.subr.mxu0 0.0
  %5923 = vmatpush1.msra.mxu0 0.0
  %5924 = vmatprep.subr.mxu0 0.0
  %5925 = vmatpush1.msra.mxu0 0.0
  %5926 = vmatprep.subr.mxu0 0.0
  %5927 = vmatpush1.msra.mxu0 0.0
  %5928 = vmatprep.mubr.f32.mxu0 0.0
  %5929 = vmatmul.mubr.f32.gmra.mrb[0].mxu0 %v4162
  %v5930 = vpop.f32.mrb[0].mxu0
  %v5931 = vadd.f32 0.0, %v5930
  %v5932 = vpop.f32.mrb[0].mxu0
  %v5933 = vadd.f32 0.0, %v5932
  %5934 = vdwg.mxu0
  %v5935 = vsub.f32 %v5393, %v5860
  %v5936 = vsub.f32 %v5395, %v5862
  %v5937 = vsub.f32 %v5475, %v5931
  %v5938 = vsub.f32 %v5477, %v5933
  %v5940 = vsel %vm4164, %v5777, 0
  %v5943 = vsel %vm4164, %v5778, 0
  %v5946 = vsel %vm4164, %v5779, 0
  %v5949 = vsel %vm4164, %v5780, 0
  %5951 = vmatprep.subr.mxu0 %v5943
  %5952 = vmatpush1.msra.mxu0 %v5940
  %5953 = vmatprep.subr.mxu0 0.0
  %5954 = vmatpush1.msra.mxu0 0.0
  %5955 = vmatprep.subr.mxu0 0.0
  %5956 = vmatpush1.msra.mxu0 0.0
  %5957 = vmatprep.subr.mxu0 0.0
  %5958 = vmatpush1.msra.mxu0 0.0
  %5959 = vmatprep.subr.mxu0 0.0
  %5960 = vmatpush1.msra.mxu0 0.0
  %5961 = vmatprep.subr.mxu0 0.0
  %5962 = vmatpush1.msra.mxu0 0.0
  %5963 = vmatprep.subr.mxu0 0.0
  %5964 = vmatpush1.msra.mxu0 0.0
  %5965 = vmatprep.subr.mxu0 0.0
  %5966 = vmatpush1.msra.mxu0 0.0
  %5967 = vmatprep.subr.mxu0 0.0
  %5968 = vmatpush1.msra.mxu0 0.0
  %5969 = vmatprep.subr.mxu0 0.0
  %5970 = vmatpush1.msra.mxu0 0.0
  %5971 = vmatprep.subr.mxu0 0.0
  %5972 = vmatpush1.msra.mxu0 0.0
  %5973 = vmatprep.subr.mxu0 0.0
  %5974 = vmatpush1.msra.mxu0 0.0
  %5975 = vmatprep.subr.mxu0 0.0
  %5976 = vmatpush1.msra.mxu0 0.0
  %5977 = vmatprep.subr.mxu0 0.0
  %5978 = vmatpush1.msra.mxu0 0.0
  %5979 = vmatprep.subr.mxu0 0.0
  %5980 = vmatpush1.msra.mxu0 0.0
  %5981 = vmatprep.subr.mxu0 0.0
  %5982 = vmatpush1.msra.mxu0 0.0
  %5983 = vmatprep.subr.mxu0 0.0
  %5984 = vmatpush1.msra.mxu0 0.0
  %5985 = vmatprep.subr.mxu0 0.0
  %5986 = vmatpush1.msra.mxu0 0.0
  %5987 = vmatprep.subr.mxu0 0.0
  %5988 = vmatpush1.msra.mxu0 0.0
  %5989 = vmatprep.subr.mxu0 0.0
  %5990 = vmatpush1.msra.mxu0 0.0
  %5991 = vmatprep.subr.mxu0 0.0
  %5992 = vmatpush1.msra.mxu0 0.0
  %5993 = vmatprep.subr.mxu0 0.0
  %5994 = vmatpush1.msra.mxu0 0.0
  %5995 = vmatprep.subr.mxu0 0.0
  %5996 = vmatpush1.msra.mxu0 0.0
  %5997 = vmatprep.subr.mxu0 0.0
  %5998 = vmatpush1.msra.mxu0 0.0
  %5999 = vmatprep.subr.mxu0 0.0
  %6000 = vmatpush1.msra.mxu0 0.0
  %6001 = vmatprep.subr.mxu0 0.0
  %6002 = vmatpush1.msra.mxu0 0.0
  %6003 = vmatprep.subr.mxu0 0.0
  %6004 = vmatpush1.msra.mxu0 0.0
  %6005 = vmatprep.subr.mxu0 0.0
  %6006 = vmatpush1.msra.mxu0 0.0
  %6007 = vmatprep.subr.mxu0 0.0
  %6008 = vmatpush1.msra.mxu0 0.0
  %6009 = vmatprep.subr.mxu0 0.0
  %6010 = vmatpush1.msra.mxu0 0.0
  %6011 = vmatprep.subr.mxu0 0.0
  %6012 = vmatpush1.msra.mxu0 0.0
  %6013 = vmatprep.subr.mxu0 0.0
  %6014 = vmatpush1.msra.mxu0 0.0
  %6015 = vmatprep.mubr.f32.mxu0 0.0
  %6016 = vmatmul.mubr.f32.gmra.mrb[0].mxu0 %v4162
  %v6017 = vpop.f32.mrb[0].mxu0
  %v6018 = vadd.f32 1e-05, %v6017
  %v6019 = vpop.f32.mrb[0].mxu0
  %v6020 = vadd.f32 1e-05, %v6019
  %6021 = vdwg.mxu0
  %6022 = vmatprep.subr.mxu0 %v5949
  %6023 = vmatpush1.msra.mxu0 %v5946
  %6024 = vmatprep.subr.mxu0 0.0
  %6025 = vmatpush1.msra.mxu0 0.0
  %6026 = vmatprep.subr.mxu0 0.0
  %6027 = vmatpush1.msra.mxu0 0.0
  %6028 = vmatprep.subr.mxu0 0.0
  %6029 = vmatpush1.msra.mxu0 0.0
  %6030 = vmatprep.subr.mxu0 0.0
  %6031 = vmatpush1.msra.mxu0 0.0
  %6032 = vmatprep.subr.mxu0 0.0
  %6033 = vmatpush1.msra.mxu0 0.0
  %6034 = vmatprep.subr.mxu0 0.0
  %6035 = vmatpush1.msra.mxu0 0.0
  %6036 = vmatprep.subr.mxu0 0.0
  %6037 = vmatpush1.msra.mxu0 0.0
  %6038 = vmatprep.subr.mxu0 0.0
  %6039 = vmatpush1.msra.mxu0 0.0
  %6040 = vmatprep.subr.mxu0 0.0
  %6041 = vmatpush1.msra.mxu0 0.0
  %6042 = vmatprep.subr.mxu0 0.0
  %6043 = vmatpush1.msra.mxu0 0.0
  %6044 = vmatprep.subr.mxu0 0.0
  %6045 = vmatpush1.msra.mxu0 0.0
  %6046 = vmatprep.subr.mxu0 0.0
  %6047 = vmatpush1.msra.mxu0 0.0
  %6048 = vmatprep.subr.mxu0 0.0
  %6049 = vmatpush1.msra.mxu0 0.0
  %6050 = vmatprep.subr.mxu0 0.0
  %6051 = vmatpush1.msra.mxu0 0.0
  %6052 = vmatprep.subr.mxu0 0.0
  %6053 = vmatpush1.msra.mxu0 0.0
  %6054 = vmatprep.subr.mxu0 0.0
  %6055 = vmatpush1.msra.mxu0 0.0
  %6056 = vmatprep.subr.mxu0 0.0
  %6057 = vmatpush1.msra.mxu0 0.0
  %6058 = vmatprep.subr.mxu0 0.0
  %6059 = vmatpush1.msra.mxu0 0.0
  %6060 = vmatprep.subr.mxu0 0.0
  %6061 = vmatpush1.msra.mxu0 0.0
  %6062 = vmatprep.subr.mxu0 0.0
  %6063 = vmatpush1.msra.mxu0 0.0
  %6064 = vmatprep.subr.mxu0 0.0
  %6065 = vmatpush1.msra.mxu0 0.0
  %6066 = vmatprep.subr.mxu0 0.0
  %6067 = vmatpush1.msra.mxu0 0.0
  %6068 = vmatprep.subr.mxu0 0.0
  %6069 = vmatpush1.msra.mxu0 0.0
  %6070 = vmatprep.subr.mxu0 0.0
  %6071 = vmatpush1.msra.mxu0 0.0
  %6072 = vmatprep.subr.mxu0 0.0
  %6073 = vmatpush1.msra.mxu0 0.0
  %6074 = vmatprep.subr.mxu0 0.0
  %6075 = vmatpush1.msra.mxu0 0.0
  %6076 = vmatprep.subr.mxu0 0.0
  %6077 = vmatpush1.msra.mxu0 0.0
  %6078 = vmatprep.subr.mxu0 0.0
  %6079 = vmatpush1.msra.mxu0 0.0
  %6080 = vmatprep.subr.mxu0 0.0
  %6081 = vmatpush1.msra.mxu0 0.0
  %6082 = vmatprep.subr.mxu0 0.0
  %6083 = vmatpush1.msra.mxu0 0.0
  %6084 = vmatprep.subr.mxu0 0.0
  %6085 = vmatpush1.msra.mxu0 0.0
  %6086 = vmatprep.mubr.f32.mxu0 0.0
  %6087 = vmatmul.mubr.f32.gmra.mrb[0].mxu0 %v4162
  %v6088 = vpop.f32.mrb[0].mxu0
  %v6089 = vadd.f32 1e-05, %v6088
  %v6090 = vpop.f32.mrb[0].mxu0
  %v6091 = vadd.f32 1e-05, %v6090
  %6092 = vdwg.mxu0
  %v6093 = vrsqrt.pop %v6018
  %v6094 = vrsqrt.pop %v6020
  %v6095 = vrsqrt.pop %v6089
  %v6096 = vrsqrt.pop %v6091
  %v6097 = vmul.f32 %v5935, %v6093
  %v6098 = vmul.f32 %v5936, %v6094
  %v6099 = vmul.f32 %v5937, %v6095
  %v6100 = vmul.f32 %v5938, %v6096
  %v6101 = vlaneseq
  %v6102 = vshrl.u32 %v6101, 7
  %v6103 = vsub.s32 4, %v6102
  %v6104 = vrot.slane %v23, %v6103
  %v6105 = vlaneseq
  %v6106 = vshrl.u32 %v6105, 7
  %v6107 = vsub.s32 4, %v6106
  %v6108 = vrot.slane %v24, %v6107
  %v6109 = vlaneseq
  %v6110 = vshrl.u32 %v6109, 7
  %v6111 = vsub.s32 4, %v6110
  %v6112 = vrot.slane %v25, %v6111
  %v6113 = vlaneseq
  %v6114 = vshrl.u32 %v6113, 7
  %v6115 = vsub.s32 4, %v6114
  %v6116 = vrot.slane %v26, %v6115
  %v6117 = vmul.f32 %v6097, %v6104
  %v6118 = vmul.f32 %v6098, %v6108
  %v6119 = vmul.f32 %v6099, %v6112
  %v6120 = vmul.f32 %v6100, %v6116
  %v6121 = vlaneseq
  %v6122 = vshrl.u32 %v6121, 7
  %v6123 = vsub.s32 5, %v6122
  %v6124 = vrot.slane %v23, %v6123
  %v6125 = vlaneseq
  %v6126 = vshrl.u32 %v6125, 7
  %v6127 = vsub.s32 5, %v6126
  %v6128 = vrot.slane %v24, %v6127
  %v6129 = vlaneseq
  %v6130 = vshrl.u32 %v6129, 7
  %v6131 = vsub.s32 5, %v6130
  %v6132 = vrot.slane %v25, %v6131
  %v6133 = vlaneseq
  %v6134 = vshrl.u32 %v6133, 7
  %v6135 = vsub.s32 5, %v6134
  %v6136 = vrot.slane %v26, %v6135
  %v6137 = vadd.f32 %v6117, %v6124
  %v6138 = vadd.f32 %v6118, %v6128
  %v6139 = vadd.f32 %v6119, %v6132
  %v6140 = vadd.f32 %v6120, %v6136
  %v6141 = vmax.f32 %v6137, 0.0
  %v6142 = vmax.f32 %v6138, 0.0
  %v6143 = vmax.f32 %v6139, 0.0
  %v6144 = vmax.f32 %v6140, 0.0
  %v6145 = vld [vmem:[%s5] sm:$0xff]
  %v6146 = vld [vmem:[%s5 + $0x8] sm:$0xff]
  %v6147 = vld [vmem:[%s5 + $0x10] sm:$0xff]
  %v6148 = vld [vmem:[%s5 + $0x18] sm:$0xff]
  %v6149 = vmul.f32 %v6141, %v6145
  %v6150 = vmul.f32 %v6142, %v6146
  %v6151 = vmul.f32 %v6143, %v6147
  %v6152 = vmul.f32 %v6144, %v6148
  %v6153 = vpack.c.bf16 %v6149, %v6149
  %v6154 = vpack.c.bf16 %v6150, %v6150
  %v6155 = vpack.c.bf16 %v6151, %v6151
  %v6156 = vpack.c.bf16 %v6152, %v6152
  %v6157 = vld [vmem:[%s3] sm:$0xff]
  %v6158 = vld [vmem:[%s3 + $0x8] sm:$0xff]
  %v6159 = vld [vmem:[%s3 + $0x10] sm:$0xff]
  %v6160 = vld [vmem:[%s3 + $0x18] sm:$0xff]
  %v6161 = vld [vmem:[%s3 + $0x20] sm:$0xff]
  %v6162 = vld [vmem:[%s3 + $0x28] sm:$0xff]
  %v6163 = vld [vmem:[%s3 + $0x30] sm:$0xff]
  %v6164 = vld [vmem:[%s3 + $0x38] sm:$0xff]
  %v6165 = vld [vmem:[%s3 + $0x40] sm:$0xff]
  %v6166 = vld [vmem:[%s3 + $0x48] sm:$0xff]
  %v6167 = vld [vmem:[%s3 + $0x50] sm:$0xff]
  %v6168 = vld [vmem:[%s3 + $0x58] sm:$0xff]
  %v6169 = vld [vmem:[%s3 + $0x60] sm:$0xff]
  %v6170 = vld [vmem:[%s3 + $0x68] sm:$0xff]
  %v6171 = vld [vmem:[%s3 + $0x70] sm:$0xff]
  %v6172 = vld [vmem:[%s3 + $0x78] sm:$0xff]
  %v6173 = vld [vmem:[%s3 + $0x80] sm:$0xff]
  %v6174 = vld [vmem:[%s3 + $0x88] sm:$0xff]
  %v6175 = vld [vmem:[%s3 + $0x90] sm:$0xff]
  %v6176 = vld [vmem:[%s3 + $0x98] sm:$0xff]
  %v6177 = vld [vmem:[%s3 + $0xa0] sm:$0xff]
  %v6178 = vld [vmem:[%s3 + $0xa8] sm:$0xff]
  %v6179 = vld [vmem:[%s3 + $0xb0] sm:$0xff]
  %v6180 = vld [vmem:[%s3 + $0xb8] sm:$0xff]
  %v6181 = vld [vmem:[%s3 + $0xc0] sm:$0xff]
  %v6182 = vld [vmem:[%s3 + $0xc8] sm:$0xff]
  %v6183 = vld [vmem:[%s3 + $0xd0] sm:$0xff]
  %v6184 = vld [vmem:[%s3 + $0xd8] sm:$0xff]
  %v6185 = vld [vmem:[%s3 + $0xe0] sm:$0xff]
  %v6186 = vld [vmem:[%s3 + $0xe8] sm:$0xff]
  %v6187 = vld [vmem:[%s3 + $0xf0] sm:$0xff]
  %v6188 = vld [vmem:[%s3 + $0xf8] sm:$0xff]
  %v6189 = vld [vmem:[%s3 + $0x100] sm:$0xff]
  %v6190 = vld [vmem:[%s3 + $0x108] sm:$0xff]
  %v6191 = vld [vmem:[%s3 + $0x110] sm:$0xff]
  %v6192 = vld [vmem:[%s3 + $0x118] sm:$0xff]
  %v6193 = vld [vmem:[%s3 + $0x120] sm:$0xff]
  %v6194 = vld [vmem:[%s3 + $0x128] sm:$0xff]
  %v6195 = vld [vmem:[%s3 + $0x130] sm:$0xff]
  %v6196 = vld [vmem:[%s3 + $0x138] sm:$0xff]
  %v6197 = vld [vmem:[%s3 + $0x140] sm:$0xff]
  %v6198 = vld [vmem:[%s3 + $0x148] sm:$0xff]
  %v6199 = vld [vmem:[%s3 + $0x150] sm:$0xff]
  %v6200 = vld [vmem:[%s3 + $0x158] sm:$0xff]
  %v6201 = vld [vmem:[%s3 + $0x160] sm:$0xff]
  %v6202 = vld [vmem:[%s3 + $0x168] sm:$0xff]
  %v6203 = vld [vmem:[%s3 + $0x170] sm:$0xff]
  %v6204 = vld [vmem:[%s3 + $0x178] sm:$0xff]
  %v6205 = vld [vmem:[%s3 + $0x180] sm:$0xff]
  %v6206 = vld [vmem:[%s3 + $0x188] sm:$0xff]
  %v6207 = vld [vmem:[%s3 + $0x190] sm:$0xff]
  %v6208 = vld [vmem:[%s3 + $0x198] sm:$0xff]
  %v6209 = vld [vmem:[%s3 + $0x1a0] sm:$0xff]
  %v6210 = vld [vmem:[%s3 + $0x1a8] sm:$0xff]
  %v6211 = vld [vmem:[%s3 + $0x1b0] sm:$0xff]
  %v6212 = vld [vmem:[%s3 + $0x1b8] sm:$0xff]
  %v6213 = vld [vmem:[%s3 + $0x1c0] sm:$0xff]
  %v6214 = vld [vmem:[%s3 + $0x1c8] sm:$0xff]
  %v6215 = vld [vmem:[%s3 + $0x1d0] sm:$0xff]
  %v6216 = vld [vmem:[%s3 + $0x1d8] sm:$0xff]
  %v6217 = vld [vmem:[%s3 + $0x1e0] sm:$0xff]
  %v6218 = vld [vmem:[%s3 + $0x1e8] sm:$0xff]
  %v6219 = vld [vmem:[%s3 + $0x1f0] sm:$0xff]
  %v6220 = vld [vmem:[%s3 + $0x1f8] sm:$0xff]
  %v6221 = vlaneseq
  %v6222 = vshrl.u32 %v6221, 7
  %v6223 = vsub.s32 6, %v6222
  %v6224 = vrot.slane %v23, %v6223
  %v6225 = vlaneseq
  %v6226 = vshrl.u32 %v6225, 7
  %v6227 = vsub.s32 6, %v6226
  %v6228 = vrot.slane %v24, %v6227
  %v6293 = vunpack.c.l.b16 %v6157
  %v6294 = vunpack.c.h.b16 %v6157
  %v6295 = vunpack.c.l.b16 %v6158
  %v6296 = vunpack.c.h.b16 %v6158
  %v6297 = vunpack.c.l.b16 %v6159
  %v6298 = vunpack.c.h.b16 %v6159
  %v6299 = vunpack.c.l.b16 %v6160
  %v6300 = vunpack.c.h.b16 %v6160
  %v6301 = vunpack.c.l.b16 %v6161
  %v6302 = vunpack.c.h.b16 %v6161
  %v6303 = vunpack.c.l.b16 %v6162
  %v6304 = vunpack.c.h.b16 %v6162
  %v6305 = vunpack.c.l.b16 %v6163
  %v6306 = vunpack.c.h.b16 %v6163
  %v6307 = vunpack.c.l.b16 %v6164
  %v6308 = vunpack.c.h.b16 %v6164
  %v6309 = vunpack.c.l.b16 %v6165
  %v6310 = vunpack.c.h.b16 %v6165
  %v6311 = vunpack.c.l.b16 %v6166
  %v6312 = vunpack.c.h.b16 %v6166
  %v6313 = vunpack.c.l.b16 %v6167
  %v6314 = vunpack.c.h.b16 %v6167
  %v6315 = vunpack.c.l.b16 %v6168
  %v6316 = vunpack.c.h.b16 %v6168
  %v6317 = vunpack.c.l.b16 %v6169
  %v6318 = vunpack.c.h.b16 %v6169
  %v6319 = vunpack.c.l.b16 %v6170
  %v6320 = vunpack.c.h.b16 %v6170
  %v6321 = vunpack.c.l.b16 %v6171
  %v6322 = vunpack.c.h.b16 %v6171
  %v6323 = vunpack.c.l.b16 %v6172
  %v6324 = vunpack.c.h.b16 %v6172
  %v6325 = vunpack.c.l.b16 %v6173
  %v6326 = vunpack.c.h.b16 %v6173
  %v6327 = vunpack.c.l.b16 %v6174
  %v6328 = vunpack.c.h.b16 %v6174
  %v6329 = vunpack.c.l.b16 %v6175
  %v6330 = vunpack.c.h.b16 %v6175
  %v6331 = vunpack.c.l.b16 %v6176
  %v6332 = vunpack.c.h.b16 %v6176
  %v6333 = vunpack.c.l.b16 %v6177
  %v6334 = vunpack.c.h.b16 %v6177
  %v6335 = vunpack.c.l.b16 %v6178
  %v6336 = vunpack.c.h.b16 %v6178
  %v6337 = vunpack.c.l.b16 %v6179
  %v6338 = vunpack.c.h.b16 %v6179
  %v6339 = vunpack.c.l.b16 %v6180
  %v6340 = vunpack.c.h.b16 %v6180
  %v6341 = vunpack.c.l.b16 %v6181
  %v6342 = vunpack.c.h.b16 %v6181
  %v6343 = vunpack.c.l.b16 %v6182
  %v6344 = vunpack.c.h.b16 %v6182
  %v6345 = vunpack.c.l.b16 %v6183
  %v6346 = vunpack.c.h.b16 %v6183
  %v6347 = vunpack.c.l.b16 %v6184
  %v6348 = vunpack.c.h.b16 %v6184
  %v6349 = vunpack.c.l.b16 %v6185
  %v6350 = vunpack.c.h.b16 %v6185
  %v6351 = vunpack.c.l.b16 %v6186
  %v6352 = vunpack.c.h.b16 %v6186
  %v6353 = vunpack.c.l.b16 %v6187
  %v6354 = vunpack.c.h.b16 %v6187
  %v6355 = vunpack.c.l.b16 %v6188
  %v6356 = vunpack.c.h.b16 %v6188
  %v6357 = vunpack.c.l.b16 %v6189
  %v6358 = vunpack.c.h.b16 %v6189
  %v6359 = vunpack.c.l.b16 %v6190
  %v6360 = vunpack.c.h.b16 %v6190
  %v6361 = vunpack.c.l.b16 %v6191
  %v6362 = vunpack.c.h.b16 %v6191
  %v6363 = vunpack.c.l.b16 %v6192
  %v6364 = vunpack.c.h.b16 %v6192
  %v6365 = vunpack.c.l.b16 %v6193
  %v6366 = vunpack.c.h.b16 %v6193
  %v6367 = vunpack.c.l.b16 %v6194
  %v6368 = vunpack.c.h.b16 %v6194
  %v6369 = vunpack.c.l.b16 %v6195
  %v6370 = vunpack.c.h.b16 %v6195
  %v6371 = vunpack.c.l.b16 %v6196
  %v6372 = vunpack.c.h.b16 %v6196
  %v6373 = vunpack.c.l.b16 %v6197
  %v6374 = vunpack.c.h.b16 %v6197
  %v6375 = vunpack.c.l.b16 %v6198
  %v6376 = vunpack.c.h.b16 %v6198
  %v6377 = vunpack.c.l.b16 %v6199
  %v6378 = vunpack.c.h.b16 %v6199
  %v6379 = vunpack.c.l.b16 %v6200
  %v6380 = vunpack.c.h.b16 %v6200
  %v6381 = vunpack.c.l.b16 %v6201
  %v6382 = vunpack.c.h.b16 %v6201
  %v6383 = vunpack.c.l.b16 %v6202
  %v6384 = vunpack.c.h.b16 %v6202
  %v6385 = vunpack.c.l.b16 %v6203
  %v6386 = vunpack.c.h.b16 %v6203
  %v6387 = vunpack.c.l.b16 %v6204
  %v6388 = vunpack.c.h.b16 %v6204
  %v6389 = vunpack.c.l.b16 %v6205
  %v6390 = vunpack.c.h.b16 %v6205
  %v6391 = vunpack.c.l.b16 %v6206
  %v6392 = vunpack.c.h.b16 %v6206
  %v6393 = vunpack.c.l.b16 %v6207
  %v6394 = vunpack.c.h.b16 %v6207
  %v6395 = vunpack.c.l.b16 %v6208
  %v6396 = vunpack.c.h.b16 %v6208
  %v6397 = vunpack.c.l.b16 %v6209
  %v6398 = vunpack.c.h.b16 %v6209
  %v6399 = vunpack.c.l.b16 %v6210
  %v6400 = vunpack.c.h.b16 %v6210
  %v6401 = vunpack.c.l.b16 %v6211
  %v6402 = vunpack.c.h.b16 %v6211
  %v6403 = vunpack.c.l.b16 %v6212
  %v6404 = vunpack.c.h.b16 %v6212
  %v6405 = vunpack.c.l.b16 %v6213
  %v6406 = vunpack.c.h.b16 %v6213
  %v6407 = vunpack.c.l.b16 %v6214
  %v6408 = vunpack.c.h.b16 %v6214
  %v6409 = vunpack.c.l.b16 %v6215
  %v6410 = vunpack.c.h.b16 %v6215
  %v6411 = vunpack.c.l.b16 %v6216
  %v6412 = vunpack.c.h.b16 %v6216
  %v6413 = vunpack.c.l.b16 %v6217
  %v6414 = vunpack.c.h.b16 %v6217
  %v6415 = vunpack.c.l.b16 %v6218
  %v6416 = vunpack.c.h.b16 %v6218
  %v6417 = vunpack.c.l.b16 %v6219
  %v6418 = vunpack.c.h.b16 %v6219
  %v6419 = vunpack.c.l.b16 %v6220
  %v6420 = vunpack.c.h.b16 %v6220
  %v6421 = vpack.c.b16 %v6295, %v6293
  %v6422 = vpack.c.b16 %v6296, %v6294
  %v6423 = vpack.c.b16 %v6299, %v6297
  %v6424 = vpack.c.b16 %v6300, %v6298
  %v6425 = vpack.c.b16 %v6303, %v6301
  %v6426 = vpack.c.b16 %v6304, %v6302
  %v6427 = vpack.c.b16 %v6307, %v6305
  %v6428 = vpack.c.b16 %v6308, %v6306
  %v6429 = vpack.c.b16 %v6311, %v6309
  %v6430 = vpack.c.b16 %v6312, %v6310
  %v6431 = vpack.c.b16 %v6315, %v6313
  %v6432 = vpack.c.b16 %v6316, %v6314
  %v6433 = vpack.c.b16 %v6319, %v6317
  %v6434 = vpack.c.b16 %v6320, %v6318
  %v6435 = vpack.c.b16 %v6323, %v6321
  %v6436 = vpack.c.b16 %v6324, %v6322
  %v6437 = vpack.c.b16 %v6327, %v6325
  %v6438 = vpack.c.b16 %v6328, %v6326
  %v6439 = vpack.c.b16 %v6331, %v6329
  %v6440 = vpack.c.b16 %v6332, %v6330
  %v6441 = vpack.c.b16 %v6335, %v6333
  %v6442 = vpack.c.b16 %v6336, %v6334
  %v6443 = vpack.c.b16 %v6339, %v6337
  %v6444 = vpack.c.b16 %v6340, %v6338
  %v6445 = vpack.c.b16 %v6343, %v6341
  %v6446 = vpack.c.b16 %v6344, %v6342
  %v6447 = vpack.c.b16 %v6347, %v6345
  %v6448 = vpack.c.b16 %v6348, %v6346
  %v6449 = vpack.c.b16 %v6351, %v6349
  %v6450 = vpack.c.b16 %v6352, %v6350
  %v6451 = vpack.c.b16 %v6355, %v6353
  %v6452 = vpack.c.b16 %v6356, %v6354
  %v6453 = vpack.c.b16 %v6359, %v6357
  %v6454 = vpack.c.b16 %v6360, %v6358
  %v6455 = vpack.c.b16 %v6363, %v6361
  %v6456 = vpack.c.b16 %v6364, %v6362
  %v6457 = vpack.c.b16 %v6367, %v6365
  %v6458 = vpack.c.b16 %v6368, %v6366
  %v6459 = vpack.c.b16 %v6371, %v6369
  %v6460 = vpack.c.b16 %v6372, %v6370
  %v6461 = vpack.c.b16 %v6375, %v6373
  %v6462 = vpack.c.b16 %v6376, %v6374
  %v6463 = vpack.c.b16 %v6379, %v6377
  %v6464 = vpack.c.b16 %v6380, %v6378
  %v6465 = vpack.c.b16 %v6383, %v6381
  %v6466 = vpack.c.b16 %v6384, %v6382
  %v6467 = vpack.c.b16 %v6387, %v6385
  %v6468 = vpack.c.b16 %v6388, %v6386
  %v6469 = vpack.c.b16 %v6391, %v6389
  %v6470 = vpack.c.b16 %v6392, %v6390
  %v6471 = vpack.c.b16 %v6395, %v6393
  %v6472 = vpack.c.b16 %v6396, %v6394
  %v6473 = vpack.c.b16 %v6399, %v6397
  %v6474 = vpack.c.b16 %v6400, %v6398
  %v6475 = vpack.c.b16 %v6403, %v6401
  %v6476 = vpack.c.b16 %v6404, %v6402
  %v6477 = vpack.c.b16 %v6407, %v6405
  %v6478 = vpack.c.b16 %v6408, %v6406
  %v6479 = vpack.c.b16 %v6411, %v6409
  %v6480 = vpack.c.b16 %v6412, %v6410
  %v6481 = vpack.c.b16 %v6415, %v6413
  %v6482 = vpack.c.b16 %v6416, %v6414
  %v6483 = vpack.c.b16 %v6419, %v6417
  %v6484 = vpack.c.b16 %v6420, %v6418
  %6549 = vmatprep.subr.bf16.mxu0 %v6422
  %6550 = vmatpush1.bf16.msra.mxu0 %v6421
  %6551 = vmatprep.subr.bf16.mxu0 %v6424
  %6552 = vmatpush1.bf16.msra.mxu0 %v6423
  %6553 = vmatprep.subr.bf16.mxu0 %v6426
  %6554 = vmatpush1.bf16.msra.mxu0 %v6425
  %6555 = vmatprep.subr.bf16.mxu0 %v6428
  %6556 = vmatpush1.bf16.msra.mxu0 %v6427
  %6557 = vmatprep.subr.bf16.mxu0 %v6430
  %6558 = vmatpush1.bf16.msra.mxu0 %v6429
  %6559 = vmatprep.subr.bf16.mxu0 %v6432
  %6560 = vmatpush1.bf16.msra.mxu0 %v6431
  %6561 = vmatprep.subr.bf16.mxu0 %v6434
  %6562 = vmatpush1.bf16.msra.mxu0 %v6433
  %6563 = vmatprep.subr.bf16.mxu0 %v6436
  %6564 = vmatpush1.bf16.msra.mxu0 %v6435
  %6565 = vmatprep.subr.bf16.mxu0 %v6438
  %6566 = vmatpush1.bf16.msra.mxu0 %v6437
  %6567 = vmatprep.subr.bf16.mxu0 %v6440
  %6568 = vmatpush1.bf16.msra.mxu0 %v6439
  %6569 = vmatprep.subr.bf16.mxu0 %v6442
  %6570 = vmatpush1.bf16.msra.mxu0 %v6441
  %6571 = vmatprep.subr.bf16.mxu0 %v6444
  %6572 = vmatpush1.bf16.msra.mxu0 %v6443
  %6573 = vmatprep.subr.bf16.mxu0 %v6446
  %6574 = vmatpush1.bf16.msra.mxu0 %v6445
  %6575 = vmatprep.subr.bf16.mxu0 %v6448
  %6576 = vmatpush1.bf16.msra.mxu0 %v6447
  %6577 = vmatprep.subr.bf16.mxu0 %v6450
  %6578 = vmatpush1.bf16.msra.mxu0 %v6449
  %6579 = vmatprep.subr.bf16.mxu0 %v6452
  %6580 = vmatpush1.bf16.msra.mxu0 %v6451
  %6581 = vmatprep.mubr.bf16.mxu0 %v6154
  %6582 = vmatmul.mubr.bf16.gmra.mrb[0].mxu0 %v6153
  %v6583 = vpop.f32.mrb[0].mxu0
  %v6584 = vadd.f32 %v6224, %v6583
  %v6585 = vpop.f32.mrb[0].mxu0
  %v6586 = vadd.f32 %v6228, %v6585
  %v6587 = vpop.f32.mrb[0].mxu0
  %v6588 = vpop.f32.mrb[0].mxu0
  %6589 = vdwg.mxu0
  %6590 = vmatprep.subr.bf16.mxu0 %v6454
  %6591 = vmatpush1.bf16.msra.mxu0 %v6453
  %6592 = vmatprep.subr.bf16.mxu0 %v6456
  %6593 = vmatpush1.bf16.msra.mxu0 %v6455
  %6594 = vmatprep.subr.bf16.mxu0 %v6458
  %6595 = vmatpush1.bf16.msra.mxu0 %v6457
  %6596 = vmatprep.subr.bf16.mxu0 %v6460
  %6597 = vmatpush1.bf16.msra.mxu0 %v6459
  %6598 = vmatprep.subr.bf16.mxu0 %v6462
  %6599 = vmatpush1.bf16.msra.mxu0 %v6461
  %6600 = vmatprep.subr.bf16.mxu0 %v6464
  %6601 = vmatpush1.bf16.msra.mxu0 %v6463
  %6602 = vmatprep.subr.bf16.mxu0 %v6466
  %6603 = vmatpush1.bf16.msra.mxu0 %v6465
  %6604 = vmatprep.subr.bf16.mxu0 %v6468
  %6605 = vmatpush1.bf16.msra.mxu0 %v6467
  %6606 = vmatprep.subr.bf16.mxu0 %v6470
  %6607 = vmatpush1.bf16.msra.mxu0 %v6469
  %6608 = vmatprep.subr.bf16.mxu0 %v6472
  %6609 = vmatpush1.bf16.msra.mxu0 %v6471
  %6610 = vmatprep.subr.bf16.mxu0 %v6474
  %6611 = vmatpush1.bf16.msra.mxu0 %v6473
  %6612 = vmatprep.subr.bf16.mxu0 %v6476
  %6613 = vmatpush1.bf16.msra.mxu0 %v6475
  %6614 = vmatprep.subr.bf16.mxu0 %v6478
  %6615 = vmatpush1.bf16.msra.mxu0 %v6477
  %6616 = vmatprep.subr.bf16.mxu0 %v6480
  %6617 = vmatpush1.bf16.msra.mxu0 %v6479
  %6618 = vmatprep.subr.bf16.mxu0 %v6482
  %6619 = vmatpush1.bf16.msra.mxu0 %v6481
  %6620 = vmatprep.subr.bf16.mxu0 %v6484
  %6621 = vmatpush1.bf16.msra.mxu0 %v6483
  %6622 = vmatprep.mubr.bf16.mxu0 %v6156
  %6623 = vmatmul.mubr.bf16.gmra.mrb[0].mxu0 %v6155
  %v6624 = vpop.f32.mrb[0].mxu0
  %v6625 = vadd.f32 %v6584, %v6624
  %v6626 = vpop.f32.mrb[0].mxu0
  %v6627 = vadd.f32 %v6586, %v6626
  %v6628 = vpop.f32.mrb[0].mxu0
  %v6629 = vpop.f32.mrb[0].mxu0
  %6630 = vdwg.mxu0
  %6631 = vst [vmem:[%s6] sm:$0xff] %v6625
  %6632 = vst [vmem:[%s6 + $0x8] sm:$0xff] %v6627
  // Predicated region
  $region26: #{cnn_encoder_forward.3} parent=0 // pred_check
    _
  $region27: #{cnn_encoder_forward.3} parent=0 // pred_check_branch
    %6634 = sbr.rel (0) target = $region29
  $region28: #{cnn_encoder_forward.3} parent=0 // pred_region
    _
  $region29: #{cnn_encoder_forward.3} parent=0 // pred_fallthru
    _
  // Predicated region
  $region30: #{cnn_encoder_forward.3} parent=0 // pred_check
    _
  $region31: #{cnn_encoder_forward.3} parent=0 // pred_check_branch
    %6636 = sbr.rel (0) target = $region33
  $region32: #{cnn_encoder_forward.3} parent=0 // pred_region
    _
  $region33: #{cnn_encoder_forward.3} parent=0 // pred_fallthru
    _

</llo_original>
